<compile_context>
chip_gen: v7x
topology: tpu7x:2x2x1
jax: 0.10.0
libtpu: 0.0.40
codegen_flags: <defaults>
</compile_context>

<pallas_src>
import functools

import jax
import jax.numpy as jnp
from jax.experimental import pallas as pl
from jax.experimental.pallas import tpu as pltpu

BN_EPS = 1e-5
N_BLOCKS = 3
CPAD = 128                  # every conv channel dim padded to one 128-lane column
WPAD = 2 * CPAD             # fused layer1 output: main in lanes [0,128), skip in [128,256)
AUX_BLOCK_ROWS = 8          # aux-slab rows reserved per conv block (and for MLP biases)
_VMEM = pl.BlockSpec(memory_space=pltpu.MemorySpace.VMEM)


# ---------------------------------------------------------------- fused model kernel
def _fused_model_kernel(x_ref, wb0_ref, wb1_ref, wb2_ref, mw_ref, aux_ref, o_ref,
                        *, B, L0, pool, K, n_mlp, d_out):
    pad_l = (K - 1) // 2
    offsets = [k - pad_l for k in range(K)]
    w_refs = (wb0_ref, wb1_ref, wb2_ref)

    h2 = x_ref[...].astype(jnp.float32)            # [B*L0, cin0]  (NLC, rows flattened)
    L = L0

    for blk in range(N_BLOCKS):
        w_ref = w_refs[blk]
        n = B * L
        inv_n = 1.0 / n

        # Hoisted ONCE per block; reused by all 3 convs / 4 BN applications.
        ones_row = jnp.ones((1, n), jnp.float32)                    # MXU row-reducer
        pos = jax.lax.broadcasted_iota(jnp.int32, (n, 1), 0) % L    # position in sequence
        edge_ok = {o: jnp.logical_and(pos + o >= 0, pos + o < L)
                   for o in offsets if o != 0}

        r = AUX_BLOCK_ROWS * blk
        bias1 = aux_ref[r + 0:r + 1, :]             # [1, 256] fused (layer1 | skip) bias
        bias2 = aux_ref[r + 1:r + 2, :CPAD]
        bias3 = aux_ref[r + 2:r + 3, :CPAD]
        gamma = aux_ref[r + 3:r + 4, :CPAD]
        beta = aux_ref[r + 4:r + 5, :CPAD]

        def bn(v):
            # Training-mode BatchNorm1d.  Both row-reductions go through the
            # (otherwise idle) MXU instead of the XLU; f32 operands keep the
            # statistics at full precision.
            s = jnp.dot(ones_row, v, preferred_element_type=jnp.float32)
            s2 = jnp.dot(ones_row, v * v, preferred_element_type=jnp.float32)
            mean = s * inv_n
            var = s2 * inv_n - mean * mean                      # biased variance
            return (v - mean) * (jax.lax.rsqrt(var + BN_EPS) * gamma) + beta

        def conv(v, row0, width):
            # 'same' conv as K per-tap matmuls accumulated in f32 — no lane-axis
            # im2col concatenate.  Rolls / masks / adds stay f32 (v5e has no
            # bf16 VALU); only the MXU operands are bf16 (weights already are).
            cin = v.shape[1]
            acc = None
            for k, o in enumerate(offsets):
                if o == 0:
                    tap = v
                else:
                    tap = jnp.where(edge_ok[o],
                                    pltpu.roll(v, shift=(-o) % n, axis=0), 0.0)
                wk = w_ref[row0 + k * cin:row0 + (k + 1) * cin, :width]
                y = jnp.dot(tap.astype(jnp.bfloat16), wk,
                            preferred_element_type=jnp.float32)
                acc = y if acc is None else acc + y
            return acc

        cin1 = h2.shape[1]
        off2 = K * cin1
        off3 = off2 + K * CPAD

        # layer1 and the 1x1 skip conv share one fused matmul; skip columns start
        # at lane 128, so both slices below are whole vreg-column selects.
        h1s = conv(h2, 0, WPAD) + bias1                      # [n, 256]
        skip = bn(h1s[:, CPAD:])
        h = jnp.maximum(bn(h1s[:, :CPAD]), 0.0)
        h = jnp.maximum(bn(conv(h, off2, CPAD) + bias2), 0.0)
        h = bn(conv(h, off3, CPAD) + bias3)
        h = jnp.maximum(h + skip, 0.0)

        # AvgPool1d(pool, pool): trailing remainder dropped (torch semantics).
        lp = L // pool
        hv = h.reshape(B, L, CPAD)
        if lp * pool != L:
            hv = hv[:, :lp * pool, :]
        h2 = jnp.mean(hv.reshape(B, lp, pool, CPAD), axis=2).reshape(B * lp, CPAD)
        L = lp

    # nn.Flatten(1, 2): the first MLP weight's rows were pre-permuted to the NLC
    # flatten order at prep time, so flatten directly (no runtime transpose).
    h = h2.reshape(B, L * CPAD)
    # TODO(synk): nn.Dropout is stochastic in training mode; applied as identity (eval).
    row = 0
    for i in range(n_mlp):
        in_rows = L * CPAD if i == 0 else CPAD
        w = mw_ref[row:row + in_rows, :]                     # [in_rows, 128] bf16
        row += in_rows
        b = aux_ref[N_BLOCKS * AUX_BLOCK_ROWS + i:
                    N_BLOCKS * AUX_BLOCK_ROWS + i + 1, :CPAD]
        h = jnp.dot(h.astype(jnp.bfloat16), w, preferred_element_type=jnp.float32) + b
        if i < n_mlp - 1:
            h = jnp.maximum(h, 0.0)
    logits = h[:, :d_out]
    # sigmoid: exp + approx reciprocal both run on the EUP slot.
    o_ref[...] = pl.reciprocal(1.0 + jnp.exp(-logits), approx=True).astype(o_ref.dtype)


# ---------------------------------------------------------------- parameter packing
def prepare_params(params, kernel_size, seq_length, pool_size, d_input):
    """One-time weight preprocessing:
    - conv taps laid out for per-tap matmuls; the 1x1 skip conv fused into
      layer1's matmul with its output columns starting at lane 128,
    - every conv channel dim zero-padded to 128 lanes (gamma pad = 1, rest = 0),
    - MXU-side weights converted to bf16 here (activations cast at the dot),
    - everything packed into 5 slabs (3 block weight slabs, 1 MLP weight slab,
      1 aux slab for all biases/gamma/beta) -> ~6 DMAs instead of ~27,
    - first MLP weight's rows permuted from torch's channel-major flatten order
      to the kernel's NLC flatten order.
    """
    K = kernel_size
    pad_l = (K - 1) // 2
    cin0 = max(16, ((d_input + 15) // 16) * 16)   # 16-aligned (bf16 sublane tiling)

    w_slabs, aux_blocks = [], []
    for bi, name in enumerate(("conv1", "conv2", "conv3")):
        p = params[name]
        k_, cin_real, cout = p["w1"].shape
        assert k_ == K and cout <= CPAD
        cin1 = cin0 if bi == 0 else CPAD
        rows = K * cin1 + 2 * K * CPAD
        slab = jnp.zeros((rows, WPAD), jnp.float32)
        for k in range(K):
            r0 = k * cin1
            slab = slab.at[r0:r0 + cin_real, :cout].set(p["w1"][k])
            if k == pad_l:   # 1x1 skip conv lives in the centre tap, lanes [128,128+cout)
                slab = slab.at[r0:r0 + cin_real, CPAD:CPAD + cout].set(p["ws"][0])
        off2 = K * cin1
        off3 = off2 + K * CPAD
        for k in range(K):
            slab = slab.at[off2 + k * CPAD:off2 + k * CPAD + cout, :cout].set(p["w2"][k])
            slab = slab.at[off3 + k * CPAD:off3 + k * CPAD + cout, :cout].set(p["w3"][k])
        w_slabs.append(slab.astype(jnp.bfloat16))

        blk = jnp.zeros((AUX_BLOCK_ROWS, WPAD), jnp.float32)
        blk = blk.at[0, :cout].set(p["b1"][0])
        blk = blk.at[0, CPAD:CPAD + cout].set(p["bs"][0])
        blk = blk.at[1, :cout].set(p["b2"][0])
        blk = blk.at[2, :cout].set(p["b3"][0])
        blk = blk.at[3, :CPAD].set(1.0)          # gamma padding (value irrelevant)
        blk = blk.at[3, :cout].set(p["gamma"][0])
        blk = blk.at[4, :cout].set(p["beta"][0])
        aux_blocks.append(blk)

    # ---- MLP ----
    lf = seq_length // pool_size ** 3
    C = params["conv3"]["w1"].shape[2]
    assert C == CPAD, "conv3 output width must equal the 128-lane padding"
    mlp_w, mlp_b = params["mlp_w"], params["mlp_b"]
    n_mlp = len(mlp_w)
    assert n_mlp <= AUX_BLOCK_ROWS
    d_out = mlp_w[-1].shape[1]

    # torch channel-major flatten index c*lf + l  ->  kernel NLC index l*C + c
    w0 = mlp_w[0]
    d_h0 = w0.shape[1]
    w0_nlc = w0.reshape(C, lf, d_h0).transpose(1, 0, 2).reshape(lf * C, d_h0)

    rows_mlp = lf * CPAD + (n_mlp - 1) * CPAD
    mslab = jnp.zeros((rows_mlp, CPAD), jnp.float32)
    r = 0
    for i in range(n_mlp):
        w = w0_nlc if i == 0 else mlp_w[i]
        di, do = w.shape
        assert do <= CPAD
        mslab = mslab.at[r:r + di, :do].set(w)
        r += lf * CPAD if i == 0 else CPAD
    mlp_slab = mslab.astype(jnp.bfloat16)

    mblk = jnp.zeros((AUX_BLOCK_ROWS, WPAD), jnp.float32)
    for i in range(n_mlp):
        b = mlp_b[i][0]
        mblk = mblk.at[i, :b.shape[0]].set(b)
    aux_slab = jnp.concatenate(aux_blocks + [mblk], axis=0)   # [(3+1)*8, 256] f32

    return w_slabs, mlp_slab, aux_slab, cin0, n_mlp, d_out


# ---------------------------------------------------------------- wrapper
def model_forward(data, w_slabs, mlp_slab, aux_slab, *, pool_size, kernel_size,
                  n_mlp, d_out, cin0):
    """Single fused pallas_call: 3x(ConvBlock+pool) -> flatten -> MLP -> sigmoid.

    All slabs + activations total < 2 MiB, so everything stays resident in VMEM
    for the whole call: no grid, no HBM round trips, one kernel launch.
    # TODO(synk): a batch-parallel grid (v7x 2nd TensorCore) only applies when
    # several independent BN batches are evaluated at once; a single batch must
    # stay on one core because training-mode BatchNorm needs full-batch stats.
    """
    B, L0, d_in = data.shape
    x = data
    if d_in < cin0:
        x = jnp.pad(x, ((0, 0), (0, 0), (0, cin0 - d_in)))
    x = x.reshape(B * L0, cin0)

    kernel = functools.partial(_fused_model_kernel, B=B, L0=L0, pool=pool_size,
                               K=kernel_size, n_mlp=n_mlp, d_out=d_out)
    args = [x, *w_slabs, mlp_slab, aux_slab]
    return pl.pallas_call(
        kernel,
        out_shape=jax.ShapeDtypeStruct((B, d_out), data.dtype),
        in_specs=[_VMEM] * len(args),
        out_specs=_VMEM,
    )(*args)


# ---------------------------------------------------------------- deterministic init
def _init_convblock(key, cin, cout, k):
    ks = jax.random.split(key, 8)

    def conv_w(kk, co, ci, ksz):
        w = jax.random.normal(kk, (co, ci, ksz), jnp.float32) * 0.1  # torch [Cout,Cin,K]
        return jnp.transpose(w, (2, 1, 0))                           # kernel [K,Cin,Cout]

    def bias(kk, co):
        return jax.random.normal(kk, (1, co), jnp.float32) * 0.1

    return dict(
        w1=conv_w(ks[0], cout, cin, k), b1=bias(ks[1], cout),
        w2=conv_w(ks[2], cout, cout, k), b2=bias(ks[3], cout),
        w3=conv_w(ks[4], cout, cout, k), b3=bias(ks[5], cout),
        ws=conv_w(ks[6], cout, cin, 1), bs=bias(ks[7], cout),
        gamma=jnp.ones((1, cout), jnp.float32),
        beta=jnp.zeros((1, cout), jnp.float32),
    )


def _init_mlp(key, d_in, d_out, d_hidden, n_layers):
    dims = [d_in] + [d_hidden] * (n_layers - 1) + [d_out]
    ws, bs = [], []
    for i in range(n_layers):
        key, k1, k2 = jax.random.split(key, 3)
        w = jax.random.normal(k1, (dims[i + 1], dims[i]), jnp.float32) * 0.1  # torch [out,in]
        ws.append(jnp.transpose(w))                                           # kernel [in,out]
        bs.append(jax.random.normal(k2, (1, dims[i + 1]), jnp.float32) * 0.1)
    return ws, bs


if __name__ == "__main__":
    seq_length, d_input, kernel_size, pool_size = 16, 4, 3, 2
    d_hidden, n_mlp_layers = 32, 3
    batch = 2

    key = jax.random.PRNGKey(0)
    kx, k1, k2, k3, km = jax.random.split(key, 5)
    data = jax.random.normal(kx, (batch, seq_length, d_input), jnp.float32)

    mlp_input_size = seq_length // pool_size ** 3 * 128
    params = dict(
        conv1=_init_convblock(k1, d_input, 32, kernel_size),
        conv2=_init_convblock(k2, 32, 64, kernel_size),
        conv3=_init_convblock(k3, 64, 128, kernel_size),
    )
    mlp_w, mlp_b = _init_mlp(km, mlp_input_size, 1, d_hidden, n_mlp_layers)
    params["mlp_w"] = mlp_w
    params["mlp_b"] = mlp_b

    w_slabs, mlp_slab, aux_slab, cin0, n_mlp, d_out = prepare_params(
        params, kernel_size, seq_length, pool_size, d_input)
    out = jax.block_until_ready(
        model_forward(data, w_slabs, mlp_slab, aux_slab, pool_size=pool_size,
                      kernel_size=kernel_size, n_mlp=n_mlp, d_out=d_out, cin0=cin0))

    assert out.shape == (batch, 1), out.shape
    assert bool(jnp.all(jnp.isfinite(out)))
    # approx reciprocal can deviate by ~2^-12 relative; allow a hair of slack.
    assert bool(jnp.all((out >= -1e-4) & (out <= 1.0 + 1e-4)))
    print("KERNEL_OK")
</pallas_src>

<mosaic_0001>
module attributes {stable_mosaic.version = 11 : i64} {
  func.func @_fused_model_kernel(%arg0: memref<32x16xf32, #tpu.memory_space<vmem>>, %arg1: memref<816x256xbf16, #tpu.memory_space<vmem>>, %arg2: memref<1152x256xbf16, #tpu.memory_space<vmem>>, %arg3: memref<1152x256xbf16, #tpu.memory_space<vmem>>, %arg4: memref<512x128xbf16, #tpu.memory_space<vmem>>, %arg5: memref<32x256xf32, #tpu.memory_space<vmem>>, %arg6: memref<2x1xf32, #tpu.memory_space<vmem>>) attributes {dimension_semantics = [], scalar_prefetch = 0 : i64, scratch_operands = 0 : i64, tpu.core_type = #tpu.core_type<tc>} {
    %c0 = arith.constant 0 : index
    %c0_0 = arith.constant 0 : index
    %0 = vector.load %arg0[%c0, %c0_0] : memref<32x16xf32, #tpu.memory_space<vmem>>, vector<32x16xf32>
    %cst = arith.constant 1.000000e+00 : f32
    %1 = vector.broadcast %cst : f32 to vector<1x32xf32>
    %2 = tpu.iota {dimensions = array<i32: 0>} : vector<32x1xi32>
    %c16_i32 = arith.constant 16 : i32
    %c0_i32 = arith.constant 0 : i32
    %3 = arith.cmpi eq, %c16_i32, %c0_i32 : i32
    %c1_i32 = arith.constant 1 : i32
    %4 = arith.select %3, %c1_i32, %c16_i32 : i32
    %5 = vector.broadcast %4 : i32 to vector<32x1xi32>
    %6 = arith.remsi %2, %5 : vector<32x1xi32>
    %c0_i32_1 = arith.constant 0 : i32
    %7 = vector.broadcast %c0_i32_1 : i32 to vector<32x1xi32>
    %8 = arith.cmpi ne, %6, %7 : vector<32x1xi32>
    %c0_i32_2 = arith.constant 0 : i32
    %9 = vector.broadcast %c0_i32_2 : i32 to vector<32x1xi32>
    %10 = arith.cmpi slt, %6, %9 : vector<32x1xi32>
    %c0_i32_3 = arith.constant 0 : i32
    %11 = arith.cmpi slt, %4, %c0_i32_3 : i32
    %12 = vector.broadcast %11 : i1 to vector<32x1xi1>
    %13 = vector.broadcast %12 : vector<32x1xi1> to vector<32x1xi1>
    %14 = arith.xori %10, %13 : vector<32x1xi1>
    %15 = arith.andi %14, %8 : vector<32x1xi1>
    %16 = vector.broadcast %4 : i32 to vector<32x1xi32>
    %17 = arith.addi %6, %16 : vector<32x1xi32>
    %18 = arith.select %15, %17, %6 : vector<32x1xi1>, vector<32x1xi32>
    %c-1_i32 = arith.constant -1 : i32
    %19 = vector.broadcast %c-1_i32 : i32 to vector<32x1xi32>
    %20 = arith.addi %18, %19 : vector<32x1xi32>
    %c0_i32_4 = arith.constant 0 : i32
    %21 = vector.broadcast %c0_i32_4 : i32 to vector<32x1xi32>
    %22 = arith.cmpi sge, %20, %21 : vector<32x1xi32>
    %c-1_i32_5 = arith.constant -1 : i32
    %23 = vector.broadcast %c-1_i32_5 : i32 to vector<32x1xi32>
    %24 = arith.addi %18, %23 : vector<32x1xi32>
    %c16_i32_6 = arith.constant 16 : i32
    %25 = vector.broadcast %c16_i32_6 : i32 to vector<32x1xi32>
    %26 = arith.cmpi slt, %24, %25 : vector<32x1xi32>
    %27 = arith.andi %22, %26 : vector<32x1xi1>
    %c1_i32_7 = arith.constant 1 : i32
    %28 = vector.broadcast %c1_i32_7 : i32 to vector<32x1xi32>
    %29 = arith.addi %18, %28 : vector<32x1xi32>
    %c0_i32_8 = arith.constant 0 : i32
    %30 = vector.broadcast %c0_i32_8 : i32 to vector<32x1xi32>
    %31 = arith.cmpi sge, %29, %30 : vector<32x1xi32>
    %c1_i32_9 = arith.constant 1 : i32
    %32 = vector.broadcast %c1_i32_9 : i32 to vector<32x1xi32>
    %33 = arith.addi %18, %32 : vector<32x1xi32>
    %c16_i32_10 = arith.constant 16 : i32
    %34 = vector.broadcast %c16_i32_10 : i32 to vector<32x1xi32>
    %35 = arith.cmpi slt, %33, %34 : vector<32x1xi32>
    %36 = arith.andi %31, %35 : vector<32x1xi1>
    %c0_11 = arith.constant 0 : index
    %c0_12 = arith.constant 0 : index
    %37 = vector.load %arg5[%c0_11, %c0_12] : memref<32x256xf32, #tpu.memory_space<vmem>>, vector<1x256xf32>
    %c1 = arith.constant 1 : index
    %c0_13 = arith.constant 0 : index
    %38 = vector.load %arg5[%c1, %c0_13] : memref<32x256xf32, #tpu.memory_space<vmem>>, vector<1x128xf32>
    %c2 = arith.constant 2 : index
    %c0_14 = arith.constant 0 : index
    %39 = vector.load %arg5[%c2, %c0_14] : memref<32x256xf32, #tpu.memory_space<vmem>>, vector<1x128xf32>
    %c3 = arith.constant 3 : index
    %c0_15 = arith.constant 0 : index
    %40 = vector.load %arg5[%c3, %c0_15] : memref<32x256xf32, #tpu.memory_space<vmem>>, vector<1x128xf32>
    %c4 = arith.constant 4 : index
    %c0_16 = arith.constant 0 : index
    %41 = vector.load %arg5[%c4, %c0_16] : memref<32x256xf32, #tpu.memory_space<vmem>>, vector<1x128xf32>
    %c1_i32_17 = arith.constant 1 : i32
    %42 = tpu.dynamic_rotate %0 by %c1_i32_17 dim 0 : vector<32x16xf32>, i32 -> vector<32x16xf32>
    %cst_18 = arith.constant 0.000000e+00 : f32
    %43 = vector.shape_cast %27 : vector<32x1xi1> to vector<32x1xi1>
    %44 = vector.broadcast %43 : vector<32x1xi1> to vector<32x16xi1>
    %45 = vector.broadcast %cst_18 : f32 to vector<32x16xf32>
    %46 = arith.select %44, %42, %45 : vector<32x16xi1>, vector<32x16xf32>
    %c0_19 = arith.constant 0 : index
    %c0_20 = arith.constant 0 : index
    %47 = vector.load %arg1[%c0_19, %c0_20] : memref<816x256xbf16, #tpu.memory_space<vmem>>, vector<16x256xbf16>
    %48 = arith.truncf %46 : vector<32x16xf32> to vector<32x16xbf16>
    %cst_21 = arith.constant dense<0.000000e+00> : vector<32x256xf32>
    %49 = tpu.matmul %48, %47, %cst_21 {dimension_numbers = #tpu.dot_dimension_numbers<[1], [0], [0], [1], [0, 0, 1, 1], [], []>} : vector<32x16xbf16>, vector<16x256xbf16>, vector<32x256xf32> -> vector<32x256xf32>
    %c16 = arith.constant 16 : index
    %c0_22 = arith.constant 0 : index
    %50 = vector.load %arg1[%c16, %c0_22] : memref<816x256xbf16, #tpu.memory_space<vmem>>, vector<16x256xbf16>
    %51 = arith.truncf %0 : vector<32x16xf32> to vector<32x16xbf16>
    %cst_23 = arith.constant dense<0.000000e+00> : vector<32x256xf32>
    %52 = tpu.matmul %51, %50, %cst_23 {dimension_numbers = #tpu.dot_dimension_numbers<[1], [0], [0], [1], [0, 0, 1, 1], [], []>} : vector<32x16xbf16>, vector<16x256xbf16>, vector<32x256xf32> -> vector<32x256xf32>
    %53 = arith.addf %49, %52 : vector<32x256xf32>
    %c31_i32 = arith.constant 31 : i32
    %54 = tpu.dynamic_rotate %0 by %c31_i32 dim 0 : vector<32x16xf32>, i32 -> vector<32x16xf32>
    %cst_24 = arith.constant 0.000000e+00 : f32
    %55 = vector.shape_cast %36 : vector<32x1xi1> to vector<32x1xi1>
    %56 = vector.broadcast %55 : vector<32x1xi1> to vector<32x16xi1>
    %57 = vector.broadcast %cst_24 : f32 to vector<32x16xf32>
    %58 = arith.select %56, %54, %57 : vector<32x16xi1>, vector<32x16xf32>
    %c32 = arith.constant 32 : index
    %c0_25 = arith.constant 0 : index
    %59 = vector.load %arg1[%c32, %c0_25] : memref<816x256xbf16, #tpu.memory_space<vmem>>, vector<16x256xbf16>
    %60 = arith.truncf %58 : vector<32x16xf32> to vector<32x16xbf16>
    %cst_26 = arith.constant dense<0.000000e+00> : vector<32x256xf32>
    %61 = tpu.matmul %60, %59, %cst_26 {dimension_numbers = #tpu.dot_dimension_numbers<[1], [0], [0], [1], [0, 0, 1, 1], [], []>} : vector<32x16xbf16>, vector<16x256xbf16>, vector<32x256xf32> -> vector<32x256xf32>
    %62 = arith.addf %53, %61 : vector<32x256xf32>
    %63 = vector.broadcast %37 : vector<1x256xf32> to vector<32x256xf32>
    %64 = arith.addf %62, %63 : vector<32x256xf32>
    %65 = vector.extract_strided_slice %64 {offsets = [0, 128], sizes = [32, 128], strides = [1, 1]} : vector<32x256xf32> to vector<32x128xf32>
    %cst_27 = arith.constant dense<0.000000e+00> : vector<1x128xf32>
    %66 = tpu.matmul %1, %65, %cst_27 {dimension_numbers = #tpu.dot_dimension_numbers<[1], [0], [0], [1], [0, 0, 1, 1], [], []>} : vector<1x32xf32>, vector<32x128xf32>, vector<1x128xf32> -> vector<1x128xf32>
    %67 = arith.mulf %65, %65 : vector<32x128xf32>
    %cst_28 = arith.constant dense<0.000000e+00> : vector<1x128xf32>
    %68 = tpu.matmul %1, %67, %cst_28 {dimension_numbers = #tpu.dot_dimension_numbers<[1], [0], [0], [1], [0, 0, 1, 1], [], []>} : vector<1x32xf32>, vector<32x128xf32>, vector<1x128xf32> -> vector<1x128xf32>
    %cst_29 = arith.constant 3.125000e-02 : f32
    %69 = vector.broadcast %cst_29 : f32 to vector<1x128xf32>
    %70 = arith.mulf %66, %69 : vector<1x128xf32>
    %cst_30 = arith.constant 3.125000e-02 : f32
    %71 = vector.broadcast %cst_30 : f32 to vector<1x128xf32>
    %72 = arith.mulf %68, %71 : vector<1x128xf32>
    %73 = arith.mulf %70, %70 : vector<1x128xf32>
    %74 = arith.subf %72, %73 : vector<1x128xf32>
    %75 = vector.broadcast %70 : vector<1x128xf32> to vector<32x128xf32>
    %76 = arith.subf %65, %75 : vector<32x128xf32>
    %cst_31 = arith.constant 9.99999974E-6 : f32
    %77 = vector.broadcast %cst_31 : f32 to vector<1x128xf32>
    %78 = arith.addf %74, %77 : vector<1x128xf32>
    %79 = math.rsqrt %78 : vector<1x128xf32>
    %80 = arith.mulf %79, %40 : vector<1x128xf32>
    %81 = vector.broadcast %80 : vector<1x128xf32> to vector<32x128xf32>
    %82 = arith.mulf %76, %81 : vector<32x128xf32>
    %83 = vector.broadcast %41 : vector<1x128xf32> to vector<32x128xf32>
    %84 = arith.addf %82, %83 : vector<32x128xf32>
    %85 = vector.extract_strided_slice %64 {offsets = [0, 0], sizes = [32, 128], strides = [1, 1]} : vector<32x256xf32> to vector<32x128xf32>
    %cst_32 = arith.constant dense<0.000000e+00> : vector<1x128xf32>
    %86 = tpu.matmul %1, %85, %cst_32 {dimension_numbers = #tpu.dot_dimension_numbers<[1], [0], [0], [1], [0, 0, 1, 1], [], []>} : vector<1x32xf32>, vector<32x128xf32>, vector<1x128xf32> -> vector<1x128xf32>
    %87 = arith.mulf %85, %85 : vector<32x128xf32>
    %cst_33 = arith.constant dense<0.000000e+00> : vector<1x128xf32>
    %88 = tpu.matmul %1, %87, %cst_33 {dimension_numbers = #tpu.dot_dimension_numbers<[1], [0], [0], [1], [0, 0, 1, 1], [], []>} : vector<1x32xf32>, vector<32x128xf32>, vector<1x128xf32> -> vector<1x128xf32>
    %cst_34 = arith.constant 3.125000e-02 : f32
    %89 = vector.broadcast %cst_34 : f32 to vector<1x128xf32>
    %90 = arith.mulf %86, %89 : vector<1x128xf32>
    %cst_35 = arith.constant 3.125000e-02 : f32
    %91 = vector.broadcast %cst_35 : f32 to vector<1x128xf32>
    %92 = arith.mulf %88, %91 : vector<1x128xf32>
    %93 = arith.mulf %90, %90 : vector<1x128xf32>
    %94 = arith.subf %92, %93 : vector<1x128xf32>
    %95 = vector.broadcast %90 : vector<1x128xf32> to vector<32x128xf32>
    %96 = arith.subf %85, %95 : vector<32x128xf32>
    %cst_36 = arith.constant 9.99999974E-6 : f32
    %97 = vector.broadcast %cst_36 : f32 to vector<1x128xf32>
    %98 = arith.addf %94, %97 : vector<1x128xf32>
    %99 = math.rsqrt %98 : vector<1x128xf32>
    %100 = arith.mulf %99, %40 : vector<1x128xf32>
    %101 = vector.broadcast %100 : vector<1x128xf32> to vector<32x128xf32>
    %102 = arith.mulf %96, %101 : vector<32x128xf32>
    %103 = vector.broadcast %41 : vector<1x128xf32> to vector<32x128xf32>
    %104 = arith.addf %102, %103 : vector<32x128xf32>
    %cst_37 = arith.constant 0.000000e+00 : f32
    %105 = vector.broadcast %cst_37 : f32 to vector<32x128xf32>
    %106 = arith.maximumf %104, %105 : vector<32x128xf32>
    %c1_i32_38 = arith.constant 1 : i32
    %107 = tpu.dynamic_rotate %106 by %c1_i32_38 dim 0 : vector<32x128xf32>, i32 -> vector<32x128xf32>
    %cst_39 = arith.constant 0.000000e+00 : f32
    %108 = vector.shape_cast %27 : vector<32x1xi1> to vector<32x1xi1>
    %109 = vector.broadcast %108 : vector<32x1xi1> to vector<32x128xi1>
    %110 = vector.broadcast %cst_39 : f32 to vector<32x128xf32>
    %111 = arith.select %109, %107, %110 : vector<32x128xi1>, vector<32x128xf32>
    %c48 = arith.constant 48 : index
    %c0_40 = arith.constant 0 : index
    %112 = vector.load %arg1[%c48, %c0_40] : memref<816x256xbf16, #tpu.memory_space<vmem>>, vector<128x128xbf16>
    %113 = arith.truncf %111 : vector<32x128xf32> to vector<32x128xbf16>
    %cst_41 = arith.constant dense<0.000000e+00> : vector<32x128xf32>
    %114 = tpu.matmul %113, %112, %cst_41 {dimension_numbers = #tpu.dot_dimension_numbers<[1], [0], [0], [1], [0, 0, 1, 1], [], []>} : vector<32x128xbf16>, vector<128x128xbf16>, vector<32x128xf32> -> vector<32x128xf32>
    %c176 = arith.constant 176 : index
    %c0_42 = arith.constant 0 : index
    %115 = vector.load %arg1[%c176, %c0_42] : memref<816x256xbf16, #tpu.memory_space<vmem>>, vector<128x128xbf16>
    %116 = arith.truncf %106 : vector<32x128xf32> to vector<32x128xbf16>
    %cst_43 = arith.constant dense<0.000000e+00> : vector<32x128xf32>
    %117 = tpu.matmul %116, %115, %cst_43 {dimension_numbers = #tpu.dot_dimension_numbers<[1], [0], [0], [1], [0, 0, 1, 1], [], []>} : vector<32x128xbf16>, vector<128x128xbf16>, vector<32x128xf32> -> vector<32x128xf32>
    %118 = arith.addf %114, %117 : vector<32x128xf32>
    %c31_i32_44 = arith.constant 31 : i32
    %119 = tpu.dynamic_rotate %106 by %c31_i32_44 dim 0 : vector<32x128xf32>, i32 -> vector<32x128xf32>
    %cst_45 = arith.constant 0.000000e+00 : f32
    %120 = vector.shape_cast %36 : vector<32x1xi1> to vector<32x1xi1>
    %121 = vector.broadcast %120 : vector<32x1xi1> to vector<32x128xi1>
    %122 = vector.broadcast %cst_45 : f32 to vector<32x128xf32>
    %123 = arith.select %121, %119, %122 : vector<32x128xi1>, vector<32x128xf32>
    %c304 = arith.constant 304 : index
    %c0_46 = arith.constant 0 : index
    %124 = vector.load %arg1[%c304, %c0_46] : memref<816x256xbf16, #tpu.memory_space<vmem>>, vector<128x128xbf16>
    %125 = arith.truncf %123 : vector<32x128xf32> to vector<32x128xbf16>
    %cst_47 = arith.constant dense<0.000000e+00> : vector<32x128xf32>
    %126 = tpu.matmul %125, %124, %cst_47 {dimension_numbers = #tpu.dot_dimension_numbers<[1], [0], [0], [1], [0, 0, 1, 1], [], []>} : vector<32x128xbf16>, vector<128x128xbf16>, vector<32x128xf32> -> vector<32x128xf32>
    %127 = arith.addf %118, %126 : vector<32x128xf32>
    %128 = vector.broadcast %38 : vector<1x128xf32> to vector<32x128xf32>
    %129 = arith.addf %127, %128 : vector<32x128xf32>
    %cst_48 = arith.constant dense<0.000000e+00> : vector<1x128xf32>
    %130 = tpu.matmul %1, %129, %cst_48 {dimension_numbers = #tpu.dot_dimension_numbers<[1], [0], [0], [1], [0, 0, 1, 1], [], []>} : vector<1x32xf32>, vector<32x128xf32>, vector<1x128xf32> -> vector<1x128xf32>
    %131 = arith.mulf %129, %129 : vector<32x128xf32>
    %cst_49 = arith.constant dense<0.000000e+00> : vector<1x128xf32>
    %132 = tpu.matmul %1, %131, %cst_49 {dimension_numbers = #tpu.dot_dimension_numbers<[1], [0], [0], [1], [0, 0, 1, 1], [], []>} : vector<1x32xf32>, vector<32x128xf32>, vector<1x128xf32> -> vector<1x128xf32>
    %cst_50 = arith.constant 3.125000e-02 : f32
    %133 = vector.broadcast %cst_50 : f32 to vector<1x128xf32>
    %134 = arith.mulf %130, %133 : vector<1x128xf32>
    %cst_51 = arith.constant 3.125000e-02 : f32
    %135 = vector.broadcast %cst_51 : f32 to vector<1x128xf32>
    %136 = arith.mulf %132, %135 : vector<1x128xf32>
    %137 = arith.mulf %134, %134 : vector<1x128xf32>
    %138 = arith.subf %136, %137 : vector<1x128xf32>
    %139 = vector.broadcast %134 : vector<1x128xf32> to vector<32x128xf32>
    %140 = arith.subf %129, %139 : vector<32x128xf32>
    %cst_52 = arith.constant 9.99999974E-6 : f32
    %141 = vector.broadcast %cst_52 : f32 to vector<1x128xf32>
    %142 = arith.addf %138, %141 : vector<1x128xf32>
    %143 = math.rsqrt %142 : vector<1x128xf32>
    %144 = arith.mulf %143, %40 : vector<1x128xf32>
    %145 = vector.broadcast %144 : vector<1x128xf32> to vector<32x128xf32>
    %146 = arith.mulf %140, %145 : vector<32x128xf32>
    %147 = vector.broadcast %41 : vector<1x128xf32> to vector<32x128xf32>
    %148 = arith.addf %146, %147 : vector<32x128xf32>
    %cst_53 = arith.constant 0.000000e+00 : f32
    %149 = vector.broadcast %cst_53 : f32 to vector<32x128xf32>
    %150 = arith.maximumf %148, %149 : vector<32x128xf32>
    %c1_i32_54 = arith.constant 1 : i32
    %151 = tpu.dynamic_rotate %150 by %c1_i32_54 dim 0 : vector<32x128xf32>, i32 -> vector<32x128xf32>
    %cst_55 = arith.constant 0.000000e+00 : f32
    %152 = vector.shape_cast %27 : vector<32x1xi1> to vector<32x1xi1>
    %153 = vector.broadcast %152 : vector<32x1xi1> to vector<32x128xi1>
    %154 = vector.broadcast %cst_55 : f32 to vector<32x128xf32>
    %155 = arith.select %153, %151, %154 : vector<32x128xi1>, vector<32x128xf32>
    %c432 = arith.constant 432 : index
    %c0_56 = arith.constant 0 : index
    %156 = vector.load %arg1[%c432, %c0_56] : memref<816x256xbf16, #tpu.memory_space<vmem>>, vector<128x128xbf16>
    %157 = arith.truncf %155 : vector<32x128xf32> to vector<32x128xbf16>
    %cst_57 = arith.constant dense<0.000000e+00> : vector<32x128xf32>
    %158 = tpu.matmul %157, %156, %cst_57 {dimension_numbers = #tpu.dot_dimension_numbers<[1], [0], [0], [1], [0, 0, 1, 1], [], []>} : vector<32x128xbf16>, vector<128x128xbf16>, vector<32x128xf32> -> vector<32x128xf32>
    %c560 = arith.constant 560 : index
    %c0_58 = arith.constant 0 : index
    %159 = vector.load %arg1[%c560, %c0_58] : memref<816x256xbf16, #tpu.memory_space<vmem>>, vector<128x128xbf16>
    %160 = arith.truncf %150 : vector<32x128xf32> to vector<32x128xbf16>
    %cst_59 = arith.constant dense<0.000000e+00> : vector<32x128xf32>
    %161 = tpu.matmul %160, %159, %cst_59 {dimension_numbers = #tpu.dot_dimension_numbers<[1], [0], [0], [1], [0, 0, 1, 1], [], []>} : vector<32x128xbf16>, vector<128x128xbf16>, vector<32x128xf32> -> vector<32x128xf32>
    %162 = arith.addf %158, %161 : vector<32x128xf32>
    %c31_i32_60 = arith.constant 31 : i32
    %163 = tpu.dynamic_rotate %150 by %c31_i32_60 dim 0 : vector<32x128xf32>, i32 -> vector<32x128xf32>
    %cst_61 = arith.constant 0.000000e+00 : f32
    %164 = vector.shape_cast %36 : vector<32x1xi1> to vector<32x1xi1>
    %165 = vector.broadcast %164 : vector<32x1xi1> to vector<32x128xi1>
    %166 = vector.broadcast %cst_61 : f32 to vector<32x128xf32>
    %167 = arith.select %165, %163, %166 : vector<32x128xi1>, vector<32x128xf32>
    %c688 = arith.constant 688 : index
    %c0_62 = arith.constant 0 : index
    %168 = vector.load %arg1[%c688, %c0_62] : memref<816x256xbf16, #tpu.memory_space<vmem>>, vector<128x128xbf16>
    %169 = arith.truncf %167 : vector<32x128xf32> to vector<32x128xbf16>
    %cst_63 = arith.constant dense<0.000000e+00> : vector<32x128xf32>
    %170 = tpu.matmul %169, %168, %cst_63 {dimension_numbers = #tpu.dot_dimension_numbers<[1], [0], [0], [1], [0, 0, 1, 1], [], []>} : vector<32x128xbf16>, vector<128x128xbf16>, vector<32x128xf32> -> vector<32x128xf32>
    %171 = arith.addf %162, %170 : vector<32x128xf32>
    %172 = vector.broadcast %39 : vector<1x128xf32> to vector<32x128xf32>
    %173 = arith.addf %171, %172 : vector<32x128xf32>
    %cst_64 = arith.constant dense<0.000000e+00> : vector<1x128xf32>
    %174 = tpu.matmul %1, %173, %cst_64 {dimension_numbers = #tpu.dot_dimension_numbers<[1], [0], [0], [1], [0, 0, 1, 1], [], []>} : vector<1x32xf32>, vector<32x128xf32>, vector<1x128xf32> -> vector<1x128xf32>
    %175 = arith.mulf %173, %173 : vector<32x128xf32>
    %cst_65 = arith.constant dense<0.000000e+00> : vector<1x128xf32>
    %176 = tpu.matmul %1, %175, %cst_65 {dimension_numbers = #tpu.dot_dimension_numbers<[1], [0], [0], [1], [0, 0, 1, 1], [], []>} : vector<1x32xf32>, vector<32x128xf32>, vector<1x128xf32> -> vector<1x128xf32>
    %cst_66 = arith.constant 3.125000e-02 : f32
    %177 = vector.broadcast %cst_66 : f32 to vector<1x128xf32>
    %178 = arith.mulf %174, %177 : vector<1x128xf32>
    %cst_67 = arith.constant 3.125000e-02 : f32
    %179 = vector.broadcast %cst_67 : f32 to vector<1x128xf32>
    %180 = arith.mulf %176, %179 : vector<1x128xf32>
    %181 = arith.mulf %178, %178 : vector<1x128xf32>
    %182 = arith.subf %180, %181 : vector<1x128xf32>
    %183 = vector.broadcast %178 : vector<1x128xf32> to vector<32x128xf32>
    %184 = arith.subf %173, %183 : vector<32x128xf32>
    %cst_68 = arith.constant 9.99999974E-6 : f32
    %185 = vector.broadcast %cst_68 : f32 to vector<1x128xf32>
    %186 = arith.addf %182, %185 : vector<1x128xf32>
    %187 = math.rsqrt %186 : vector<1x128xf32>
    %188 = arith.mulf %187, %40 : vector<1x128xf32>
    %189 = vector.broadcast %188 : vector<1x128xf32> to vector<32x128xf32>
    %190 = arith.mulf %184, %189 : vector<32x128xf32>
    %191 = vector.broadcast %41 : vector<1x128xf32> to vector<32x128xf32>
    %192 = arith.addf %190, %191 : vector<32x128xf32>
    %193 = arith.addf %192, %84 : vector<32x128xf32>
    %cst_69 = arith.constant 0.000000e+00 : f32
    %194 = vector.broadcast %cst_69 : f32 to vector<32x128xf32>
    %195 = arith.maximumf %193, %194 : vector<32x128xf32>
    %196 = vector.shape_cast %195 : vector<32x128xf32> to vector<2x16x128xf32>
    %197 = vector.shape_cast %196 : vector<2x16x128xf32> to vector<2x8x2x128xf32>
    %cst_70 = arith.constant dense<0.000000e+00> : vector<2x8x128xf32>
    %198 = vector.multi_reduction <add>, %197, %cst_70 [2] : vector<2x8x2x128xf32> to vector<2x8x128xf32>
    %cst_71 = arith.constant 2.000000e+00 : f32
    %199 = vector.broadcast %cst_71 : f32 to vector<2x8x128xf32>
    %200 = arith.divf %198, %199 : vector<2x8x128xf32>
    %201 = vector.shape_cast %200 : vector<2x8x128xf32> to vector<16x128xf32>
    %cst_72 = arith.constant 1.000000e+00 : f32
    %202 = vector.broadcast %cst_72 : f32 to vector<1x16xf32>
    %203 = tpu.iota {dimensions = array<i32: 0>} : vector<16x1xi32>
    %c8_i32 = arith.constant 8 : i32
    %c0_i32_73 = arith.constant 0 : i32
    %204 = arith.cmpi eq, %c8_i32, %c0_i32_73 : i32
    %c1_i32_74 = arith.constant 1 : i32
    %205 = arith.select %204, %c1_i32_74, %c8_i32 : i32
    %206 = vector.broadcast %205 : i32 to vector<16x1xi32>
    %207 = arith.remsi %203, %206 : vector<16x1xi32>
    %c0_i32_75 = arith.constant 0 : i32
    %208 = vector.broadcast %c0_i32_75 : i32 to vector<16x1xi32>
    %209 = arith.cmpi ne, %207, %208 : vector<16x1xi32>
    %c0_i32_76 = arith.constant 0 : i32
    %210 = vector.broadcast %c0_i32_76 : i32 to vector<16x1xi32>
    %211 = arith.cmpi slt, %207, %210 : vector<16x1xi32>
    %c0_i32_77 = arith.constant 0 : i32
    %212 = arith.cmpi slt, %205, %c0_i32_77 : i32
    %213 = vector.broadcast %212 : i1 to vector<16x1xi1>
    %214 = vector.broadcast %213 : vector<16x1xi1> to vector<16x1xi1>
    %215 = arith.xori %211, %214 : vector<16x1xi1>
    %216 = arith.andi %215, %209 : vector<16x1xi1>
    %217 = vector.broadcast %205 : i32 to vector<16x1xi32>
    %218 = arith.addi %207, %217 : vector<16x1xi32>
    %219 = arith.select %216, %218, %207 : vector<16x1xi1>, vector<16x1xi32>
    %c-1_i32_78 = arith.constant -1 : i32
    %220 = vector.broadcast %c-1_i32_78 : i32 to vector<16x1xi32>
    %221 = arith.addi %219, %220 : vector<16x1xi32>
    %c0_i32_79 = arith.constant 0 : i32
    %222 = vector.broadcast %c0_i32_79 : i32 to vector<16x1xi32>
    %223 = arith.cmpi sge, %221, %222 : vector<16x1xi32>
    %c-1_i32_80 = arith.constant -1 : i32
    %224 = vector.broadcast %c-1_i32_80 : i32 to vector<16x1xi32>
    %225 = arith.addi %219, %224 : vector<16x1xi32>
    %c8_i32_81 = arith.constant 8 : i32
    %226 = vector.broadcast %c8_i32_81 : i32 to vector<16x1xi32>
    %227 = arith.cmpi slt, %225, %226 : vector<16x1xi32>
    %228 = arith.andi %223, %227 : vector<16x1xi1>
    %c1_i32_82 = arith.constant 1 : i32
    %229 = vector.broadcast %c1_i32_82 : i32 to vector<16x1xi32>
    %230 = arith.addi %219, %229 : vector<16x1xi32>
    %c0_i32_83 = arith.constant 0 : i32
    %231 = vector.broadcast %c0_i32_83 : i32 to vector<16x1xi32>
    %232 = arith.cmpi sge, %230, %231 : vector<16x1xi32>
    %c1_i32_84 = arith.constant 1 : i32
    %233 = vector.broadcast %c1_i32_84 : i32 to vector<16x1xi32>
    %234 = arith.addi %219, %233 : vector<16x1xi32>
    %c8_i32_85 = arith.constant 8 : i32
    %235 = vector.broadcast %c8_i32_85 : i32 to vector<16x1xi32>
    %236 = arith.cmpi slt, %234, %235 : vector<16x1xi32>
    %237 = arith.andi %232, %236 : vector<16x1xi1>
    %c8 = arith.constant 8 : index
    %c0_86 = arith.constant 0 : index
    %238 = vector.load %arg5[%c8, %c0_86] : memref<32x256xf32, #tpu.memory_space<vmem>>, vector<1x256xf32>
    %c9 = arith.constant 9 : index
    %c0_87 = arith.constant 0 : index
    %239 = vector.load %arg5[%c9, %c0_87] : memref<32x256xf32, #tpu.memory_space<vmem>>, vector<1x128xf32>
    %c10 = arith.constant 10 : index
    %c0_88 = arith.constant 0 : index
    %240 = vector.load %arg5[%c10, %c0_88] : memref<32x256xf32, #tpu.memory_space<vmem>>, vector<1x128xf32>
    %c11 = arith.constant 11 : index
    %c0_89 = arith.constant 0 : index
    %241 = vector.load %arg5[%c11, %c0_89] : memref<32x256xf32, #tpu.memory_space<vmem>>, vector<1x128xf32>
    %c12 = arith.constant 12 : index
    %c0_90 = arith.constant 0 : index
    %242 = vector.load %arg5[%c12, %c0_90] : memref<32x256xf32, #tpu.memory_space<vmem>>, vector<1x128xf32>
    %c1_i32_91 = arith.constant 1 : i32
    %243 = tpu.dynamic_rotate %201 by %c1_i32_91 dim 0 : vector<16x128xf32>, i32 -> vector<16x128xf32>
    %cst_92 = arith.constant 0.000000e+00 : f32
    %244 = vector.shape_cast %228 : vector<16x1xi1> to vector<16x1xi1>
    %245 = vector.broadcast %244 : vector<16x1xi1> to vector<16x128xi1>
    %246 = vector.broadcast %cst_92 : f32 to vector<16x128xf32>
    %247 = arith.select %245, %243, %246 : vector<16x128xi1>, vector<16x128xf32>
    %c0_93 = arith.constant 0 : index
    %c0_94 = arith.constant 0 : index
    %248 = vector.load %arg2[%c0_93, %c0_94] : memref<1152x256xbf16, #tpu.memory_space<vmem>>, vector<128x256xbf16>
    %249 = arith.truncf %247 : vector<16x128xf32> to vector<16x128xbf16>
    %cst_95 = arith.constant dense<0.000000e+00> : vector<16x256xf32>
    %250 = tpu.matmul %249, %248, %cst_95 {dimension_numbers = #tpu.dot_dimension_numbers<[1], [0], [0], [1], [0, 0, 1, 1], [], []>} : vector<16x128xbf16>, vector<128x256xbf16>, vector<16x256xf32> -> vector<16x256xf32>
    %c128 = arith.constant 128 : index
    %c0_96 = arith.constant 0 : index
    %251 = vector.load %arg2[%c128, %c0_96] : memref<1152x256xbf16, #tpu.memory_space<vmem>>, vector<128x256xbf16>
    %252 = arith.truncf %201 : vector<16x128xf32> to vector<16x128xbf16>
    %cst_97 = arith.constant dense<0.000000e+00> : vector<16x256xf32>
    %253 = tpu.matmul %252, %251, %cst_97 {dimension_numbers = #tpu.dot_dimension_numbers<[1], [0], [0], [1], [0, 0, 1, 1], [], []>} : vector<16x128xbf16>, vector<128x256xbf16>, vector<16x256xf32> -> vector<16x256xf32>
    %254 = arith.addf %250, %253 : vector<16x256xf32>
    %c15_i32 = arith.constant 15 : i32
    %255 = tpu.dynamic_rotate %201 by %c15_i32 dim 0 : vector<16x128xf32>, i32 -> vector<16x128xf32>
    %cst_98 = arith.constant 0.000000e+00 : f32
    %256 = vector.shape_cast %237 : vector<16x1xi1> to vector<16x1xi1>
    %257 = vector.broadcast %256 : vector<16x1xi1> to vector<16x128xi1>
    %258 = vector.broadcast %cst_98 : f32 to vector<16x128xf32>
    %259 = arith.select %257, %255, %258 : vector<16x128xi1>, vector<16x128xf32>
    %c256 = arith.constant 256 : index
    %c0_99 = arith.constant 0 : index
    %260 = vector.load %arg2[%c256, %c0_99] : memref<1152x256xbf16, #tpu.memory_space<vmem>>, vector<128x256xbf16>
    %261 = arith.truncf %259 : vector<16x128xf32> to vector<16x128xbf16>
    %cst_100 = arith.constant dense<0.000000e+00> : vector<16x256xf32>
    %262 = tpu.matmul %261, %260, %cst_100 {dimension_numbers = #tpu.dot_dimension_numbers<[1], [0], [0], [1], [0, 0, 1, 1], [], []>} : vector<16x128xbf16>, vector<128x256xbf16>, vector<16x256xf32> -> vector<16x256xf32>
    %263 = arith.addf %254, %262 : vector<16x256xf32>
    %264 = vector.broadcast %238 : vector<1x256xf32> to vector<16x256xf32>
    %265 = arith.addf %263, %264 : vector<16x256xf32>
    %266 = vector.extract_strided_slice %265 {offsets = [0, 128], sizes = [16, 128], strides = [1, 1]} : vector<16x256xf32> to vector<16x128xf32>
    %cst_101 = arith.constant dense<0.000000e+00> : vector<1x128xf32>
    %267 = tpu.matmul %202, %266, %cst_101 {dimension_numbers = #tpu.dot_dimension_numbers<[1], [0], [0], [1], [0, 0, 1, 1], [], []>} : vector<1x16xf32>, vector<16x128xf32>, vector<1x128xf32> -> vector<1x128xf32>
    %268 = arith.mulf %266, %266 : vector<16x128xf32>
    %cst_102 = arith.constant dense<0.000000e+00> : vector<1x128xf32>
    %269 = tpu.matmul %202, %268, %cst_102 {dimension_numbers = #tpu.dot_dimension_numbers<[1], [0], [0], [1], [0, 0, 1, 1], [], []>} : vector<1x16xf32>, vector<16x128xf32>, vector<1x128xf32> -> vector<1x128xf32>
    %cst_103 = arith.constant 6.250000e-02 : f32
    %270 = vector.broadcast %cst_103 : f32 to vector<1x128xf32>
    %271 = arith.mulf %267, %270 : vector<1x128xf32>
    %cst_104 = arith.constant 6.250000e-02 : f32
    %272 = vector.broadcast %cst_104 : f32 to vector<1x128xf32>
    %273 = arith.mulf %269, %272 : vector<1x128xf32>
    %274 = arith.mulf %271, %271 : vector<1x128xf32>
    %275 = arith.subf %273, %274 : vector<1x128xf32>
    %276 = vector.broadcast %271 : vector<1x128xf32> to vector<16x128xf32>
    %277 = arith.subf %266, %276 : vector<16x128xf32>
    %cst_105 = arith.constant 9.99999974E-6 : f32
    %278 = vector.broadcast %cst_105 : f32 to vector<1x128xf32>
    %279 = arith.addf %275, %278 : vector<1x128xf32>
    %280 = math.rsqrt %279 : vector<1x128xf32>
    %281 = arith.mulf %280, %241 : vector<1x128xf32>
    %282 = vector.broadcast %281 : vector<1x128xf32> to vector<16x128xf32>
    %283 = arith.mulf %277, %282 : vector<16x128xf32>
    %284 = vector.broadcast %242 : vector<1x128xf32> to vector<16x128xf32>
    %285 = arith.addf %283, %284 : vector<16x128xf32>
    %286 = vector.extract_strided_slice %265 {offsets = [0, 0], sizes = [16, 128], strides = [1, 1]} : vector<16x256xf32> to vector<16x128xf32>
    %cst_106 = arith.constant dense<0.000000e+00> : vector<1x128xf32>
    %287 = tpu.matmul %202, %286, %cst_106 {dimension_numbers = #tpu.dot_dimension_numbers<[1], [0], [0], [1], [0, 0, 1, 1], [], []>} : vector<1x16xf32>, vector<16x128xf32>, vector<1x128xf32> -> vector<1x128xf32>
    %288 = arith.mulf %286, %286 : vector<16x128xf32>
    %cst_107 = arith.constant dense<0.000000e+00> : vector<1x128xf32>
    %289 = tpu.matmul %202, %288, %cst_107 {dimension_numbers = #tpu.dot_dimension_numbers<[1], [0], [0], [1], [0, 0, 1, 1], [], []>} : vector<1x16xf32>, vector<16x128xf32>, vector<1x128xf32> -> vector<1x128xf32>
    %cst_108 = arith.constant 6.250000e-02 : f32
    %290 = vector.broadcast %cst_108 : f32 to vector<1x128xf32>
    %291 = arith.mulf %287, %290 : vector<1x128xf32>
    %cst_109 = arith.constant 6.250000e-02 : f32
    %292 = vector.broadcast %cst_109 : f32 to vector<1x128xf32>
    %293 = arith.mulf %289, %292 : vector<1x128xf32>
    %294 = arith.mulf %291, %291 : vector<1x128xf32>
    %295 = arith.subf %293, %294 : vector<1x128xf32>
    %296 = vector.broadcast %291 : vector<1x128xf32> to vector<16x128xf32>
    %297 = arith.subf %286, %296 : vector<16x128xf32>
    %cst_110 = arith.constant 9.99999974E-6 : f32
    %298 = vector.broadcast %cst_110 : f32 to vector<1x128xf32>
    %299 = arith.addf %295, %298 : vector<1x128xf32>
    %300 = math.rsqrt %299 : vector<1x128xf32>
    %301 = arith.mulf %300, %241 : vector<1x128xf32>
    %302 = vector.broadcast %301 : vector<1x128xf32> to vector<16x128xf32>
    %303 = arith.mulf %297, %302 : vector<16x128xf32>
    %304 = vector.broadcast %242 : vector<1x128xf32> to vector<16x128xf32>
    %305 = arith.addf %303, %304 : vector<16x128xf32>
    %cst_111 = arith.constant 0.000000e+00 : f32
    %306 = vector.broadcast %cst_111 : f32 to vector<16x128xf32>
    %307 = arith.maximumf %305, %306 : vector<16x128xf32>
    %c1_i32_112 = arith.constant 1 : i32
    %308 = tpu.dynamic_rotate %307 by %c1_i32_112 dim 0 : vector<16x128xf32>, i32 -> vector<16x128xf32>
    %cst_113 = arith.constant 0.000000e+00 : f32
    %309 = vector.shape_cast %228 : vector<16x1xi1> to vector<16x1xi1>
    %310 = vector.broadcast %309 : vector<16x1xi1> to vector<16x128xi1>
    %311 = vector.broadcast %cst_113 : f32 to vector<16x128xf32>
    %312 = arith.select %310, %308, %311 : vector<16x128xi1>, vector<16x128xf32>
    %c384 = arith.constant 384 : index
    %c0_114 = arith.constant 0 : index
    %313 = vector.load %arg2[%c384, %c0_114] : memref<1152x256xbf16, #tpu.memory_space<vmem>>, vector<128x128xbf16>
    %314 = arith.truncf %312 : vector<16x128xf32> to vector<16x128xbf16>
    %cst_115 = arith.constant dense<0.000000e+00> : vector<16x128xf32>
    %315 = tpu.matmul %314, %313, %cst_115 {dimension_numbers = #tpu.dot_dimension_numbers<[1], [0], [0], [1], [0, 0, 1, 1], [], []>} : vector<16x128xbf16>, vector<128x128xbf16>, vector<16x128xf32> -> vector<16x128xf32>
    %c512 = arith.constant 512 : index
    %c0_116 = arith.constant 0 : index
    %316 = vector.load %arg2[%c512, %c0_116] : memref<1152x256xbf16, #tpu.memory_space<vmem>>, vector<128x128xbf16>
    %317 = arith.truncf %307 : vector<16x128xf32> to vector<16x128xbf16>
    %cst_117 = arith.constant dense<0.000000e+00> : vector<16x128xf32>
    %318 = tpu.matmul %317, %316, %cst_117 {dimension_numbers = #tpu.dot_dimension_numbers<[1], [0], [0], [1], [0, 0, 1, 1], [], []>} : vector<16x128xbf16>, vector<128x128xbf16>, vector<16x128xf32> -> vector<16x128xf32>
    %319 = arith.addf %315, %318 : vector<16x128xf32>
    %c15_i32_118 = arith.constant 15 : i32
    %320 = tpu.dynamic_rotate %307 by %c15_i32_118 dim 0 : vector<16x128xf32>, i32 -> vector<16x128xf32>
    %cst_119 = arith.constant 0.000000e+00 : f32
    %321 = vector.shape_cast %237 : vector<16x1xi1> to vector<16x1xi1>
    %322 = vector.broadcast %321 : vector<16x1xi1> to vector<16x128xi1>
    %323 = vector.broadcast %cst_119 : f32 to vector<16x128xf32>
    %324 = arith.select %322, %320, %323 : vector<16x128xi1>, vector<16x128xf32>
    %c640 = arith.constant 640 : index
    %c0_120 = arith.constant 0 : index
    %325 = vector.load %arg2[%c640, %c0_120] : memref<1152x256xbf16, #tpu.memory_space<vmem>>, vector<128x128xbf16>
    %326 = arith.truncf %324 : vector<16x128xf32> to vector<16x128xbf16>
    %cst_121 = arith.constant dense<0.000000e+00> : vector<16x128xf32>
    %327 = tpu.matmul %326, %325, %cst_121 {dimension_numbers = #tpu.dot_dimension_numbers<[1], [0], [0], [1], [0, 0, 1, 1], [], []>} : vector<16x128xbf16>, vector<128x128xbf16>, vector<16x128xf32> -> vector<16x128xf32>
    %328 = arith.addf %319, %327 : vector<16x128xf32>
    %329 = vector.broadcast %239 : vector<1x128xf32> to vector<16x128xf32>
    %330 = arith.addf %328, %329 : vector<16x128xf32>
    %cst_122 = arith.constant dense<0.000000e+00> : vector<1x128xf32>
    %331 = tpu.matmul %202, %330, %cst_122 {dimension_numbers = #tpu.dot_dimension_numbers<[1], [0], [0], [1], [0, 0, 1, 1], [], []>} : vector<1x16xf32>, vector<16x128xf32>, vector<1x128xf32> -> vector<1x128xf32>
    %332 = arith.mulf %330, %330 : vector<16x128xf32>
    %cst_123 = arith.constant dense<0.000000e+00> : vector<1x128xf32>
    %333 = tpu.matmul %202, %332, %cst_123 {dimension_numbers = #tpu.dot_dimension_numbers<[1], [0], [0], [1], [0, 0, 1, 1], [], []>} : vector<1x16xf32>, vector<16x128xf32>, vector<1x128xf32> -> vector<1x128xf32>
    %cst_124 = arith.constant 6.250000e-02 : f32
    %334 = vector.broadcast %cst_124 : f32 to vector<1x128xf32>
    %335 = arith.mulf %331, %334 : vector<1x128xf32>
    %cst_125 = arith.constant 6.250000e-02 : f32
    %336 = vector.broadcast %cst_125 : f32 to vector<1x128xf32>
    %337 = arith.mulf %333, %336 : vector<1x128xf32>
    %338 = arith.mulf %335, %335 : vector<1x128xf32>
    %339 = arith.subf %337, %338 : vector<1x128xf32>
    %340 = vector.broadcast %335 : vector<1x128xf32> to vector<16x128xf32>
    %341 = arith.subf %330, %340 : vector<16x128xf32>
    %cst_126 = arith.constant 9.99999974E-6 : f32
    %342 = vector.broadcast %cst_126 : f32 to vector<1x128xf32>
    %343 = arith.addf %339, %342 : vector<1x128xf32>
    %344 = math.rsqrt %343 : vector<1x128xf32>
    %345 = arith.mulf %344, %241 : vector<1x128xf32>
    %346 = vector.broadcast %345 : vector<1x128xf32> to vector<16x128xf32>
    %347 = arith.mulf %341, %346 : vector<16x128xf32>
    %348 = vector.broadcast %242 : vector<1x128xf32> to vector<16x128xf32>
    %349 = arith.addf %347, %348 : vector<16x128xf32>
    %cst_127 = arith.constant 0.000000e+00 : f32
    %350 = vector.broadcast %cst_127 : f32 to vector<16x128xf32>
    %351 = arith.maximumf %349, %350 : vector<16x128xf32>
    %c1_i32_128 = arith.constant 1 : i32
    %352 = tpu.dynamic_rotate %351 by %c1_i32_128 dim 0 : vector<16x128xf32>, i32 -> vector<16x128xf32>
    %cst_129 = arith.constant 0.000000e+00 : f32
    %353 = vector.shape_cast %228 : vector<16x1xi1> to vector<16x1xi1>
    %354 = vector.broadcast %353 : vector<16x1xi1> to vector<16x128xi1>
    %355 = vector.broadcast %cst_129 : f32 to vector<16x128xf32>
    %356 = arith.select %354, %352, %355 : vector<16x128xi1>, vector<16x128xf32>
    %c768 = arith.constant 768 : index
    %c0_130 = arith.constant 0 : index
    %357 = vector.load %arg2[%c768, %c0_130] : memref<1152x256xbf16, #tpu.memory_space<vmem>>, vector<128x128xbf16>
    %358 = arith.truncf %356 : vector<16x128xf32> to vector<16x128xbf16>
    %cst_131 = arith.constant dense<0.000000e+00> : vector<16x128xf32>
    %359 = tpu.matmul %358, %357, %cst_131 {dimension_numbers = #tpu.dot_dimension_numbers<[1], [0], [0], [1], [0, 0, 1, 1], [], []>} : vector<16x128xbf16>, vector<128x128xbf16>, vector<16x128xf32> -> vector<16x128xf32>
    %c896 = arith.constant 896 : index
    %c0_132 = arith.constant 0 : index
    %360 = vector.load %arg2[%c896, %c0_132] : memref<1152x256xbf16, #tpu.memory_space<vmem>>, vector<128x128xbf16>
    %361 = arith.truncf %351 : vector<16x128xf32> to vector<16x128xbf16>
    %cst_133 = arith.constant dense<0.000000e+00> : vector<16x128xf32>
    %362 = tpu.matmul %361, %360, %cst_133 {dimension_numbers = #tpu.dot_dimension_numbers<[1], [0], [0], [1], [0, 0, 1, 1], [], []>} : vector<16x128xbf16>, vector<128x128xbf16>, vector<16x128xf32> -> vector<16x128xf32>
    %363 = arith.addf %359, %362 : vector<16x128xf32>
    %c15_i32_134 = arith.constant 15 : i32
    %364 = tpu.dynamic_rotate %351 by %c15_i32_134 dim 0 : vector<16x128xf32>, i32 -> vector<16x128xf32>
    %cst_135 = arith.constant 0.000000e+00 : f32
    %365 = vector.shape_cast %237 : vector<16x1xi1> to vector<16x1xi1>
    %366 = vector.broadcast %365 : vector<16x1xi1> to vector<16x128xi1>
    %367 = vector.broadcast %cst_135 : f32 to vector<16x128xf32>
    %368 = arith.select %366, %364, %367 : vector<16x128xi1>, vector<16x128xf32>
    %c1024 = arith.constant 1024 : index
    %c0_136 = arith.constant 0 : index
    %369 = vector.load %arg2[%c1024, %c0_136] : memref<1152x256xbf16, #tpu.memory_space<vmem>>, vector<128x128xbf16>
    %370 = arith.truncf %368 : vector<16x128xf32> to vector<16x128xbf16>
    %cst_137 = arith.constant dense<0.000000e+00> : vector<16x128xf32>
    %371 = tpu.matmul %370, %369, %cst_137 {dimension_numbers = #tpu.dot_dimension_numbers<[1], [0], [0], [1], [0, 0, 1, 1], [], []>} : vector<16x128xbf16>, vector<128x128xbf16>, vector<16x128xf32> -> vector<16x128xf32>
    %372 = arith.addf %363, %371 : vector<16x128xf32>
    %373 = vector.broadcast %240 : vector<1x128xf32> to vector<16x128xf32>
    %374 = arith.addf %372, %373 : vector<16x128xf32>
    %cst_138 = arith.constant dense<0.000000e+00> : vector<1x128xf32>
    %375 = tpu.matmul %202, %374, %cst_138 {dimension_numbers = #tpu.dot_dimension_numbers<[1], [0], [0], [1], [0, 0, 1, 1], [], []>} : vector<1x16xf32>, vector<16x128xf32>, vector<1x128xf32> -> vector<1x128xf32>
    %376 = arith.mulf %374, %374 : vector<16x128xf32>
    %cst_139 = arith.constant dense<0.000000e+00> : vector<1x128xf32>
    %377 = tpu.matmul %202, %376, %cst_139 {dimension_numbers = #tpu.dot_dimension_numbers<[1], [0], [0], [1], [0, 0, 1, 1], [], []>} : vector<1x16xf32>, vector<16x128xf32>, vector<1x128xf32> -> vector<1x128xf32>
    %cst_140 = arith.constant 6.250000e-02 : f32
    %378 = vector.broadcast %cst_140 : f32 to vector<1x128xf32>
    %379 = arith.mulf %375, %378 : vector<1x128xf32>
    %cst_141 = arith.constant 6.250000e-02 : f32
    %380 = vector.broadcast %cst_141 : f32 to vector<1x128xf32>
    %381 = arith.mulf %377, %380 : vector<1x128xf32>
    %382 = arith.mulf %379, %379 : vector<1x128xf32>
    %383 = arith.subf %381, %382 : vector<1x128xf32>
    %384 = vector.broadcast %379 : vector<1x128xf32> to vector<16x128xf32>
    %385 = arith.subf %374, %384 : vector<16x128xf32>
    %cst_142 = arith.constant 9.99999974E-6 : f32
    %386 = vector.broadcast %cst_142 : f32 to vector<1x128xf32>
    %387 = arith.addf %383, %386 : vector<1x128xf32>
    %388 = math.rsqrt %387 : vector<1x128xf32>
    %389 = arith.mulf %388, %241 : vector<1x128xf32>
    %390 = vector.broadcast %389 : vector<1x128xf32> to vector<16x128xf32>
    %391 = arith.mulf %385, %390 : vector<16x128xf32>
    %392 = vector.broadcast %242 : vector<1x128xf32> to vector<16x128xf32>
    %393 = arith.addf %391, %392 : vector<16x128xf32>
    %394 = arith.addf %393, %285 : vector<16x128xf32>
    %cst_143 = arith.constant 0.000000e+00 : f32
    %395 = vector.broadcast %cst_143 : f32 to vector<16x128xf32>
    %396 = arith.maximumf %394, %395 : vector<16x128xf32>
    %397 = vector.shape_cast %396 : vector<16x128xf32> to vector<2x8x128xf32>
    %398 = vector.shape_cast %397 : vector<2x8x128xf32> to vector<2x4x2x128xf32>
    %cst_144 = arith.constant dense<0.000000e+00> : vector<2x4x128xf32>
    %399 = vector.multi_reduction <add>, %398, %cst_144 [2] : vector<2x4x2x128xf32> to vector<2x4x128xf32>
    %cst_145 = arith.constant 2.000000e+00 : f32
    %400 = vector.broadcast %cst_145 : f32 to vector<2x4x128xf32>
    %401 = arith.divf %399, %400 : vector<2x4x128xf32>
    %402 = vector.shape_cast %401 : vector<2x4x128xf32> to vector<8x128xf32>
    %cst_146 = arith.constant 1.000000e+00 : f32
    %403 = vector.broadcast %cst_146 : f32 to vector<1x8xf32>
    %404 = tpu.iota {dimensions = array<i32: 0>} : vector<8x1xi32>
    %c4_i32 = arith.constant 4 : i32
    %c0_i32_147 = arith.constant 0 : i32
    %405 = arith.cmpi eq, %c4_i32, %c0_i32_147 : i32
    %c1_i32_148 = arith.constant 1 : i32
    %406 = arith.select %405, %c1_i32_148, %c4_i32 : i32
    %407 = vector.broadcast %406 : i32 to vector<8x1xi32>
    %408 = arith.remsi %404, %407 : vector<8x1xi32>
    %c0_i32_149 = arith.constant 0 : i32
    %409 = vector.broadcast %c0_i32_149 : i32 to vector<8x1xi32>
    %410 = arith.cmpi ne, %408, %409 : vector<8x1xi32>
    %c0_i32_150 = arith.constant 0 : i32
    %411 = vector.broadcast %c0_i32_150 : i32 to vector<8x1xi32>
    %412 = arith.cmpi slt, %408, %411 : vector<8x1xi32>
    %c0_i32_151 = arith.constant 0 : i32
    %413 = arith.cmpi slt, %406, %c0_i32_151 : i32
    %414 = vector.broadcast %413 : i1 to vector<8x1xi1>
    %415 = vector.broadcast %414 : vector<8x1xi1> to vector<8x1xi1>
    %416 = arith.xori %412, %415 : vector<8x1xi1>
    %417 = arith.andi %416, %410 : vector<8x1xi1>
    %418 = vector.broadcast %406 : i32 to vector<8x1xi32>
    %419 = arith.addi %408, %418 : vector<8x1xi32>
    %420 = arith.select %417, %419, %408 : vector<8x1xi1>, vector<8x1xi32>
    %c-1_i32_152 = arith.constant -1 : i32
    %421 = vector.broadcast %c-1_i32_152 : i32 to vector<8x1xi32>
    %422 = arith.addi %420, %421 : vector<8x1xi32>
    %c0_i32_153 = arith.constant 0 : i32
    %423 = vector.broadcast %c0_i32_153 : i32 to vector<8x1xi32>
    %424 = arith.cmpi sge, %422, %423 : vector<8x1xi32>
    %c-1_i32_154 = arith.constant -1 : i32
    %425 = vector.broadcast %c-1_i32_154 : i32 to vector<8x1xi32>
    %426 = arith.addi %420, %425 : vector<8x1xi32>
    %c4_i32_155 = arith.constant 4 : i32
    %427 = vector.broadcast %c4_i32_155 : i32 to vector<8x1xi32>
    %428 = arith.cmpi slt, %426, %427 : vector<8x1xi32>
    %429 = arith.andi %424, %428 : vector<8x1xi1>
    %c1_i32_156 = arith.constant 1 : i32
    %430 = vector.broadcast %c1_i32_156 : i32 to vector<8x1xi32>
    %431 = arith.addi %420, %430 : vector<8x1xi32>
    %c0_i32_157 = arith.constant 0 : i32
    %432 = vector.broadcast %c0_i32_157 : i32 to vector<8x1xi32>
    %433 = arith.cmpi sge, %431, %432 : vector<8x1xi32>
    %c1_i32_158 = arith.constant 1 : i32
    %434 = vector.broadcast %c1_i32_158 : i32 to vector<8x1xi32>
    %435 = arith.addi %420, %434 : vector<8x1xi32>
    %c4_i32_159 = arith.constant 4 : i32
    %436 = vector.broadcast %c4_i32_159 : i32 to vector<8x1xi32>
    %437 = arith.cmpi slt, %435, %436 : vector<8x1xi32>
    %438 = arith.andi %433, %437 : vector<8x1xi1>
    %c16_160 = arith.constant 16 : index
    %c0_161 = arith.constant 0 : index
    %439 = vector.load %arg5[%c16_160, %c0_161] : memref<32x256xf32, #tpu.memory_space<vmem>>, vector<1x256xf32>
    %c17 = arith.constant 17 : index
    %c0_162 = arith.constant 0 : index
    %440 = vector.load %arg5[%c17, %c0_162] : memref<32x256xf32, #tpu.memory_space<vmem>>, vector<1x128xf32>
    %c18 = arith.constant 18 : index
    %c0_163 = arith.constant 0 : index
    %441 = vector.load %arg5[%c18, %c0_163] : memref<32x256xf32, #tpu.memory_space<vmem>>, vector<1x128xf32>
    %c19 = arith.constant 19 : index
    %c0_164 = arith.constant 0 : index
    %442 = vector.load %arg5[%c19, %c0_164] : memref<32x256xf32, #tpu.memory_space<vmem>>, vector<1x128xf32>
    %c20 = arith.constant 20 : index
    %c0_165 = arith.constant 0 : index
    %443 = vector.load %arg5[%c20, %c0_165] : memref<32x256xf32, #tpu.memory_space<vmem>>, vector<1x128xf32>
    %c1_i32_166 = arith.constant 1 : i32
    %444 = tpu.dynamic_rotate %402 by %c1_i32_166 dim 0 : vector<8x128xf32>, i32 -> vector<8x128xf32>
    %cst_167 = arith.constant 0.000000e+00 : f32
    %445 = vector.shape_cast %429 : vector<8x1xi1> to vector<8x1xi1>
    %446 = vector.broadcast %445 : vector<8x1xi1> to vector<8x128xi1>
    %447 = vector.broadcast %cst_167 : f32 to vector<8x128xf32>
    %448 = arith.select %446, %444, %447 : vector<8x128xi1>, vector<8x128xf32>
    %c0_168 = arith.constant 0 : index
    %c0_169 = arith.constant 0 : index
    %449 = vector.load %arg3[%c0_168, %c0_169] : memref<1152x256xbf16, #tpu.memory_space<vmem>>, vector<128x256xbf16>
    %450 = arith.truncf %448 : vector<8x128xf32> to vector<8x128xbf16>
    %cst_170 = arith.constant dense<0.000000e+00> : vector<8x256xf32>
    %451 = tpu.matmul %450, %449, %cst_170 {dimension_numbers = #tpu.dot_dimension_numbers<[1], [0], [0], [1], [0, 0, 1, 1], [], []>} : vector<8x128xbf16>, vector<128x256xbf16>, vector<8x256xf32> -> vector<8x256xf32>
    %c128_171 = arith.constant 128 : index
    %c0_172 = arith.constant 0 : index
    %452 = vector.load %arg3[%c128_171, %c0_172] : memref<1152x256xbf16, #tpu.memory_space<vmem>>, vector<128x256xbf16>
    %453 = arith.truncf %402 : vector<8x128xf32> to vector<8x128xbf16>
    %cst_173 = arith.constant dense<0.000000e+00> : vector<8x256xf32>
    %454 = tpu.matmul %453, %452, %cst_173 {dimension_numbers = #tpu.dot_dimension_numbers<[1], [0], [0], [1], [0, 0, 1, 1], [], []>} : vector<8x128xbf16>, vector<128x256xbf16>, vector<8x256xf32> -> vector<8x256xf32>
    %455 = arith.addf %451, %454 : vector<8x256xf32>
    %c7_i32 = arith.constant 7 : i32
    %456 = tpu.dynamic_rotate %402 by %c7_i32 dim 0 : vector<8x128xf32>, i32 -> vector<8x128xf32>
    %cst_174 = arith.constant 0.000000e+00 : f32
    %457 = vector.shape_cast %438 : vector<8x1xi1> to vector<8x1xi1>
    %458 = vector.broadcast %457 : vector<8x1xi1> to vector<8x128xi1>
    %459 = vector.broadcast %cst_174 : f32 to vector<8x128xf32>
    %460 = arith.select %458, %456, %459 : vector<8x128xi1>, vector<8x128xf32>
    %c256_175 = arith.constant 256 : index
    %c0_176 = arith.constant 0 : index
    %461 = vector.load %arg3[%c256_175, %c0_176] : memref<1152x256xbf16, #tpu.memory_space<vmem>>, vector<128x256xbf16>
    %462 = arith.truncf %460 : vector<8x128xf32> to vector<8x128xbf16>
    %cst_177 = arith.constant dense<0.000000e+00> : vector<8x256xf32>
    %463 = tpu.matmul %462, %461, %cst_177 {dimension_numbers = #tpu.dot_dimension_numbers<[1], [0], [0], [1], [0, 0, 1, 1], [], []>} : vector<8x128xbf16>, vector<128x256xbf16>, vector<8x256xf32> -> vector<8x256xf32>
    %464 = arith.addf %455, %463 : vector<8x256xf32>
    %465 = vector.broadcast %439 : vector<1x256xf32> to vector<8x256xf32>
    %466 = arith.addf %464, %465 : vector<8x256xf32>
    %467 = vector.extract_strided_slice %466 {offsets = [0, 128], sizes = [8, 128], strides = [1, 1]} : vector<8x256xf32> to vector<8x128xf32>
    %cst_178 = arith.constant dense<0.000000e+00> : vector<1x128xf32>
    %468 = tpu.matmul %403, %467, %cst_178 {dimension_numbers = #tpu.dot_dimension_numbers<[1], [0], [0], [1], [0, 0, 1, 1], [], []>} : vector<1x8xf32>, vector<8x128xf32>, vector<1x128xf32> -> vector<1x128xf32>
    %469 = arith.mulf %467, %467 : vector<8x128xf32>
    %cst_179 = arith.constant dense<0.000000e+00> : vector<1x128xf32>
    %470 = tpu.matmul %403, %469, %cst_179 {dimension_numbers = #tpu.dot_dimension_numbers<[1], [0], [0], [1], [0, 0, 1, 1], [], []>} : vector<1x8xf32>, vector<8x128xf32>, vector<1x128xf32> -> vector<1x128xf32>
    %cst_180 = arith.constant 1.250000e-01 : f32
    %471 = vector.broadcast %cst_180 : f32 to vector<1x128xf32>
    %472 = arith.mulf %468, %471 : vector<1x128xf32>
    %cst_181 = arith.constant 1.250000e-01 : f32
    %473 = vector.broadcast %cst_181 : f32 to vector<1x128xf32>
    %474 = arith.mulf %470, %473 : vector<1x128xf32>
    %475 = arith.mulf %472, %472 : vector<1x128xf32>
    %476 = arith.subf %474, %475 : vector<1x128xf32>
    %477 = vector.broadcast %472 : vector<1x128xf32> to vector<8x128xf32>
    %478 = arith.subf %467, %477 : vector<8x128xf32>
    %cst_182 = arith.constant 9.99999974E-6 : f32
    %479 = vector.broadcast %cst_182 : f32 to vector<1x128xf32>
    %480 = arith.addf %476, %479 : vector<1x128xf32>
    %481 = math.rsqrt %480 : vector<1x128xf32>
    %482 = arith.mulf %481, %442 : vector<1x128xf32>
    %483 = vector.broadcast %482 : vector<1x128xf32> to vector<8x128xf32>
    %484 = arith.mulf %478, %483 : vector<8x128xf32>
    %485 = vector.broadcast %443 : vector<1x128xf32> to vector<8x128xf32>
    %486 = arith.addf %484, %485 : vector<8x128xf32>
    %487 = vector.extract_strided_slice %466 {offsets = [0, 0], sizes = [8, 128], strides = [1, 1]} : vector<8x256xf32> to vector<8x128xf32>
    %cst_183 = arith.constant dense<0.000000e+00> : vector<1x128xf32>
    %488 = tpu.matmul %403, %487, %cst_183 {dimension_numbers = #tpu.dot_dimension_numbers<[1], [0], [0], [1], [0, 0, 1, 1], [], []>} : vector<1x8xf32>, vector<8x128xf32>, vector<1x128xf32> -> vector<1x128xf32>
    %489 = arith.mulf %487, %487 : vector<8x128xf32>
    %cst_184 = arith.constant dense<0.000000e+00> : vector<1x128xf32>
    %490 = tpu.matmul %403, %489, %cst_184 {dimension_numbers = #tpu.dot_dimension_numbers<[1], [0], [0], [1], [0, 0, 1, 1], [], []>} : vector<1x8xf32>, vector<8x128xf32>, vector<1x128xf32> -> vector<1x128xf32>
    %cst_185 = arith.constant 1.250000e-01 : f32
    %491 = vector.broadcast %cst_185 : f32 to vector<1x128xf32>
    %492 = arith.mulf %488, %491 : vector<1x128xf32>
    %cst_186 = arith.constant 1.250000e-01 : f32
    %493 = vector.broadcast %cst_186 : f32 to vector<1x128xf32>
    %494 = arith.mulf %490, %493 : vector<1x128xf32>
    %495 = arith.mulf %492, %492 : vector<1x128xf32>
    %496 = arith.subf %494, %495 : vector<1x128xf32>
    %497 = vector.broadcast %492 : vector<1x128xf32> to vector<8x128xf32>
    %498 = arith.subf %487, %497 : vector<8x128xf32>
    %cst_187 = arith.constant 9.99999974E-6 : f32
    %499 = vector.broadcast %cst_187 : f32 to vector<1x128xf32>
    %500 = arith.addf %496, %499 : vector<1x128xf32>
    %501 = math.rsqrt %500 : vector<1x128xf32>
    %502 = arith.mulf %501, %442 : vector<1x128xf32>
    %503 = vector.broadcast %502 : vector<1x128xf32> to vector<8x128xf32>
    %504 = arith.mulf %498, %503 : vector<8x128xf32>
    %505 = vector.broadcast %443 : vector<1x128xf32> to vector<8x128xf32>
    %506 = arith.addf %504, %505 : vector<8x128xf32>
    %cst_188 = arith.constant 0.000000e+00 : f32
    %507 = vector.broadcast %cst_188 : f32 to vector<8x128xf32>
    %508 = arith.maximumf %506, %507 : vector<8x128xf32>
    %c1_i32_189 = arith.constant 1 : i32
    %509 = tpu.dynamic_rotate %508 by %c1_i32_189 dim 0 : vector<8x128xf32>, i32 -> vector<8x128xf32>
    %cst_190 = arith.constant 0.000000e+00 : f32
    %510 = vector.shape_cast %429 : vector<8x1xi1> to vector<8x1xi1>
    %511 = vector.broadcast %510 : vector<8x1xi1> to vector<8x128xi1>
    %512 = vector.broadcast %cst_190 : f32 to vector<8x128xf32>
    %513 = arith.select %511, %509, %512 : vector<8x128xi1>, vector<8x128xf32>
    %c384_191 = arith.constant 384 : index
    %c0_192 = arith.constant 0 : index
    %514 = vector.load %arg3[%c384_191, %c0_192] : memref<1152x256xbf16, #tpu.memory_space<vmem>>, vector<128x128xbf16>
    %515 = arith.truncf %513 : vector<8x128xf32> to vector<8x128xbf16>
    %cst_193 = arith.constant dense<0.000000e+00> : vector<8x128xf32>
    %516 = tpu.matmul %515, %514, %cst_193 {dimension_numbers = #tpu.dot_dimension_numbers<[1], [0], [0], [1], [0, 0, 1, 1], [], []>} : vector<8x128xbf16>, vector<128x128xbf16>, vector<8x128xf32> -> vector<8x128xf32>
    %c512_194 = arith.constant 512 : index
    %c0_195 = arith.constant 0 : index
    %517 = vector.load %arg3[%c512_194, %c0_195] : memref<1152x256xbf16, #tpu.memory_space<vmem>>, vector<128x128xbf16>
    %518 = arith.truncf %508 : vector<8x128xf32> to vector<8x128xbf16>
    %cst_196 = arith.constant dense<0.000000e+00> : vector<8x128xf32>
    %519 = tpu.matmul %518, %517, %cst_196 {dimension_numbers = #tpu.dot_dimension_numbers<[1], [0], [0], [1], [0, 0, 1, 1], [], []>} : vector<8x128xbf16>, vector<128x128xbf16>, vector<8x128xf32> -> vector<8x128xf32>
    %520 = arith.addf %516, %519 : vector<8x128xf32>
    %c7_i32_197 = arith.constant 7 : i32
    %521 = tpu.dynamic_rotate %508 by %c7_i32_197 dim 0 : vector<8x128xf32>, i32 -> vector<8x128xf32>
    %cst_198 = arith.constant 0.000000e+00 : f32
    %522 = vector.shape_cast %438 : vector<8x1xi1> to vector<8x1xi1>
    %523 = vector.broadcast %522 : vector<8x1xi1> to vector<8x128xi1>
    %524 = vector.broadcast %cst_198 : f32 to vector<8x128xf32>
    %525 = arith.select %523, %521, %524 : vector<8x128xi1>, vector<8x128xf32>
    %c640_199 = arith.constant 640 : index
    %c0_200 = arith.constant 0 : index
    %526 = vector.load %arg3[%c640_199, %c0_200] : memref<1152x256xbf16, #tpu.memory_space<vmem>>, vector<128x128xbf16>
    %527 = arith.truncf %525 : vector<8x128xf32> to vector<8x128xbf16>
    %cst_201 = arith.constant dense<0.000000e+00> : vector<8x128xf32>
    %528 = tpu.matmul %527, %526, %cst_201 {dimension_numbers = #tpu.dot_dimension_numbers<[1], [0], [0], [1], [0, 0, 1, 1], [], []>} : vector<8x128xbf16>, vector<128x128xbf16>, vector<8x128xf32> -> vector<8x128xf32>
    %529 = arith.addf %520, %528 : vector<8x128xf32>
    %530 = vector.broadcast %440 : vector<1x128xf32> to vector<8x128xf32>
    %531 = arith.addf %529, %530 : vector<8x128xf32>
    %cst_202 = arith.constant dense<0.000000e+00> : vector<1x128xf32>
    %532 = tpu.matmul %403, %531, %cst_202 {dimension_numbers = #tpu.dot_dimension_numbers<[1], [0], [0], [1], [0, 0, 1, 1], [], []>} : vector<1x8xf32>, vector<8x128xf32>, vector<1x128xf32> -> vector<1x128xf32>
    %533 = arith.mulf %531, %531 : vector<8x128xf32>
    %cst_203 = arith.constant dense<0.000000e+00> : vector<1x128xf32>
    %534 = tpu.matmul %403, %533, %cst_203 {dimension_numbers = #tpu.dot_dimension_numbers<[1], [0], [0], [1], [0, 0, 1, 1], [], []>} : vector<1x8xf32>, vector<8x128xf32>, vector<1x128xf32> -> vector<1x128xf32>
    %cst_204 = arith.constant 1.250000e-01 : f32
    %535 = vector.broadcast %cst_204 : f32 to vector<1x128xf32>
    %536 = arith.mulf %532, %535 : vector<1x128xf32>
    %cst_205 = arith.constant 1.250000e-01 : f32
    %537 = vector.broadcast %cst_205 : f32 to vector<1x128xf32>
    %538 = arith.mulf %534, %537 : vector<1x128xf32>
    %539 = arith.mulf %536, %536 : vector<1x128xf32>
    %540 = arith.subf %538, %539 : vector<1x128xf32>
    %541 = vector.broadcast %536 : vector<1x128xf32> to vector<8x128xf32>
    %542 = arith.subf %531, %541 : vector<8x128xf32>
    %cst_206 = arith.constant 9.99999974E-6 : f32
    %543 = vector.broadcast %cst_206 : f32 to vector<1x128xf32>
    %544 = arith.addf %540, %543 : vector<1x128xf32>
    %545 = math.rsqrt %544 : vector<1x128xf32>
    %546 = arith.mulf %545, %442 : vector<1x128xf32>
    %547 = vector.broadcast %546 : vector<1x128xf32> to vector<8x128xf32>
    %548 = arith.mulf %542, %547 : vector<8x128xf32>
    %549 = vector.broadcast %443 : vector<1x128xf32> to vector<8x128xf32>
    %550 = arith.addf %548, %549 : vector<8x128xf32>
    %cst_207 = arith.constant 0.000000e+00 : f32
    %551 = vector.broadcast %cst_207 : f32 to vector<8x128xf32>
    %552 = arith.maximumf %550, %551 : vector<8x128xf32>
    %c1_i32_208 = arith.constant 1 : i32
    %553 = tpu.dynamic_rotate %552 by %c1_i32_208 dim 0 : vector<8x128xf32>, i32 -> vector<8x128xf32>
    %cst_209 = arith.constant 0.000000e+00 : f32
    %554 = vector.shape_cast %429 : vector<8x1xi1> to vector<8x1xi1>
    %555 = vector.broadcast %554 : vector<8x1xi1> to vector<8x128xi1>
    %556 = vector.broadcast %cst_209 : f32 to vector<8x128xf32>
    %557 = arith.select %555, %553, %556 : vector<8x128xi1>, vector<8x128xf32>
    %c768_210 = arith.constant 768 : index
    %c0_211 = arith.constant 0 : index
    %558 = vector.load %arg3[%c768_210, %c0_211] : memref<1152x256xbf16, #tpu.memory_space<vmem>>, vector<128x128xbf16>
    %559 = arith.truncf %557 : vector<8x128xf32> to vector<8x128xbf16>
    %cst_212 = arith.constant dense<0.000000e+00> : vector<8x128xf32>
    %560 = tpu.matmul %559, %558, %cst_212 {dimension_numbers = #tpu.dot_dimension_numbers<[1], [0], [0], [1], [0, 0, 1, 1], [], []>} : vector<8x128xbf16>, vector<128x128xbf16>, vector<8x128xf32> -> vector<8x128xf32>
    %c896_213 = arith.constant 896 : index
    %c0_214 = arith.constant 0 : index
    %561 = vector.load %arg3[%c896_213, %c0_214] : memref<1152x256xbf16, #tpu.memory_space<vmem>>, vector<128x128xbf16>
    %562 = arith.truncf %552 : vector<8x128xf32> to vector<8x128xbf16>
    %cst_215 = arith.constant dense<0.000000e+00> : vector<8x128xf32>
    %563 = tpu.matmul %562, %561, %cst_215 {dimension_numbers = #tpu.dot_dimension_numbers<[1], [0], [0], [1], [0, 0, 1, 1], [], []>} : vector<8x128xbf16>, vector<128x128xbf16>, vector<8x128xf32> -> vector<8x128xf32>
    %564 = arith.addf %560, %563 : vector<8x128xf32>
    %c7_i32_216 = arith.constant 7 : i32
    %565 = tpu.dynamic_rotate %552 by %c7_i32_216 dim 0 : vector<8x128xf32>, i32 -> vector<8x128xf32>
    %cst_217 = arith.constant 0.000000e+00 : f32
    %566 = vector.shape_cast %438 : vector<8x1xi1> to vector<8x1xi1>
    %567 = vector.broadcast %566 : vector<8x1xi1> to vector<8x128xi1>
    %568 = vector.broadcast %cst_217 : f32 to vector<8x128xf32>
    %569 = arith.select %567, %565, %568 : vector<8x128xi1>, vector<8x128xf32>
    %c1024_218 = arith.constant 1024 : index
    %c0_219 = arith.constant 0 : index
    %570 = vector.load %arg3[%c1024_218, %c0_219] : memref<1152x256xbf16, #tpu.memory_space<vmem>>, vector<128x128xbf16>
    %571 = arith.truncf %569 : vector<8x128xf32> to vector<8x128xbf16>
    %cst_220 = arith.constant dense<0.000000e+00> : vector<8x128xf32>
    %572 = tpu.matmul %571, %570, %cst_220 {dimension_numbers = #tpu.dot_dimension_numbers<[1], [0], [0], [1], [0, 0, 1, 1], [], []>} : vector<8x128xbf16>, vector<128x128xbf16>, vector<8x128xf32> -> vector<8x128xf32>
    %573 = arith.addf %564, %572 : vector<8x128xf32>
    %574 = vector.broadcast %441 : vector<1x128xf32> to vector<8x128xf32>
    %575 = arith.addf %573, %574 : vector<8x128xf32>
    %cst_221 = arith.constant dense<0.000000e+00> : vector<1x128xf32>
    %576 = tpu.matmul %403, %575, %cst_221 {dimension_numbers = #tpu.dot_dimension_numbers<[1], [0], [0], [1], [0, 0, 1, 1], [], []>} : vector<1x8xf32>, vector<8x128xf32>, vector<1x128xf32> -> vector<1x128xf32>
    %577 = arith.mulf %575, %575 : vector<8x128xf32>
    %cst_222 = arith.constant dense<0.000000e+00> : vector<1x128xf32>
    %578 = tpu.matmul %403, %577, %cst_222 {dimension_numbers = #tpu.dot_dimension_numbers<[1], [0], [0], [1], [0, 0, 1, 1], [], []>} : vector<1x8xf32>, vector<8x128xf32>, vector<1x128xf32> -> vector<1x128xf32>
    %cst_223 = arith.constant 1.250000e-01 : f32
    %579 = vector.broadcast %cst_223 : f32 to vector<1x128xf32>
    %580 = arith.mulf %576, %579 : vector<1x128xf32>
    %cst_224 = arith.constant 1.250000e-01 : f32
    %581 = vector.broadcast %cst_224 : f32 to vector<1x128xf32>
    %582 = arith.mulf %578, %581 : vector<1x128xf32>
    %583 = arith.mulf %580, %580 : vector<1x128xf32>
    %584 = arith.subf %582, %583 : vector<1x128xf32>
    %585 = vector.broadcast %580 : vector<1x128xf32> to vector<8x128xf32>
    %586 = arith.subf %575, %585 : vector<8x128xf32>
    %cst_225 = arith.constant 9.99999974E-6 : f32
    %587 = vector.broadcast %cst_225 : f32 to vector<1x128xf32>
    %588 = arith.addf %584, %587 : vector<1x128xf32>
    %589 = math.rsqrt %588 : vector<1x128xf32>
    %590 = arith.mulf %589, %442 : vector<1x128xf32>
    %591 = vector.broadcast %590 : vector<1x128xf32> to vector<8x128xf32>
    %592 = arith.mulf %586, %591 : vector<8x128xf32>
    %593 = vector.broadcast %443 : vector<1x128xf32> to vector<8x128xf32>
    %594 = arith.addf %592, %593 : vector<8x128xf32>
    %595 = arith.addf %594, %486 : vector<8x128xf32>
    %cst_226 = arith.constant 0.000000e+00 : f32
    %596 = vector.broadcast %cst_226 : f32 to vector<8x128xf32>
    %597 = arith.maximumf %595, %596 : vector<8x128xf32>
    %598 = vector.shape_cast %597 : vector<8x128xf32> to vector<2x4x128xf32>
    %599 = vector.shape_cast %598 : vector<2x4x128xf32> to vector<2x2x2x128xf32>
    %cst_227 = arith.constant dense<0.000000e+00> : vector<2x2x128xf32>
    %600 = vector.multi_reduction <add>, %599, %cst_227 [2] : vector<2x2x2x128xf32> to vector<2x2x128xf32>
    %cst_228 = arith.constant 2.000000e+00 : f32
    %601 = vector.broadcast %cst_228 : f32 to vector<2x2x128xf32>
    %602 = arith.divf %600, %601 : vector<2x2x128xf32>
    %603 = vector.shape_cast %602 : vector<2x2x128xf32> to vector<4x128xf32>
    %604 = vector.shape_cast %603 : vector<4x128xf32> to vector<2x256xf32>
    %c0_229 = arith.constant 0 : index
    %c0_230 = arith.constant 0 : index
    %605 = vector.load %arg4[%c0_229, %c0_230] : memref<512x128xbf16, #tpu.memory_space<vmem>>, vector<256x128xbf16>
    %c24 = arith.constant 24 : index
    %c0_231 = arith.constant 0 : index
    %606 = vector.load %arg5[%c24, %c0_231] : memref<32x256xf32, #tpu.memory_space<vmem>>, vector<1x128xf32>
    %607 = arith.truncf %604 : vector<2x256xf32> to vector<2x256xbf16>
    %cst_232 = arith.constant dense<0.000000e+00> : vector<2x128xf32>
    %608 = tpu.matmul %607, %605, %cst_232 {dimension_numbers = #tpu.dot_dimension_numbers<[1], [0], [0], [1], [0, 0, 1, 1], [], []>} : vector<2x256xbf16>, vector<256x128xbf16>, vector<2x128xf32> -> vector<2x128xf32>
    %609 = vector.broadcast %606 : vector<1x128xf32> to vector<2x128xf32>
    %610 = arith.addf %608, %609 : vector<2x128xf32>
    %cst_233 = arith.constant 0.000000e+00 : f32
    %611 = vector.broadcast %cst_233 : f32 to vector<2x128xf32>
    %612 = arith.maximumf %610, %611 : vector<2x128xf32>
    %c256_234 = arith.constant 256 : index
    %c0_235 = arith.constant 0 : index
    %613 = vector.load %arg4[%c256_234, %c0_235] : memref<512x128xbf16, #tpu.memory_space<vmem>>, vector<128x128xbf16>
    %c25 = arith.constant 25 : index
    %c0_236 = arith.constant 0 : index
    %614 = vector.load %arg5[%c25, %c0_236] : memref<32x256xf32, #tpu.memory_space<vmem>>, vector<1x128xf32>
    %615 = arith.truncf %612 : vector<2x128xf32> to vector<2x128xbf16>
    %cst_237 = arith.constant dense<0.000000e+00> : vector<2x128xf32>
    %616 = tpu.matmul %615, %613, %cst_237 {dimension_numbers = #tpu.dot_dimension_numbers<[1], [0], [0], [1], [0, 0, 1, 1], [], []>} : vector<2x128xbf16>, vector<128x128xbf16>, vector<2x128xf32> -> vector<2x128xf32>
    %617 = vector.broadcast %614 : vector<1x128xf32> to vector<2x128xf32>
    %618 = arith.addf %616, %617 : vector<2x128xf32>
    %cst_238 = arith.constant 0.000000e+00 : f32
    %619 = vector.broadcast %cst_238 : f32 to vector<2x128xf32>
    %620 = arith.maximumf %618, %619 : vector<2x128xf32>
    %c384_239 = arith.constant 384 : index
    %c0_240 = arith.constant 0 : index
    %621 = vector.load %arg4[%c384_239, %c0_240] : memref<512x128xbf16, #tpu.memory_space<vmem>>, vector<128x128xbf16>
    %c26 = arith.constant 26 : index
    %c0_241 = arith.constant 0 : index
    %622 = vector.load %arg5[%c26, %c0_241] : memref<32x256xf32, #tpu.memory_space<vmem>>, vector<1x128xf32>
    %623 = arith.truncf %620 : vector<2x128xf32> to vector<2x128xbf16>
    %cst_242 = arith.constant dense<0.000000e+00> : vector<2x128xf32>
    %624 = tpu.matmul %623, %621, %cst_242 {dimension_numbers = #tpu.dot_dimension_numbers<[1], [0], [0], [1], [0, 0, 1, 1], [], []>} : vector<2x128xbf16>, vector<128x128xbf16>, vector<2x128xf32> -> vector<2x128xf32>
    %625 = vector.broadcast %622 : vector<1x128xf32> to vector<2x128xf32>
    %626 = arith.addf %624, %625 : vector<2x128xf32>
    %627 = vector.extract_strided_slice %626 {offsets = [0, 0], sizes = [2, 1], strides = [1, 1]} : vector<2x128xf32> to vector<2x1xf32>
    %cst_243 = arith.constant 0.000000e+00 : f32
    %628 = vector.broadcast %cst_243 : f32 to vector<2x1xf32>
    %629 = arith.subf %628, %627 : vector<2x1xf32>
    %630 = math.exp %629 : vector<2x1xf32>
    %cst_244 = arith.constant 1.000000e+00 : f32
    %631 = vector.broadcast %cst_244 : f32 to vector<2x1xf32>
    %632 = arith.addf %631, %630 : vector<2x1xf32>
    %633 = tpu.reciprocal %632 {approx = true} : vector<2x1xf32> -> vector<2x1xf32>
    %c0_245 = arith.constant 0 : index
    %c0_246 = arith.constant 0 : index
    %634 = vector.load %arg6[%c0_245, %c0_246] : memref<2x1xf32, #tpu.memory_space<vmem>>, vector<2x1xf32>
    tpu.vector_store %arg6[%c0_245, %c0_246], %633 {strides = array<i32>} : memref<2x1xf32, #tpu.memory_space<vmem>>, vector<2x1xf32>,
    return
  }
}

</mosaic_0001>

<llo_original>
// kernel: tpu_custom_call.1
$region0: #{tpu_custom_call.1}
  #allocation0 [shape = 'u32[]', space=smem, size = 0x4, offset = 0x4, fixed_abs, tag = 'smem constant byte address 0x4 - core index']
  #allocation1 [shape = 'u32[144,128]{1,0:T(1,128)}', space=vmem, size = 0x12000, scoped, tag = 'internal scratch']
  %s0 = inlined_call_operand.vmem [shape: f32[32,16], index: 0, kind: input, shape index: {}]
  %s1 = inlined_call_operand.hbm [shape: bf16[816,256], index: 1, kind: input, shape index: {}]
  %s2 = inlined_call_operand.hbm [shape: bf16[1152,256], index: 2, kind: input, shape index: {}]
  %s3 = inlined_call_operand.hbm [shape: bf16[1152,256], index: 3, kind: input, shape index: {}]
  %s4 = inlined_call_operand.hbm [shape: bf16[512,128], index: 4, kind: input, shape index: {}]
  %s5 = inlined_call_operand.vmem [shape: f32[32,256], index: 5, kind: input, shape index: {}]
  %s6 = inlined_call_operand.vmem [shape: f32[2,1], index: 6, kind: output, shape index: {}]
  %s7 = sld [smem:[#allocation0]]
  $region50: #{tpu_custom_call.1} parent=0
    _
  %s9 = ssub.s32 1, %s7
  %s10 = scalar_select 0, %s9, %s7
  $region1: #{tpu_custom_call.1} parent=0
    #allocation2 [shape = 'u8[417792]{0}', space=vmem, size = 0x66000, scoped, tag = 'input window, operand 1, single buffered']
    #allocation3 [shape = 's32[1]{0}', space=sflag, size = 0x4, scoped, tag = 'scoped memory for tpu_custom_call.1']
    #allocation4 [shape = 'u8[589824]{0}', space=vmem, size = 0x90000, scoped, tag = 'input window, operand 2, single buffered']
    #allocation5 [shape = 's32[1]{0}', space=sflag, size = 0x4, scoped, tag = 'scoped memory for tpu_custom_call.1']
    #allocation6 [shape = 'u8[589824]{0}', space=vmem, size = 0x90000, scoped, tag = 'input window, operand 3, single buffered']
    #allocation7 [shape = 'u8[131072]{0}', space=vmem, size = 0x20000, scoped, tag = 'input window, operand 4, single buffered']
    #allocation8 [shape = 's32[1]{0}', space=sflag, size = 0x4, scoped, tag = 'scoped memory for tpu_custom_call.1']
    %11 = vsyncpa [#allocation3], 0
    %12 = vsyncpa [#allocation5], 0
    %13 = vsyncpa [#allocation8], 0
    // Predicated region
    $region2: #{tpu_custom_call.1} parent=1 // pred_check
      _
    $region3: #{tpu_custom_call.1} parent=1 // pred_check_branch
      %15 = sbr.rel (0) target = $region5
    $region4: #{tpu_custom_call.1} parent=1 // pred_region
      _
    $region5: #{tpu_custom_call.1} parent=1 // pred_fallthru
      _
    // Predicated region
    $region6: #{tpu_custom_call.1} parent=1 // pred_check
      _
    $region7: #{tpu_custom_call.1} parent=1 // pred_check_branch
      %17 = sbr.rel (0) target = $region9
    $region8: #{tpu_custom_call.1} parent=1 // pred_region
      %s19 = ssub.s32 13056, 13056
      %20 = vsyncadd [#allocation3], %s19
      %s21 = sshll.u32 [#allocation2], 4
      %s22 = int_to_ptr.vmem [resolvable:$true] %s21
      %27 = dma.hbm_to_vmem [thread:$0]  %s1, 13056, %s22, [#allocation3], 128, 128, 8
    $region9: #{tpu_custom_call.1} parent=1 // pred_fallthru
      _
    // Predicated region
    $region10: #{tpu_custom_call.1} parent=1 // pred_check
      _
    $region11: #{tpu_custom_call.1} parent=1 // pred_check_branch
      %29 = sbr.rel (0) target = $region13
    $region12: #{tpu_custom_call.1} parent=1 // pred_region
      %s31 = ssub.s32 18432, 18432
      %32 = vsyncadd [#allocation5], %s31
      %s33 = sshll.u32 [#allocation4], 4
      %s34 = int_to_ptr.vmem [resolvable:$true] %s33
      %39 = dma.hbm_to_vmem [thread:$0]  %s2, 18432, %s34, [#allocation5], 128, 128, 8
    $region13: #{tpu_custom_call.1} parent=1 // pred_fallthru
      _
    // Predicated region
    $region14: #{tpu_custom_call.1} parent=1 // pred_check
      _
    $region15: #{tpu_custom_call.1} parent=1 // pred_check_branch
      %41 = sbr.rel (0) target = $region17
    $region16: #{tpu_custom_call.1} parent=1 // pred_region
      %s43 = ssub.s32 18432, 18432
      %44 = vsyncadd [#allocation5], %s43
      %s45 = sshll.u32 [#allocation6], 4
      %s46 = int_to_ptr.vmem [resolvable:$true] %s45
      %51 = dma.hbm_to_vmem [thread:$0]  %s3, 18432, %s46, [#allocation5], 128, 128, 8
    $region17: #{tpu_custom_call.1} parent=1 // pred_fallthru
      _
    // Predicated region
    $region18: #{tpu_custom_call.1} parent=1 // pred_check
      _
    $region19: #{tpu_custom_call.1} parent=1 // pred_check_branch
      %53 = sbr.rel (0) target = $region21
    $region20: #{tpu_custom_call.1} parent=1 // pred_region
      %s55 = ssub.s32 4096, 4096
      %56 = vsyncadd [#allocation8], %s55
      %s57 = sshll.u32 [#allocation7], 4
      %s58 = int_to_ptr.vmem [resolvable:$true] %s57
      %63 = dma.hbm_to_vmem [thread:$0]  %s4, 4096, %s58, [#allocation8], 64, 64, 4
    $region21: #{tpu_custom_call.1} parent=1 // pred_fallthru
      _
    // Predicated region
    $region22: #{tpu_custom_call.1} parent=1 // pred_check
      _
    $region23: #{tpu_custom_call.1} parent=1 // pred_check_branch
      %65 = sbr.rel (0) target = $region25
    $region24: #{tpu_custom_call.1} parent=1 // pred_region
      _
    $region25: #{tpu_custom_call.1} parent=1 // pred_fallthru
      _
    // Predicated region
    $region26: #{tpu_custom_call.1} parent=1 // pred_check
      _
    $region27: #{tpu_custom_call.1} parent=1 // pred_check_branch
      %67 = sbr.rel (0) target = $region29
    $region28: #{tpu_custom_call.1} parent=1 // pred_region
      %68 = dma.done [#allocation3], 13056
    $region29: #{tpu_custom_call.1} parent=1 // pred_fallthru
      _
    // Predicated region
    $region30: #{tpu_custom_call.1} parent=1 // pred_check
      _
    $region31: #{tpu_custom_call.1} parent=1 // pred_check_branch
      %70 = sbr.rel (0) target = $region33
    $region32: #{tpu_custom_call.1} parent=1 // pred_region
      %71 = dma.done [#allocation5], 18432
    $region33: #{tpu_custom_call.1} parent=1 // pred_fallthru
      _
    // Predicated region
    $region34: #{tpu_custom_call.1} parent=1 // pred_check
      _
    $region35: #{tpu_custom_call.1} parent=1 // pred_check_branch
      %73 = sbr.rel (0) target = $region37
    $region36: #{tpu_custom_call.1} parent=1 // pred_region
      %74 = dma.done [#allocation5], 18432
    $region37: #{tpu_custom_call.1} parent=1 // pred_fallthru
      _
    // Predicated region
    $region38: #{tpu_custom_call.1} parent=1 // pred_check
      _
    $region39: #{tpu_custom_call.1} parent=1 // pred_check_branch
      %76 = sbr.rel (0) target = $region41
    $region40: #{tpu_custom_call.1} parent=1 // pred_region
      %77 = dma.done [#allocation8], 4096
    $region41: #{tpu_custom_call.1} parent=1 // pred_fallthru
      _
    %v79 = vld [vmem:[%s0] sm:$0xff]
    %v80 = vld [vmem:[%s0 + $0x8] sm:$0xff]
    %v81 = vld [vmem:[%s0 + $0x10] sm:$0xff]
    %v82 = vld [vmem:[%s0 + $0x18] sm:$0xff]
    %v83 = vlaneseq
    %v84 = vshrl.u32 %v83, 7
    %v85 = vadd.s32 %v84, 8
    %v86 = vadd.s32 %v84, 16
    %v87 = vadd.s32 %v84, 24
    %vm88 = vcmp.lt.s32.totalorder %v84, 0
    %v89 = vsub.s32 0, %v84
    %v90 = vsel %vm88, %v89, %v84
    %v91 = vshrl.u32 %v90, 4
    %v92 = vand.u32 %v90, 15
    %v93 = vsub.s32 0, %v92
    %v94 = vsel %vm88, %v93, %v92
    %vm95 = vcmp.lt.s32.totalorder %v85, 0
    %v96 = vsub.s32 0, %v85
    %v97 = vsel %vm95, %v96, %v85
    %v98 = vshrl.u32 %v97, 4
    %v99 = vand.u32 %v97, 15
    %v100 = vsub.s32 0, %v99
    %v101 = vsel %vm95, %v100, %v99
    %vm102 = vcmp.lt.s32.totalorder %v86, 0
    %v103 = vsub.s32 0, %v86
    %v104 = vsel %vm102, %v103, %v86
    %v105 = vshrl.u32 %v104, 4
    %v106 = vand.u32 %v104, 15
    %v107 = vsub.s32 0, %v106
    %v108 = vsel %vm102, %v107, %v106
    %vm109 = vcmp.lt.s32.totalorder %v87, 0
    %v110 = vsub.s32 0, %v87
    %v111 = vsel %vm109, %v110, %v87
    %v112 = vshrl.u32 %v111, 4
    %v113 = vand.u32 %v111, 15
    %v114 = vsub.s32 0, %v113
    %v115 = vsel %vm109, %v114, %v113
    %vm116 = vcmp.ne.s32.totalorder %v94, 0
    %vm117 = vcmp.ne.s32.totalorder %v101, 0
    %vm118 = vcmp.ne.s32.totalorder %v108, 0
    %vm119 = vcmp.ne.s32.totalorder %v115, 0
    %vm120 = vcmp.lt.s32.totalorder %v94, 0
    %vm121 = vcmp.lt.s32.totalorder %v101, 0
    %vm122 = vcmp.lt.s32.totalorder %v108, 0
    %vm123 = vcmp.lt.s32.totalorder %v115, 0
    %vm124 = vmand %vm120, %vm116
    %vm125 = vmand %vm121, %vm117
    %vm126 = vmand %vm122, %vm118
    %vm127 = vmand %vm123, %vm119
    %v128 = vadd.s32 %v94, 16
    %v129 = vadd.s32 %v101, 16
    %v130 = vadd.s32 %v108, 16
    %v131 = vadd.s32 %v115, 16
    %v132 = vsel %vm124, %v128, %v94
    %v133 = vsel %vm125, %v129, %v101
    %v134 = vsel %vm126, %v130, %v108
    %v135 = vsel %vm127, %v131, %v115
    %v136 = vadd.s32 %v132, 4294967295
    %v137 = vadd.s32 %v133, 4294967295
    %v138 = vadd.s32 %v134, 4294967295
    %v139 = vadd.s32 %v135, 4294967295
    %vm140 = vcmp.ge.s32.totalorder %v136, 0
    %vm141 = vcmp.ge.s32.totalorder %v137, 0
    %vm142 = vcmp.ge.s32.totalorder %v138, 0
    %vm143 = vcmp.ge.s32.totalorder %v139, 0
    %vm144 = vcmp.lt.s32.totalorder %v136, 16
    %vm145 = vcmp.lt.s32.totalorder %v137, 16
    %vm146 = vcmp.lt.s32.totalorder %v138, 16
    %vm147 = vcmp.lt.s32.totalorder %v139, 16
    %vm148 = vmand %vm140, %vm144
    %vm149 = vmand %vm141, %vm145
    %vm150 = vmand %vm142, %vm146
    %vm151 = vmand %vm143, %vm147
    %v152 = vadd.s32 %v132, 1
    %v153 = vadd.s32 %v133, 1
    %v154 = vadd.s32 %v134, 1
    %v155 = vadd.s32 %v135, 1
    %vm156 = vcmp.ge.s32.totalorder %v152, 0
    %vm157 = vcmp.ge.s32.totalorder %v153, 0
    %vm158 = vcmp.ge.s32.totalorder %v154, 0
    %vm159 = vcmp.ge.s32.totalorder %v155, 0
    %vm160 = vcmp.lt.s32.totalorder %v152, 16
    %vm161 = vcmp.lt.s32.totalorder %v153, 16
    %vm162 = vcmp.lt.s32.totalorder %v154, 16
    %vm163 = vcmp.lt.s32.totalorder %v155, 16
    %vm164 = vmand %vm156, %vm160
    %vm165 = vmand %vm157, %vm161
    %vm166 = vmand %vm158, %vm162
    %vm167 = vmand %vm159, %vm163
    %v168 = vld [vmem:[%s5] ss:$8 sm:$0x3]
    %v169 = vld [vmem:[%s5 + $0x1] ss:$0 sm:$0xff]
    %v170 = vld [vmem:[%s5 + $0x2] ss:$0 sm:$0xff]
    %v171 = vld [vmem:[%s5 + $0x3] ss:$0 sm:$0xff]
    %v172 = vld [vmem:[%s5 + $0x4] ss:$0 sm:$0xff]
    %v173 = vrot.slane %v79, 7
    %v174 = vrot.slane %v80, 7
    %v175 = vrot.slane %v81, 7
    %v176 = vrot.slane %v82, 7
    %vm177 = vcmp.lt.s32.totalorder %v84, 1
    %v178 = vsel %vm177, %v175, %v176
    %v179 = vsel %vm177, %v174, %v175
    %v180 = vsel %vm177, %v173, %v174
    %v181 = vsel %vm177, %v176, %v173
    %v182 = vsel %vm148, 1, 0
    %v183 = vsel %vm149, 1, 0
    %v184 = vsel %vm150, 1, 0
    %v185 = vsel %vm151, 1, 0
    %vm186 = vcmp.eq.s32.totalorder %v182, 1
    %vm187 = vcmp.eq.s32.totalorder %v183, 1
    %vm188 = vcmp.eq.s32.totalorder %v184, 1
    %vm189 = vcmp.eq.s32.totalorder %v185, 1
    %v190 = vsel %vm186, %v181, 0.0
    %v191 = vsel %vm187, %v180, 0.0
    %v192 = vsel %vm188, %v179, 0.0
    %v193 = vsel %vm189, %v178, 0.0
    %v194 = vld [vmem:[#allocation2] sm:$0xff]
    %v195 = vld [vmem:[#allocation2 + $0x8] sm:$0xff]
    %v196 = vpack.c.bf16 %v191, %v190
    %v197 = vpack.c.bf16 %v193, %v192
    %v198 = vld [vmem:[#allocation2 + $0x10] sm:$0xff]
    %v199 = vld [vmem:[#allocation2 + $0x18] sm:$0xff]
    %v200 = vpack.c.bf16 %v80, %v79
    %v201 = vpack.c.bf16 %v82, %v81
    %v204 = vunpack.c.l.b16 %v198
    %v205 = vunpack.c.h.b16 %v198
    %v206 = vunpack.c.l.b16 %v199
    %v207 = vunpack.c.h.b16 %v199
    %v208 = vpack.c.b16 %v206, %v204
    %v209 = vpack.c.b16 %v207, %v205
    %vm212 = vcmask 130048
    %v214 = vsel %vm212, %v200, 0
    %v217 = vsel %vm212, %v201, 0
    %219 = vmatprep.subr.bf16.mxu0 %v209
    %220 = vmatpush1.bf16.msra.mxu0 %v208
    %221 = vmatprep.subr.bf16.mxu0 0
    %222 = vmatpush1.bf16.msra.mxu0 0
    %223 = vmatprep.subr.bf16.mxu0 0
    %224 = vmatpush1.bf16.msra.mxu0 0
    %225 = vmatprep.subr.bf16.mxu0 0
    %226 = vmatpush1.bf16.msra.mxu0 0
    %227 = vmatprep.subr.bf16.mxu0 0
    %228 = vmatpush1.bf16.msra.mxu0 0
    %229 = vmatprep.subr.bf16.mxu0 0
    %230 = vmatpush1.bf16.msra.mxu0 0
    %231 = vmatprep.subr.bf16.mxu0 0
    %232 = vmatpush1.bf16.msra.mxu0 0
    %233 = vmatprep.subr.bf16.mxu0 0
    %234 = vmatpush1.bf16.msra.mxu0 0
    %235 = vmatprep.subr.bf16.mxu0 0
    %236 = vmatpush1.bf16.msra.mxu0 0
    %237 = vmatprep.subr.bf16.mxu0 0
    %238 = vmatpush1.bf16.msra.mxu0 0
    %239 = vmatprep.subr.bf16.mxu0 0
    %240 = vmatpush1.bf16.msra.mxu0 0
    %241 = vmatprep.subr.bf16.mxu0 0
    %242 = vmatpush1.bf16.msra.mxu0 0
    %243 = vmatprep.subr.bf16.mxu0 0
    %244 = vmatpush1.bf16.msra.mxu0 0
    %245 = vmatprep.subr.bf16.mxu0 0
    %246 = vmatpush1.bf16.msra.mxu0 0
    %247 = vmatprep.subr.bf16.mxu0 0
    %248 = vmatpush1.bf16.msra.mxu0 0
    %249 = vmatprep.subr.bf16.mxu0 0
    %250 = vmatpush1.bf16.msra.mxu0 0
    %251 = vmatprep.mubr.bf16.mxu0 0
    %252 = vmatmul.mubr.bf16.gmra.mrb[0].mxu0 %v214
    %v253 = vpop.f32.mrb[0].mxu0
    %v254 = vadd.f32 0.0, %v253
    %v255 = vpop.f32.mrb[0].mxu0
    %v256 = vadd.f32 0.0, %v255
    %v257 = vpop.f32.mrb[0].mxu0
    %v258 = vadd.f32 0.0, %v257
    %v259 = vpop.f32.mrb[0].mxu0
    %v260 = vadd.f32 0.0, %v259
    %261 = vmatprep.mubr.bf16.mxu0 0
    %262 = vmatmul.mubr.bf16.gmra.mrb[0].mxu0 %v217
    %v263 = vpop.f32.mrb[0].mxu0
    %v264 = vadd.f32 0.0, %v263
    %v265 = vpop.f32.mrb[0].mxu0
    %v266 = vadd.f32 0.0, %v265
    %v267 = vpop.f32.mrb[0].mxu0
    %v268 = vadd.f32 0.0, %v267
    %v269 = vpop.f32.mrb[0].mxu0
    %v270 = vadd.f32 0.0, %v269
    %271 = vdwg.mxu0
    %v274 = vunpack.c.l.b16 %v194
    %v275 = vunpack.c.h.b16 %v194
    %v276 = vunpack.c.l.b16 %v195
    %v277 = vunpack.c.h.b16 %v195
    %v278 = vpack.c.b16 %v276, %v274
    %v279 = vpack.c.b16 %v277, %v275
    %v283 = vsel %vm212, %v196, 0
    %v286 = vsel %vm212, %v197, 0
    %288 = vmatprep.subr.bf16.mxu0 %v279
    %289 = vmatpush1.bf16.msra.mxu0 %v278
    %290 = vmatprep.subr.bf16.mxu0 0
    %291 = vmatpush1.bf16.msra.mxu0 0
    %292 = vmatprep.subr.bf16.mxu0 0
    %293 = vmatpush1.bf16.msra.mxu0 0
    %294 = vmatprep.subr.bf16.mxu0 0
    %295 = vmatpush1.bf16.msra.mxu0 0
    %296 = vmatprep.subr.bf16.mxu0 0
    %297 = vmatpush1.bf16.msra.mxu0 0
    %298 = vmatprep.subr.bf16.mxu0 0
    %299 = vmatpush1.bf16.msra.mxu0 0
    %300 = vmatprep.subr.bf16.mxu0 0
    %301 = vmatpush1.bf16.msra.mxu0 0
    %302 = vmatprep.subr.bf16.mxu0 0
    %303 = vmatpush1.bf16.msra.mxu0 0
    %304 = vmatprep.subr.bf16.mxu0 0
    %305 = vmatpush1.bf16.msra.mxu0 0
    %306 = vmatprep.subr.bf16.mxu0 0
    %307 = vmatpush1.bf16.msra.mxu0 0
    %308 = vmatprep.subr.bf16.mxu0 0
    %309 = vmatpush1.bf16.msra.mxu0 0
    %310 = vmatprep.subr.bf16.mxu0 0
    %311 = vmatpush1.bf16.msra.mxu0 0
    %312 = vmatprep.subr.bf16.mxu0 0
    %313 = vmatpush1.bf16.msra.mxu0 0
    %314 = vmatprep.subr.bf16.mxu0 0
    %315 = vmatpush1.bf16.msra.mxu0 0
    %316 = vmatprep.subr.bf16.mxu0 0
    %317 = vmatpush1.bf16.msra.mxu0 0
    %318 = vmatprep.subr.bf16.mxu0 0
    %319 = vmatpush1.bf16.msra.mxu0 0
    %320 = vmatprep.mubr.bf16.mxu0 0
    %321 = vmatmul.mubr.bf16.gmra.mrb[0].mxu0 %v283
    %v322 = vpop.f32.mrb[0].mxu0
    %v323 = vadd.f32 %v254, %v322
    %v324 = vpop.f32.mrb[0].mxu0
    %v325 = vadd.f32 %v256, %v324
    %v326 = vpop.f32.mrb[0].mxu0
    %v327 = vadd.f32 %v258, %v326
    %v328 = vpop.f32.mrb[0].mxu0
    %v329 = vadd.f32 %v260, %v328
    %330 = vmatprep.mubr.bf16.mxu0 0
    %331 = vmatmul.mubr.bf16.gmra.mrb[0].mxu0 %v286
    %v332 = vpop.f32.mrb[0].mxu0
    %v333 = vadd.f32 %v264, %v332
    %v334 = vpop.f32.mrb[0].mxu0
    %v335 = vadd.f32 %v266, %v334
    %v336 = vpop.f32.mrb[0].mxu0
    %v337 = vadd.f32 %v268, %v336
    %v338 = vpop.f32.mrb[0].mxu0
    %v339 = vadd.f32 %v270, %v338
    %340 = vdwg.mxu0
    %v341 = vrot.slane %v79, 1
    %v342 = vrot.slane %v80, 1
    %v343 = vrot.slane %v81, 1
    %v344 = vrot.slane %v82, 1
    %vm345 = vcmp.lt.s32.totalorder %v84, 7
    %v346 = vsel %vm345, %v343, %v344
    %v347 = vsel %vm345, %v342, %v343
    %v348 = vsel %vm345, %v341, %v342
    %v349 = vsel %vm345, %v344, %v341
    %v350 = vsel %vm164, 1, 0
    %v351 = vsel %vm165, 1, 0
    %v352 = vsel %vm166, 1, 0
    %v353 = vsel %vm167, 1, 0
    %vm354 = vcmp.eq.s32.totalorder %v350, 1
    %vm355 = vcmp.eq.s32.totalorder %v351, 1
    %vm356 = vcmp.eq.s32.totalorder %v352, 1
    %vm357 = vcmp.eq.s32.totalorder %v353, 1
    %v358 = vsel %vm354, %v348, 0.0
    %v359 = vsel %vm355, %v347, 0.0
    %v360 = vsel %vm356, %v346, 0.0
    %v361 = vsel %vm357, %v349, 0.0
    %v362 = vld [vmem:[#allocation2 + $0x20] sm:$0xff]
    %v363 = vld [vmem:[#allocation2 + $0x28] sm:$0xff]
    %v364 = vpack.c.bf16 %v359, %v358
    %v365 = vpack.c.bf16 %v361, %v360
    %v368 = vunpack.c.l.b16 %v362
    %v369 = vunpack.c.h.b16 %v362
    %v370 = vunpack.c.l.b16 %v363
    %v371 = vunpack.c.h.b16 %v363
    %v372 = vpack.c.b16 %v370, %v368
    %v373 = vpack.c.b16 %v371, %v369
    %v377 = vsel %vm212, %v364, 0
    %v380 = vsel %vm212, %v365, 0
    %382 = vmatprep.subr.bf16.mxu0 %v373
    %383 = vmatpush1.bf16.msra.mxu0 %v372
    %384 = vmatprep.subr.bf16.mxu0 0
    %385 = vmatpush1.bf16.msra.mxu0 0
    %386 = vmatprep.subr.bf16.mxu0 0
    %387 = vmatpush1.bf16.msra.mxu0 0
    %388 = vmatprep.subr.bf16.mxu0 0
    %389 = vmatpush1.bf16.msra.mxu0 0
    %390 = vmatprep.subr.bf16.mxu0 0
    %391 = vmatpush1.bf16.msra.mxu0 0
    %392 = vmatprep.subr.bf16.mxu0 0
    %393 = vmatpush1.bf16.msra.mxu0 0
    %394 = vmatprep.subr.bf16.mxu0 0
    %395 = vmatpush1.bf16.msra.mxu0 0
    %396 = vmatprep.subr.bf16.mxu0 0
    %397 = vmatpush1.bf16.msra.mxu0 0
    %398 = vmatprep.subr.bf16.mxu0 0
    %399 = vmatpush1.bf16.msra.mxu0 0
    %400 = vmatprep.subr.bf16.mxu0 0
    %401 = vmatpush1.bf16.msra.mxu0 0
    %402 = vmatprep.subr.bf16.mxu0 0
    %403 = vmatpush1.bf16.msra.mxu0 0
    %404 = vmatprep.subr.bf16.mxu0 0
    %405 = vmatpush1.bf16.msra.mxu0 0
    %406 = vmatprep.subr.bf16.mxu0 0
    %407 = vmatpush1.bf16.msra.mxu0 0
    %408 = vmatprep.subr.bf16.mxu0 0
    %409 = vmatpush1.bf16.msra.mxu0 0
    %410 = vmatprep.subr.bf16.mxu0 0
    %411 = vmatpush1.bf16.msra.mxu0 0
    %412 = vmatprep.subr.bf16.mxu0 0
    %413 = vmatpush1.bf16.msra.mxu0 0
    %414 = vmatprep.mubr.bf16.mxu0 0
    %415 = vmatmul.mubr.bf16.gmra.mrb[0].mxu0 %v377
    %v416 = vpop.f32.mrb[0].mxu0
    %v417 = vadd.f32 0.0, %v416
    %v418 = vpop.f32.mrb[0].mxu0
    %v419 = vadd.f32 0.0, %v418
    %v420 = vpop.f32.mrb[0].mxu0
    %v421 = vadd.f32 0.0, %v420
    %v422 = vpop.f32.mrb[0].mxu0
    %v423 = vadd.f32 0.0, %v422
    %424 = vmatprep.mubr.bf16.mxu0 0
    %425 = vmatmul.mubr.bf16.gmra.mrb[0].mxu0 %v380
    %v426 = vpop.f32.mrb[0].mxu0
    %v427 = vadd.f32 0.0, %v426
    %v428 = vpop.f32.mrb[0].mxu0
    %v429 = vadd.f32 0.0, %v428
    %v430 = vpop.f32.mrb[0].mxu0
    %v431 = vadd.f32 0.0, %v430
    %v432 = vpop.f32.mrb[0].mxu0
    %v433 = vadd.f32 0.0, %v432
    %434 = vdwg.mxu0
    %v435 = vadd.f32 %v323, %v417
    %v436 = vadd.f32 %v325, %v419
    %v437 = vadd.f32 %v327, %v421
    %v438 = vadd.f32 %v329, %v423
    %v439 = vadd.f32 %v333, %v427
    %v440 = vadd.f32 %v335, %v429
    %v441 = vadd.f32 %v337, %v431
    %v442 = vadd.f32 %v339, %v433
    %v444 = vlaneseq
    %v445 = vshrl.u32 %v444, 7
    %v446 = vsub.s32 0, %v445
    %v447 = vrot.slane %v168, %v446
    %v448 = vlaneseq
    %v449 = vshrl.u32 %v448, 7
    %v450 = vsub.s32 1, %v449
    %v451 = vrot.slane %v168, %v450
    %v454 = vadd.f32 %v435, %v447
    %v455 = vadd.f32 %v436, %v451
    %v456 = vadd.f32 %v437, %v447
    %v457 = vadd.f32 %v438, %v451
    %v458 = vadd.f32 %v439, %v447
    %v459 = vadd.f32 %v440, %v451
    %v460 = vadd.f32 %v441, %v447
    %v461 = vadd.f32 %v442, %v451
    %vm462 = vcmask 261120
    %v464 = vsel %vm462, 1.0, 0
    %466 = vmatprep.subr.mxu0 0.0
    %467 = vmatpush1.msra.mxu0 %v455
    %468 = vmatprep.subr.mxu0 0.0
    %469 = vmatpush1.msra.mxu0 %v457
    %470 = vmatprep.subr.mxu0 0.0
    %471 = vmatpush1.msra.mxu0 %v459
    %472 = vmatprep.subr.mxu0 0.0
    %473 = vmatpush1.msra.mxu0 %v461
    %474 = vmatprep.subr.mxu0 0.0
    %475 = vmatpush1.msra.mxu0 0.0
    %476 = vmatprep.subr.mxu0 0.0
    %477 = vmatpush1.msra.mxu0 0.0
    %478 = vmatprep.subr.mxu0 0.0
    %479 = vmatpush1.msra.mxu0 0.0
    %480 = vmatprep.subr.mxu0 0.0
    %481 = vmatpush1.msra.mxu0 0.0
    %482 = vmatprep.subr.mxu0 0.0
    %483 = vmatpush1.msra.mxu0 0.0
    %484 = vmatprep.subr.mxu0 0.0
    %485 = vmatpush1.msra.mxu0 0.0
    %486 = vmatprep.subr.mxu0 0.0
    %487 = vmatpush1.msra.mxu0 0.0
    %488 = vmatprep.subr.mxu0 0.0
    %489 = vmatpush1.msra.mxu0 0.0
    %490 = vmatprep.subr.mxu0 0.0
    %491 = vmatpush1.msra.mxu0 0.0
    %492 = vmatprep.subr.mxu0 0.0
    %493 = vmatpush1.msra.mxu0 0.0
    %494 = vmatprep.subr.mxu0 0.0
    %495 = vmatpush1.msra.mxu0 0.0
    %496 = vmatprep.subr.mxu0 0.0
    %497 = vmatpush1.msra.mxu0 0.0
    %498 = vmatprep.subr.mxu0 0.0
    %499 = vmatpush1.msra.mxu0 0.0
    %500 = vmatprep.subr.mxu0 0.0
    %501 = vmatpush1.msra.mxu0 0.0
    %502 = vmatprep.subr.mxu0 0.0
    %503 = vmatpush1.msra.mxu0 0.0
    %504 = vmatprep.subr.mxu0 0.0
    %505 = vmatpush1.msra.mxu0 0.0
    %506 = vmatprep.subr.mxu0 0.0
    %507 = vmatpush1.msra.mxu0 0.0
    %508 = vmatprep.subr.mxu0 0.0
    %509 = vmatpush1.msra.mxu0 0.0
    %510 = vmatprep.subr.mxu0 0.0
    %511 = vmatpush1.msra.mxu0 0.0
    %512 = vmatprep.subr.mxu0 0.0
    %513 = vmatpush1.msra.mxu0 0.0
    %514 = vmatprep.subr.mxu0 0.0
    %515 = vmatpush1.msra.mxu0 0.0
    %516 = vmatprep.subr.mxu0 0.0
    %517 = vmatpush1.msra.mxu0 0.0
    %518 = vmatprep.subr.mxu0 0.0
    %519 = vmatpush1.msra.mxu0 0.0
    %520 = vmatprep.subr.mxu0 0.0
    %521 = vmatpush1.msra.mxu0 0.0
    %522 = vmatprep.subr.mxu0 0.0
    %523 = vmatpush1.msra.mxu0 0.0
    %524 = vmatprep.subr.mxu0 0.0
    %525 = vmatpush1.msra.mxu0 0.0
    %526 = vmatprep.subr.mxu0 0.0
    %527 = vmatpush1.msra.mxu0 0.0
    %528 = vmatprep.subr.mxu0 0.0
    %529 = vmatpush1.msra.mxu0 0.0
    %530 = vmatprep.mubr.f32.mxu0 0.0
    %531 = vmatmul.mubr.f32.gmra.mrb[0].mxu0 %v464
    %v532 = vpop.f32.mrb[0].mxu0
    %v533 = vadd.f32 0.0, %v532
    %v534 = vpop.f32.mrb[0].mxu0
    %535 = vdwg.mxu0
    %v536 = vmul.f32 %v455, %v455
    %v537 = vmul.f32 %v457, %v457
    %v538 = vmul.f32 %v459, %v459
    %v539 = vmul.f32 %v461, %v461
    %540 = vmatprep.subr.mxu0 0.0
    %541 = vmatpush1.msra.mxu0 %v536
    %542 = vmatprep.subr.mxu0 0.0
    %543 = vmatpush1.msra.mxu0 %v537
    %544 = vmatprep.subr.mxu0 0.0
    %545 = vmatpush1.msra.mxu0 %v538
    %546 = vmatprep.subr.mxu0 0.0
    %547 = vmatpush1.msra.mxu0 %v539
    %548 = vmatprep.subr.mxu0 0.0
    %549 = vmatpush1.msra.mxu0 0.0
    %550 = vmatprep.subr.mxu0 0.0
    %551 = vmatpush1.msra.mxu0 0.0
    %552 = vmatprep.subr.mxu0 0.0
    %553 = vmatpush1.msra.mxu0 0.0
    %554 = vmatprep.subr.mxu0 0.0
    %555 = vmatpush1.msra.mxu0 0.0
    %556 = vmatprep.subr.mxu0 0.0
    %557 = vmatpush1.msra.mxu0 0.0
    %558 = vmatprep.subr.mxu0 0.0
    %559 = vmatpush1.msra.mxu0 0.0
    %560 = vmatprep.subr.mxu0 0.0
    %561 = vmatpush1.msra.mxu0 0.0
    %562 = vmatprep.subr.mxu0 0.0
    %563 = vmatpush1.msra.mxu0 0.0
    %564 = vmatprep.subr.mxu0 0.0
    %565 = vmatpush1.msra.mxu0 0.0
    %566 = vmatprep.subr.mxu0 0.0
    %567 = vmatpush1.msra.mxu0 0.0
    %568 = vmatprep.subr.mxu0 0.0
    %569 = vmatpush1.msra.mxu0 0.0
    %570 = vmatprep.subr.mxu0 0.0
    %571 = vmatpush1.msra.mxu0 0.0
    %572 = vmatprep.subr.mxu0 0.0
    %573 = vmatpush1.msra.mxu0 0.0
    %574 = vmatprep.subr.mxu0 0.0
    %575 = vmatpush1.msra.mxu0 0.0
    %576 = vmatprep.subr.mxu0 0.0
    %577 = vmatpush1.msra.mxu0 0.0
    %578 = vmatprep.subr.mxu0 0.0
    %579 = vmatpush1.msra.mxu0 0.0
    %580 = vmatprep.subr.mxu0 0.0
    %581 = vmatpush1.msra.mxu0 0.0
    %582 = vmatprep.subr.mxu0 0.0
    %583 = vmatpush1.msra.mxu0 0.0
    %584 = vmatprep.subr.mxu0 0.0
    %585 = vmatpush1.msra.mxu0 0.0
    %586 = vmatprep.subr.mxu0 0.0
    %587 = vmatpush1.msra.mxu0 0.0
    %588 = vmatprep.subr.mxu0 0.0
    %589 = vmatpush1.msra.mxu0 0.0
    %590 = vmatprep.subr.mxu0 0.0
    %591 = vmatpush1.msra.mxu0 0.0
    %592 = vmatprep.subr.mxu0 0.0
    %593 = vmatpush1.msra.mxu0 0.0
    %594 = vmatprep.subr.mxu0 0.0
    %595 = vmatpush1.msra.mxu0 0.0
    %596 = vmatprep.subr.mxu0 0.0
    %597 = vmatpush1.msra.mxu0 0.0
    %598 = vmatprep.subr.mxu0 0.0
    %599 = vmatpush1.msra.mxu0 0.0
    %600 = vmatprep.subr.mxu0 0.0
    %601 = vmatpush1.msra.mxu0 0.0
    %602 = vmatprep.subr.mxu0 0.0
    %603 = vmatpush1.msra.mxu0 0.0
    %604 = vmatprep.mubr.f32.mxu0 0.0
    %605 = vmatmul.mubr.f32.gmra.mrb[0].mxu0 %v464
    %v606 = vpop.f32.mrb[0].mxu0
    %v607 = vadd.f32 0.0, %v606
    %v608 = vpop.f32.mrb[0].mxu0
    %609 = vdwg.mxu0
    %v610 = vmul.f32 %v533, 0.03125
    %v611 = vmul.f32 %v607, 0.03125
    %v612 = vmul.f32 %v610, %v610
    %v613 = vsub.f32 %v611, %v612
    %v614 = vlaneseq
    %v615 = vshrl.u32 %v614, 7
    %v616 = vsub.s32 0, %v615
    %v617 = vrot.slane %v610, %v616
    %v618 = vsub.f32 %v455, %v617
    %v619 = vsub.f32 %v457, %v617
    %v620 = vsub.f32 %v459, %v617
    %v621 = vsub.f32 %v461, %v617
    %v622 = vadd.f32 %v613, 1e-05
    %v623 = vrsqrt.pop %v622
    %v624 = vmul.f32 %v623, %v171
    %v625 = vlaneseq
    %v626 = vshrl.u32 %v625, 7
    %v627 = vsub.s32 0, %v626
    %v628 = vrot.slane %v624, %v627
    %v629 = vmul.f32 %v618, %v628
    %v630 = vmul.f32 %v619, %v628
    %v631 = vmul.f32 %v620, %v628
    %v632 = vmul.f32 %v621, %v628
    %v633 = vadd.f32 %v629, %v172
    %v634 = vadd.f32 %v630, %v172
    %v635 = vadd.f32 %v631, %v172
    %v636 = vadd.f32 %v632, %v172
    %637 = vmatprep.subr.mxu0 0.0
    %638 = vmatpush1.msra.mxu0 %v454
    %639 = vmatprep.subr.mxu0 0.0
    %640 = vmatpush1.msra.mxu0 %v456
    %641 = vmatprep.subr.mxu0 0.0
    %642 = vmatpush1.msra.mxu0 %v458
    %643 = vmatprep.subr.mxu0 0.0
    %644 = vmatpush1.msra.mxu0 %v460
    %645 = vmatprep.subr.mxu0 0.0
    %646 = vmatpush1.msra.mxu0 0.0
    %647 = vmatprep.subr.mxu0 0.0
    %648 = vmatpush1.msra.mxu0 0.0
    %649 = vmatprep.subr.mxu0 0.0
    %650 = vmatpush1.msra.mxu0 0.0
    %651 = vmatprep.subr.mxu0 0.0
    %652 = vmatpush1.msra.mxu0 0.0
    %653 = vmatprep.subr.mxu0 0.0
    %654 = vmatpush1.msra.mxu0 0.0
    %655 = vmatprep.subr.mxu0 0.0
    %656 = vmatpush1.msra.mxu0 0.0
    %657 = vmatprep.subr.mxu0 0.0
    %658 = vmatpush1.msra.mxu0 0.0
    %659 = vmatprep.subr.mxu0 0.0
    %660 = vmatpush1.msra.mxu0 0.0
    %661 = vmatprep.subr.mxu0 0.0
    %662 = vmatpush1.msra.mxu0 0.0
    %663 = vmatprep.subr.mxu0 0.0
    %664 = vmatpush1.msra.mxu0 0.0
    %665 = vmatprep.subr.mxu0 0.0
    %666 = vmatpush1.msra.mxu0 0.0
    %667 = vmatprep.subr.mxu0 0.0
    %668 = vmatpush1.msra.mxu0 0.0
    %669 = vmatprep.subr.mxu0 0.0
    %670 = vmatpush1.msra.mxu0 0.0
    %671 = vmatprep.subr.mxu0 0.0
    %672 = vmatpush1.msra.mxu0 0.0
    %673 = vmatprep.subr.mxu0 0.0
    %674 = vmatpush1.msra.mxu0 0.0
    %675 = vmatprep.subr.mxu0 0.0
    %676 = vmatpush1.msra.mxu0 0.0
    %677 = vmatprep.subr.mxu0 0.0
    %678 = vmatpush1.msra.mxu0 0.0
    %679 = vmatprep.subr.mxu0 0.0
    %680 = vmatpush1.msra.mxu0 0.0
    %681 = vmatprep.subr.mxu0 0.0
    %682 = vmatpush1.msra.mxu0 0.0
    %683 = vmatprep.subr.mxu0 0.0
    %684 = vmatpush1.msra.mxu0 0.0
    %685 = vmatprep.subr.mxu0 0.0
    %686 = vmatpush1.msra.mxu0 0.0
    %687 = vmatprep.subr.mxu0 0.0
    %688 = vmatpush1.msra.mxu0 0.0
    %689 = vmatprep.subr.mxu0 0.0
    %690 = vmatpush1.msra.mxu0 0.0
    %691 = vmatprep.subr.mxu0 0.0
    %692 = vmatpush1.msra.mxu0 0.0
    %693 = vmatprep.subr.mxu0 0.0
    %694 = vmatpush1.msra.mxu0 0.0
    %695 = vmatprep.subr.mxu0 0.0
    %696 = vmatpush1.msra.mxu0 0.0
    %697 = vmatprep.subr.mxu0 0.0
    %698 = vmatpush1.msra.mxu0 0.0
    %699 = vmatprep.subr.mxu0 0.0
    %700 = vmatpush1.msra.mxu0 0.0
    %701 = vmatprep.mubr.f32.mxu0 0.0
    %702 = vmatmul.mubr.f32.gmra.mrb[0].mxu0 %v464
    %v703 = vpop.f32.mrb[0].mxu0
    %v704 = vadd.f32 0.0, %v703
    %v705 = vpop.f32.mrb[0].mxu0
    %706 = vdwg.mxu0
    %v707 = vmul.f32 %v454, %v454
    %v708 = vmul.f32 %v456, %v456
    %v709 = vmul.f32 %v458, %v458
    %v710 = vmul.f32 %v460, %v460
    %711 = vmatprep.subr.mxu0 0.0
    %712 = vmatpush1.msra.mxu0 %v707
    %713 = vmatprep.subr.mxu0 0.0
    %714 = vmatpush1.msra.mxu0 %v708
    %715 = vmatprep.subr.mxu0 0.0
    %716 = vmatpush1.msra.mxu0 %v709
    %717 = vmatprep.subr.mxu0 0.0
    %718 = vmatpush1.msra.mxu0 %v710
    %719 = vmatprep.subr.mxu0 0.0
    %720 = vmatpush1.msra.mxu0 0.0
    %721 = vmatprep.subr.mxu0 0.0
    %722 = vmatpush1.msra.mxu0 0.0
    %723 = vmatprep.subr.mxu0 0.0
    %724 = vmatpush1.msra.mxu0 0.0
    %725 = vmatprep.subr.mxu0 0.0
    %726 = vmatpush1.msra.mxu0 0.0
    %727 = vmatprep.subr.mxu0 0.0
    %728 = vmatpush1.msra.mxu0 0.0
    %729 = vmatprep.subr.mxu0 0.0
    %730 = vmatpush1.msra.mxu0 0.0
    %731 = vmatprep.subr.mxu0 0.0
    %732 = vmatpush1.msra.mxu0 0.0
    %733 = vmatprep.subr.mxu0 0.0
    %734 = vmatpush1.msra.mxu0 0.0
    %735 = vmatprep.subr.mxu0 0.0
    %736 = vmatpush1.msra.mxu0 0.0
    %737 = vmatprep.subr.mxu0 0.0
    %738 = vmatpush1.msra.mxu0 0.0
    %739 = vmatprep.subr.mxu0 0.0
    %740 = vmatpush1.msra.mxu0 0.0
    %741 = vmatprep.subr.mxu0 0.0
    %742 = vmatpush1.msra.mxu0 0.0
    %743 = vmatprep.subr.mxu0 0.0
    %744 = vmatpush1.msra.mxu0 0.0
    %745 = vmatprep.subr.mxu0 0.0
    %746 = vmatpush1.msra.mxu0 0.0
    %747 = vmatprep.subr.mxu0 0.0
    %748 = vmatpush1.msra.mxu0 0.0
    %749 = vmatprep.subr.mxu0 0.0
    %750 = vmatpush1.msra.mxu0 0.0
    %751 = vmatprep.subr.mxu0 0.0
    %752 = vmatpush1.msra.mxu0 0.0
    %753 = vmatprep.subr.mxu0 0.0
    %754 = vmatpush1.msra.mxu0 0.0
    %755 = vmatprep.subr.mxu0 0.0
    %756 = vmatpush1.msra.mxu0 0.0
    %757 = vmatprep.subr.mxu0 0.0
    %758 = vmatpush1.msra.mxu0 0.0
    %759 = vmatprep.subr.mxu0 0.0
    %760 = vmatpush1.msra.mxu0 0.0
    %761 = vmatprep.subr.mxu0 0.0
    %762 = vmatpush1.msra.mxu0 0.0
    %763 = vmatprep.subr.mxu0 0.0
    %764 = vmatpush1.msra.mxu0 0.0
    %765 = vmatprep.subr.mxu0 0.0
    %766 = vmatpush1.msra.mxu0 0.0
    %767 = vmatprep.subr.mxu0 0.0
    %768 = vmatpush1.msra.mxu0 0.0
    %769 = vmatprep.subr.mxu0 0.0
    %770 = vmatpush1.msra.mxu0 0.0
    %771 = vmatprep.subr.mxu0 0.0
    %772 = vmatpush1.msra.mxu0 0.0
    %773 = vmatprep.subr.mxu0 0.0
    %774 = vmatpush1.msra.mxu0 0.0
    %775 = vmatprep.mubr.f32.mxu0 0.0
    %776 = vmatmul.mubr.f32.gmra.mrb[0].mxu0 %v464
    %v777 = vpop.f32.mrb[0].mxu0
    %v778 = vadd.f32 0.0, %v777
    %v779 = vpop.f32.mrb[0].mxu0
    %780 = vdwg.mxu0
    %v781 = vmul.f32 %v704, 0.03125
    %v782 = vmul.f32 %v778, 0.03125
    %v783 = vmul.f32 %v781, %v781
    %v784 = vsub.f32 %v782, %v783
    %v785 = vlaneseq
    %v786 = vshrl.u32 %v785, 7
    %v787 = vsub.s32 0, %v786
    %v788 = vrot.slane %v781, %v787
    %v789 = vsub.f32 %v454, %v788
    %v790 = vsub.f32 %v456, %v788
    %v791 = vsub.f32 %v458, %v788
    %v792 = vsub.f32 %v460, %v788
    %v793 = vadd.f32 %v784, 1e-05
    %v794 = vrsqrt.pop %v793
    %v795 = vmul.f32 %v794, %v171
    %v796 = vlaneseq
    %v797 = vshrl.u32 %v796, 7
    %v798 = vsub.s32 0, %v797
    %v799 = vrot.slane %v795, %v798
    %v800 = vmul.f32 %v789, %v799
    %v801 = vmul.f32 %v790, %v799
    %v802 = vmul.f32 %v791, %v799
    %v803 = vmul.f32 %v792, %v799
    %v804 = vadd.f32 %v800, %v172
    %v805 = vadd.f32 %v801, %v172
    %v806 = vadd.f32 %v802, %v172
    %v807 = vadd.f32 %v803, %v172
    %v808 = vmax.f32 %v804, 0.0
    %v809 = vmax.f32 %v805, 0.0
    %v810 = vmax.f32 %v806, 0.0
    %v811 = vmax.f32 %v807, 0.0
    %v812 = vrot.slane %v808, 7
    %v813 = vrot.slane %v809, 7
    %v814 = vrot.slane %v810, 7
    %v815 = vrot.slane %v811, 7
    %v816 = vsel %vm177, %v814, %v815
    %v817 = vsel %vm177, %v813, %v814
    %v818 = vsel %vm177, %v812, %v813
    %v819 = vsel %vm177, %v815, %v812
    %v820 = vsel %vm186, %v819, 0.0
    %v821 = vsel %vm187, %v818, 0.0
    %v822 = vsel %vm188, %v817, 0.0
    %v823 = vsel %vm189, %v816, 0.0
    %v824 = vld [vmem:[#allocation2 + $0x30] sm:$0xf]
    %v825 = vld [vmem:[#allocation2 + $0x38] sm:$0xf]
    %v826 = vld [vmem:[#allocation2 + $0x40] sm:$0xf]
    %v827 = vld [vmem:[#allocation2 + $0x48] sm:$0xf]
    %v828 = vld [vmem:[#allocation2 + $0x50] sm:$0xf]
    %v829 = vld [vmem:[#allocation2 + $0x58] sm:$0xf]
    %v830 = vld [vmem:[#allocation2 + $0x60] sm:$0xf]
    %v831 = vld [vmem:[#allocation2 + $0x68] sm:$0xf]
    %v832 = vld [vmem:[#allocation2 + $0x70] sm:$0xf]
    %v833 = vld [vmem:[#allocation2 + $0x78] sm:$0xf]
    %v834 = vld [vmem:[#allocation2 + $0x80] sm:$0xf]
    %v835 = vld [vmem:[#allocation2 + $0x88] sm:$0xf]
    %v836 = vld [vmem:[#allocation2 + $0x90] sm:$0xf]
    %v837 = vld [vmem:[#allocation2 + $0x98] sm:$0xf]
    %v838 = vld [vmem:[#allocation2 + $0xa0] sm:$0xf]
    %v839 = vld [vmem:[#allocation2 + $0xa8] sm:$0xf]
    %v840 = vpack.c.bf16 %v821, %v820
    %v841 = vpack.c.bf16 %v823, %v822
    %v842 = vld [vmem:[#allocation2 + $0xb0] sm:$0xf]
    %v843 = vld [vmem:[#allocation2 + $0xb8] sm:$0xf]
    %v844 = vld [vmem:[#allocation2 + $0xc0] sm:$0xf]
    %v845 = vld [vmem:[#allocation2 + $0xc8] sm:$0xf]
    %v846 = vld [vmem:[#allocation2 + $0xd0] sm:$0xf]
    %v847 = vld [vmem:[#allocation2 + $0xd8] sm:$0xf]
    %v848 = vld [vmem:[#allocation2 + $0xe0] sm:$0xf]
    %v849 = vld [vmem:[#allocation2 + $0xe8] sm:$0xf]
    %v850 = vld [vmem:[#allocation2 + $0xf0] sm:$0xf]
    %v851 = vld [vmem:[#allocation2 + $0xf8] sm:$0xf]
    %v852 = vld [vmem:[#allocation2 + $0x100] sm:$0xf]
    %v853 = vld [vmem:[#allocation2 + $0x108] sm:$0xf]
    %v854 = vld [vmem:[#allocation2 + $0x110] sm:$0xf]
    %v855 = vld [vmem:[#allocation2 + $0x118] sm:$0xf]
    %v856 = vld [vmem:[#allocation2 + $0x120] sm:$0xf]
    %v857 = vld [vmem:[#allocation2 + $0x128] sm:$0xf]
    %v858 = vpack.c.bf16 %v809, %v808
    %v859 = vpack.c.bf16 %v811, %v810
    %v876 = vunpack.c.l.b16 %v842
    %v877 = vunpack.c.l.b16 %v843
    %v878 = vunpack.c.l.b16 %v844
    %v879 = vunpack.c.l.b16 %v845
    %v880 = vunpack.c.l.b16 %v846
    %v881 = vunpack.c.l.b16 %v847
    %v882 = vunpack.c.l.b16 %v848
    %v883 = vunpack.c.l.b16 %v849
    %v884 = vunpack.c.l.b16 %v850
    %v885 = vunpack.c.l.b16 %v851
    %v886 = vunpack.c.l.b16 %v852
    %v887 = vunpack.c.l.b16 %v853
    %v888 = vunpack.c.l.b16 %v854
    %v889 = vunpack.c.l.b16 %v855
    %v890 = vunpack.c.l.b16 %v856
    %v891 = vunpack.c.l.b16 %v857
    %v892 = vpack.c.b16 %v877, %v876
    %v893 = vpack.c.b16 %v879, %v878
    %v894 = vpack.c.b16 %v881, %v880
    %v895 = vpack.c.b16 %v883, %v882
    %v896 = vpack.c.b16 %v885, %v884
    %v897 = vpack.c.b16 %v887, %v886
    %v898 = vpack.c.b16 %v889, %v888
    %v899 = vpack.c.b16 %v891, %v890
    %908 = vmatprep.subr.bf16.mxu0 0
    %909 = vmatpush1.bf16.msra.mxu0 %v892
    %910 = vmatprep.subr.bf16.mxu0 0
    %911 = vmatpush1.bf16.msra.mxu0 %v893
    %912 = vmatprep.subr.bf16.mxu0 0
    %913 = vmatpush1.bf16.msra.mxu0 %v894
    %914 = vmatprep.subr.bf16.mxu0 0
    %915 = vmatpush1.bf16.msra.mxu0 %v895
    %916 = vmatprep.subr.bf16.mxu0 0
    %917 = vmatpush1.bf16.msra.mxu0 %v896
    %918 = vmatprep.subr.bf16.mxu0 0
    %919 = vmatpush1.bf16.msra.mxu0 %v897
    %920 = vmatprep.subr.bf16.mxu0 0
    %921 = vmatpush1.bf16.msra.mxu0 %v898
    %922 = vmatprep.subr.bf16.mxu0 0
    %923 = vmatpush1.bf16.msra.mxu0 %v899
    %924 = vmatprep.subr.bf16.mxu0 0
    %925 = vmatpush1.bf16.msra.mxu0 0
    %926 = vmatprep.subr.bf16.mxu0 0
    %927 = vmatpush1.bf16.msra.mxu0 0
    %928 = vmatprep.subr.bf16.mxu0 0
    %929 = vmatpush1.bf16.msra.mxu0 0
    %930 = vmatprep.subr.bf16.mxu0 0
    %931 = vmatpush1.bf16.msra.mxu0 0
    %932 = vmatprep.subr.bf16.mxu0 0
    %933 = vmatpush1.bf16.msra.mxu0 0
    %934 = vmatprep.subr.bf16.mxu0 0
    %935 = vmatpush1.bf16.msra.mxu0 0
    %936 = vmatprep.subr.bf16.mxu0 0
    %937 = vmatpush1.bf16.msra.mxu0 0
    %938 = vmatprep.subr.bf16.mxu0 0
    %939 = vmatpush1.bf16.msra.mxu0 0
    %940 = vmatprep.mubr.bf16.mxu0 0
    %941 = vmatmul.mubr.bf16.gmra.mrb[0].mxu0 %v858
    %v942 = vpop.f32.mrb[0].mxu0
    %v943 = vadd.f32 0.0, %v942
    %v944 = vpop.f32.mrb[0].mxu0
    %v945 = vpop.f32.mrb[0].mxu0
    %v946 = vadd.f32 0.0, %v945
    %v947 = vpop.f32.mrb[0].mxu0
    %948 = vmatprep.mubr.bf16.mxu0 0
    %949 = vmatmul.mubr.bf16.gmra.mrb[0].mxu0 %v859
    %v950 = vpop.f32.mrb[0].mxu0
    %v951 = vadd.f32 0.0, %v950
    %v952 = vpop.f32.mrb[0].mxu0
    %v953 = vpop.f32.mrb[0].mxu0
    %v954 = vadd.f32 0.0, %v953
    %v955 = vpop.f32.mrb[0].mxu0
    %956 = vdwg.mxu0
    %v973 = vunpack.c.l.b16 %v824
    %v974 = vunpack.c.l.b16 %v825
    %v975 = vunpack.c.l.b16 %v826
    %v976 = vunpack.c.l.b16 %v827
    %v977 = vunpack.c.l.b16 %v828
    %v978 = vunpack.c.l.b16 %v829
    %v979 = vunpack.c.l.b16 %v830
    %v980 = vunpack.c.l.b16 %v831
    %v981 = vunpack.c.l.b16 %v832
    %v982 = vunpack.c.l.b16 %v833
    %v983 = vunpack.c.l.b16 %v834
    %v984 = vunpack.c.l.b16 %v835
    %v985 = vunpack.c.l.b16 %v836
    %v986 = vunpack.c.l.b16 %v837
    %v987 = vunpack.c.l.b16 %v838
    %v988 = vunpack.c.l.b16 %v839
    %v989 = vpack.c.b16 %v974, %v973
    %v990 = vpack.c.b16 %v976, %v975
    %v991 = vpack.c.b16 %v978, %v977
    %v992 = vpack.c.b16 %v980, %v979
    %v993 = vpack.c.b16 %v982, %v981
    %v994 = vpack.c.b16 %v984, %v983
    %v995 = vpack.c.b16 %v986, %v985
    %v996 = vpack.c.b16 %v988, %v987
    %1005 = vmatprep.subr.bf16.mxu0 0
    %1006 = vmatpush1.bf16.msra.mxu0 %v989
    %1007 = vmatprep.subr.bf16.mxu0 0
    %1008 = vmatpush1.bf16.msra.mxu0 %v990
    %1009 = vmatprep.subr.bf16.mxu0 0
    %1010 = vmatpush1.bf16.msra.mxu0 %v991
    %1011 = vmatprep.subr.bf16.mxu0 0
    %1012 = vmatpush1.bf16.msra.mxu0 %v992
    %1013 = vmatprep.subr.bf16.mxu0 0
    %1014 = vmatpush1.bf16.msra.mxu0 %v993
    %1015 = vmatprep.subr.bf16.mxu0 0
    %1016 = vmatpush1.bf16.msra.mxu0 %v994
    %1017 = vmatprep.subr.bf16.mxu0 0
    %1018 = vmatpush1.bf16.msra.mxu0 %v995
    %1019 = vmatprep.subr.bf16.mxu0 0
    %1020 = vmatpush1.bf16.msra.mxu0 %v996
    %1021 = vmatprep.subr.bf16.mxu0 0
    %1022 = vmatpush1.bf16.msra.mxu0 0
    %1023 = vmatprep.subr.bf16.mxu0 0
    %1024 = vmatpush1.bf16.msra.mxu0 0
    %1025 = vmatprep.subr.bf16.mxu0 0
    %1026 = vmatpush1.bf16.msra.mxu0 0
    %1027 = vmatprep.subr.bf16.mxu0 0
    %1028 = vmatpush1.bf16.msra.mxu0 0
    %1029 = vmatprep.subr.bf16.mxu0 0
    %1030 = vmatpush1.bf16.msra.mxu0 0
    %1031 = vmatprep.subr.bf16.mxu0 0
    %1032 = vmatpush1.bf16.msra.mxu0 0
    %1033 = vmatprep.subr.bf16.mxu0 0
    %1034 = vmatpush1.bf16.msra.mxu0 0
    %1035 = vmatprep.subr.bf16.mxu0 0
    %1036 = vmatpush1.bf16.msra.mxu0 0
    %1037 = vmatprep.mubr.bf16.mxu0 0
    %1038 = vmatmul.mubr.bf16.gmra.mrb[0].mxu0 %v840
    %v1039 = vpop.f32.mrb[0].mxu0
    %v1040 = vadd.f32 %v943, %v1039
    %v1041 = vpop.f32.mrb[0].mxu0
    %v1042 = vpop.f32.mrb[0].mxu0
    %v1043 = vadd.f32 %v946, %v1042
    %v1044 = vpop.f32.mrb[0].mxu0
    %1045 = vmatprep.mubr.bf16.mxu0 0
    %1046 = vmatmul.mubr.bf16.gmra.mrb[0].mxu0 %v841
    %v1047 = vpop.f32.mrb[0].mxu0
    %v1048 = vadd.f32 %v951, %v1047
    %v1049 = vpop.f32.mrb[0].mxu0
    %v1050 = vpop.f32.mrb[0].mxu0
    %v1051 = vadd.f32 %v954, %v1050
    %v1052 = vpop.f32.mrb[0].mxu0
    %1053 = vdwg.mxu0
    %v1054 = vrot.slane %v808, 1
    %v1055 = vrot.slane %v809, 1
    %v1056 = vrot.slane %v810, 1
    %v1057 = vrot.slane %v811, 1
    %v1058 = vsel %vm345, %v1056, %v1057
    %v1059 = vsel %vm345, %v1055, %v1056
    %v1060 = vsel %vm345, %v1054, %v1055
    %v1061 = vsel %vm345, %v1057, %v1054
    %v1062 = vsel %vm354, %v1060, 0.0
    %v1063 = vsel %vm355, %v1059, 0.0
    %v1064 = vsel %vm356, %v1058, 0.0
    %v1065 = vsel %vm357, %v1061, 0.0
    %v1066 = vld [vmem:[#allocation2 + $0x130] sm:$0xf]
    %v1067 = vld [vmem:[#allocation2 + $0x138] sm:$0xf]
    %v1068 = vld [vmem:[#allocation2 + $0x140] sm:$0xf]
    %v1069 = vld [vmem:[#allocation2 + $0x148] sm:$0xf]
    %v1070 = vld [vmem:[#allocation2 + $0x150] sm:$0xf]
    %v1071 = vld [vmem:[#allocation2 + $0x158] sm:$0xf]
    %v1072 = vld [vmem:[#allocation2 + $0x160] sm:$0xf]
    %v1073 = vld [vmem:[#allocation2 + $0x168] sm:$0xf]
    %v1074 = vld [vmem:[#allocation2 + $0x170] sm:$0xf]
    %v1075 = vld [vmem:[#allocation2 + $0x178] sm:$0xf]
    %v1076 = vld [vmem:[#allocation2 + $0x180] sm:$0xf]
    %v1077 = vld [vmem:[#allocation2 + $0x188] sm:$0xf]
    %v1078 = vld [vmem:[#allocation2 + $0x190] sm:$0xf]
    %v1079 = vld [vmem:[#allocation2 + $0x198] sm:$0xf]
    %v1080 = vld [vmem:[#allocation2 + $0x1a0] sm:$0xf]
    %v1081 = vld [vmem:[#allocation2 + $0x1a8] sm:$0xf]
    %v1082 = vpack.c.bf16 %v1063, %v1062
    %v1083 = vpack.c.bf16 %v1065, %v1064
    %v1100 = vunpack.c.l.b16 %v1066
    %v1101 = vunpack.c.l.b16 %v1067
    %v1102 = vunpack.c.l.b16 %v1068
    %v1103 = vunpack.c.l.b16 %v1069
    %v1104 = vunpack.c.l.b16 %v1070
    %v1105 = vunpack.c.l.b16 %v1071
    %v1106 = vunpack.c.l.b16 %v1072
    %v1107 = vunpack.c.l.b16 %v1073
    %v1108 = vunpack.c.l.b16 %v1074
    %v1109 = vunpack.c.l.b16 %v1075
    %v1110 = vunpack.c.l.b16 %v1076
    %v1111 = vunpack.c.l.b16 %v1077
    %v1112 = vunpack.c.l.b16 %v1078
    %v1113 = vunpack.c.l.b16 %v1079
    %v1114 = vunpack.c.l.b16 %v1080
    %v1115 = vunpack.c.l.b16 %v1081
    %v1116 = vpack.c.b16 %v1101, %v1100
    %v1117 = vpack.c.b16 %v1103, %v1102
    %v1118 = vpack.c.b16 %v1105, %v1104
    %v1119 = vpack.c.b16 %v1107, %v1106
    %v1120 = vpack.c.b16 %v1109, %v1108
    %v1121 = vpack.c.b16 %v1111, %v1110
    %v1122 = vpack.c.b16 %v1113, %v1112
    %v1123 = vpack.c.b16 %v1115, %v1114
    %1132 = vmatprep.subr.bf16.mxu0 0
    %1133 = vmatpush1.bf16.msra.mxu0 %v1116
    %1134 = vmatprep.subr.bf16.mxu0 0
    %1135 = vmatpush1.bf16.msra.mxu0 %v1117
    %1136 = vmatprep.subr.bf16.mxu0 0
    %1137 = vmatpush1.bf16.msra.mxu0 %v1118
    %1138 = vmatprep.subr.bf16.mxu0 0
    %1139 = vmatpush1.bf16.msra.mxu0 %v1119
    %1140 = vmatprep.subr.bf16.mxu0 0
    %1141 = vmatpush1.bf16.msra.mxu0 %v1120
    %1142 = vmatprep.subr.bf16.mxu0 0
    %1143 = vmatpush1.bf16.msra.mxu0 %v1121
    %1144 = vmatprep.subr.bf16.mxu0 0
    %1145 = vmatpush1.bf16.msra.mxu0 %v1122
    %1146 = vmatprep.subr.bf16.mxu0 0
    %1147 = vmatpush1.bf16.msra.mxu0 %v1123
    %1148 = vmatprep.subr.bf16.mxu0 0
    %1149 = vmatpush1.bf16.msra.mxu0 0
    %1150 = vmatprep.subr.bf16.mxu0 0
    %1151 = vmatpush1.bf16.msra.mxu0 0
    %1152 = vmatprep.subr.bf16.mxu0 0
    %1153 = vmatpush1.bf16.msra.mxu0 0
    %1154 = vmatprep.subr.bf16.mxu0 0
    %1155 = vmatpush1.bf16.msra.mxu0 0
    %1156 = vmatprep.subr.bf16.mxu0 0
    %1157 = vmatpush1.bf16.msra.mxu0 0
    %1158 = vmatprep.subr.bf16.mxu0 0
    %1159 = vmatpush1.bf16.msra.mxu0 0
    %1160 = vmatprep.subr.bf16.mxu0 0
    %1161 = vmatpush1.bf16.msra.mxu0 0
    %1162 = vmatprep.subr.bf16.mxu0 0
    %1163 = vmatpush1.bf16.msra.mxu0 0
    %1164 = vmatprep.mubr.bf16.mxu0 0
    %1165 = vmatmul.mubr.bf16.gmra.mrb[0].mxu0 %v1082
    %v1166 = vpop.f32.mrb[0].mxu0
    %v1167 = vadd.f32 0.0, %v1166
    %v1168 = vpop.f32.mrb[0].mxu0
    %v1169 = vpop.f32.mrb[0].mxu0
    %v1170 = vadd.f32 0.0, %v1169
    %v1171 = vpop.f32.mrb[0].mxu0
    %1172 = vmatprep.mubr.bf16.mxu0 0
    %1173 = vmatmul.mubr.bf16.gmra.mrb[0].mxu0 %v1083
    %v1174 = vpop.f32.mrb[0].mxu0
    %v1175 = vadd.f32 0.0, %v1174
    %v1176 = vpop.f32.mrb[0].mxu0
    %v1177 = vpop.f32.mrb[0].mxu0
    %v1178 = vadd.f32 0.0, %v1177
    %v1179 = vpop.f32.mrb[0].mxu0
    %1180 = vdwg.mxu0
    %v1181 = vadd.f32 %v1040, %v1167
    %v1182 = vadd.f32 %v1043, %v1170
    %v1183 = vadd.f32 %v1048, %v1175
    %v1184 = vadd.f32 %v1051, %v1178
    %v1185 = vadd.f32 %v1181, %v169
    %v1186 = vadd.f32 %v1182, %v169
    %v1187 = vadd.f32 %v1183, %v169
    %v1188 = vadd.f32 %v1184, %v169
    %1189 = vmatprep.subr.mxu0 0.0
    %1190 = vmatpush1.msra.mxu0 %v1185
    %1191 = vmatprep.subr.mxu0 0.0
    %1192 = vmatpush1.msra.mxu0 %v1186
    %1193 = vmatprep.subr.mxu0 0.0
    %1194 = vmatpush1.msra.mxu0 %v1187
    %1195 = vmatprep.subr.mxu0 0.0
    %1196 = vmatpush1.msra.mxu0 %v1188
    %1197 = vmatprep.subr.mxu0 0.0
    %1198 = vmatpush1.msra.mxu0 0.0
    %1199 = vmatprep.subr.mxu0 0.0
    %1200 = vmatpush1.msra.mxu0 0.0
    %1201 = vmatprep.subr.mxu0 0.0
    %1202 = vmatpush1.msra.mxu0 0.0
    %1203 = vmatprep.subr.mxu0 0.0
    %1204 = vmatpush1.msra.mxu0 0.0
    %1205 = vmatprep.subr.mxu0 0.0
    %1206 = vmatpush1.msra.mxu0 0.0
    %1207 = vmatprep.subr.mxu0 0.0
    %1208 = vmatpush1.msra.mxu0 0.0
    %1209 = vmatprep.subr.mxu0 0.0
    %1210 = vmatpush1.msra.mxu0 0.0
    %1211 = vmatprep.subr.mxu0 0.0
    %1212 = vmatpush1.msra.mxu0 0.0
    %1213 = vmatprep.subr.mxu0 0.0
    %1214 = vmatpush1.msra.mxu0 0.0
    %1215 = vmatprep.subr.mxu0 0.0
    %1216 = vmatpush1.msra.mxu0 0.0
    %1217 = vmatprep.subr.mxu0 0.0
    %1218 = vmatpush1.msra.mxu0 0.0
    %1219 = vmatprep.subr.mxu0 0.0
    %1220 = vmatpush1.msra.mxu0 0.0
    %1221 = vmatprep.subr.mxu0 0.0
    %1222 = vmatpush1.msra.mxu0 0.0
    %1223 = vmatprep.subr.mxu0 0.0
    %1224 = vmatpush1.msra.mxu0 0.0
    %1225 = vmatprep.subr.mxu0 0.0
    %1226 = vmatpush1.msra.mxu0 0.0
    %1227 = vmatprep.subr.mxu0 0.0
    %1228 = vmatpush1.msra.mxu0 0.0
    %1229 = vmatprep.subr.mxu0 0.0
    %1230 = vmatpush1.msra.mxu0 0.0
    %1231 = vmatprep.subr.mxu0 0.0
    %1232 = vmatpush1.msra.mxu0 0.0
    %1233 = vmatprep.subr.mxu0 0.0
    %1234 = vmatpush1.msra.mxu0 0.0
    %1235 = vmatprep.subr.mxu0 0.0
    %1236 = vmatpush1.msra.mxu0 0.0
    %1237 = vmatprep.subr.mxu0 0.0
    %1238 = vmatpush1.msra.mxu0 0.0
    %1239 = vmatprep.subr.mxu0 0.0
    %1240 = vmatpush1.msra.mxu0 0.0
    %1241 = vmatprep.subr.mxu0 0.0
    %1242 = vmatpush1.msra.mxu0 0.0
    %1243 = vmatprep.subr.mxu0 0.0
    %1244 = vmatpush1.msra.mxu0 0.0
    %1245 = vmatprep.subr.mxu0 0.0
    %1246 = vmatpush1.msra.mxu0 0.0
    %1247 = vmatprep.subr.mxu0 0.0
    %1248 = vmatpush1.msra.mxu0 0.0
    %1249 = vmatprep.subr.mxu0 0.0
    %1250 = vmatpush1.msra.mxu0 0.0
    %1251 = vmatprep.subr.mxu0 0.0
    %1252 = vmatpush1.msra.mxu0 0.0
    %1253 = vmatprep.mubr.f32.mxu0 0.0
    %1254 = vmatmul.mubr.f32.gmra.mrb[0].mxu0 %v464
    %v1255 = vpop.f32.mrb[0].mxu0
    %v1256 = vadd.f32 0.0, %v1255
    %v1257 = vpop.f32.mrb[0].mxu0
    %1258 = vdwg.mxu0
    %v1259 = vmul.f32 %v1185, %v1185
    %v1260 = vmul.f32 %v1186, %v1186
    %v1261 = vmul.f32 %v1187, %v1187
    %v1262 = vmul.f32 %v1188, %v1188
    %1263 = vmatprep.subr.mxu0 0.0
    %1264 = vmatpush1.msra.mxu0 %v1259
    %1265 = vmatprep.subr.mxu0 0.0
    %1266 = vmatpush1.msra.mxu0 %v1260
    %1267 = vmatprep.subr.mxu0 0.0
    %1268 = vmatpush1.msra.mxu0 %v1261
    %1269 = vmatprep.subr.mxu0 0.0
    %1270 = vmatpush1.msra.mxu0 %v1262
    %1271 = vmatprep.subr.mxu0 0.0
    %1272 = vmatpush1.msra.mxu0 0.0
    %1273 = vmatprep.subr.mxu0 0.0
    %1274 = vmatpush1.msra.mxu0 0.0
    %1275 = vmatprep.subr.mxu0 0.0
    %1276 = vmatpush1.msra.mxu0 0.0
    %1277 = vmatprep.subr.mxu0 0.0
    %1278 = vmatpush1.msra.mxu0 0.0
    %1279 = vmatprep.subr.mxu0 0.0
    %1280 = vmatpush1.msra.mxu0 0.0
    %1281 = vmatprep.subr.mxu0 0.0
    %1282 = vmatpush1.msra.mxu0 0.0
    %1283 = vmatprep.subr.mxu0 0.0
    %1284 = vmatpush1.msra.mxu0 0.0
    %1285 = vmatprep.subr.mxu0 0.0
    %1286 = vmatpush1.msra.mxu0 0.0
    %1287 = vmatprep.subr.mxu0 0.0
    %1288 = vmatpush1.msra.mxu0 0.0
    %1289 = vmatprep.subr.mxu0 0.0
    %1290 = vmatpush1.msra.mxu0 0.0
    %1291 = vmatprep.subr.mxu0 0.0
    %1292 = vmatpush1.msra.mxu0 0.0
    %1293 = vmatprep.subr.mxu0 0.0
    %1294 = vmatpush1.msra.mxu0 0.0
    %1295 = vmatprep.subr.mxu0 0.0
    %1296 = vmatpush1.msra.mxu0 0.0
    %1297 = vmatprep.subr.mxu0 0.0
    %1298 = vmatpush1.msra.mxu0 0.0
    %1299 = vmatprep.subr.mxu0 0.0
    %1300 = vmatpush1.msra.mxu0 0.0
    %1301 = vmatprep.subr.mxu0 0.0
    %1302 = vmatpush1.msra.mxu0 0.0
    %1303 = vmatprep.subr.mxu0 0.0
    %1304 = vmatpush1.msra.mxu0 0.0
    %1305 = vmatprep.subr.mxu0 0.0
    %1306 = vmatpush1.msra.mxu0 0.0
    %1307 = vmatprep.subr.mxu0 0.0
    %1308 = vmatpush1.msra.mxu0 0.0
    %1309 = vmatprep.subr.mxu0 0.0
    %1310 = vmatpush1.msra.mxu0 0.0
    %1311 = vmatprep.subr.mxu0 0.0
    %1312 = vmatpush1.msra.mxu0 0.0
    %1313 = vmatprep.subr.mxu0 0.0
    %1314 = vmatpush1.msra.mxu0 0.0
    %1315 = vmatprep.subr.mxu0 0.0
    %1316 = vmatpush1.msra.mxu0 0.0
    %1317 = vmatprep.subr.mxu0 0.0
    %1318 = vmatpush1.msra.mxu0 0.0
    %1319 = vmatprep.subr.mxu0 0.0
    %1320 = vmatpush1.msra.mxu0 0.0
    %1321 = vmatprep.subr.mxu0 0.0
    %1322 = vmatpush1.msra.mxu0 0.0
    %1323 = vmatprep.subr.mxu0 0.0
    %1324 = vmatpush1.msra.mxu0 0.0
    %1325 = vmatprep.subr.mxu0 0.0
    %1326 = vmatpush1.msra.mxu0 0.0
    %1327 = vmatprep.mubr.f32.mxu0 0.0
    %1328 = vmatmul.mubr.f32.gmra.mrb[0].mxu0 %v464
    %v1329 = vpop.f32.mrb[0].mxu0
    %v1330 = vadd.f32 0.0, %v1329
    %v1331 = vpop.f32.mrb[0].mxu0
    %1332 = vdwg.mxu0
    %v1333 = vmul.f32 %v1256, 0.03125
    %v1334 = vmul.f32 %v1330, 0.03125
    %v1335 = vmul.f32 %v1333, %v1333
    %v1336 = vsub.f32 %v1334, %v1335
    %v1337 = vlaneseq
    %v1338 = vshrl.u32 %v1337, 7
    %v1339 = vsub.s32 0, %v1338
    %v1340 = vrot.slane %v1333, %v1339
    %v1341 = vsub.f32 %v1185, %v1340
    %v1342 = vsub.f32 %v1186, %v1340
    %v1343 = vsub.f32 %v1187, %v1340
    %v1344 = vsub.f32 %v1188, %v1340
    %v1345 = vadd.f32 %v1336, 1e-05
    %v1346 = vrsqrt.pop %v1345
    %v1347 = vmul.f32 %v1346, %v171
    %v1348 = vlaneseq
    %v1349 = vshrl.u32 %v1348, 7
    %v1350 = vsub.s32 0, %v1349
    %v1351 = vrot.slane %v1347, %v1350
    %v1352 = vmul.f32 %v1341, %v1351
    %v1353 = vmul.f32 %v1342, %v1351
    %v1354 = vmul.f32 %v1343, %v1351
    %v1355 = vmul.f32 %v1344, %v1351
    %v1356 = vadd.f32 %v1352, %v172
    %v1357 = vadd.f32 %v1353, %v172
    %v1358 = vadd.f32 %v1354, %v172
    %v1359 = vadd.f32 %v1355, %v172
    %v1360 = vmax.f32 %v1356, 0.0
    %v1361 = vmax.f32 %v1357, 0.0
    %v1362 = vmax.f32 %v1358, 0.0
    %v1363 = vmax.f32 %v1359, 0.0
    %v1364 = vrot.slane %v1360, 7
    %v1365 = vrot.slane %v1361, 7
    %v1366 = vrot.slane %v1362, 7
    %v1367 = vrot.slane %v1363, 7
    %v1368 = vsel %vm177, %v1366, %v1367
    %v1369 = vsel %vm177, %v1365, %v1366
    %v1370 = vsel %vm177, %v1364, %v1365
    %v1371 = vsel %vm177, %v1367, %v1364
    %v1372 = vsel %vm186, %v1371, 0.0
    %v1373 = vsel %vm187, %v1370, 0.0
    %v1374 = vsel %vm188, %v1369, 0.0
    %v1375 = vsel %vm189, %v1368, 0.0
    %v1376 = vld [vmem:[#allocation2 + $0x1b0] sm:$0xf]
    %v1377 = vld [vmem:[#allocation2 + $0x1b8] sm:$0xf]
    %v1378 = vld [vmem:[#allocation2 + $0x1c0] sm:$0xf]
    %v1379 = vld [vmem:[#allocation2 + $0x1c8] sm:$0xf]
    %v1380 = vld [vmem:[#allocation2 + $0x1d0] sm:$0xf]
    %v1381 = vld [vmem:[#allocation2 + $0x1d8] sm:$0xf]
    %v1382 = vld [vmem:[#allocation2 + $0x1e0] sm:$0xf]
    %v1383 = vld [vmem:[#allocation2 + $0x1e8] sm:$0xf]
    %v1384 = vld [vmem:[#allocation2 + $0x1f0] sm:$0xf]
    %v1385 = vld [vmem:[#allocation2 + $0x1f8] sm:$0xf]
    %v1386 = vld [vmem:[#allocation2 + $0x200] sm:$0xf]
    %v1387 = vld [vmem:[#allocation2 + $0x208] sm:$0xf]
    %v1388 = vld [vmem:[#allocation2 + $0x210] sm:$0xf]
    %v1389 = vld [vmem:[#allocation2 + $0x218] sm:$0xf]
    %v1390 = vld [vmem:[#allocation2 + $0x220] sm:$0xf]
    %v1391 = vld [vmem:[#allocation2 + $0x228] sm:$0xf]
    %v1392 = vpack.c.bf16 %v1373, %v1372
    %v1393 = vpack.c.bf16 %v1375, %v1374
    %v1394 = vld [vmem:[#allocation2 + $0x230] sm:$0xf]
    %v1395 = vld [vmem:[#allocation2 + $0x238] sm:$0xf]
    %v1396 = vld [vmem:[#allocation2 + $0x240] sm:$0xf]
    %v1397 = vld [vmem:[#allocation2 + $0x248] sm:$0xf]
    %v1398 = vld [vmem:[#allocation2 + $0x250] sm:$0xf]
    %v1399 = vld [vmem:[#allocation2 + $0x258] sm:$0xf]
    %v1400 = vld [vmem:[#allocation2 + $0x260] sm:$0xf]
    %v1401 = vld [vmem:[#allocation2 + $0x268] sm:$0xf]
    %v1402 = vld [vmem:[#allocation2 + $0x270] sm:$0xf]
    %v1403 = vld [vmem:[#allocation2 + $0x278] sm:$0xf]
    %v1404 = vld [vmem:[#allocation2 + $0x280] sm:$0xf]
    %v1405 = vld [vmem:[#allocation2 + $0x288] sm:$0xf]
    %v1406 = vld [vmem:[#allocation2 + $0x290] sm:$0xf]
    %v1407 = vld [vmem:[#allocation2 + $0x298] sm:$0xf]
    %v1408 = vld [vmem:[#allocation2 + $0x2a0] sm:$0xf]
    %v1409 = vld [vmem:[#allocation2 + $0x2a8] sm:$0xf]
    %v1410 = vpack.c.bf16 %v1361, %v1360
    %v1411 = vpack.c.bf16 %v1363, %v1362
    %v1428 = vunpack.c.l.b16 %v1394
    %v1429 = vunpack.c.l.b16 %v1395
    %v1430 = vunpack.c.l.b16 %v1396
    %v1431 = vunpack.c.l.b16 %v1397
    %v1432 = vunpack.c.l.b16 %v1398
    %v1433 = vunpack.c.l.b16 %v1399
    %v1434 = vunpack.c.l.b16 %v1400
    %v1435 = vunpack.c.l.b16 %v1401
    %v1436 = vunpack.c.l.b16 %v1402
    %v1437 = vunpack.c.l.b16 %v1403
    %v1438 = vunpack.c.l.b16 %v1404
    %v1439 = vunpack.c.l.b16 %v1405
    %v1440 = vunpack.c.l.b16 %v1406
    %v1441 = vunpack.c.l.b16 %v1407
    %v1442 = vunpack.c.l.b16 %v1408
    %v1443 = vunpack.c.l.b16 %v1409
    %v1444 = vpack.c.b16 %v1429, %v1428
    %v1445 = vpack.c.b16 %v1431, %v1430
    %v1446 = vpack.c.b16 %v1433, %v1432
    %v1447 = vpack.c.b16 %v1435, %v1434
    %v1448 = vpack.c.b16 %v1437, %v1436
    %v1449 = vpack.c.b16 %v1439, %v1438
    %v1450 = vpack.c.b16 %v1441, %v1440
    %v1451 = vpack.c.b16 %v1443, %v1442
    %1460 = vmatprep.subr.bf16.mxu0 0
    %1461 = vmatpush1.bf16.msra.mxu0 %v1444
    %1462 = vmatprep.subr.bf16.mxu0 0
    %1463 = vmatpush1.bf16.msra.mxu0 %v1445
    %1464 = vmatprep.subr.bf16.mxu0 0
    %1465 = vmatpush1.bf16.msra.mxu0 %v1446
    %1466 = vmatprep.subr.bf16.mxu0 0
    %1467 = vmatpush1.bf16.msra.mxu0 %v1447
    %1468 = vmatprep.subr.bf16.mxu0 0
    %1469 = vmatpush1.bf16.msra.mxu0 %v1448
    %1470 = vmatprep.subr.bf16.mxu0 0
    %1471 = vmatpush1.bf16.msra.mxu0 %v1449
    %1472 = vmatprep.subr.bf16.mxu0 0
    %1473 = vmatpush1.bf16.msra.mxu0 %v1450
    %1474 = vmatprep.subr.bf16.mxu0 0
    %1475 = vmatpush1.bf16.msra.mxu0 %v1451
    %1476 = vmatprep.subr.bf16.mxu0 0
    %1477 = vmatpush1.bf16.msra.mxu0 0
    %1478 = vmatprep.subr.bf16.mxu0 0
    %1479 = vmatpush1.bf16.msra.mxu0 0
    %1480 = vmatprep.subr.bf16.mxu0 0
    %1481 = vmatpush1.bf16.msra.mxu0 0
    %1482 = vmatprep.subr.bf16.mxu0 0
    %1483 = vmatpush1.bf16.msra.mxu0 0
    %1484 = vmatprep.subr.bf16.mxu0 0
    %1485 = vmatpush1.bf16.msra.mxu0 0
    %1486 = vmatprep.subr.bf16.mxu0 0
    %1487 = vmatpush1.bf16.msra.mxu0 0
    %1488 = vmatprep.subr.bf16.mxu0 0
    %1489 = vmatpush1.bf16.msra.mxu0 0
    %1490 = vmatprep.subr.bf16.mxu0 0
    %1491 = vmatpush1.bf16.msra.mxu0 0
    %1492 = vmatprep.mubr.bf16.mxu0 0
    %1493 = vmatmul.mubr.bf16.gmra.mrb[0].mxu0 %v1410
    %v1494 = vpop.f32.mrb[0].mxu0
    %v1495 = vadd.f32 0.0, %v1494
    %v1496 = vpop.f32.mrb[0].mxu0
    %v1497 = vpop.f32.mrb[0].mxu0
    %v1498 = vadd.f32 0.0, %v1497
    %v1499 = vpop.f32.mrb[0].mxu0
    %1500 = vmatprep.mubr.bf16.mxu0 0
    %1501 = vmatmul.mubr.bf16.gmra.mrb[0].mxu0 %v1411
    %v1502 = vpop.f32.mrb[0].mxu0
    %v1503 = vadd.f32 0.0, %v1502
    %v1504 = vpop.f32.mrb[0].mxu0
    %v1505 = vpop.f32.mrb[0].mxu0
    %v1506 = vadd.f32 0.0, %v1505
    %v1507 = vpop.f32.mrb[0].mxu0
    %1508 = vdwg.mxu0
    %v1525 = vunpack.c.l.b16 %v1376
    %v1526 = vunpack.c.l.b16 %v1377
    %v1527 = vunpack.c.l.b16 %v1378
    %v1528 = vunpack.c.l.b16 %v1379
    %v1529 = vunpack.c.l.b16 %v1380
    %v1530 = vunpack.c.l.b16 %v1381
    %v1531 = vunpack.c.l.b16 %v1382
    %v1532 = vunpack.c.l.b16 %v1383
    %v1533 = vunpack.c.l.b16 %v1384
    %v1534 = vunpack.c.l.b16 %v1385
    %v1535 = vunpack.c.l.b16 %v1386
    %v1536 = vunpack.c.l.b16 %v1387
    %v1537 = vunpack.c.l.b16 %v1388
    %v1538 = vunpack.c.l.b16 %v1389
    %v1539 = vunpack.c.l.b16 %v1390
    %v1540 = vunpack.c.l.b16 %v1391
    %v1541 = vpack.c.b16 %v1526, %v1525
    %v1542 = vpack.c.b16 %v1528, %v1527
    %v1543 = vpack.c.b16 %v1530, %v1529
    %v1544 = vpack.c.b16 %v1532, %v1531
    %v1545 = vpack.c.b16 %v1534, %v1533
    %v1546 = vpack.c.b16 %v1536, %v1535
    %v1547 = vpack.c.b16 %v1538, %v1537
    %v1548 = vpack.c.b16 %v1540, %v1539
    %1557 = vmatprep.subr.bf16.mxu0 0
    %1558 = vmatpush1.bf16.msra.mxu0 %v1541
    %1559 = vmatprep.subr.bf16.mxu0 0
    %1560 = vmatpush1.bf16.msra.mxu0 %v1542
    %1561 = vmatprep.subr.bf16.mxu0 0
    %1562 = vmatpush1.bf16.msra.mxu0 %v1543
    %1563 = vmatprep.subr.bf16.mxu0 0
    %1564 = vmatpush1.bf16.msra.mxu0 %v1544
    %1565 = vmatprep.subr.bf16.mxu0 0
    %1566 = vmatpush1.bf16.msra.mxu0 %v1545
    %1567 = vmatprep.subr.bf16.mxu0 0
    %1568 = vmatpush1.bf16.msra.mxu0 %v1546
    %1569 = vmatprep.subr.bf16.mxu0 0
    %1570 = vmatpush1.bf16.msra.mxu0 %v1547
    %1571 = vmatprep.subr.bf16.mxu0 0
    %1572 = vmatpush1.bf16.msra.mxu0 %v1548
    %1573 = vmatprep.subr.bf16.mxu0 0
    %1574 = vmatpush1.bf16.msra.mxu0 0
    %1575 = vmatprep.subr.bf16.mxu0 0
    %1576 = vmatpush1.bf16.msra.mxu0 0
    %1577 = vmatprep.subr.bf16.mxu0 0
    %1578 = vmatpush1.bf16.msra.mxu0 0
    %1579 = vmatprep.subr.bf16.mxu0 0
    %1580 = vmatpush1.bf16.msra.mxu0 0
    %1581 = vmatprep.subr.bf16.mxu0 0
    %1582 = vmatpush1.bf16.msra.mxu0 0
    %1583 = vmatprep.subr.bf16.mxu0 0
    %1584 = vmatpush1.bf16.msra.mxu0 0
    %1585 = vmatprep.subr.bf16.mxu0 0
    %1586 = vmatpush1.bf16.msra.mxu0 0
    %1587 = vmatprep.subr.bf16.mxu0 0
    %1588 = vmatpush1.bf16.msra.mxu0 0
    %1589 = vmatprep.mubr.bf16.mxu0 0
    %1590 = vmatmul.mubr.bf16.gmra.mrb[0].mxu0 %v1392
    %v1591 = vpop.f32.mrb[0].mxu0
    %v1592 = vadd.f32 %v1495, %v1591
    %v1593 = vpop.f32.mrb[0].mxu0
    %v1594 = vpop.f32.mrb[0].mxu0
    %v1595 = vadd.f32 %v1498, %v1594
    %v1596 = vpop.f32.mrb[0].mxu0
    %1597 = vmatprep.mubr.bf16.mxu0 0
    %1598 = vmatmul.mubr.bf16.gmra.mrb[0].mxu0 %v1393
    %v1599 = vpop.f32.mrb[0].mxu0
    %v1600 = vadd.f32 %v1503, %v1599
    %v1601 = vpop.f32.mrb[0].mxu0
    %v1602 = vpop.f32.mrb[0].mxu0
    %v1603 = vadd.f32 %v1506, %v1602
    %v1604 = vpop.f32.mrb[0].mxu0
    %1605 = vdwg.mxu0
    %v1606 = vrot.slane %v1360, 1
    %v1607 = vrot.slane %v1361, 1
    %v1608 = vrot.slane %v1362, 1
    %v1609 = vrot.slane %v1363, 1
    %v1610 = vsel %vm345, %v1608, %v1609
    %v1611 = vsel %vm345, %v1607, %v1608
    %v1612 = vsel %vm345, %v1606, %v1607
    %v1613 = vsel %vm345, %v1609, %v1606
    %v1614 = vsel %vm354, %v1612, 0.0
    %v1615 = vsel %vm355, %v1611, 0.0
    %v1616 = vsel %vm356, %v1610, 0.0
    %v1617 = vsel %vm357, %v1613, 0.0
    %v1618 = vld [vmem:[#allocation2 + $0x2b0] sm:$0xf]
    %v1619 = vld [vmem:[#allocation2 + $0x2b8] sm:$0xf]
    %v1620 = vld [vmem:[#allocation2 + $0x2c0] sm:$0xf]
    %v1621 = vld [vmem:[#allocation2 + $0x2c8] sm:$0xf]
    %v1622 = vld [vmem:[#allocation2 + $0x2d0] sm:$0xf]
    %v1623 = vld [vmem:[#allocation2 + $0x2d8] sm:$0xf]
    %v1624 = vld [vmem:[#allocation2 + $0x2e0] sm:$0xf]
    %v1625 = vld [vmem:[#allocation2 + $0x2e8] sm:$0xf]
    %v1626 = vld [vmem:[#allocation2 + $0x2f0] sm:$0xf]
    %v1627 = vld [vmem:[#allocation2 + $0x2f8] sm:$0xf]
    %v1628 = vld [vmem:[#allocation2 + $0x300] sm:$0xf]
    %v1629 = vld [vmem:[#allocation2 + $0x308] sm:$0xf]
    %v1630 = vld [vmem:[#allocation2 + $0x310] sm:$0xf]
    %v1631 = vld [vmem:[#allocation2 + $0x318] sm:$0xf]
    %v1632 = vld [vmem:[#allocation2 + $0x320] sm:$0xf]
    %v1633 = vld [vmem:[#allocation2 + $0x328] sm:$0xf]
    %v1634 = vpack.c.bf16 %v1615, %v1614
    %v1635 = vpack.c.bf16 %v1617, %v1616
    %v1652 = vunpack.c.l.b16 %v1618
    %v1653 = vunpack.c.l.b16 %v1619
    %v1654 = vunpack.c.l.b16 %v1620
    %v1655 = vunpack.c.l.b16 %v1621
    %v1656 = vunpack.c.l.b16 %v1622
    %v1657 = vunpack.c.l.b16 %v1623
    %v1658 = vunpack.c.l.b16 %v1624
    %v1659 = vunpack.c.l.b16 %v1625
    %v1660 = vunpack.c.l.b16 %v1626
    %v1661 = vunpack.c.l.b16 %v1627
    %v1662 = vunpack.c.l.b16 %v1628
    %v1663 = vunpack.c.l.b16 %v1629
    %v1664 = vunpack.c.l.b16 %v1630
    %v1665 = vunpack.c.l.b16 %v1631
    %v1666 = vunpack.c.l.b16 %v1632
    %v1667 = vunpack.c.l.b16 %v1633
    %v1668 = vpack.c.b16 %v1653, %v1652
    %v1669 = vpack.c.b16 %v1655, %v1654
    %v1670 = vpack.c.b16 %v1657, %v1656
    %v1671 = vpack.c.b16 %v1659, %v1658
    %v1672 = vpack.c.b16 %v1661, %v1660
    %v1673 = vpack.c.b16 %v1663, %v1662
    %v1674 = vpack.c.b16 %v1665, %v1664
    %v1675 = vpack.c.b16 %v1667, %v1666
    %1684 = vmatprep.subr.bf16.mxu0 0
    %1685 = vmatpush1.bf16.msra.mxu0 %v1668
    %1686 = vmatprep.subr.bf16.mxu0 0
    %1687 = vmatpush1.bf16.msra.mxu0 %v1669
    %1688 = vmatprep.subr.bf16.mxu0 0
    %1689 = vmatpush1.bf16.msra.mxu0 %v1670
    %1690 = vmatprep.subr.bf16.mxu0 0
    %1691 = vmatpush1.bf16.msra.mxu0 %v1671
    %1692 = vmatprep.subr.bf16.mxu0 0
    %1693 = vmatpush1.bf16.msra.mxu0 %v1672
    %1694 = vmatprep.subr.bf16.mxu0 0
    %1695 = vmatpush1.bf16.msra.mxu0 %v1673
    %1696 = vmatprep.subr.bf16.mxu0 0
    %1697 = vmatpush1.bf16.msra.mxu0 %v1674
    %1698 = vmatprep.subr.bf16.mxu0 0
    %1699 = vmatpush1.bf16.msra.mxu0 %v1675
    %1700 = vmatprep.subr.bf16.mxu0 0
    %1701 = vmatpush1.bf16.msra.mxu0 0
    %1702 = vmatprep.subr.bf16.mxu0 0
    %1703 = vmatpush1.bf16.msra.mxu0 0
    %1704 = vmatprep.subr.bf16.mxu0 0
    %1705 = vmatpush1.bf16.msra.mxu0 0
    %1706 = vmatprep.subr.bf16.mxu0 0
    %1707 = vmatpush1.bf16.msra.mxu0 0
    %1708 = vmatprep.subr.bf16.mxu0 0
    %1709 = vmatpush1.bf16.msra.mxu0 0
    %1710 = vmatprep.subr.bf16.mxu0 0
    %1711 = vmatpush1.bf16.msra.mxu0 0
    %1712 = vmatprep.subr.bf16.mxu0 0
    %1713 = vmatpush1.bf16.msra.mxu0 0
    %1714 = vmatprep.subr.bf16.mxu0 0
    %1715 = vmatpush1.bf16.msra.mxu0 0
    %1716 = vmatprep.mubr.bf16.mxu0 0
    %1717 = vmatmul.mubr.bf16.gmra.mrb[0].mxu0 %v1634
    %v1718 = vpop.f32.mrb[0].mxu0
    %v1719 = vadd.f32 0.0, %v1718
    %v1720 = vpop.f32.mrb[0].mxu0
    %v1721 = vpop.f32.mrb[0].mxu0
    %v1722 = vadd.f32 0.0, %v1721
    %v1723 = vpop.f32.mrb[0].mxu0
    %1724 = vmatprep.mubr.bf16.mxu0 0
    %1725 = vmatmul.mubr.bf16.gmra.mrb[0].mxu0 %v1635
    %v1726 = vpop.f32.mrb[0].mxu0
    %v1727 = vadd.f32 0.0, %v1726
    %v1728 = vpop.f32.mrb[0].mxu0
    %v1729 = vpop.f32.mrb[0].mxu0
    %v1730 = vadd.f32 0.0, %v1729
    %v1731 = vpop.f32.mrb[0].mxu0
    %1732 = vdwg.mxu0
    %v1733 = vadd.f32 %v1592, %v1719
    %v1734 = vadd.f32 %v1595, %v1722
    %v1735 = vadd.f32 %v1600, %v1727
    %v1736 = vadd.f32 %v1603, %v1730
    %v1737 = vadd.f32 %v1733, %v170
    %v1738 = vadd.f32 %v1734, %v170
    %v1739 = vadd.f32 %v1735, %v170
    %v1740 = vadd.f32 %v1736, %v170
    %1741 = vmatprep.subr.mxu0 0.0
    %1742 = vmatpush1.msra.mxu0 %v1737
    %1743 = vmatprep.subr.mxu0 0.0
    %1744 = vmatpush1.msra.mxu0 %v1738
    %1745 = vmatprep.subr.mxu0 0.0
    %1746 = vmatpush1.msra.mxu0 %v1739
    %1747 = vmatprep.subr.mxu0 0.0
    %1748 = vmatpush1.msra.mxu0 %v1740
    %1749 = vmatprep.subr.mxu0 0.0
    %1750 = vmatpush1.msra.mxu0 0.0
    %1751 = vmatprep.subr.mxu0 0.0
    %1752 = vmatpush1.msra.mxu0 0.0
    %1753 = vmatprep.subr.mxu0 0.0
    %1754 = vmatpush1.msra.mxu0 0.0
    %1755 = vmatprep.subr.mxu0 0.0
    %1756 = vmatpush1.msra.mxu0 0.0
    %1757 = vmatprep.subr.mxu0 0.0
    %1758 = vmatpush1.msra.mxu0 0.0
    %1759 = vmatprep.subr.mxu0 0.0
    %1760 = vmatpush1.msra.mxu0 0.0
    %1761 = vmatprep.subr.mxu0 0.0
    %1762 = vmatpush1.msra.mxu0 0.0
    %1763 = vmatprep.subr.mxu0 0.0
    %1764 = vmatpush1.msra.mxu0 0.0
    %1765 = vmatprep.subr.mxu0 0.0
    %1766 = vmatpush1.msra.mxu0 0.0
    %1767 = vmatprep.subr.mxu0 0.0
    %1768 = vmatpush1.msra.mxu0 0.0
    %1769 = vmatprep.subr.mxu0 0.0
    %1770 = vmatpush1.msra.mxu0 0.0
    %1771 = vmatprep.subr.mxu0 0.0
    %1772 = vmatpush1.msra.mxu0 0.0
    %1773 = vmatprep.subr.mxu0 0.0
    %1774 = vmatpush1.msra.mxu0 0.0
    %1775 = vmatprep.subr.mxu0 0.0
    %1776 = vmatpush1.msra.mxu0 0.0
    %1777 = vmatprep.subr.mxu0 0.0
    %1778 = vmatpush1.msra.mxu0 0.0
    %1779 = vmatprep.subr.mxu0 0.0
    %1780 = vmatpush1.msra.mxu0 0.0
    %1781 = vmatprep.subr.mxu0 0.0
    %1782 = vmatpush1.msra.mxu0 0.0
    %1783 = vmatprep.subr.mxu0 0.0
    %1784 = vmatpush1.msra.mxu0 0.0
    %1785 = vmatprep.subr.mxu0 0.0
    %1786 = vmatpush1.msra.mxu0 0.0
    %1787 = vmatprep.subr.mxu0 0.0
    %1788 = vmatpush1.msra.mxu0 0.0
    %1789 = vmatprep.subr.mxu0 0.0
    %1790 = vmatpush1.msra.mxu0 0.0
    %1791 = vmatprep.subr.mxu0 0.0
    %1792 = vmatpush1.msra.mxu0 0.0
    %1793 = vmatprep.subr.mxu0 0.0
    %1794 = vmatpush1.msra.mxu0 0.0
    %1795 = vmatprep.subr.mxu0 0.0
    %1796 = vmatpush1.msra.mxu0 0.0
    %1797 = vmatprep.subr.mxu0 0.0
    %1798 = vmatpush1.msra.mxu0 0.0
    %1799 = vmatprep.subr.mxu0 0.0
    %1800 = vmatpush1.msra.mxu0 0.0
    %1801 = vmatprep.subr.mxu0 0.0
    %1802 = vmatpush1.msra.mxu0 0.0
    %1803 = vmatprep.subr.mxu0 0.0
    %1804 = vmatpush1.msra.mxu0 0.0
    %1805 = vmatprep.mubr.f32.mxu0 0.0
    %1806 = vmatmul.mubr.f32.gmra.mrb[0].mxu0 %v464
    %v1807 = vpop.f32.mrb[0].mxu0
    %v1808 = vadd.f32 0.0, %v1807
    %v1809 = vpop.f32.mrb[0].mxu0
    %1810 = vdwg.mxu0
    %v1811 = vmul.f32 %v1737, %v1737
    %v1812 = vmul.f32 %v1738, %v1738
    %v1813 = vmul.f32 %v1739, %v1739
    %v1814 = vmul.f32 %v1740, %v1740
    %1815 = vmatprep.subr.mxu0 0.0
    %1816 = vmatpush1.msra.mxu0 %v1811
    %1817 = vmatprep.subr.mxu0 0.0
    %1818 = vmatpush1.msra.mxu0 %v1812
    %1819 = vmatprep.subr.mxu0 0.0
    %1820 = vmatpush1.msra.mxu0 %v1813
    %1821 = vmatprep.subr.mxu0 0.0
    %1822 = vmatpush1.msra.mxu0 %v1814
    %1823 = vmatprep.subr.mxu0 0.0
    %1824 = vmatpush1.msra.mxu0 0.0
    %1825 = vmatprep.subr.mxu0 0.0
    %1826 = vmatpush1.msra.mxu0 0.0
    %1827 = vmatprep.subr.mxu0 0.0
    %1828 = vmatpush1.msra.mxu0 0.0
    %1829 = vmatprep.subr.mxu0 0.0
    %1830 = vmatpush1.msra.mxu0 0.0
    %1831 = vmatprep.subr.mxu0 0.0
    %1832 = vmatpush1.msra.mxu0 0.0
    %1833 = vmatprep.subr.mxu0 0.0
    %1834 = vmatpush1.msra.mxu0 0.0
    %1835 = vmatprep.subr.mxu0 0.0
    %1836 = vmatpush1.msra.mxu0 0.0
    %1837 = vmatprep.subr.mxu0 0.0
    %1838 = vmatpush1.msra.mxu0 0.0
    %1839 = vmatprep.subr.mxu0 0.0
    %1840 = vmatpush1.msra.mxu0 0.0
    %1841 = vmatprep.subr.mxu0 0.0
    %1842 = vmatpush1.msra.mxu0 0.0
    %1843 = vmatprep.subr.mxu0 0.0
    %1844 = vmatpush1.msra.mxu0 0.0
    %1845 = vmatprep.subr.mxu0 0.0
    %1846 = vmatpush1.msra.mxu0 0.0
    %1847 = vmatprep.subr.mxu0 0.0
    %1848 = vmatpush1.msra.mxu0 0.0
    %1849 = vmatprep.subr.mxu0 0.0
    %1850 = vmatpush1.msra.mxu0 0.0
    %1851 = vmatprep.subr.mxu0 0.0
    %1852 = vmatpush1.msra.mxu0 0.0
    %1853 = vmatprep.subr.mxu0 0.0
    %1854 = vmatpush1.msra.mxu0 0.0
    %1855 = vmatprep.subr.mxu0 0.0
    %1856 = vmatpush1.msra.mxu0 0.0
    %1857 = vmatprep.subr.mxu0 0.0
    %1858 = vmatpush1.msra.mxu0 0.0
    %1859 = vmatprep.subr.mxu0 0.0
    %1860 = vmatpush1.msra.mxu0 0.0
    %1861 = vmatprep.subr.mxu0 0.0
    %1862 = vmatpush1.msra.mxu0 0.0
    %1863 = vmatprep.subr.mxu0 0.0
    %1864 = vmatpush1.msra.mxu0 0.0
    %1865 = vmatprep.subr.mxu0 0.0
    %1866 = vmatpush1.msra.mxu0 0.0
    %1867 = vmatprep.subr.mxu0 0.0
    %1868 = vmatpush1.msra.mxu0 0.0
    %1869 = vmatprep.subr.mxu0 0.0
    %1870 = vmatpush1.msra.mxu0 0.0
    %1871 = vmatprep.subr.mxu0 0.0
    %1872 = vmatpush1.msra.mxu0 0.0
    %1873 = vmatprep.subr.mxu0 0.0
    %1874 = vmatpush1.msra.mxu0 0.0
    %1875 = vmatprep.subr.mxu0 0.0
    %1876 = vmatpush1.msra.mxu0 0.0
    %1877 = vmatprep.subr.mxu0 0.0
    %1878 = vmatpush1.msra.mxu0 0.0
    %1879 = vmatprep.mubr.f32.mxu0 0.0
    %1880 = vmatmul.mubr.f32.gmra.mrb[0].mxu0 %v464
    %v1881 = vpop.f32.mrb[0].mxu0
    %v1882 = vadd.f32 0.0, %v1881
    %v1883 = vpop.f32.mrb[0].mxu0
    %1884 = vdwg.mxu0
    %v1885 = vmul.f32 %v1808, 0.03125
    %v1886 = vmul.f32 %v1882, 0.03125
    %v1887 = vmul.f32 %v1885, %v1885
    %v1888 = vsub.f32 %v1886, %v1887
    %v1889 = vlaneseq
    %v1890 = vshrl.u32 %v1889, 7
    %v1891 = vsub.s32 0, %v1890
    %v1892 = vrot.slane %v1885, %v1891
    %v1893 = vsub.f32 %v1737, %v1892
    %v1894 = vsub.f32 %v1738, %v1892
    %v1895 = vsub.f32 %v1739, %v1892
    %v1896 = vsub.f32 %v1740, %v1892
    %v1897 = vadd.f32 %v1888, 1e-05
    %v1898 = vrsqrt.pop %v1897
    %v1899 = vmul.f32 %v1898, %v171
    %v1900 = vlaneseq
    %v1901 = vshrl.u32 %v1900, 7
    %v1902 = vsub.s32 0, %v1901
    %v1903 = vrot.slane %v1899, %v1902
    %v1904 = vmul.f32 %v1893, %v1903
    %v1905 = vmul.f32 %v1894, %v1903
    %v1906 = vmul.f32 %v1895, %v1903
    %v1907 = vmul.f32 %v1896, %v1903
    %v1908 = vadd.f32 %v1904, %v172
    %v1909 = vadd.f32 %v1905, %v172
    %v1910 = vadd.f32 %v1906, %v172
    %v1911 = vadd.f32 %v1907, %v172
    %v1912 = vadd.f32 %v1908, %v633
    %v1913 = vadd.f32 %v1909, %v634
    %v1914 = vadd.f32 %v1910, %v635
    %v1915 = vadd.f32 %v1911, %v636
    %v1916 = vmax.f32 %v1912, 0.0
    %v1917 = vmax.f32 %v1913, 0.0
    %v1918 = vmax.f32 %v1914, 0.0
    %v1919 = vmax.f32 %v1915, 0.0
    %v1924 = vcombine.high %v1916, %v1916
    %v1926 = vunpack.c.l.s4 1983009808
    %v1927 = vunpack.c.0.s8 %v1926
    %v1928 = vlaneseq
    %v1929 = vshrl.u32 %v1928, 7
    %v1930 = vsub.s32 %v1927, %v1929
    %v1931 = vrot.slane %v1916, %v1930
    %v1933 = vunpack.c.l.s4 1983009808
    %v1934 = vunpack.c.0.s8 %v1933
    %v1935 = vlaneseq
    %v1936 = vshrl.u32 %v1935, 7
    %v1937 = vsub.s32 %v1934, %v1936
    %v1938 = vrot.slane %v1924, %v1937
    %v1939 = vcombine.high %v1931, %v1931
    %v1940 = vcombine.high %v1938, %v1938
    %v1941 = vcombine.high %v1917, %v1917
    %v1943 = vunpack.c.l.s4 1983009808
    %v1944 = vunpack.c.0.s8 %v1943
    %v1945 = vlaneseq
    %v1946 = vshrl.u32 %v1945, 7
    %v1947 = vsub.s32 %v1944, %v1946
    %v1948 = vrot.slane %v1917, %v1947
    %v1950 = vunpack.c.l.s4 1983009808
    %v1951 = vunpack.c.0.s8 %v1950
    %v1952 = vlaneseq
    %v1953 = vshrl.u32 %v1952, 7
    %v1954 = vsub.s32 %v1951, %v1953
    %v1955 = vrot.slane %v1941, %v1954
    %v1956 = vcombine.high %v1948, %v1948
    %v1957 = vcombine.high %v1955, %v1955
    %v1958 = vcombine.high %v1918, %v1918
    %v1960 = vunpack.c.l.s4 1983009808
    %v1961 = vunpack.c.0.s8 %v1960
    %v1962 = vlaneseq
    %v1963 = vshrl.u32 %v1962, 7
    %v1964 = vsub.s32 %v1961, %v1963
    %v1965 = vrot.slane %v1918, %v1964
    %v1967 = vunpack.c.l.s4 1983009808
    %v1968 = vunpack.c.0.s8 %v1967
    %v1969 = vlaneseq
    %v1970 = vshrl.u32 %v1969, 7
    %v1971 = vsub.s32 %v1968, %v1970
    %v1972 = vrot.slane %v1958, %v1971
    %v1973 = vcombine.high %v1965, %v1965
    %v1974 = vcombine.high %v1972, %v1972
    %v1975 = vcombine.high %v1919, %v1919
    %v1977 = vunpack.c.l.s4 1983009808
    %v1978 = vunpack.c.0.s8 %v1977
    %v1979 = vlaneseq
    %v1980 = vshrl.u32 %v1979, 7
    %v1981 = vsub.s32 %v1978, %v1980
    %v1982 = vrot.slane %v1919, %v1981
    %v1984 = vunpack.c.l.s4 1983009808
    %v1985 = vunpack.c.0.s8 %v1984
    %v1986 = vlaneseq
    %v1987 = vshrl.u32 %v1986, 7
    %v1988 = vsub.s32 %v1985, %v1987
    %v1989 = vrot.slane %v1975, %v1988
    %v1990 = vcombine.high %v1982, %v1982
    %v1991 = vcombine.high %v1989, %v1989
    %vm2008 = vcmask 1041408
    %v2009 = vsel %vm2008, %v1931, 0.0
    %v2010 = vrot.slane %v2009, 4
    %v2011 = vadd.f32 %v2009, %v2010
    %v2012 = vrot.slane %v2011, 2
    %v2013 = vadd.f32 %v2011, %v2012
    %v2014 = vrot.slane %v2013, 1
    %v2015 = vadd.f32 %v2013, %v2014
    %v2016 = vsel %vm2008, %v1939, 0.0
    %v2017 = vrot.slane %v2016, 4
    %v2018 = vadd.f32 %v2016, %v2017
    %v2019 = vrot.slane %v2018, 2
    %v2020 = vadd.f32 %v2018, %v2019
    %v2021 = vrot.slane %v2020, 1
    %v2022 = vadd.f32 %v2020, %v2021
    %v2023 = vsel %vm2008, %v1938, 0.0
    %v2024 = vrot.slane %v2023, 4
    %v2025 = vadd.f32 %v2023, %v2024
    %v2026 = vrot.slane %v2025, 2
    %v2027 = vadd.f32 %v2025, %v2026
    %v2028 = vrot.slane %v2027, 1
    %v2029 = vadd.f32 %v2027, %v2028
    %v2030 = vsel %vm2008, %v1940, 0.0
    %v2031 = vrot.slane %v2030, 4
    %v2032 = vadd.f32 %v2030, %v2031
    %v2033 = vrot.slane %v2032, 2
    %v2034 = vadd.f32 %v2032, %v2033
    %v2035 = vrot.slane %v2034, 1
    %v2036 = vadd.f32 %v2034, %v2035
    %v2037 = vsel %vm2008, %v1948, 0.0
    %v2038 = vrot.slane %v2037, 4
    %v2039 = vadd.f32 %v2037, %v2038
    %v2040 = vrot.slane %v2039, 2
    %v2041 = vadd.f32 %v2039, %v2040
    %v2042 = vrot.slane %v2041, 1
    %v2043 = vadd.f32 %v2041, %v2042
    %v2044 = vsel %vm2008, %v1956, 0.0
    %v2045 = vrot.slane %v2044, 4
    %v2046 = vadd.f32 %v2044, %v2045
    %v2047 = vrot.slane %v2046, 2
    %v2048 = vadd.f32 %v2046, %v2047
    %v2049 = vrot.slane %v2048, 1
    %v2050 = vadd.f32 %v2048, %v2049
    %v2051 = vsel %vm2008, %v1955, 0.0
    %v2052 = vrot.slane %v2051, 4
    %v2053 = vadd.f32 %v2051, %v2052
    %v2054 = vrot.slane %v2053, 2
    %v2055 = vadd.f32 %v2053, %v2054
    %v2056 = vrot.slane %v2055, 1
    %v2057 = vadd.f32 %v2055, %v2056
    %v2058 = vsel %vm2008, %v1957, 0.0
    %v2059 = vrot.slane %v2058, 4
    %v2060 = vadd.f32 %v2058, %v2059
    %v2061 = vrot.slane %v2060, 2
    %v2062 = vadd.f32 %v2060, %v2061
    %v2063 = vrot.slane %v2062, 1
    %v2064 = vadd.f32 %v2062, %v2063
    %v2065 = vsel %vm2008, %v1965, 0.0
    %v2066 = vrot.slane %v2065, 4
    %v2067 = vadd.f32 %v2065, %v2066
    %v2068 = vrot.slane %v2067, 2
    %v2069 = vadd.f32 %v2067, %v2068
    %v2070 = vrot.slane %v2069, 1
    %v2071 = vadd.f32 %v2069, %v2070
    %v2072 = vsel %vm2008, %v1973, 0.0
    %v2073 = vrot.slane %v2072, 4
    %v2074 = vadd.f32 %v2072, %v2073
    %v2075 = vrot.slane %v2074, 2
    %v2076 = vadd.f32 %v2074, %v2075
    %v2077 = vrot.slane %v2076, 1
    %v2078 = vadd.f32 %v2076, %v2077
    %v2079 = vsel %vm2008, %v1972, 0.0
    %v2080 = vrot.slane %v2079, 4
    %v2081 = vadd.f32 %v2079, %v2080
    %v2082 = vrot.slane %v2081, 2
    %v2083 = vadd.f32 %v2081, %v2082
    %v2084 = vrot.slane %v2083, 1
    %v2085 = vadd.f32 %v2083, %v2084
    %v2086 = vsel %vm2008, %v1974, 0.0
    %v2087 = vrot.slane %v2086, 4
    %v2088 = vadd.f32 %v2086, %v2087
    %v2089 = vrot.slane %v2088, 2
    %v2090 = vadd.f32 %v2088, %v2089
    %v2091 = vrot.slane %v2090, 1
    %v2092 = vadd.f32 %v2090, %v2091
    %v2093 = vsel %vm2008, %v1982, 0.0
    %v2094 = vrot.slane %v2093, 4
    %v2095 = vadd.f32 %v2093, %v2094
    %v2096 = vrot.slane %v2095, 2
    %v2097 = vadd.f32 %v2095, %v2096
    %v2098 = vrot.slane %v2097, 1
    %v2099 = vadd.f32 %v2097, %v2098
    %v2100 = vsel %vm2008, %v1990, 0.0
    %v2101 = vrot.slane %v2100, 4
    %v2102 = vadd.f32 %v2100, %v2101
    %v2103 = vrot.slane %v2102, 2
    %v2104 = vadd.f32 %v2102, %v2103
    %v2105 = vrot.slane %v2104, 1
    %v2106 = vadd.f32 %v2104, %v2105
    %v2107 = vsel %vm2008, %v1989, 0.0
    %v2108 = vrot.slane %v2107, 4
    %v2109 = vadd.f32 %v2107, %v2108
    %v2110 = vrot.slane %v2109, 2
    %v2111 = vadd.f32 %v2109, %v2110
    %v2112 = vrot.slane %v2111, 1
    %v2113 = vadd.f32 %v2111, %v2112
    %v2114 = vsel %vm2008, %v1991, 0.0
    %v2115 = vrot.slane %v2114, 4
    %v2116 = vadd.f32 %v2114, %v2115
    %v2117 = vrot.slane %v2116, 2
    %v2118 = vadd.f32 %v2116, %v2117
    %v2119 = vrot.slane %v2118, 1
    %v2120 = vadd.f32 %v2118, %v2119
    %v2121 = vrcp.pop 2.0
    %v2122 = vmul.f32 %v2015, %v2121
    %v2123 = vmul.f32 %v2022, %v2121
    %v2124 = vmul.f32 %v2029, %v2121
    %v2125 = vmul.f32 %v2036, %v2121
    %v2126 = vmul.f32 %v2043, %v2121
    %v2127 = vmul.f32 %v2050, %v2121
    %v2128 = vmul.f32 %v2057, %v2121
    %v2129 = vmul.f32 %v2064, %v2121
    %v2130 = vmul.f32 %v2071, %v2121
    %v2131 = vmul.f32 %v2078, %v2121
    %v2132 = vmul.f32 %v2085, %v2121
    %v2133 = vmul.f32 %v2092, %v2121
    %v2134 = vmul.f32 %v2099, %v2121
    %v2135 = vmul.f32 %v2106, %v2121
    %v2136 = vmul.f32 %v2113, %v2121
    %v2137 = vmul.f32 %v2120, %v2121
    %vm2138 = vcmp.lt.s32.totalorder %v84, 0
    %v2139 = vsub.s32 0, %v84
    %v2140 = vsel %vm2138, %v2139, %v84
    %v2141 = vshrl.u32 %v2140, 3
    %v2142 = vand.u32 %v2140, 7
    %v2143 = vsub.s32 0, %v2142
    %v2144 = vsel %vm2138, %v2143, %v2142
    %vm2145 = vcmp.lt.s32.totalorder %v85, 0
    %v2146 = vsub.s32 0, %v85
    %v2147 = vsel %vm2145, %v2146, %v85
    %v2148 = vshrl.u32 %v2147, 3
    %v2149 = vand.u32 %v2147, 7
    %v2150 = vsub.s32 0, %v2149
    %v2151 = vsel %vm2145, %v2150, %v2149
    %vm2152 = vcmp.ne.s32.totalorder %v2144, 0
    %vm2153 = vcmp.ne.s32.totalorder %v2151, 0
    %vm2154 = vcmp.lt.s32.totalorder %v2144, 0
    %vm2155 = vcmp.lt.s32.totalorder %v2151, 0
    %vm2156 = vmand %vm2154, %vm2152
    %vm2157 = vmand %vm2155, %vm2153
    %v2158 = vadd.s32 %v2144, 8
    %v2159 = vadd.s32 %v2151, 8
    %v2160 = vsel %vm2156, %v2158, %v2144
    %v2161 = vsel %vm2157, %v2159, %v2151
    %v2162 = vadd.s32 %v2160, 4294967295
    %v2163 = vadd.s32 %v2161, 4294967295
    %vm2164 = vcmp.ge.s32.totalorder %v2162, 0
    %vm2165 = vcmp.ge.s32.totalorder %v2163, 0
    %vm2166 = vcmp.lt.s32.totalorder %v2162, 8
    %vm2167 = vcmp.lt.s32.totalorder %v2163, 8
    %vm2168 = vmand %vm2164, %vm2166
    %vm2169 = vmand %vm2165, %vm2167
    %v2170 = vadd.s32 %v2160, 1
    %v2171 = vadd.s32 %v2161, 1
    %vm2172 = vcmp.ge.s32.totalorder %v2170, 0
    %vm2173 = vcmp.ge.s32.totalorder %v2171, 0
    %vm2174 = vcmp.lt.s32.totalorder %v2170, 8
    %vm2175 = vcmp.lt.s32.totalorder %v2171, 8
    %vm2176 = vmand %vm2172, %vm2174
    %vm2177 = vmand %vm2173, %vm2175
    %s2178 = scalar_lea.vmem %s5, 16
    %v2179 = vld [vmem:[%s2178] ss:$8 sm:$0x3]
    %v2180 = vld [vmem:[%s5 + $0x11] ss:$0 sm:$0xff]
    %v2181 = vld [vmem:[%s5 + $0x12] ss:$0 sm:$0xff]
    %v2182 = vld [vmem:[%s5 + $0x13] ss:$0 sm:$0xff]
    %v2183 = vld [vmem:[%s5 + $0x14] ss:$0 sm:$0xff]
    %vm2200 = vcmask 1041409
    %v2201 = vsel %vm2200, %v2123, %v2122
    %vm2202 = vcmask 1042434
    %v2203 = vsel %vm2202, %v2124, %v2201
    %vm2204 = vcmask 1043459
    %v2205 = vsel %vm2204, %v2125, %v2203
    %vm2206 = vcmask 1044484
    %v2207 = vsel %vm2206, %v2126, %v2205
    %vm2208 = vcmask 1045509
    %v2209 = vsel %vm2208, %v2127, %v2207
    %vm2210 = vcmask 1046534
    %v2211 = vsel %vm2210, %v2128, %v2209
    %vm2212 = vcmask 1047559
    %v2213 = vsel %vm2212, %v2129, %v2211
    %v2214 = vsel %vm2200, %v2131, %v2130
    %v2215 = vsel %vm2202, %v2132, %v2214
    %v2216 = vsel %vm2204, %v2133, %v2215
    %v2217 = vsel %vm2206, %v2134, %v2216
    %v2218 = vsel %vm2208, %v2135, %v2217
    %v2219 = vsel %vm2210, %v2136, %v2218
    %v2220 = vsel %vm2212, %v2137, %v2219
    %v2223 = vrot.slane %v2213, 7
    %v2224 = vrot.slane %v2220, 7
    %v2225 = vsel %vm177, %v2223, %v2224
    %v2226 = vsel %vm177, %v2224, %v2223
    %v2227 = vsel %vm2168, 1, 0
    %v2228 = vsel %vm2169, 1, 0
    %vm2229 = vcmp.eq.s32.totalorder %v2227, 1
    %vm2230 = vcmp.eq.s32.totalorder %v2228, 1
    %v2231 = vsel %vm2229, %v2226, 0.0
    %v2232 = vsel %vm2230, %v2225, 0.0
    %v2233 = vld [vmem:[#allocation4] sm:$0xff]
    %v2234 = vld [vmem:[#allocation4 + $0x8] sm:$0xff]
    %v2235 = vld [vmem:[#allocation4 + $0x10] sm:$0xff]
    %v2236 = vld [vmem:[#allocation4 + $0x18] sm:$0xff]
    %v2237 = vld [vmem:[#allocation4 + $0x20] sm:$0xff]
    %v2238 = vld [vmem:[#allocation4 + $0x28] sm:$0xff]
    %v2239 = vld [vmem:[#allocation4 + $0x30] sm:$0xff]
    %v2240 = vld [vmem:[#allocation4 + $0x38] sm:$0xff]
    %v2241 = vld [vmem:[#allocation4 + $0x40] sm:$0xff]
    %v2242 = vld [vmem:[#allocation4 + $0x48] sm:$0xff]
    %v2243 = vld [vmem:[#allocation4 + $0x50] sm:$0xff]
    %v2244 = vld [vmem:[#allocation4 + $0x58] sm:$0xff]
    %v2245 = vld [vmem:[#allocation4 + $0x60] sm:$0xff]
    %v2246 = vld [vmem:[#allocation4 + $0x68] sm:$0xff]
    %v2247 = vld [vmem:[#allocation4 + $0x70] sm:$0xff]
    %v2248 = vld [vmem:[#allocation4 + $0x78] sm:$0xff]
    %v2249 = vpack.c.bf16 %v2232, %v2231
    %v2250 = vld [vmem:[#allocation4 + $0x80] sm:$0xff]
    %v2251 = vld [vmem:[#allocation4 + $0x88] sm:$0xff]
    %v2252 = vld [vmem:[#allocation4 + $0x90] sm:$0xff]
    %v2253 = vld [vmem:[#allocation4 + $0x98] sm:$0xff]
    %v2254 = vld [vmem:[#allocation4 + $0xa0] sm:$0xff]
    %v2255 = vld [vmem:[#allocation4 + $0xa8] sm:$0xff]
    %v2256 = vld [vmem:[#allocation4 + $0xb0] sm:$0xff]
    %v2257 = vld [vmem:[#allocation4 + $0xb8] sm:$0xff]
    %v2258 = vld [vmem:[#allocation4 + $0xc0] sm:$0xff]
    %v2259 = vld [vmem:[#allocation4 + $0xc8] sm:$0xff]
    %v2260 = vld [vmem:[#allocation4 + $0xd0] sm:$0xff]
    %v2261 = vld [vmem:[#allocation4 + $0xd8] sm:$0xff]
    %v2262 = vld [vmem:[#allocation4 + $0xe0] sm:$0xff]
    %v2263 = vld [vmem:[#allocation4 + $0xe8] sm:$0xff]
    %v2264 = vld [vmem:[#allocation4 + $0xf0] sm:$0xff]
    %v2265 = vld [vmem:[#allocation4 + $0xf8] sm:$0xff]
    %v2266 = vpack.c.bf16 %v2122, %v2122
    %v2267 = vpack.c.bf16 %v2123, %v2123
    %v2268 = vpack.c.bf16 %v2124, %v2124
    %v2269 = vpack.c.bf16 %v2125, %v2125
    %v2270 = vpack.c.bf16 %v2126, %v2126
    %v2271 = vpack.c.bf16 %v2127, %v2127
    %v2272 = vpack.c.bf16 %v2128, %v2128
    %v2273 = vpack.c.bf16 %v2129, %v2129
    %v2274 = vpack.c.bf16 %v2130, %v2130
    %v2275 = vpack.c.bf16 %v2131, %v2131
    %v2276 = vpack.c.bf16 %v2132, %v2132
    %v2277 = vpack.c.bf16 %v2133, %v2133
    %v2278 = vpack.c.bf16 %v2134, %v2134
    %v2279 = vpack.c.bf16 %v2135, %v2135
    %v2280 = vpack.c.bf16 %v2136, %v2136
    %v2281 = vpack.c.bf16 %v2137, %v2137
    %v2298 = vunpack.c.l.b16 %v2266
    %v2299 = vunpack.c.l.b16 %v2267
    %v2300 = vunpack.c.l.b16 %v2268
    %v2301 = vunpack.c.l.b16 %v2269
    %v2302 = vunpack.c.l.b16 %v2270
    %v2303 = vunpack.c.l.b16 %v2271
    %v2304 = vunpack.c.l.b16 %v2272
    %v2305 = vunpack.c.l.b16 %v2273
    %v2306 = vunpack.c.l.b16 %v2274
    %v2307 = vunpack.c.l.b16 %v2275
    %v2308 = vunpack.c.l.b16 %v2276
    %v2309 = vunpack.c.l.b16 %v2277
    %v2310 = vunpack.c.l.b16 %v2278
    %v2311 = vunpack.c.l.b16 %v2279
    %v2312 = vunpack.c.l.b16 %v2280
    %v2313 = vunpack.c.l.b16 %v2281
    %v2314 = vsel %vm2200, %v2299, %v2298
    %v2315 = vsel %vm2202, %v2300, %v2314
    %v2316 = vsel %vm2204, %v2301, %v2315
    %v2317 = vsel %vm2206, %v2302, %v2316
    %v2318 = vsel %vm2208, %v2303, %v2317
    %v2319 = vsel %vm2210, %v2304, %v2318
    %v2320 = vsel %vm2212, %v2305, %v2319
    %v2321 = vsel %vm2200, %v2307, %v2306
    %v2322 = vsel %vm2202, %v2308, %v2321
    %v2323 = vsel %vm2204, %v2309, %v2322
    %v2324 = vsel %vm2206, %v2310, %v2323
    %v2325 = vsel %vm2208, %v2311, %v2324
    %v2326 = vsel %vm2210, %v2312, %v2325
    %v2327 = vsel %vm2212, %v2313, %v2326
    %v2328 = vpack.c.b16 %v2327, %v2320
    %v2346 = vunpack.c.l.b16 %v2250
    %v2347 = vunpack.c.h.b16 %v2250
    %v2348 = vunpack.c.l.b16 %v2251
    %v2349 = vunpack.c.h.b16 %v2251
    %v2350 = vunpack.c.l.b16 %v2252
    %v2351 = vunpack.c.h.b16 %v2252
    %v2352 = vunpack.c.l.b16 %v2253
    %v2353 = vunpack.c.h.b16 %v2253
    %v2354 = vunpack.c.l.b16 %v2254
    %v2355 = vunpack.c.h.b16 %v2254
    %v2356 = vunpack.c.l.b16 %v2255
    %v2357 = vunpack.c.h.b16 %v2255
    %v2358 = vunpack.c.l.b16 %v2256
    %v2359 = vunpack.c.h.b16 %v2256
    %v2360 = vunpack.c.l.b16 %v2257
    %v2361 = vunpack.c.h.b16 %v2257
    %v2362 = vunpack.c.l.b16 %v2258
    %v2363 = vunpack.c.h.b16 %v2258
    %v2364 = vunpack.c.l.b16 %v2259
    %v2365 = vunpack.c.h.b16 %v2259
    %v2366 = vunpack.c.l.b16 %v2260
    %v2367 = vunpack.c.h.b16 %v2260
    %v2368 = vunpack.c.l.b16 %v2261
    %v2369 = vunpack.c.h.b16 %v2261
    %v2370 = vunpack.c.l.b16 %v2262
    %v2371 = vunpack.c.h.b16 %v2262
    %v2372 = vunpack.c.l.b16 %v2263
    %v2373 = vunpack.c.h.b16 %v2263
    %v2374 = vunpack.c.l.b16 %v2264
    %v2375 = vunpack.c.h.b16 %v2264
    %v2376 = vunpack.c.l.b16 %v2265
    %v2377 = vunpack.c.h.b16 %v2265
    %v2378 = vpack.c.b16 %v2348, %v2346
    %v2379 = vpack.c.b16 %v2349, %v2347
    %v2380 = vpack.c.b16 %v2352, %v2350
    %v2381 = vpack.c.b16 %v2353, %v2351
    %v2382 = vpack.c.b16 %v2356, %v2354
    %v2383 = vpack.c.b16 %v2357, %v2355
    %v2384 = vpack.c.b16 %v2360, %v2358
    %v2385 = vpack.c.b16 %v2361, %v2359
    %v2386 = vpack.c.b16 %v2364, %v2362
    %v2387 = vpack.c.b16 %v2365, %v2363
    %v2388 = vpack.c.b16 %v2368, %v2366
    %v2389 = vpack.c.b16 %v2369, %v2367
    %v2390 = vpack.c.b16 %v2372, %v2370
    %v2391 = vpack.c.b16 %v2373, %v2371
    %v2392 = vpack.c.b16 %v2376, %v2374
    %v2393 = vpack.c.b16 %v2377, %v2375
    %2410 = vmatprep.subr.bf16.mxu0 %v2379
    %2411 = vmatpush1.bf16.msra.mxu0 %v2378
    %2412 = vmatprep.subr.bf16.mxu0 %v2381
    %2413 = vmatpush1.bf16.msra.mxu0 %v2380
    %2414 = vmatprep.subr.bf16.mxu0 %v2383
    %2415 = vmatpush1.bf16.msra.mxu0 %v2382
    %2416 = vmatprep.subr.bf16.mxu0 %v2385
    %2417 = vmatpush1.bf16.msra.mxu0 %v2384
    %2418 = vmatprep.subr.bf16.mxu0 %v2387
    %2419 = vmatpush1.bf16.msra.mxu0 %v2386
    %2420 = vmatprep.subr.bf16.mxu0 %v2389
    %2421 = vmatpush1.bf16.msra.mxu0 %v2388
    %2422 = vmatprep.subr.bf16.mxu0 %v2391
    %2423 = vmatpush1.bf16.msra.mxu0 %v2390
    %2424 = vmatprep.subr.bf16.mxu0 %v2393
    %2425 = vmatpush1.bf16.msra.mxu0 %v2392
    %2426 = vmatprep.subr.bf16.mxu0 0
    %2427 = vmatpush1.bf16.msra.mxu0 0
    %2428 = vmatprep.subr.bf16.mxu0 0
    %2429 = vmatpush1.bf16.msra.mxu0 0
    %2430 = vmatprep.subr.bf16.mxu0 0
    %2431 = vmatpush1.bf16.msra.mxu0 0
    %2432 = vmatprep.subr.bf16.mxu0 0
    %2433 = vmatpush1.bf16.msra.mxu0 0
    %2434 = vmatprep.subr.bf16.mxu0 0
    %2435 = vmatpush1.bf16.msra.mxu0 0
    %2436 = vmatprep.subr.bf16.mxu0 0
    %2437 = vmatpush1.bf16.msra.mxu0 0
    %2438 = vmatprep.subr.bf16.mxu0 0
    %2439 = vmatpush1.bf16.msra.mxu0 0
    %2440 = vmatprep.subr.bf16.mxu0 0
    %2441 = vmatpush1.bf16.msra.mxu0 0
    %2442 = vmatprep.mubr.bf16.mxu0 0
    %2443 = vmatmul.mubr.bf16.gmra.mrb[0].mxu0 %v2328
    %v2444 = vpop.f32.mrb[0].mxu0
    %v2445 = vadd.f32 0.0, %v2444
    %v2446 = vpop.f32.mrb[0].mxu0
    %v2447 = vadd.f32 0.0, %v2446
    %v2448 = vpop.f32.mrb[0].mxu0
    %v2449 = vadd.f32 0.0, %v2448
    %v2450 = vpop.f32.mrb[0].mxu0
    %v2451 = vadd.f32 0.0, %v2450
    %2452 = vdwg.mxu0
    %v2469 = vunpack.c.l.b16 %v2233
    %v2470 = vunpack.c.h.b16 %v2233
    %v2471 = vunpack.c.l.b16 %v2234
    %v2472 = vunpack.c.h.b16 %v2234
    %v2473 = vunpack.c.l.b16 %v2235
    %v2474 = vunpack.c.h.b16 %v2235
    %v2475 = vunpack.c.l.b16 %v2236
    %v2476 = vunpack.c.h.b16 %v2236
    %v2477 = vunpack.c.l.b16 %v2237
    %v2478 = vunpack.c.h.b16 %v2237
    %v2479 = vunpack.c.l.b16 %v2238
    %v2480 = vunpack.c.h.b16 %v2238
    %v2481 = vunpack.c.l.b16 %v2239
    %v2482 = vunpack.c.h.b16 %v2239
    %v2483 = vunpack.c.l.b16 %v2240
    %v2484 = vunpack.c.h.b16 %v2240
    %v2485 = vunpack.c.l.b16 %v2241
    %v2486 = vunpack.c.h.b16 %v2241
    %v2487 = vunpack.c.l.b16 %v2242
    %v2488 = vunpack.c.h.b16 %v2242
    %v2489 = vunpack.c.l.b16 %v2243
    %v2490 = vunpack.c.h.b16 %v2243
    %v2491 = vunpack.c.l.b16 %v2244
    %v2492 = vunpack.c.h.b16 %v2244
    %v2493 = vunpack.c.l.b16 %v2245
    %v2494 = vunpack.c.h.b16 %v2245
    %v2495 = vunpack.c.l.b16 %v2246
    %v2496 = vunpack.c.h.b16 %v2246
    %v2497 = vunpack.c.l.b16 %v2247
    %v2498 = vunpack.c.h.b16 %v2247
    %v2499 = vunpack.c.l.b16 %v2248
    %v2500 = vunpack.c.h.b16 %v2248
    %v2501 = vpack.c.b16 %v2471, %v2469
    %v2502 = vpack.c.b16 %v2472, %v2470
    %v2503 = vpack.c.b16 %v2475, %v2473
    %v2504 = vpack.c.b16 %v2476, %v2474
    %v2505 = vpack.c.b16 %v2479, %v2477
    %v2506 = vpack.c.b16 %v2480, %v2478
    %v2507 = vpack.c.b16 %v2483, %v2481
    %v2508 = vpack.c.b16 %v2484, %v2482
    %v2509 = vpack.c.b16 %v2487, %v2485
    %v2510 = vpack.c.b16 %v2488, %v2486
    %v2511 = vpack.c.b16 %v2491, %v2489
    %v2512 = vpack.c.b16 %v2492, %v2490
    %v2513 = vpack.c.b16 %v2495, %v2493
    %v2514 = vpack.c.b16 %v2496, %v2494
    %v2515 = vpack.c.b16 %v2499, %v2497
    %v2516 = vpack.c.b16 %v2500, %v2498
    %2533 = vmatprep.subr.bf16.mxu0 %v2502
    %2534 = vmatpush1.bf16.msra.mxu0 %v2501
    %2535 = vmatprep.subr.bf16.mxu0 %v2504
    %2536 = vmatpush1.bf16.msra.mxu0 %v2503
    %2537 = vmatprep.subr.bf16.mxu0 %v2506
    %2538 = vmatpush1.bf16.msra.mxu0 %v2505
    %2539 = vmatprep.subr.bf16.mxu0 %v2508
    %2540 = vmatpush1.bf16.msra.mxu0 %v2507
    %2541 = vmatprep.subr.bf16.mxu0 %v2510
    %2542 = vmatpush1.bf16.msra.mxu0 %v2509
    %2543 = vmatprep.subr.bf16.mxu0 %v2512
    %2544 = vmatpush1.bf16.msra.mxu0 %v2511
    %2545 = vmatprep.subr.bf16.mxu0 %v2514
    %2546 = vmatpush1.bf16.msra.mxu0 %v2513
    %2547 = vmatprep.subr.bf16.mxu0 %v2516
    %2548 = vmatpush1.bf16.msra.mxu0 %v2515
    %2549 = vmatprep.subr.bf16.mxu0 0
    %2550 = vmatpush1.bf16.msra.mxu0 0
    %2551 = vmatprep.subr.bf16.mxu0 0
    %2552 = vmatpush1.bf16.msra.mxu0 0
    %2553 = vmatprep.subr.bf16.mxu0 0
    %2554 = vmatpush1.bf16.msra.mxu0 0
    %2555 = vmatprep.subr.bf16.mxu0 0
    %2556 = vmatpush1.bf16.msra.mxu0 0
    %2557 = vmatprep.subr.bf16.mxu0 0
    %2558 = vmatpush1.bf16.msra.mxu0 0
    %2559 = vmatprep.subr.bf16.mxu0 0
    %2560 = vmatpush1.bf16.msra.mxu0 0
    %2561 = vmatprep.subr.bf16.mxu0 0
    %2562 = vmatpush1.bf16.msra.mxu0 0
    %2563 = vmatprep.subr.bf16.mxu0 0
    %2564 = vmatpush1.bf16.msra.mxu0 0
    %2565 = vmatprep.mubr.bf16.mxu0 0
    %2566 = vmatmul.mubr.bf16.gmra.mrb[0].mxu0 %v2249
    %v2567 = vpop.f32.mrb[0].mxu0
    %v2568 = vadd.f32 %v2445, %v2567
    %v2569 = vpop.f32.mrb[0].mxu0
    %v2570 = vadd.f32 %v2447, %v2569
    %v2571 = vpop.f32.mrb[0].mxu0
    %v2572 = vadd.f32 %v2449, %v2571
    %v2573 = vpop.f32.mrb[0].mxu0
    %v2574 = vadd.f32 %v2451, %v2573
    %2575 = vdwg.mxu0
    %v2576 = vrot.slane %v2213, 1
    %v2577 = vrot.slane %v2220, 1
    %v2578 = vsel %vm345, %v2576, %v2577
    %v2579 = vsel %vm345, %v2577, %v2576
    %v2580 = vsel %vm2176, 1, 0
    %v2581 = vsel %vm2177, 1, 0
    %vm2582 = vcmp.eq.s32.totalorder %v2580, 1
    %vm2583 = vcmp.eq.s32.totalorder %v2581, 1
    %v2584 = vsel %vm2582, %v2578, 0.0
    %v2585 = vsel %vm2583, %v2579, 0.0
    %v2586 = vld [vmem:[#allocation4 + $0x100] sm:$0xff]
    %v2587 = vld [vmem:[#allocation4 + $0x108] sm:$0xff]
    %v2588 = vld [vmem:[#allocation4 + $0x110] sm:$0xff]
    %v2589 = vld [vmem:[#allocation4 + $0x118] sm:$0xff]
    %v2590 = vld [vmem:[#allocation4 + $0x120] sm:$0xff]
    %v2591 = vld [vmem:[#allocation4 + $0x128] sm:$0xff]
    %v2592 = vld [vmem:[#allocation4 + $0x130] sm:$0xff]
    %v2593 = vld [vmem:[#allocation4 + $0x138] sm:$0xff]
    %v2594 = vld [vmem:[#allocation4 + $0x140] sm:$0xff]
    %v2595 = vld [vmem:[#allocation4 + $0x148] sm:$0xff]
    %v2596 = vld [vmem:[#allocation4 + $0x150] sm:$0xff]
    %v2597 = vld [vmem:[#allocation4 + $0x158] sm:$0xff]
    %v2598 = vld [vmem:[#allocation4 + $0x160] sm:$0xff]
    %v2599 = vld [vmem:[#allocation4 + $0x168] sm:$0xff]
    %v2600 = vld [vmem:[#allocation4 + $0x170] sm:$0xff]
    %v2601 = vld [vmem:[#allocation4 + $0x178] sm:$0xff]
    %v2602 = vpack.c.bf16 %v2585, %v2584
    %v2619 = vunpack.c.l.b16 %v2586
    %v2620 = vunpack.c.h.b16 %v2586
    %v2621 = vunpack.c.l.b16 %v2587
    %v2622 = vunpack.c.h.b16 %v2587
    %v2623 = vunpack.c.l.b16 %v2588
    %v2624 = vunpack.c.h.b16 %v2588
    %v2625 = vunpack.c.l.b16 %v2589
    %v2626 = vunpack.c.h.b16 %v2589
    %v2627 = vunpack.c.l.b16 %v2590
    %v2628 = vunpack.c.h.b16 %v2590
    %v2629 = vunpack.c.l.b16 %v2591
    %v2630 = vunpack.c.h.b16 %v2591
    %v2631 = vunpack.c.l.b16 %v2592
    %v2632 = vunpack.c.h.b16 %v2592
    %v2633 = vunpack.c.l.b16 %v2593
    %v2634 = vunpack.c.h.b16 %v2593
    %v2635 = vunpack.c.l.b16 %v2594
    %v2636 = vunpack.c.h.b16 %v2594
    %v2637 = vunpack.c.l.b16 %v2595
    %v2638 = vunpack.c.h.b16 %v2595
    %v2639 = vunpack.c.l.b16 %v2596
    %v2640 = vunpack.c.h.b16 %v2596
    %v2641 = vunpack.c.l.b16 %v2597
    %v2642 = vunpack.c.h.b16 %v2597
    %v2643 = vunpack.c.l.b16 %v2598
    %v2644 = vunpack.c.h.b16 %v2598
    %v2645 = vunpack.c.l.b16 %v2599
    %v2646 = vunpack.c.h.b16 %v2599
    %v2647 = vunpack.c.l.b16 %v2600
    %v2648 = vunpack.c.h.b16 %v2600
    %v2649 = vunpack.c.l.b16 %v2601
    %v2650 = vunpack.c.h.b16 %v2601
    %v2651 = vpack.c.b16 %v2621, %v2619
    %v2652 = vpack.c.b16 %v2622, %v2620
    %v2653 = vpack.c.b16 %v2625, %v2623
    %v2654 = vpack.c.b16 %v2626, %v2624
    %v2655 = vpack.c.b16 %v2629, %v2627
    %v2656 = vpack.c.b16 %v2630, %v2628
    %v2657 = vpack.c.b16 %v2633, %v2631
    %v2658 = vpack.c.b16 %v2634, %v2632
    %v2659 = vpack.c.b16 %v2637, %v2635
    %v2660 = vpack.c.b16 %v2638, %v2636
    %v2661 = vpack.c.b16 %v2641, %v2639
    %v2662 = vpack.c.b16 %v2642, %v2640
    %v2663 = vpack.c.b16 %v2645, %v2643
    %v2664 = vpack.c.b16 %v2646, %v2644
    %v2665 = vpack.c.b16 %v2649, %v2647
    %v2666 = vpack.c.b16 %v2650, %v2648
    %2683 = vmatprep.subr.bf16.mxu0 %v2652
    %2684 = vmatpush1.bf16.msra.mxu0 %v2651
    %2685 = vmatprep.subr.bf16.mxu0 %v2654
    %2686 = vmatpush1.bf16.msra.mxu0 %v2653
    %2687 = vmatprep.subr.bf16.mxu0 %v2656
    %2688 = vmatpush1.bf16.msra.mxu0 %v2655
    %2689 = vmatprep.subr.bf16.mxu0 %v2658
    %2690 = vmatpush1.bf16.msra.mxu0 %v2657
    %2691 = vmatprep.subr.bf16.mxu0 %v2660
    %2692 = vmatpush1.bf16.msra.mxu0 %v2659
    %2693 = vmatprep.subr.bf16.mxu0 %v2662
    %2694 = vmatpush1.bf16.msra.mxu0 %v2661
    %2695 = vmatprep.subr.bf16.mxu0 %v2664
    %2696 = vmatpush1.bf16.msra.mxu0 %v2663
    %2697 = vmatprep.subr.bf16.mxu0 %v2666
    %2698 = vmatpush1.bf16.msra.mxu0 %v2665
    %2699 = vmatprep.subr.bf16.mxu0 0
    %2700 = vmatpush1.bf16.msra.mxu0 0
    %2701 = vmatprep.subr.bf16.mxu0 0
    %2702 = vmatpush1.bf16.msra.mxu0 0
    %2703 = vmatprep.subr.bf16.mxu0 0
    %2704 = vmatpush1.bf16.msra.mxu0 0
    %2705 = vmatprep.subr.bf16.mxu0 0
    %2706 = vmatpush1.bf16.msra.mxu0 0
    %2707 = vmatprep.subr.bf16.mxu0 0
    %2708 = vmatpush1.bf16.msra.mxu0 0
    %2709 = vmatprep.subr.bf16.mxu0 0
    %2710 = vmatpush1.bf16.msra.mxu0 0
    %2711 = vmatprep.subr.bf16.mxu0 0
    %2712 = vmatpush1.bf16.msra.mxu0 0
    %2713 = vmatprep.subr.bf16.mxu0 0
    %2714 = vmatpush1.bf16.msra.mxu0 0
    %2715 = vmatprep.mubr.bf16.mxu0 0
    %2716 = vmatmul.mubr.bf16.gmra.mrb[0].mxu0 %v2602
    %v2717 = vpop.f32.mrb[0].mxu0
    %v2718 = vadd.f32 0.0, %v2717
    %v2719 = vpop.f32.mrb[0].mxu0
    %v2720 = vadd.f32 0.0, %v2719
    %v2721 = vpop.f32.mrb[0].mxu0
    %v2722 = vadd.f32 0.0, %v2721
    %v2723 = vpop.f32.mrb[0].mxu0
    %v2724 = vadd.f32 0.0, %v2723
    %2725 = vdwg.mxu0
    %v2726 = vadd.f32 %v2568, %v2718
    %v2727 = vadd.f32 %v2570, %v2720
    %v2728 = vadd.f32 %v2572, %v2722
    %v2729 = vadd.f32 %v2574, %v2724
    %v2731 = vlaneseq
    %v2732 = vshrl.u32 %v2731, 7
    %v2733 = vsub.s32 0, %v2732
    %v2734 = vrot.slane %v2179, %v2733
    %v2735 = vlaneseq
    %v2736 = vshrl.u32 %v2735, 7
    %v2737 = vsub.s32 1, %v2736
    %v2738 = vrot.slane %v2179, %v2737
    %v2741 = vadd.f32 %v2726, %v2734
    %v2742 = vadd.f32 %v2727, %v2738
    %v2743 = vadd.f32 %v2728, %v2734
    %v2744 = vadd.f32 %v2729, %v2738
    %v2745 = vsel %vm212, 1.0, 0
    %2747 = vmatprep.subr.mxu0 0.0
    %2748 = vmatpush1.msra.mxu0 %v2742
    %2749 = vmatprep.subr.mxu0 0.0
    %2750 = vmatpush1.msra.mxu0 %v2744
    %2751 = vmatprep.subr.mxu0 0.0
    %2752 = vmatpush1.msra.mxu0 0.0
    %2753 = vmatprep.subr.mxu0 0.0
    %2754 = vmatpush1.msra.mxu0 0.0
    %2755 = vmatprep.subr.mxu0 0.0
    %2756 = vmatpush1.msra.mxu0 0.0
    %2757 = vmatprep.subr.mxu0 0.0
    %2758 = vmatpush1.msra.mxu0 0.0
    %2759 = vmatprep.subr.mxu0 0.0
    %2760 = vmatpush1.msra.mxu0 0.0
    %2761 = vmatprep.subr.mxu0 0.0
    %2762 = vmatpush1.msra.mxu0 0.0
    %2763 = vmatprep.subr.mxu0 0.0
    %2764 = vmatpush1.msra.mxu0 0.0
    %2765 = vmatprep.subr.mxu0 0.0
    %2766 = vmatpush1.msra.mxu0 0.0
    %2767 = vmatprep.subr.mxu0 0.0
    %2768 = vmatpush1.msra.mxu0 0.0
    %2769 = vmatprep.subr.mxu0 0.0
    %2770 = vmatpush1.msra.mxu0 0.0
    %2771 = vmatprep.subr.mxu0 0.0
    %2772 = vmatpush1.msra.mxu0 0.0
    %2773 = vmatprep.subr.mxu0 0.0
    %2774 = vmatpush1.msra.mxu0 0.0
    %2775 = vmatprep.subr.mxu0 0.0
    %2776 = vmatpush1.msra.mxu0 0.0
    %2777 = vmatprep.subr.mxu0 0.0
    %2778 = vmatpush1.msra.mxu0 0.0
    %2779 = vmatprep.subr.mxu0 0.0
    %2780 = vmatpush1.msra.mxu0 0.0
    %2781 = vmatprep.subr.mxu0 0.0
    %2782 = vmatpush1.msra.mxu0 0.0
    %2783 = vmatprep.subr.mxu0 0.0
    %2784 = vmatpush1.msra.mxu0 0.0
    %2785 = vmatprep.subr.mxu0 0.0
    %2786 = vmatpush1.msra.mxu0 0.0
    %2787 = vmatprep.subr.mxu0 0.0
    %2788 = vmatpush1.msra.mxu0 0.0
    %2789 = vmatprep.subr.mxu0 0.0
    %2790 = vmatpush1.msra.mxu0 0.0
    %2791 = vmatprep.subr.mxu0 0.0
    %2792 = vmatpush1.msra.mxu0 0.0
    %2793 = vmatprep.subr.mxu0 0.0
    %2794 = vmatpush1.msra.mxu0 0.0
    %2795 = vmatprep.subr.mxu0 0.0
    %2796 = vmatpush1.msra.mxu0 0.0
    %2797 = vmatprep.subr.mxu0 0.0
    %2798 = vmatpush1.msra.mxu0 0.0
    %2799 = vmatprep.subr.mxu0 0.0
    %2800 = vmatpush1.msra.mxu0 0.0
    %2801 = vmatprep.subr.mxu0 0.0
    %2802 = vmatpush1.msra.mxu0 0.0
    %2803 = vmatprep.subr.mxu0 0.0
    %2804 = vmatpush1.msra.mxu0 0.0
    %2805 = vmatprep.subr.mxu0 0.0
    %2806 = vmatpush1.msra.mxu0 0.0
    %2807 = vmatprep.subr.mxu0 0.0
    %2808 = vmatpush1.msra.mxu0 0.0
    %2809 = vmatprep.subr.mxu0 0.0
    %2810 = vmatpush1.msra.mxu0 0.0
    %2811 = vmatprep.mubr.f32.mxu0 0.0
    %2812 = vmatmul.mubr.f32.gmra.mrb[0].mxu0 %v2745
    %v2813 = vpop.f32.mrb[0].mxu0
    %v2814 = vadd.f32 0.0, %v2813
    %v2815 = vpop.f32.mrb[0].mxu0
    %2816 = vdwg.mxu0
    %v2817 = vmul.f32 %v2742, %v2742
    %v2818 = vmul.f32 %v2744, %v2744
    %2819 = vmatprep.subr.mxu0 0.0
    %2820 = vmatpush1.msra.mxu0 %v2817
    %2821 = vmatprep.subr.mxu0 0.0
    %2822 = vmatpush1.msra.mxu0 %v2818
    %2823 = vmatprep.subr.mxu0 0.0
    %2824 = vmatpush1.msra.mxu0 0.0
    %2825 = vmatprep.subr.mxu0 0.0
    %2826 = vmatpush1.msra.mxu0 0.0
    %2827 = vmatprep.subr.mxu0 0.0
    %2828 = vmatpush1.msra.mxu0 0.0
    %2829 = vmatprep.subr.mxu0 0.0
    %2830 = vmatpush1.msra.mxu0 0.0
    %2831 = vmatprep.subr.mxu0 0.0
    %2832 = vmatpush1.msra.mxu0 0.0
    %2833 = vmatprep.subr.mxu0 0.0
    %2834 = vmatpush1.msra.mxu0 0.0
    %2835 = vmatprep.subr.mxu0 0.0
    %2836 = vmatpush1.msra.mxu0 0.0
    %2837 = vmatprep.subr.mxu0 0.0
    %2838 = vmatpush1.msra.mxu0 0.0
    %2839 = vmatprep.subr.mxu0 0.0
    %2840 = vmatpush1.msra.mxu0 0.0
    %2841 = vmatprep.subr.mxu0 0.0
    %2842 = vmatpush1.msra.mxu0 0.0
    %2843 = vmatprep.subr.mxu0 0.0
    %2844 = vmatpush1.msra.mxu0 0.0
    %2845 = vmatprep.subr.mxu0 0.0
    %2846 = vmatpush1.msra.mxu0 0.0
    %2847 = vmatprep.subr.mxu0 0.0
    %2848 = vmatpush1.msra.mxu0 0.0
    %2849 = vmatprep.subr.mxu0 0.0
    %2850 = vmatpush1.msra.mxu0 0.0
    %2851 = vmatprep.subr.mxu0 0.0
    %2852 = vmatpush1.msra.mxu0 0.0
    %2853 = vmatprep.subr.mxu0 0.0
    %2854 = vmatpush1.msra.mxu0 0.0
    %2855 = vmatprep.subr.mxu0 0.0
    %2856 = vmatpush1.msra.mxu0 0.0
    %2857 = vmatprep.subr.mxu0 0.0
    %2858 = vmatpush1.msra.mxu0 0.0
    %2859 = vmatprep.subr.mxu0 0.0
    %2860 = vmatpush1.msra.mxu0 0.0
    %2861 = vmatprep.subr.mxu0 0.0
    %2862 = vmatpush1.msra.mxu0 0.0
    %2863 = vmatprep.subr.mxu0 0.0
    %2864 = vmatpush1.msra.mxu0 0.0
    %2865 = vmatprep.subr.mxu0 0.0
    %2866 = vmatpush1.msra.mxu0 0.0
    %2867 = vmatprep.subr.mxu0 0.0
    %2868 = vmatpush1.msra.mxu0 0.0
    %2869 = vmatprep.subr.mxu0 0.0
    %2870 = vmatpush1.msra.mxu0 0.0
    %2871 = vmatprep.subr.mxu0 0.0
    %2872 = vmatpush1.msra.mxu0 0.0
    %2873 = vmatprep.subr.mxu0 0.0
    %2874 = vmatpush1.msra.mxu0 0.0
    %2875 = vmatprep.subr.mxu0 0.0
    %2876 = vmatpush1.msra.mxu0 0.0
    %2877 = vmatprep.subr.mxu0 0.0
    %2878 = vmatpush1.msra.mxu0 0.0
    %2879 = vmatprep.subr.mxu0 0.0
    %2880 = vmatpush1.msra.mxu0 0.0
    %2881 = vmatprep.subr.mxu0 0.0
    %2882 = vmatpush1.msra.mxu0 0.0
    %2883 = vmatprep.mubr.f32.mxu0 0.0
    %2884 = vmatmul.mubr.f32.gmra.mrb[0].mxu0 %v2745
    %v2885 = vpop.f32.mrb[0].mxu0
    %v2886 = vadd.f32 0.0, %v2885
    %v2887 = vpop.f32.mrb[0].mxu0
    %2888 = vdwg.mxu0
    %v2889 = vmul.f32 %v2814, 0.0625
    %v2890 = vmul.f32 %v2886, 0.0625
    %v2891 = vmul.f32 %v2889, %v2889
    %v2892 = vsub.f32 %v2890, %v2891
    %v2893 = vlaneseq
    %v2894 = vshrl.u32 %v2893, 7
    %v2895 = vsub.s32 0, %v2894
    %v2896 = vrot.slane %v2889, %v2895
    %v2897 = vsub.f32 %v2742, %v2896
    %v2898 = vsub.f32 %v2744, %v2896
    %v2899 = vadd.f32 %v2892, 1e-05
    %v2900 = vrsqrt.pop %v2899
    %v2901 = vmul.f32 %v2900, %v2182
    %v2902 = vlaneseq
    %v2903 = vshrl.u32 %v2902, 7
    %v2904 = vsub.s32 0, %v2903
    %v2905 = vrot.slane %v2901, %v2904
    %v2906 = vmul.f32 %v2897, %v2905
    %v2907 = vmul.f32 %v2898, %v2905
    %v2908 = vadd.f32 %v2906, %v2183
    %v2909 = vadd.f32 %v2907, %v2183
    %2910 = vmatprep.subr.mxu0 0.0
    %2911 = vmatpush1.msra.mxu0 %v2741
    %2912 = vmatprep.subr.mxu0 0.0
    %2913 = vmatpush1.msra.mxu0 %v2743
    %2914 = vmatprep.subr.mxu0 0.0
    %2915 = vmatpush1.msra.mxu0 0.0
    %2916 = vmatprep.subr.mxu0 0.0
    %2917 = vmatpush1.msra.mxu0 0.0
    %2918 = vmatprep.subr.mxu0 0.0
    %2919 = vmatpush1.msra.mxu0 0.0
    %2920 = vmatprep.subr.mxu0 0.0
    %2921 = vmatpush1.msra.mxu0 0.0
    %2922 = vmatprep.subr.mxu0 0.0
    %2923 = vmatpush1.msra.mxu0 0.0
    %2924 = vmatprep.subr.mxu0 0.0
    %2925 = vmatpush1.msra.mxu0 0.0
    %2926 = vmatprep.subr.mxu0 0.0
    %2927 = vmatpush1.msra.mxu0 0.0
    %2928 = vmatprep.subr.mxu0 0.0
    %2929 = vmatpush1.msra.mxu0 0.0
    %2930 = vmatprep.subr.mxu0 0.0
    %2931 = vmatpush1.msra.mxu0 0.0
    %2932 = vmatprep.subr.mxu0 0.0
    %2933 = vmatpush1.msra.mxu0 0.0
    %2934 = vmatprep.subr.mxu0 0.0
    %2935 = vmatpush1.msra.mxu0 0.0
    %2936 = vmatprep.subr.mxu0 0.0
    %2937 = vmatpush1.msra.mxu0 0.0
    %2938 = vmatprep.subr.mxu0 0.0
    %2939 = vmatpush1.msra.mxu0 0.0
    %2940 = vmatprep.subr.mxu0 0.0
    %2941 = vmatpush1.msra.mxu0 0.0
    %2942 = vmatprep.subr.mxu0 0.0
    %2943 = vmatpush1.msra.mxu0 0.0
    %2944 = vmatprep.subr.mxu0 0.0
    %2945 = vmatpush1.msra.mxu0 0.0
    %2946 = vmatprep.subr.mxu0 0.0
    %2947 = vmatpush1.msra.mxu0 0.0
    %2948 = vmatprep.subr.mxu0 0.0
    %2949 = vmatpush1.msra.mxu0 0.0
    %2950 = vmatprep.subr.mxu0 0.0
    %2951 = vmatpush1.msra.mxu0 0.0
    %2952 = vmatprep.subr.mxu0 0.0
    %2953 = vmatpush1.msra.mxu0 0.0
    %2954 = vmatprep.subr.mxu0 0.0
    %2955 = vmatpush1.msra.mxu0 0.0
    %2956 = vmatprep.subr.mxu0 0.0
    %2957 = vmatpush1.msra.mxu0 0.0
    %2958 = vmatprep.subr.mxu0 0.0
    %2959 = vmatpush1.msra.mxu0 0.0
    %2960 = vmatprep.subr.mxu0 0.0
    %2961 = vmatpush1.msra.mxu0 0.0
    %2962 = vmatprep.subr.mxu0 0.0
    %2963 = vmatpush1.msra.mxu0 0.0
    %2964 = vmatprep.subr.mxu0 0.0
    %2965 = vmatpush1.msra.mxu0 0.0
    %2966 = vmatprep.subr.mxu0 0.0
    %2967 = vmatpush1.msra.mxu0 0.0
    %2968 = vmatprep.subr.mxu0 0.0
    %2969 = vmatpush1.msra.mxu0 0.0
    %2970 = vmatprep.subr.mxu0 0.0
    %2971 = vmatpush1.msra.mxu0 0.0
    %2972 = vmatprep.subr.mxu0 0.0
    %2973 = vmatpush1.msra.mxu0 0.0
    %2974 = vmatprep.mubr.f32.mxu0 0.0
    %2975 = vmatmul.mubr.f32.gmra.mrb[0].mxu0 %v2745
    %v2976 = vpop.f32.mrb[0].mxu0
    %v2977 = vadd.f32 0.0, %v2976
    %v2978 = vpop.f32.mrb[0].mxu0
    %2979 = vdwg.mxu0
    %v2980 = vmul.f32 %v2741, %v2741
    %v2981 = vmul.f32 %v2743, %v2743
    %2982 = vmatprep.subr.mxu0 0.0
    %2983 = vmatpush1.msra.mxu0 %v2980
    %2984 = vmatprep.subr.mxu0 0.0
    %2985 = vmatpush1.msra.mxu0 %v2981
    %2986 = vmatprep.subr.mxu0 0.0
    %2987 = vmatpush1.msra.mxu0 0.0
    %2988 = vmatprep.subr.mxu0 0.0
    %2989 = vmatpush1.msra.mxu0 0.0
    %2990 = vmatprep.subr.mxu0 0.0
    %2991 = vmatpush1.msra.mxu0 0.0
    %2992 = vmatprep.subr.mxu0 0.0
    %2993 = vmatpush1.msra.mxu0 0.0
    %2994 = vmatprep.subr.mxu0 0.0
    %2995 = vmatpush1.msra.mxu0 0.0
    %2996 = vmatprep.subr.mxu0 0.0
    %2997 = vmatpush1.msra.mxu0 0.0
    %2998 = vmatprep.subr.mxu0 0.0
    %2999 = vmatpush1.msra.mxu0 0.0
    %3000 = vmatprep.subr.mxu0 0.0
    %3001 = vmatpush1.msra.mxu0 0.0
    %3002 = vmatprep.subr.mxu0 0.0
    %3003 = vmatpush1.msra.mxu0 0.0
    %3004 = vmatprep.subr.mxu0 0.0
    %3005 = vmatpush1.msra.mxu0 0.0
    %3006 = vmatprep.subr.mxu0 0.0
    %3007 = vmatpush1.msra.mxu0 0.0
    %3008 = vmatprep.subr.mxu0 0.0
    %3009 = vmatpush1.msra.mxu0 0.0
    %3010 = vmatprep.subr.mxu0 0.0
    %3011 = vmatpush1.msra.mxu0 0.0
    %3012 = vmatprep.subr.mxu0 0.0
    %3013 = vmatpush1.msra.mxu0 0.0
    %3014 = vmatprep.subr.mxu0 0.0
    %3015 = vmatpush1.msra.mxu0 0.0
    %3016 = vmatprep.subr.mxu0 0.0
    %3017 = vmatpush1.msra.mxu0 0.0
    %3018 = vmatprep.subr.mxu0 0.0
    %3019 = vmatpush1.msra.mxu0 0.0
    %3020 = vmatprep.subr.mxu0 0.0
    %3021 = vmatpush1.msra.mxu0 0.0
    %3022 = vmatprep.subr.mxu0 0.0
    %3023 = vmatpush1.msra.mxu0 0.0
    %3024 = vmatprep.subr.mxu0 0.0
    %3025 = vmatpush1.msra.mxu0 0.0
    %3026 = vmatprep.subr.mxu0 0.0
    %3027 = vmatpush1.msra.mxu0 0.0
    %3028 = vmatprep.subr.mxu0 0.0
    %3029 = vmatpush1.msra.mxu0 0.0
    %3030 = vmatprep.subr.mxu0 0.0
    %3031 = vmatpush1.msra.mxu0 0.0
    %3032 = vmatprep.subr.mxu0 0.0
    %3033 = vmatpush1.msra.mxu0 0.0
    %3034 = vmatprep.subr.mxu0 0.0
    %3035 = vmatpush1.msra.mxu0 0.0
    %3036 = vmatprep.subr.mxu0 0.0
    %3037 = vmatpush1.msra.mxu0 0.0
    %3038 = vmatprep.subr.mxu0 0.0
    %3039 = vmatpush1.msra.mxu0 0.0
    %3040 = vmatprep.subr.mxu0 0.0
    %3041 = vmatpush1.msra.mxu0 0.0
    %3042 = vmatprep.subr.mxu0 0.0
    %3043 = vmatpush1.msra.mxu0 0.0
    %3044 = vmatprep.subr.mxu0 0.0
    %3045 = vmatpush1.msra.mxu0 0.0
    %3046 = vmatprep.mubr.f32.mxu0 0.0
    %3047 = vmatmul.mubr.f32.gmra.mrb[0].mxu0 %v2745
    %v3048 = vpop.f32.mrb[0].mxu0
    %v3049 = vadd.f32 0.0, %v3048
    %v3050 = vpop.f32.mrb[0].mxu0
    %3051 = vdwg.mxu0
    %v3052 = vmul.f32 %v2977, 0.0625
    %v3053 = vmul.f32 %v3049, 0.0625
    %v3054 = vmul.f32 %v3052, %v3052
    %v3055 = vsub.f32 %v3053, %v3054
    %v3056 = vlaneseq
    %v3057 = vshrl.u32 %v3056, 7
    %v3058 = vsub.s32 0, %v3057
    %v3059 = vrot.slane %v3052, %v3058
    %v3060 = vsub.f32 %v2741, %v3059
    %v3061 = vsub.f32 %v2743, %v3059
    %v3062 = vadd.f32 %v3055, 1e-05
    %v3063 = vrsqrt.pop %v3062
    %v3064 = vmul.f32 %v3063, %v2182
    %v3065 = vlaneseq
    %v3066 = vshrl.u32 %v3065, 7
    %v3067 = vsub.s32 0, %v3066
    %v3068 = vrot.slane %v3064, %v3067
    %v3069 = vmul.f32 %v3060, %v3068
    %v3070 = vmul.f32 %v3061, %v3068
    %v3071 = vadd.f32 %v3069, %v2183
    %v3072 = vadd.f32 %v3070, %v2183
    %v3073 = vmax.f32 %v3071, 0.0
    %v3074 = vmax.f32 %v3072, 0.0
    %v3075 = vrot.slane %v3073, 7
    %v3076 = vrot.slane %v3074, 7
    %v3077 = vsel %vm177, %v3075, %v3076
    %v3078 = vsel %vm177, %v3076, %v3075
    %v3079 = vsel %vm2229, %v3078, 0.0
    %v3080 = vsel %vm2230, %v3077, 0.0
    %v3081 = vld [vmem:[#allocation4 + $0x180] sm:$0xf]
    %v3082 = vld [vmem:[#allocation4 + $0x188] sm:$0xf]
    %v3083 = vld [vmem:[#allocation4 + $0x190] sm:$0xf]
    %v3084 = vld [vmem:[#allocation4 + $0x198] sm:$0xf]
    %v3085 = vld [vmem:[#allocation4 + $0x1a0] sm:$0xf]
    %v3086 = vld [vmem:[#allocation4 + $0x1a8] sm:$0xf]
    %v3087 = vld [vmem:[#allocation4 + $0x1b0] sm:$0xf]
    %v3088 = vld [vmem:[#allocation4 + $0x1b8] sm:$0xf]
    %v3089 = vld [vmem:[#allocation4 + $0x1c0] sm:$0xf]
    %v3090 = vld [vmem:[#allocation4 + $0x1c8] sm:$0xf]
    %v3091 = vld [vmem:[#allocation4 + $0x1d0] sm:$0xf]
    %v3092 = vld [vmem:[#allocation4 + $0x1d8] sm:$0xf]
    %v3093 = vld [vmem:[#allocation4 + $0x1e0] sm:$0xf]
    %v3094 = vld [vmem:[#allocation4 + $0x1e8] sm:$0xf]
    %v3095 = vld [vmem:[#allocation4 + $0x1f0] sm:$0xf]
    %v3096 = vld [vmem:[#allocation4 + $0x1f8] sm:$0xf]
    %v3097 = vpack.c.bf16 %v3080, %v3079
    %v3098 = vld [vmem:[#allocation4 + $0x200] sm:$0xf]
    %v3099 = vld [vmem:[#allocation4 + $0x208] sm:$0xf]
    %v3100 = vld [vmem:[#allocation4 + $0x210] sm:$0xf]
    %v3101 = vld [vmem:[#allocation4 + $0x218] sm:$0xf]
    %v3102 = vld [vmem:[#allocation4 + $0x220] sm:$0xf]
    %v3103 = vld [vmem:[#allocation4 + $0x228] sm:$0xf]
    %v3104 = vld [vmem:[#allocation4 + $0x230] sm:$0xf]
    %v3105 = vld [vmem:[#allocation4 + $0x238] sm:$0xf]
    %v3106 = vld [vmem:[#allocation4 + $0x240] sm:$0xf]
    %v3107 = vld [vmem:[#allocation4 + $0x248] sm:$0xf]
    %v3108 = vld [vmem:[#allocation4 + $0x250] sm:$0xf]
    %v3109 = vld [vmem:[#allocation4 + $0x258] sm:$0xf]
    %v3110 = vld [vmem:[#allocation4 + $0x260] sm:$0xf]
    %v3111 = vld [vmem:[#allocation4 + $0x268] sm:$0xf]
    %v3112 = vld [vmem:[#allocation4 + $0x270] sm:$0xf]
    %v3113 = vld [vmem:[#allocation4 + $0x278] sm:$0xf]
    %v3114 = vpack.c.bf16 %v3074, %v3073
    %v3131 = vunpack.c.l.b16 %v3098
    %v3132 = vunpack.c.l.b16 %v3099
    %v3133 = vunpack.c.l.b16 %v3100
    %v3134 = vunpack.c.l.b16 %v3101
    %v3135 = vunpack.c.l.b16 %v3102
    %v3136 = vunpack.c.l.b16 %v3103
    %v3137 = vunpack.c.l.b16 %v3104
    %v3138 = vunpack.c.l.b16 %v3105
    %v3139 = vunpack.c.l.b16 %v3106
    %v3140 = vunpack.c.l.b16 %v3107
    %v3141 = vunpack.c.l.b16 %v3108
    %v3142 = vunpack.c.l.b16 %v3109
    %v3143 = vunpack.c.l.b16 %v3110
    %v3144 = vunpack.c.l.b16 %v3111
    %v3145 = vunpack.c.l.b16 %v3112
    %v3146 = vunpack.c.l.b16 %v3113
    %v3147 = vpack.c.b16 %v3132, %v3131
    %v3148 = vpack.c.b16 %v3134, %v3133
    %v3149 = vpack.c.b16 %v3136, %v3135
    %v3150 = vpack.c.b16 %v3138, %v3137
    %v3151 = vpack.c.b16 %v3140, %v3139
    %v3152 = vpack.c.b16 %v3142, %v3141
    %v3153 = vpack.c.b16 %v3144, %v3143
    %v3154 = vpack.c.b16 %v3146, %v3145
    %3163 = vmatprep.subr.bf16.mxu0 0
    %3164 = vmatpush1.bf16.msra.mxu0 %v3147
    %3165 = vmatprep.subr.bf16.mxu0 0
    %3166 = vmatpush1.bf16.msra.mxu0 %v3148
    %3167 = vmatprep.subr.bf16.mxu0 0
    %3168 = vmatpush1.bf16.msra.mxu0 %v3149
    %3169 = vmatprep.subr.bf16.mxu0 0
    %3170 = vmatpush1.bf16.msra.mxu0 %v3150
    %3171 = vmatprep.subr.bf16.mxu0 0
    %3172 = vmatpush1.bf16.msra.mxu0 %v3151
    %3173 = vmatprep.subr.bf16.mxu0 0
    %3174 = vmatpush1.bf16.msra.mxu0 %v3152
    %3175 = vmatprep.subr.bf16.mxu0 0
    %3176 = vmatpush1.bf16.msra.mxu0 %v3153
    %3177 = vmatprep.subr.bf16.mxu0 0
    %3178 = vmatpush1.bf16.msra.mxu0 %v3154
    %3179 = vmatprep.subr.bf16.mxu0 0
    %3180 = vmatpush1.bf16.msra.mxu0 0
    %3181 = vmatprep.subr.bf16.mxu0 0
    %3182 = vmatpush1.bf16.msra.mxu0 0
    %3183 = vmatprep.subr.bf16.mxu0 0
    %3184 = vmatpush1.bf16.msra.mxu0 0
    %3185 = vmatprep.subr.bf16.mxu0 0
    %3186 = vmatpush1.bf16.msra.mxu0 0
    %3187 = vmatprep.subr.bf16.mxu0 0
    %3188 = vmatpush1.bf16.msra.mxu0 0
    %3189 = vmatprep.subr.bf16.mxu0 0
    %3190 = vmatpush1.bf16.msra.mxu0 0
    %3191 = vmatprep.subr.bf16.mxu0 0
    %3192 = vmatpush1.bf16.msra.mxu0 0
    %3193 = vmatprep.subr.bf16.mxu0 0
    %3194 = vmatpush1.bf16.msra.mxu0 0
    %3195 = vmatprep.mubr.bf16.mxu0 0
    %3196 = vmatmul.mubr.bf16.gmra.mrb[0].mxu0 %v3114
    %v3197 = vpop.f32.mrb[0].mxu0
    %v3198 = vadd.f32 0.0, %v3197
    %v3199 = vpop.f32.mrb[0].mxu0
    %v3200 = vpop.f32.mrb[0].mxu0
    %v3201 = vadd.f32 0.0, %v3200
    %v3202 = vpop.f32.mrb[0].mxu0
    %3203 = vdwg.mxu0
    %v3220 = vunpack.c.l.b16 %v3081
    %v3221 = vunpack.c.l.b16 %v3082
    %v3222 = vunpack.c.l.b16 %v3083
    %v3223 = vunpack.c.l.b16 %v3084
    %v3224 = vunpack.c.l.b16 %v3085
    %v3225 = vunpack.c.l.b16 %v3086
    %v3226 = vunpack.c.l.b16 %v3087
    %v3227 = vunpack.c.l.b16 %v3088
    %v3228 = vunpack.c.l.b16 %v3089
    %v3229 = vunpack.c.l.b16 %v3090
    %v3230 = vunpack.c.l.b16 %v3091
    %v3231 = vunpack.c.l.b16 %v3092
    %v3232 = vunpack.c.l.b16 %v3093
    %v3233 = vunpack.c.l.b16 %v3094
    %v3234 = vunpack.c.l.b16 %v3095
    %v3235 = vunpack.c.l.b16 %v3096
    %v3236 = vpack.c.b16 %v3221, %v3220
    %v3237 = vpack.c.b16 %v3223, %v3222
    %v3238 = vpack.c.b16 %v3225, %v3224
    %v3239 = vpack.c.b16 %v3227, %v3226
    %v3240 = vpack.c.b16 %v3229, %v3228
    %v3241 = vpack.c.b16 %v3231, %v3230
    %v3242 = vpack.c.b16 %v3233, %v3232
    %v3243 = vpack.c.b16 %v3235, %v3234
    %3252 = vmatprep.subr.bf16.mxu0 0
    %3253 = vmatpush1.bf16.msra.mxu0 %v3236
    %3254 = vmatprep.subr.bf16.mxu0 0
    %3255 = vmatpush1.bf16.msra.mxu0 %v3237
    %3256 = vmatprep.subr.bf16.mxu0 0
    %3257 = vmatpush1.bf16.msra.mxu0 %v3238
    %3258 = vmatprep.subr.bf16.mxu0 0
    %3259 = vmatpush1.bf16.msra.mxu0 %v3239
    %3260 = vmatprep.subr.bf16.mxu0 0
    %3261 = vmatpush1.bf16.msra.mxu0 %v3240
    %3262 = vmatprep.subr.bf16.mxu0 0
    %3263 = vmatpush1.bf16.msra.mxu0 %v3241
    %3264 = vmatprep.subr.bf16.mxu0 0
    %3265 = vmatpush1.bf16.msra.mxu0 %v3242
    %3266 = vmatprep.subr.bf16.mxu0 0
    %3267 = vmatpush1.bf16.msra.mxu0 %v3243
    %3268 = vmatprep.subr.bf16.mxu0 0
    %3269 = vmatpush1.bf16.msra.mxu0 0
    %3270 = vmatprep.subr.bf16.mxu0 0
    %3271 = vmatpush1.bf16.msra.mxu0 0
    %3272 = vmatprep.subr.bf16.mxu0 0
    %3273 = vmatpush1.bf16.msra.mxu0 0
    %3274 = vmatprep.subr.bf16.mxu0 0
    %3275 = vmatpush1.bf16.msra.mxu0 0
    %3276 = vmatprep.subr.bf16.mxu0 0
    %3277 = vmatpush1.bf16.msra.mxu0 0
    %3278 = vmatprep.subr.bf16.mxu0 0
    %3279 = vmatpush1.bf16.msra.mxu0 0
    %3280 = vmatprep.subr.bf16.mxu0 0
    %3281 = vmatpush1.bf16.msra.mxu0 0
    %3282 = vmatprep.subr.bf16.mxu0 0
    %3283 = vmatpush1.bf16.msra.mxu0 0
    %3284 = vmatprep.mubr.bf16.mxu0 0
    %3285 = vmatmul.mubr.bf16.gmra.mrb[0].mxu0 %v3097
    %v3286 = vpop.f32.mrb[0].mxu0
    %v3287 = vadd.f32 %v3198, %v3286
    %v3288 = vpop.f32.mrb[0].mxu0
    %v3289 = vpop.f32.mrb[0].mxu0
    %v3290 = vadd.f32 %v3201, %v3289
    %v3291 = vpop.f32.mrb[0].mxu0
    %3292 = vdwg.mxu0
    %v3293 = vrot.slane %v3073, 1
    %v3294 = vrot.slane %v3074, 1
    %v3295 = vsel %vm345, %v3293, %v3294
    %v3296 = vsel %vm345, %v3294, %v3293
    %v3297 = vsel %vm2582, %v3295, 0.0
    %v3298 = vsel %vm2583, %v3296, 0.0
    %v3299 = vld [vmem:[#allocation4 + $0x280] sm:$0xf]
    %v3300 = vld [vmem:[#allocation4 + $0x288] sm:$0xf]
    %v3301 = vld [vmem:[#allocation4 + $0x290] sm:$0xf]
    %v3302 = vld [vmem:[#allocation4 + $0x298] sm:$0xf]
    %v3303 = vld [vmem:[#allocation4 + $0x2a0] sm:$0xf]
    %v3304 = vld [vmem:[#allocation4 + $0x2a8] sm:$0xf]
    %v3305 = vld [vmem:[#allocation4 + $0x2b0] sm:$0xf]
    %v3306 = vld [vmem:[#allocation4 + $0x2b8] sm:$0xf]
    %v3307 = vld [vmem:[#allocation4 + $0x2c0] sm:$0xf]
    %v3308 = vld [vmem:[#allocation4 + $0x2c8] sm:$0xf]
    %v3309 = vld [vmem:[#allocation4 + $0x2d0] sm:$0xf]
    %v3310 = vld [vmem:[#allocation4 + $0x2d8] sm:$0xf]
    %v3311 = vld [vmem:[#allocation4 + $0x2e0] sm:$0xf]
    %v3312 = vld [vmem:[#allocation4 + $0x2e8] sm:$0xf]
    %v3313 = vld [vmem:[#allocation4 + $0x2f0] sm:$0xf]
    %v3314 = vld [vmem:[#allocation4 + $0x2f8] sm:$0xf]
    %v3315 = vpack.c.bf16 %v3298, %v3297
    %v3332 = vunpack.c.l.b16 %v3299
    %v3333 = vunpack.c.l.b16 %v3300
    %v3334 = vunpack.c.l.b16 %v3301
    %v3335 = vunpack.c.l.b16 %v3302
    %v3336 = vunpack.c.l.b16 %v3303
    %v3337 = vunpack.c.l.b16 %v3304
    %v3338 = vunpack.c.l.b16 %v3305
    %v3339 = vunpack.c.l.b16 %v3306
    %v3340 = vunpack.c.l.b16 %v3307
    %v3341 = vunpack.c.l.b16 %v3308
    %v3342 = vunpack.c.l.b16 %v3309
    %v3343 = vunpack.c.l.b16 %v3310
    %v3344 = vunpack.c.l.b16 %v3311
    %v3345 = vunpack.c.l.b16 %v3312
    %v3346 = vunpack.c.l.b16 %v3313
    %v3347 = vunpack.c.l.b16 %v3314
    %v3348 = vpack.c.b16 %v3333, %v3332
    %v3349 = vpack.c.b16 %v3335, %v3334
    %v3350 = vpack.c.b16 %v3337, %v3336
    %v3351 = vpack.c.b16 %v3339, %v3338
    %v3352 = vpack.c.b16 %v3341, %v3340
    %v3353 = vpack.c.b16 %v3343, %v3342
    %v3354 = vpack.c.b16 %v3345, %v3344
    %v3355 = vpack.c.b16 %v3347, %v3346
    %3364 = vmatprep.subr.bf16.mxu0 0
    %3365 = vmatpush1.bf16.msra.mxu0 %v3348
    %3366 = vmatprep.subr.bf16.mxu0 0
    %3367 = vmatpush1.bf16.msra.mxu0 %v3349
    %3368 = vmatprep.subr.bf16.mxu0 0
    %3369 = vmatpush1.bf16.msra.mxu0 %v3350
    %3370 = vmatprep.subr.bf16.mxu0 0
    %3371 = vmatpush1.bf16.msra.mxu0 %v3351
    %3372 = vmatprep.subr.bf16.mxu0 0
    %3373 = vmatpush1.bf16.msra.mxu0 %v3352
    %3374 = vmatprep.subr.bf16.mxu0 0
    %3375 = vmatpush1.bf16.msra.mxu0 %v3353
    %3376 = vmatprep.subr.bf16.mxu0 0
    %3377 = vmatpush1.bf16.msra.mxu0 %v3354
    %3378 = vmatprep.subr.bf16.mxu0 0
    %3379 = vmatpush1.bf16.msra.mxu0 %v3355
    %3380 = vmatprep.subr.bf16.mxu0 0
    %3381 = vmatpush1.bf16.msra.mxu0 0
    %3382 = vmatprep.subr.bf16.mxu0 0
    %3383 = vmatpush1.bf16.msra.mxu0 0
    %3384 = vmatprep.subr.bf16.mxu0 0
    %3385 = vmatpush1.bf16.msra.mxu0 0
    %3386 = vmatprep.subr.bf16.mxu0 0
    %3387 = vmatpush1.bf16.msra.mxu0 0
    %3388 = vmatprep.subr.bf16.mxu0 0
    %3389 = vmatpush1.bf16.msra.mxu0 0
    %3390 = vmatprep.subr.bf16.mxu0 0
    %3391 = vmatpush1.bf16.msra.mxu0 0
    %3392 = vmatprep.subr.bf16.mxu0 0
    %3393 = vmatpush1.bf16.msra.mxu0 0
    %3394 = vmatprep.subr.bf16.mxu0 0
    %3395 = vmatpush1.bf16.msra.mxu0 0
    %3396 = vmatprep.mubr.bf16.mxu0 0
    %3397 = vmatmul.mubr.bf16.gmra.mrb[0].mxu0 %v3315
    %v3398 = vpop.f32.mrb[0].mxu0
    %v3399 = vadd.f32 0.0, %v3398
    %v3400 = vpop.f32.mrb[0].mxu0
    %v3401 = vpop.f32.mrb[0].mxu0
    %v3402 = vadd.f32 0.0, %v3401
    %v3403 = vpop.f32.mrb[0].mxu0
    %3404 = vdwg.mxu0
    %v3405 = vadd.f32 %v3287, %v3399
    %v3406 = vadd.f32 %v3290, %v3402
    %v3407 = vadd.f32 %v3405, %v2180
    %v3408 = vadd.f32 %v3406, %v2180
    %3409 = vmatprep.subr.mxu0 0.0
    %3410 = vmatpush1.msra.mxu0 %v3407
    %3411 = vmatprep.subr.mxu0 0.0
    %3412 = vmatpush1.msra.mxu0 %v3408
    %3413 = vmatprep.subr.mxu0 0.0
    %3414 = vmatpush1.msra.mxu0 0.0
    %3415 = vmatprep.subr.mxu0 0.0
    %3416 = vmatpush1.msra.mxu0 0.0
    %3417 = vmatprep.subr.mxu0 0.0
    %3418 = vmatpush1.msra.mxu0 0.0
    %3419 = vmatprep.subr.mxu0 0.0
    %3420 = vmatpush1.msra.mxu0 0.0
    %3421 = vmatprep.subr.mxu0 0.0
    %3422 = vmatpush1.msra.mxu0 0.0
    %3423 = vmatprep.subr.mxu0 0.0
    %3424 = vmatpush1.msra.mxu0 0.0
    %3425 = vmatprep.subr.mxu0 0.0
    %3426 = vmatpush1.msra.mxu0 0.0
    %3427 = vmatprep.subr.mxu0 0.0
    %3428 = vmatpush1.msra.mxu0 0.0
    %3429 = vmatprep.subr.mxu0 0.0
    %3430 = vmatpush1.msra.mxu0 0.0
    %3431 = vmatprep.subr.mxu0 0.0
    %3432 = vmatpush1.msra.mxu0 0.0
    %3433 = vmatprep.subr.mxu0 0.0
    %3434 = vmatpush1.msra.mxu0 0.0
    %3435 = vmatprep.subr.mxu0 0.0
    %3436 = vmatpush1.msra.mxu0 0.0
    %3437 = vmatprep.subr.mxu0 0.0
    %3438 = vmatpush1.msra.mxu0 0.0
    %3439 = vmatprep.subr.mxu0 0.0
    %3440 = vmatpush1.msra.mxu0 0.0
    %3441 = vmatprep.subr.mxu0 0.0
    %3442 = vmatpush1.msra.mxu0 0.0
    %3443 = vmatprep.subr.mxu0 0.0
    %3444 = vmatpush1.msra.mxu0 0.0
    %3445 = vmatprep.subr.mxu0 0.0
    %3446 = vmatpush1.msra.mxu0 0.0
    %3447 = vmatprep.subr.mxu0 0.0
    %3448 = vmatpush1.msra.mxu0 0.0
    %3449 = vmatprep.subr.mxu0 0.0
    %3450 = vmatpush1.msra.mxu0 0.0
    %3451 = vmatprep.subr.mxu0 0.0
    %3452 = vmatpush1.msra.mxu0 0.0
    %3453 = vmatprep.subr.mxu0 0.0
    %3454 = vmatpush1.msra.mxu0 0.0
    %3455 = vmatprep.subr.mxu0 0.0
    %3456 = vmatpush1.msra.mxu0 0.0
    %3457 = vmatprep.subr.mxu0 0.0
    %3458 = vmatpush1.msra.mxu0 0.0
    %3459 = vmatprep.subr.mxu0 0.0
    %3460 = vmatpush1.msra.mxu0 0.0
    %3461 = vmatprep.subr.mxu0 0.0
    %3462 = vmatpush1.msra.mxu0 0.0
    %3463 = vmatprep.subr.mxu0 0.0
    %3464 = vmatpush1.msra.mxu0 0.0
    %3465 = vmatprep.subr.mxu0 0.0
    %3466 = vmatpush1.msra.mxu0 0.0
    %3467 = vmatprep.subr.mxu0 0.0
    %3468 = vmatpush1.msra.mxu0 0.0
    %3469 = vmatprep.subr.mxu0 0.0
    %3470 = vmatpush1.msra.mxu0 0.0
    %3471 = vmatprep.subr.mxu0 0.0
    %3472 = vmatpush1.msra.mxu0 0.0
    %3473 = vmatprep.mubr.f32.mxu0 0.0
    %3474 = vmatmul.mubr.f32.gmra.mrb[0].mxu0 %v2745
    %v3475 = vpop.f32.mrb[0].mxu0
    %v3476 = vadd.f32 0.0, %v3475
    %v3477 = vpop.f32.mrb[0].mxu0
    %3478 = vdwg.mxu0
    %v3479 = vmul.f32 %v3407, %v3407
    %v3480 = vmul.f32 %v3408, %v3408
    %3481 = vmatprep.subr.mxu0 0.0
    %3482 = vmatpush1.msra.mxu0 %v3479
    %3483 = vmatprep.subr.mxu0 0.0
    %3484 = vmatpush1.msra.mxu0 %v3480
    %3485 = vmatprep.subr.mxu0 0.0
    %3486 = vmatpush1.msra.mxu0 0.0
    %3487 = vmatprep.subr.mxu0 0.0
    %3488 = vmatpush1.msra.mxu0 0.0
    %3489 = vmatprep.subr.mxu0 0.0
    %3490 = vmatpush1.msra.mxu0 0.0
    %3491 = vmatprep.subr.mxu0 0.0
    %3492 = vmatpush1.msra.mxu0 0.0
    %3493 = vmatprep.subr.mxu0 0.0
    %3494 = vmatpush1.msra.mxu0 0.0
    %3495 = vmatprep.subr.mxu0 0.0
    %3496 = vmatpush1.msra.mxu0 0.0
    %3497 = vmatprep.subr.mxu0 0.0
    %3498 = vmatpush1.msra.mxu0 0.0
    %3499 = vmatprep.subr.mxu0 0.0
    %3500 = vmatpush1.msra.mxu0 0.0
    %3501 = vmatprep.subr.mxu0 0.0
    %3502 = vmatpush1.msra.mxu0 0.0
    %3503 = vmatprep.subr.mxu0 0.0
    %3504 = vmatpush1.msra.mxu0 0.0
    %3505 = vmatprep.subr.mxu0 0.0
    %3506 = vmatpush1.msra.mxu0 0.0
    %3507 = vmatprep.subr.mxu0 0.0
    %3508 = vmatpush1.msra.mxu0 0.0
    %3509 = vmatprep.subr.mxu0 0.0
    %3510 = vmatpush1.msra.mxu0 0.0
    %3511 = vmatprep.subr.mxu0 0.0
    %3512 = vmatpush1.msra.mxu0 0.0
    %3513 = vmatprep.subr.mxu0 0.0
    %3514 = vmatpush1.msra.mxu0 0.0
    %3515 = vmatprep.subr.mxu0 0.0
    %3516 = vmatpush1.msra.mxu0 0.0
    %3517 = vmatprep.subr.mxu0 0.0
    %3518 = vmatpush1.msra.mxu0 0.0
    %3519 = vmatprep.subr.mxu0 0.0
    %3520 = vmatpush1.msra.mxu0 0.0
    %3521 = vmatprep.subr.mxu0 0.0
    %3522 = vmatpush1.msra.mxu0 0.0
    %3523 = vmatprep.subr.mxu0 0.0
    %3524 = vmatpush1.msra.mxu0 0.0
    %3525 = vmatprep.subr.mxu0 0.0
    %3526 = vmatpush1.msra.mxu0 0.0
    %3527 = vmatprep.subr.mxu0 0.0
    %3528 = vmatpush1.msra.mxu0 0.0
    %3529 = vmatprep.subr.mxu0 0.0
    %3530 = vmatpush1.msra.mxu0 0.0
    %3531 = vmatprep.subr.mxu0 0.0
    %3532 = vmatpush1.msra.mxu0 0.0
    %3533 = vmatprep.subr.mxu0 0.0
    %3534 = vmatpush1.msra.mxu0 0.0
    %3535 = vmatprep.subr.mxu0 0.0
    %3536 = vmatpush1.msra.mxu0 0.0
    %3537 = vmatprep.subr.mxu0 0.0
    %3538 = vmatpush1.msra.mxu0 0.0
    %3539 = vmatprep.subr.mxu0 0.0
    %3540 = vmatpush1.msra.mxu0 0.0
    %3541 = vmatprep.subr.mxu0 0.0
    %3542 = vmatpush1.msra.mxu0 0.0
    %3543 = vmatprep.subr.mxu0 0.0
    %3544 = vmatpush1.msra.mxu0 0.0
    %3545 = vmatprep.mubr.f32.mxu0 0.0
    %3546 = vmatmul.mubr.f32.gmra.mrb[0].mxu0 %v2745
    %v3547 = vpop.f32.mrb[0].mxu0
    %v3548 = vadd.f32 0.0, %v3547
    %v3549 = vpop.f32.mrb[0].mxu0
    %3550 = vdwg.mxu0
    %v3551 = vmul.f32 %v3476, 0.0625
    %v3552 = vmul.f32 %v3548, 0.0625
    %v3553 = vmul.f32 %v3551, %v3551
    %v3554 = vsub.f32 %v3552, %v3553
    %v3555 = vlaneseq
    %v3556 = vshrl.u32 %v3555, 7
    %v3557 = vsub.s32 0, %v3556
    %v3558 = vrot.slane %v3551, %v3557
    %v3559 = vsub.f32 %v3407, %v3558
    %v3560 = vsub.f32 %v3408, %v3558
    %v3561 = vadd.f32 %v3554, 1e-05
    %v3562 = vrsqrt.pop %v3561
    %v3563 = vmul.f32 %v3562, %v2182
    %v3564 = vlaneseq
    %v3565 = vshrl.u32 %v3564, 7
    %v3566 = vsub.s32 0, %v3565
    %v3567 = vrot.slane %v3563, %v3566
    %v3568 = vmul.f32 %v3559, %v3567
    %v3569 = vmul.f32 %v3560, %v3567
    %v3570 = vadd.f32 %v3568, %v2183
    %v3571 = vadd.f32 %v3569, %v2183
    %v3572 = vmax.f32 %v3570, 0.0
    %v3573 = vmax.f32 %v3571, 0.0
    %v3574 = vrot.slane %v3572, 7
    %v3575 = vrot.slane %v3573, 7
    %v3576 = vsel %vm177, %v3574, %v3575
    %v3577 = vsel %vm177, %v3575, %v3574
    %v3578 = vsel %vm2229, %v3577, 0.0
    %v3579 = vsel %vm2230, %v3576, 0.0
    %v3580 = vld [vmem:[#allocation4 + $0x300] sm:$0xf]
    %v3581 = vld [vmem:[#allocation4 + $0x308] sm:$0xf]
    %v3582 = vld [vmem:[#allocation4 + $0x310] sm:$0xf]
    %v3583 = vld [vmem:[#allocation4 + $0x318] sm:$0xf]
    %v3584 = vld [vmem:[#allocation4 + $0x320] sm:$0xf]
    %v3585 = vld [vmem:[#allocation4 + $0x328] sm:$0xf]
    %v3586 = vld [vmem:[#allocation4 + $0x330] sm:$0xf]
    %v3587 = vld [vmem:[#allocation4 + $0x338] sm:$0xf]
    %v3588 = vld [vmem:[#allocation4 + $0x340] sm:$0xf]
    %v3589 = vld [vmem:[#allocation4 + $0x348] sm:$0xf]
    %v3590 = vld [vmem:[#allocation4 + $0x350] sm:$0xf]
    %v3591 = vld [vmem:[#allocation4 + $0x358] sm:$0xf]
    %v3592 = vld [vmem:[#allocation4 + $0x360] sm:$0xf]
    %v3593 = vld [vmem:[#allocation4 + $0x368] sm:$0xf]
    %v3594 = vld [vmem:[#allocation4 + $0x370] sm:$0xf]
    %v3595 = vld [vmem:[#allocation4 + $0x378] sm:$0xf]
    %v3596 = vpack.c.bf16 %v3579, %v3578
    %v3597 = vld [vmem:[#allocation4 + $0x380] sm:$0xf]
    %v3598 = vld [vmem:[#allocation4 + $0x388] sm:$0xf]
    %v3599 = vld [vmem:[#allocation4 + $0x390] sm:$0xf]
    %v3600 = vld [vmem:[#allocation4 + $0x398] sm:$0xf]
    %v3601 = vld [vmem:[#allocation4 + $0x3a0] sm:$0xf]
    %v3602 = vld [vmem:[#allocation4 + $0x3a8] sm:$0xf]
    %v3603 = vld [vmem:[#allocation4 + $0x3b0] sm:$0xf]
    %v3604 = vld [vmem:[#allocation4 + $0x3b8] sm:$0xf]
    %v3605 = vld [vmem:[#allocation4 + $0x3c0] sm:$0xf]
    %v3606 = vld [vmem:[#allocation4 + $0x3c8] sm:$0xf]
    %v3607 = vld [vmem:[#allocation4 + $0x3d0] sm:$0xf]
    %v3608 = vld [vmem:[#allocation4 + $0x3d8] sm:$0xf]
    %v3609 = vld [vmem:[#allocation4 + $0x3e0] sm:$0xf]
    %v3610 = vld [vmem:[#allocation4 + $0x3e8] sm:$0xf]
    %v3611 = vld [vmem:[#allocation4 + $0x3f0] sm:$0xf]
    %v3612 = vld [vmem:[#allocation4 + $0x3f8] sm:$0xf]
    %v3613 = vpack.c.bf16 %v3573, %v3572
    %v3630 = vunpack.c.l.b16 %v3597
    %v3631 = vunpack.c.l.b16 %v3598
    %v3632 = vunpack.c.l.b16 %v3599
    %v3633 = vunpack.c.l.b16 %v3600
    %v3634 = vunpack.c.l.b16 %v3601
    %v3635 = vunpack.c.l.b16 %v3602
    %v3636 = vunpack.c.l.b16 %v3603
    %v3637 = vunpack.c.l.b16 %v3604
    %v3638 = vunpack.c.l.b16 %v3605
    %v3639 = vunpack.c.l.b16 %v3606
    %v3640 = vunpack.c.l.b16 %v3607
    %v3641 = vunpack.c.l.b16 %v3608
    %v3642 = vunpack.c.l.b16 %v3609
    %v3643 = vunpack.c.l.b16 %v3610
    %v3644 = vunpack.c.l.b16 %v3611
    %v3645 = vunpack.c.l.b16 %v3612
    %v3646 = vpack.c.b16 %v3631, %v3630
    %v3647 = vpack.c.b16 %v3633, %v3632
    %v3648 = vpack.c.b16 %v3635, %v3634
    %v3649 = vpack.c.b16 %v3637, %v3636
    %v3650 = vpack.c.b16 %v3639, %v3638
    %v3651 = vpack.c.b16 %v3641, %v3640
    %v3652 = vpack.c.b16 %v3643, %v3642
    %v3653 = vpack.c.b16 %v3645, %v3644
    %3662 = vmatprep.subr.bf16.mxu0 0
    %3663 = vmatpush1.bf16.msra.mxu0 %v3646
    %3664 = vmatprep.subr.bf16.mxu0 0
    %3665 = vmatpush1.bf16.msra.mxu0 %v3647
    %3666 = vmatprep.subr.bf16.mxu0 0
    %3667 = vmatpush1.bf16.msra.mxu0 %v3648
    %3668 = vmatprep.subr.bf16.mxu0 0
    %3669 = vmatpush1.bf16.msra.mxu0 %v3649
    %3670 = vmatprep.subr.bf16.mxu0 0
    %3671 = vmatpush1.bf16.msra.mxu0 %v3650
    %3672 = vmatprep.subr.bf16.mxu0 0
    %3673 = vmatpush1.bf16.msra.mxu0 %v3651
    %3674 = vmatprep.subr.bf16.mxu0 0
    %3675 = vmatpush1.bf16.msra.mxu0 %v3652
    %3676 = vmatprep.subr.bf16.mxu0 0
    %3677 = vmatpush1.bf16.msra.mxu0 %v3653
    %3678 = vmatprep.subr.bf16.mxu0 0
    %3679 = vmatpush1.bf16.msra.mxu0 0
    %3680 = vmatprep.subr.bf16.mxu0 0
    %3681 = vmatpush1.bf16.msra.mxu0 0
    %3682 = vmatprep.subr.bf16.mxu0 0
    %3683 = vmatpush1.bf16.msra.mxu0 0
    %3684 = vmatprep.subr.bf16.mxu0 0
    %3685 = vmatpush1.bf16.msra.mxu0 0
    %3686 = vmatprep.subr.bf16.mxu0 0
    %3687 = vmatpush1.bf16.msra.mxu0 0
    %3688 = vmatprep.subr.bf16.mxu0 0
    %3689 = vmatpush1.bf16.msra.mxu0 0
    %3690 = vmatprep.subr.bf16.mxu0 0
    %3691 = vmatpush1.bf16.msra.mxu0 0
    %3692 = vmatprep.subr.bf16.mxu0 0
    %3693 = vmatpush1.bf16.msra.mxu0 0
    %3694 = vmatprep.mubr.bf16.mxu0 0
    %3695 = vmatmul.mubr.bf16.gmra.mrb[0].mxu0 %v3613
    %v3696 = vpop.f32.mrb[0].mxu0
    %v3697 = vadd.f32 0.0, %v3696
    %v3698 = vpop.f32.mrb[0].mxu0
    %v3699 = vpop.f32.mrb[0].mxu0
    %v3700 = vadd.f32 0.0, %v3699
    %v3701 = vpop.f32.mrb[0].mxu0
    %3702 = vdwg.mxu0
    %v3719 = vunpack.c.l.b16 %v3580
    %v3720 = vunpack.c.l.b16 %v3581
    %v3721 = vunpack.c.l.b16 %v3582
    %v3722 = vunpack.c.l.b16 %v3583
    %v3723 = vunpack.c.l.b16 %v3584
    %v3724 = vunpack.c.l.b16 %v3585
    %v3725 = vunpack.c.l.b16 %v3586
    %v3726 = vunpack.c.l.b16 %v3587
    %v3727 = vunpack.c.l.b16 %v3588
    %v3728 = vunpack.c.l.b16 %v3589
    %v3729 = vunpack.c.l.b16 %v3590
    %v3730 = vunpack.c.l.b16 %v3591
    %v3731 = vunpack.c.l.b16 %v3592
    %v3732 = vunpack.c.l.b16 %v3593
    %v3733 = vunpack.c.l.b16 %v3594
    %v3734 = vunpack.c.l.b16 %v3595
    %v3735 = vpack.c.b16 %v3720, %v3719
    %v3736 = vpack.c.b16 %v3722, %v3721
    %v3737 = vpack.c.b16 %v3724, %v3723
    %v3738 = vpack.c.b16 %v3726, %v3725
    %v3739 = vpack.c.b16 %v3728, %v3727
    %v3740 = vpack.c.b16 %v3730, %v3729
    %v3741 = vpack.c.b16 %v3732, %v3731
    %v3742 = vpack.c.b16 %v3734, %v3733
    %3751 = vmatprep.subr.bf16.mxu0 0
    %3752 = vmatpush1.bf16.msra.mxu0 %v3735
    %3753 = vmatprep.subr.bf16.mxu0 0
    %3754 = vmatpush1.bf16.msra.mxu0 %v3736
    %3755 = vmatprep.subr.bf16.mxu0 0
    %3756 = vmatpush1.bf16.msra.mxu0 %v3737
    %3757 = vmatprep.subr.bf16.mxu0 0
    %3758 = vmatpush1.bf16.msra.mxu0 %v3738
    %3759 = vmatprep.subr.bf16.mxu0 0
    %3760 = vmatpush1.bf16.msra.mxu0 %v3739
    %3761 = vmatprep.subr.bf16.mxu0 0
    %3762 = vmatpush1.bf16.msra.mxu0 %v3740
    %3763 = vmatprep.subr.bf16.mxu0 0
    %3764 = vmatpush1.bf16.msra.mxu0 %v3741
    %3765 = vmatprep.subr.bf16.mxu0 0
    %3766 = vmatpush1.bf16.msra.mxu0 %v3742
    %3767 = vmatprep.subr.bf16.mxu0 0
    %3768 = vmatpush1.bf16.msra.mxu0 0
    %3769 = vmatprep.subr.bf16.mxu0 0
    %3770 = vmatpush1.bf16.msra.mxu0 0
    %3771 = vmatprep.subr.bf16.mxu0 0
    %3772 = vmatpush1.bf16.msra.mxu0 0
    %3773 = vmatprep.subr.bf16.mxu0 0
    %3774 = vmatpush1.bf16.msra.mxu0 0
    %3775 = vmatprep.subr.bf16.mxu0 0
    %3776 = vmatpush1.bf16.msra.mxu0 0
    %3777 = vmatprep.subr.bf16.mxu0 0
    %3778 = vmatpush1.bf16.msra.mxu0 0
    %3779 = vmatprep.subr.bf16.mxu0 0
    %3780 = vmatpush1.bf16.msra.mxu0 0
    %3781 = vmatprep.subr.bf16.mxu0 0
    %3782 = vmatpush1.bf16.msra.mxu0 0
    %3783 = vmatprep.mubr.bf16.mxu0 0
    %3784 = vmatmul.mubr.bf16.gmra.mrb[0].mxu0 %v3596
    %v3785 = vpop.f32.mrb[0].mxu0
    %v3786 = vadd.f32 %v3697, %v3785
    %v3787 = vpop.f32.mrb[0].mxu0
    %v3788 = vpop.f32.mrb[0].mxu0
    %v3789 = vadd.f32 %v3700, %v3788
    %v3790 = vpop.f32.mrb[0].mxu0
    %3791 = vdwg.mxu0
    %v3792 = vrot.slane %v3572, 1
    %v3793 = vrot.slane %v3573, 1
    %v3794 = vsel %vm345, %v3792, %v3793
    %v3795 = vsel %vm345, %v3793, %v3792
    %v3796 = vsel %vm2582, %v3794, 0.0
    %v3797 = vsel %vm2583, %v3795, 0.0
    %v3798 = vld [vmem:[#allocation4 + $0x400] sm:$0xf]
    %v3799 = vld [vmem:[#allocation4 + $0x408] sm:$0xf]
    %v3800 = vld [vmem:[#allocation4 + $0x410] sm:$0xf]
    %v3801 = vld [vmem:[#allocation4 + $0x418] sm:$0xf]
    %v3802 = vld [vmem:[#allocation4 + $0x420] sm:$0xf]
    %v3803 = vld [vmem:[#allocation4 + $0x428] sm:$0xf]
    %v3804 = vld [vmem:[#allocation4 + $0x430] sm:$0xf]
    %v3805 = vld [vmem:[#allocation4 + $0x438] sm:$0xf]
    %v3806 = vld [vmem:[#allocation4 + $0x440] sm:$0xf]
    %v3807 = vld [vmem:[#allocation4 + $0x448] sm:$0xf]
    %v3808 = vld [vmem:[#allocation4 + $0x450] sm:$0xf]
    %v3809 = vld [vmem:[#allocation4 + $0x458] sm:$0xf]
    %v3810 = vld [vmem:[#allocation4 + $0x460] sm:$0xf]
    %v3811 = vld [vmem:[#allocation4 + $0x468] sm:$0xf]
    %v3812 = vld [vmem:[#allocation4 + $0x470] sm:$0xf]
    %v3813 = vld [vmem:[#allocation4 + $0x478] sm:$0xf]
    %v3814 = vpack.c.bf16 %v3797, %v3796
    %v3831 = vunpack.c.l.b16 %v3798
    %v3832 = vunpack.c.l.b16 %v3799
    %v3833 = vunpack.c.l.b16 %v3800
    %v3834 = vunpack.c.l.b16 %v3801
    %v3835 = vunpack.c.l.b16 %v3802
    %v3836 = vunpack.c.l.b16 %v3803
    %v3837 = vunpack.c.l.b16 %v3804
    %v3838 = vunpack.c.l.b16 %v3805
    %v3839 = vunpack.c.l.b16 %v3806
    %v3840 = vunpack.c.l.b16 %v3807
    %v3841 = vunpack.c.l.b16 %v3808
    %v3842 = vunpack.c.l.b16 %v3809
    %v3843 = vunpack.c.l.b16 %v3810
    %v3844 = vunpack.c.l.b16 %v3811
    %v3845 = vunpack.c.l.b16 %v3812
    %v3846 = vunpack.c.l.b16 %v3813
    %v3847 = vpack.c.b16 %v3832, %v3831
    %v3848 = vpack.c.b16 %v3834, %v3833
    %v3849 = vpack.c.b16 %v3836, %v3835
    %v3850 = vpack.c.b16 %v3838, %v3837
    %v3851 = vpack.c.b16 %v3840, %v3839
    %v3852 = vpack.c.b16 %v3842, %v3841
    %v3853 = vpack.c.b16 %v3844, %v3843
    %v3854 = vpack.c.b16 %v3846, %v3845
    %3863 = vmatprep.subr.bf16.mxu0 0
    %3864 = vmatpush1.bf16.msra.mxu0 %v3847
    %3865 = vmatprep.subr.bf16.mxu0 0
    %3866 = vmatpush1.bf16.msra.mxu0 %v3848
    %3867 = vmatprep.subr.bf16.mxu0 0
    %3868 = vmatpush1.bf16.msra.mxu0 %v3849
    %3869 = vmatprep.subr.bf16.mxu0 0
    %3870 = vmatpush1.bf16.msra.mxu0 %v3850
    %3871 = vmatprep.subr.bf16.mxu0 0
    %3872 = vmatpush1.bf16.msra.mxu0 %v3851
    %3873 = vmatprep.subr.bf16.mxu0 0
    %3874 = vmatpush1.bf16.msra.mxu0 %v3852
    %3875 = vmatprep.subr.bf16.mxu0 0
    %3876 = vmatpush1.bf16.msra.mxu0 %v3853
    %3877 = vmatprep.subr.bf16.mxu0 0
    %3878 = vmatpush1.bf16.msra.mxu0 %v3854
    %3879 = vmatprep.subr.bf16.mxu0 0
    %3880 = vmatpush1.bf16.msra.mxu0 0
    %3881 = vmatprep.subr.bf16.mxu0 0
    %3882 = vmatpush1.bf16.msra.mxu0 0
    %3883 = vmatprep.subr.bf16.mxu0 0
    %3884 = vmatpush1.bf16.msra.mxu0 0
    %3885 = vmatprep.subr.bf16.mxu0 0
    %3886 = vmatpush1.bf16.msra.mxu0 0
    %3887 = vmatprep.subr.bf16.mxu0 0
    %3888 = vmatpush1.bf16.msra.mxu0 0
    %3889 = vmatprep.subr.bf16.mxu0 0
    %3890 = vmatpush1.bf16.msra.mxu0 0
    %3891 = vmatprep.subr.bf16.mxu0 0
    %3892 = vmatpush1.bf16.msra.mxu0 0
    %3893 = vmatprep.subr.bf16.mxu0 0
    %3894 = vmatpush1.bf16.msra.mxu0 0
    %3895 = vmatprep.mubr.bf16.mxu0 0
    %3896 = vmatmul.mubr.bf16.gmra.mrb[0].mxu0 %v3814
    %v3897 = vpop.f32.mrb[0].mxu0
    %v3898 = vadd.f32 0.0, %v3897
    %v3899 = vpop.f32.mrb[0].mxu0
    %v3900 = vpop.f32.mrb[0].mxu0
    %v3901 = vadd.f32 0.0, %v3900
    %v3902 = vpop.f32.mrb[0].mxu0
    %3903 = vdwg.mxu0
    %v3904 = vadd.f32 %v3786, %v3898
    %v3905 = vadd.f32 %v3789, %v3901
    %v3906 = vadd.f32 %v3904, %v2181
    %v3907 = vadd.f32 %v3905, %v2181
    %3908 = vmatprep.subr.mxu0 0.0
    %3909 = vmatpush1.msra.mxu0 %v3906
    %3910 = vmatprep.subr.mxu0 0.0
    %3911 = vmatpush1.msra.mxu0 %v3907
    %3912 = vmatprep.subr.mxu0 0.0
    %3913 = vmatpush1.msra.mxu0 0.0
    %3914 = vmatprep.subr.mxu0 0.0
    %3915 = vmatpush1.msra.mxu0 0.0
    %3916 = vmatprep.subr.mxu0 0.0
    %3917 = vmatpush1.msra.mxu0 0.0
    %3918 = vmatprep.subr.mxu0 0.0
    %3919 = vmatpush1.msra.mxu0 0.0
    %3920 = vmatprep.subr.mxu0 0.0
    %3921 = vmatpush1.msra.mxu0 0.0
    %3922 = vmatprep.subr.mxu0 0.0
    %3923 = vmatpush1.msra.mxu0 0.0
    %3924 = vmatprep.subr.mxu0 0.0
    %3925 = vmatpush1.msra.mxu0 0.0
    %3926 = vmatprep.subr.mxu0 0.0
    %3927 = vmatpush1.msra.mxu0 0.0
    %3928 = vmatprep.subr.mxu0 0.0
    %3929 = vmatpush1.msra.mxu0 0.0
    %3930 = vmatprep.subr.mxu0 0.0
    %3931 = vmatpush1.msra.mxu0 0.0
    %3932 = vmatprep.subr.mxu0 0.0
    %3933 = vmatpush1.msra.mxu0 0.0
    %3934 = vmatprep.subr.mxu0 0.0
    %3935 = vmatpush1.msra.mxu0 0.0
    %3936 = vmatprep.subr.mxu0 0.0
    %3937 = vmatpush1.msra.mxu0 0.0
    %3938 = vmatprep.subr.mxu0 0.0
    %3939 = vmatpush1.msra.mxu0 0.0
    %3940 = vmatprep.subr.mxu0 0.0
    %3941 = vmatpush1.msra.mxu0 0.0
    %3942 = vmatprep.subr.mxu0 0.0
    %3943 = vmatpush1.msra.mxu0 0.0
    %3944 = vmatprep.subr.mxu0 0.0
    %3945 = vmatpush1.msra.mxu0 0.0
    %3946 = vmatprep.subr.mxu0 0.0
    %3947 = vmatpush1.msra.mxu0 0.0
    %3948 = vmatprep.subr.mxu0 0.0
    %3949 = vmatpush1.msra.mxu0 0.0
    %3950 = vmatprep.subr.mxu0 0.0
    %3951 = vmatpush1.msra.mxu0 0.0
    %3952 = vmatprep.subr.mxu0 0.0
    %3953 = vmatpush1.msra.mxu0 0.0
    %3954 = vmatprep.subr.mxu0 0.0
    %3955 = vmatpush1.msra.mxu0 0.0
    %3956 = vmatprep.subr.mxu0 0.0
    %3957 = vmatpush1.msra.mxu0 0.0
    %3958 = vmatprep.subr.mxu0 0.0
    %3959 = vmatpush1.msra.mxu0 0.0
    %3960 = vmatprep.subr.mxu0 0.0
    %3961 = vmatpush1.msra.mxu0 0.0
    %3962 = vmatprep.subr.mxu0 0.0
    %3963 = vmatpush1.msra.mxu0 0.0
    %3964 = vmatprep.subr.mxu0 0.0
    %3965 = vmatpush1.msra.mxu0 0.0
    %3966 = vmatprep.subr.mxu0 0.0
    %3967 = vmatpush1.msra.mxu0 0.0
    %3968 = vmatprep.subr.mxu0 0.0
    %3969 = vmatpush1.msra.mxu0 0.0
    %3970 = vmatprep.subr.mxu0 0.0
    %3971 = vmatpush1.msra.mxu0 0.0
    %3972 = vmatprep.mubr.f32.mxu0 0.0
    %3973 = vmatmul.mubr.f32.gmra.mrb[0].mxu0 %v2745
    %v3974 = vpop.f32.mrb[0].mxu0
    %v3975 = vadd.f32 0.0, %v3974
    %v3976 = vpop.f32.mrb[0].mxu0
    %3977 = vdwg.mxu0
    %v3978 = vmul.f32 %v3906, %v3906
    %v3979 = vmul.f32 %v3907, %v3907
    %3980 = vmatprep.subr.mxu0 0.0
    %3981 = vmatpush1.msra.mxu0 %v3978
    %3982 = vmatprep.subr.mxu0 0.0
    %3983 = vmatpush1.msra.mxu0 %v3979
    %3984 = vmatprep.subr.mxu0 0.0
    %3985 = vmatpush1.msra.mxu0 0.0
    %3986 = vmatprep.subr.mxu0 0.0
    %3987 = vmatpush1.msra.mxu0 0.0
    %3988 = vmatprep.subr.mxu0 0.0
    %3989 = vmatpush1.msra.mxu0 0.0
    %3990 = vmatprep.subr.mxu0 0.0
    %3991 = vmatpush1.msra.mxu0 0.0
    %3992 = vmatprep.subr.mxu0 0.0
    %3993 = vmatpush1.msra.mxu0 0.0
    %3994 = vmatprep.subr.mxu0 0.0
    %3995 = vmatpush1.msra.mxu0 0.0
    %3996 = vmatprep.subr.mxu0 0.0
    %3997 = vmatpush1.msra.mxu0 0.0
    %3998 = vmatprep.subr.mxu0 0.0
    %3999 = vmatpush1.msra.mxu0 0.0
    %4000 = vmatprep.subr.mxu0 0.0
    %4001 = vmatpush1.msra.mxu0 0.0
    %4002 = vmatprep.subr.mxu0 0.0
    %4003 = vmatpush1.msra.mxu0 0.0
    %4004 = vmatprep.subr.mxu0 0.0
    %4005 = vmatpush1.msra.mxu0 0.0
    %4006 = vmatprep.subr.mxu0 0.0
    %4007 = vmatpush1.msra.mxu0 0.0
    %4008 = vmatprep.subr.mxu0 0.0
    %4009 = vmatpush1.msra.mxu0 0.0
    %4010 = vmatprep.subr.mxu0 0.0
    %4011 = vmatpush1.msra.mxu0 0.0
    %4012 = vmatprep.subr.mxu0 0.0
    %4013 = vmatpush1.msra.mxu0 0.0
    %4014 = vmatprep.subr.mxu0 0.0
    %4015 = vmatpush1.msra.mxu0 0.0
    %4016 = vmatprep.subr.mxu0 0.0
    %4017 = vmatpush1.msra.mxu0 0.0
    %4018 = vmatprep.subr.mxu0 0.0
    %4019 = vmatpush1.msra.mxu0 0.0
    %4020 = vmatprep.subr.mxu0 0.0
    %4021 = vmatpush1.msra.mxu0 0.0
    %4022 = vmatprep.subr.mxu0 0.0
    %4023 = vmatpush1.msra.mxu0 0.0
    %4024 = vmatprep.subr.mxu0 0.0
    %4025 = vmatpush1.msra.mxu0 0.0
    %4026 = vmatprep.subr.mxu0 0.0
    %4027 = vmatpush1.msra.mxu0 0.0
    %4028 = vmatprep.subr.mxu0 0.0
    %4029 = vmatpush1.msra.mxu0 0.0
    %4030 = vmatprep.subr.mxu0 0.0
    %4031 = vmatpush1.msra.mxu0 0.0
    %4032 = vmatprep.subr.mxu0 0.0
    %4033 = vmatpush1.msra.mxu0 0.0
    %4034 = vmatprep.subr.mxu0 0.0
    %4035 = vmatpush1.msra.mxu0 0.0
    %4036 = vmatprep.subr.mxu0 0.0
    %4037 = vmatpush1.msra.mxu0 0.0
    %4038 = vmatprep.subr.mxu0 0.0
    %4039 = vmatpush1.msra.mxu0 0.0
    %4040 = vmatprep.subr.mxu0 0.0
    %4041 = vmatpush1.msra.mxu0 0.0
    %4042 = vmatprep.subr.mxu0 0.0
    %4043 = vmatpush1.msra.mxu0 0.0
    %4044 = vmatprep.mubr.f32.mxu0 0.0
    %4045 = vmatmul.mubr.f32.gmra.mrb[0].mxu0 %v2745
    %v4046 = vpop.f32.mrb[0].mxu0
    %v4047 = vadd.f32 0.0, %v4046
    %v4048 = vpop.f32.mrb[0].mxu0
    %4049 = vdwg.mxu0
    %v4050 = vmul.f32 %v3975, 0.0625
    %v4051 = vmul.f32 %v4047, 0.0625
    %v4052 = vmul.f32 %v4050, %v4050
    %v4053 = vsub.f32 %v4051, %v4052
    %v4054 = vlaneseq
    %v4055 = vshrl.u32 %v4054, 7
    %v4056 = vsub.s32 0, %v4055
    %v4057 = vrot.slane %v4050, %v4056
    %v4058 = vsub.f32 %v3906, %v4057
    %v4059 = vsub.f32 %v3907, %v4057
    %v4060 = vadd.f32 %v4053, 1e-05
    %v4061 = vrsqrt.pop %v4060
    %v4062 = vmul.f32 %v4061, %v2182
    %v4063 = vlaneseq
    %v4064 = vshrl.u32 %v4063, 7
    %v4065 = vsub.s32 0, %v4064
    %v4066 = vrot.slane %v4062, %v4065
    %v4067 = vmul.f32 %v4058, %v4066
    %v4068 = vmul.f32 %v4059, %v4066
    %v4069 = vadd.f32 %v4067, %v2183
    %v4070 = vadd.f32 %v4068, %v2183
    %v4071 = vadd.f32 %v4069, %v2908
    %v4072 = vadd.f32 %v4070, %v2909
    %v4073 = vmax.f32 %v4071, 0.0
    %v4074 = vmax.f32 %v4072, 0.0
    %v4077 = vcombine.high %v4073, %v4073
    %v4079 = vunpack.c.l.s4 1983009808
    %v4080 = vunpack.c.0.s8 %v4079
    %v4081 = vlaneseq
    %v4082 = vshrl.u32 %v4081, 7
    %v4083 = vsub.s32 %v4080, %v4082
    %v4084 = vrot.slane %v4073, %v4083
    %v4086 = vunpack.c.l.s4 1983009808
    %v4087 = vunpack.c.0.s8 %v4086
    %v4088 = vlaneseq
    %v4089 = vshrl.u32 %v4088, 7
    %v4090 = vsub.s32 %v4087, %v4089
    %v4091 = vrot.slane %v4077, %v4090
    %v4092 = vcombine.high %v4084, %v4084
    %v4093 = vcombine.high %v4091, %v4091
    %v4094 = vcombine.high %v4074, %v4074
    %v4096 = vunpack.c.l.s4 1983009808
    %v4097 = vunpack.c.0.s8 %v4096
    %v4098 = vlaneseq
    %v4099 = vshrl.u32 %v4098, 7
    %v4100 = vsub.s32 %v4097, %v4099
    %v4101 = vrot.slane %v4074, %v4100
    %v4103 = vunpack.c.l.s4 1983009808
    %v4104 = vunpack.c.0.s8 %v4103
    %v4105 = vlaneseq
    %v4106 = vshrl.u32 %v4105, 7
    %v4107 = vsub.s32 %v4104, %v4106
    %v4108 = vrot.slane %v4094, %v4107
    %v4109 = vcombine.high %v4101, %v4101
    %v4110 = vcombine.high %v4108, %v4108
    %v4119 = vsel %vm2008, %v4084, 0.0
    %v4120 = vrot.slane %v4119, 4
    %v4121 = vadd.f32 %v4119, %v4120
    %v4122 = vrot.slane %v4121, 2
    %v4123 = vadd.f32 %v4121, %v4122
    %v4124 = vrot.slane %v4123, 1
    %v4125 = vadd.f32 %v4123, %v4124
    %v4126 = vsel %vm2008, %v4092, 0.0
    %v4127 = vrot.slane %v4126, 4
    %v4128 = vadd.f32 %v4126, %v4127
    %v4129 = vrot.slane %v4128, 2
    %v4130 = vadd.f32 %v4128, %v4129
    %v4131 = vrot.slane %v4130, 1
    %v4132 = vadd.f32 %v4130, %v4131
    %v4133 = vsel %vm2008, %v4091, 0.0
    %v4134 = vrot.slane %v4133, 4
    %v4135 = vadd.f32 %v4133, %v4134
    %v4136 = vrot.slane %v4135, 2
    %v4137 = vadd.f32 %v4135, %v4136
    %v4138 = vrot.slane %v4137, 1
    %v4139 = vadd.f32 %v4137, %v4138
    %v4140 = vsel %vm2008, %v4093, 0.0
    %v4141 = vrot.slane %v4140, 4
    %v4142 = vadd.f32 %v4140, %v4141
    %v4143 = vrot.slane %v4142, 2
    %v4144 = vadd.f32 %v4142, %v4143
    %v4145 = vrot.slane %v4144, 1
    %v4146 = vadd.f32 %v4144, %v4145
    %v4147 = vsel %vm2008, %v4101, 0.0
    %v4148 = vrot.slane %v4147, 4
    %v4149 = vadd.f32 %v4147, %v4148
    %v4150 = vrot.slane %v4149, 2
    %v4151 = vadd.f32 %v4149, %v4150
    %v4152 = vrot.slane %v4151, 1
    %v4153 = vadd.f32 %v4151, %v4152
    %v4154 = vsel %vm2008, %v4109, 0.0
    %v4155 = vrot.slane %v4154, 4
    %v4156 = vadd.f32 %v4154, %v4155
    %v4157 = vrot.slane %v4156, 2
    %v4158 = vadd.f32 %v4156, %v4157
    %v4159 = vrot.slane %v4158, 1
    %v4160 = vadd.f32 %v4158, %v4159
    %v4161 = vsel %vm2008, %v4108, 0.0
    %v4162 = vrot.slane %v4161, 4
    %v4163 = vadd.f32 %v4161, %v4162
    %v4164 = vrot.slane %v4163, 2
    %v4165 = vadd.f32 %v4163, %v4164
    %v4166 = vrot.slane %v4165, 1
    %v4167 = vadd.f32 %v4165, %v4166
    %v4168 = vsel %vm2008, %v4110, 0.0
    %v4169 = vrot.slane %v4168, 4
    %v4170 = vadd.f32 %v4168, %v4169
    %v4171 = vrot.slane %v4170, 2
    %v4172 = vadd.f32 %v4170, %v4171
    %v4173 = vrot.slane %v4172, 1
    %v4174 = vadd.f32 %v4172, %v4173
    %v4175 = vmul.f32 %v4125, %v2121
    %v4176 = vmul.f32 %v4132, %v2121
    %v4177 = vmul.f32 %v4139, %v2121
    %v4178 = vmul.f32 %v4146, %v2121
    %v4179 = vmul.f32 %v4153, %v2121
    %v4180 = vmul.f32 %v4160, %v2121
    %v4181 = vmul.f32 %v4167, %v2121
    %v4182 = vmul.f32 %v4174, %v2121
    %vm4183 = vcmp.lt.s32.totalorder %v84, 0
    %v4184 = vsub.s32 0, %v84
    %v4185 = vsel %vm4183, %v4184, %v84
    %v4186 = vshrl.u32 %v4185, 2
    %v4187 = vand.u32 %v4185, 3
    %v4188 = vsub.s32 0, %v4187
    %v4189 = vsel %vm4183, %v4188, %v4187
    %vm4190 = vcmp.ne.s32.totalorder %v4189, 0
    %vm4191 = vcmp.lt.s32.totalorder %v4189, 0
    %vm4192 = vmand %vm4191, %vm4190
    %v4193 = vadd.s32 %v4189, 4
    %v4194 = vsel %vm4192, %v4193, %v4189
    %v4195 = vadd.s32 %v4194, 4294967295
    %vm4196 = vcmp.ge.s32.totalorder %v4195, 0
    %vm4197 = vcmp.lt.s32.totalorder %v4195, 4
    %vm4198 = vmand %vm4196, %vm4197
    %v4199 = vadd.s32 %v4194, 1
    %vm4200 = vcmp.ge.s32.totalorder %v4199, 0
    %vm4201 = vcmp.lt.s32.totalorder %v4199, 4
    %vm4202 = vmand %vm4200, %vm4201
    %s4203 = scalar_lea.vmem %s5, 32
    %v4204 = vld [vmem:[%s4203] ss:$8 sm:$0x3]
    %v4205 = vld [vmem:[%s5 + $0x21] ss:$0 sm:$0xff]
    %v4206 = vld [vmem:[%s5 + $0x22] ss:$0 sm:$0xff]
    %v4207 = vld [vmem:[%s5 + $0x23] ss:$0 sm:$0xff]
    %v4208 = vld [vmem:[%s5 + $0x24] ss:$0 sm:$0xff]
    %v4217 = vsel %vm2200, %v4176, %v4175
    %v4218 = vsel %vm2202, %v4177, %v4217
    %v4219 = vsel %vm2204, %v4178, %v4218
    %v4220 = vsel %vm2206, %v4179, %v4219
    %v4221 = vsel %vm2208, %v4180, %v4220
    %v4222 = vsel %vm2210, %v4181, %v4221
    %v4223 = vsel %vm2212, %v4182, %v4222
    %v4225 = vrot.slane %v4223, 7
    %v4226 = vsel %vm4198, 1, 0
    %vm4227 = vcmp.eq.s32.totalorder %v4226, 1
    %v4228 = vsel %vm4227, %v4225, 0.0
    %v4229 = vld [vmem:[#allocation6] sm:$0xff]
    %v4230 = vld [vmem:[#allocation6 + $0x8] sm:$0xff]
    %v4231 = vld [vmem:[#allocation6 + $0x10] sm:$0xff]
    %v4232 = vld [vmem:[#allocation6 + $0x18] sm:$0xff]
    %v4233 = vld [vmem:[#allocation6 + $0x20] sm:$0xff]
    %v4234 = vld [vmem:[#allocation6 + $0x28] sm:$0xff]
    %v4235 = vld [vmem:[#allocation6 + $0x30] sm:$0xff]
    %v4236 = vld [vmem:[#allocation6 + $0x38] sm:$0xff]
    %v4237 = vld [vmem:[#allocation6 + $0x40] sm:$0xff]
    %v4238 = vld [vmem:[#allocation6 + $0x48] sm:$0xff]
    %v4239 = vld [vmem:[#allocation6 + $0x50] sm:$0xff]
    %v4240 = vld [vmem:[#allocation6 + $0x58] sm:$0xff]
    %v4241 = vld [vmem:[#allocation6 + $0x60] sm:$0xff]
    %v4242 = vld [vmem:[#allocation6 + $0x68] sm:$0xff]
    %v4243 = vld [vmem:[#allocation6 + $0x70] sm:$0xff]
    %v4244 = vld [vmem:[#allocation6 + $0x78] sm:$0xff]
    %v4245 = vpack.c.bf16 %v4228, %v4228
    %v4246 = vld [vmem:[#allocation6 + $0x80] sm:$0xff]
    %v4247 = vld [vmem:[#allocation6 + $0x88] sm:$0xff]
    %v4248 = vld [vmem:[#allocation6 + $0x90] sm:$0xff]
    %v4249 = vld [vmem:[#allocation6 + $0x98] sm:$0xff]
    %v4250 = vld [vmem:[#allocation6 + $0xa0] sm:$0xff]
    %v4251 = vld [vmem:[#allocation6 + $0xa8] sm:$0xff]
    %v4252 = vld [vmem:[#allocation6 + $0xb0] sm:$0xff]
    %v4253 = vld [vmem:[#allocation6 + $0xb8] sm:$0xff]
    %v4254 = vld [vmem:[#allocation6 + $0xc0] sm:$0xff]
    %v4255 = vld [vmem:[#allocation6 + $0xc8] sm:$0xff]
    %v4256 = vld [vmem:[#allocation6 + $0xd0] sm:$0xff]
    %v4257 = vld [vmem:[#allocation6 + $0xd8] sm:$0xff]
    %v4258 = vld [vmem:[#allocation6 + $0xe0] sm:$0xff]
    %v4259 = vld [vmem:[#allocation6 + $0xe8] sm:$0xff]
    %v4260 = vld [vmem:[#allocation6 + $0xf0] sm:$0xff]
    %v4261 = vld [vmem:[#allocation6 + $0xf8] sm:$0xff]
    %v4262 = vpack.c.bf16 %v4175, %v4175
    %v4263 = vpack.c.bf16 %v4176, %v4176
    %v4264 = vpack.c.bf16 %v4177, %v4177
    %v4265 = vpack.c.bf16 %v4178, %v4178
    %v4266 = vpack.c.bf16 %v4179, %v4179
    %v4267 = vpack.c.bf16 %v4180, %v4180
    %v4268 = vpack.c.bf16 %v4181, %v4181
    %v4269 = vpack.c.bf16 %v4182, %v4182
    %v4278 = vunpack.c.l.b16 %v4262
    %v4279 = vunpack.c.l.b16 %v4263
    %v4280 = vunpack.c.l.b16 %v4264
    %v4281 = vunpack.c.l.b16 %v4265
    %v4282 = vunpack.c.l.b16 %v4266
    %v4283 = vunpack.c.l.b16 %v4267
    %v4284 = vunpack.c.l.b16 %v4268
    %v4285 = vunpack.c.l.b16 %v4269
    %v4286 = vsel %vm2200, %v4279, %v4278
    %v4287 = vsel %vm2202, %v4280, %v4286
    %v4288 = vsel %vm2204, %v4281, %v4287
    %v4289 = vsel %vm2206, %v4282, %v4288
    %v4290 = vsel %vm2208, %v4283, %v4289
    %v4291 = vsel %vm2210, %v4284, %v4290
    %v4292 = vsel %vm2212, %v4285, %v4291
    %v4293 = vpack.c.b16 %v4292, %v4292
    %v4311 = vunpack.c.l.b16 %v4246
    %v4312 = vunpack.c.h.b16 %v4246
    %v4313 = vunpack.c.l.b16 %v4247
    %v4314 = vunpack.c.h.b16 %v4247
    %v4315 = vunpack.c.l.b16 %v4248
    %v4316 = vunpack.c.h.b16 %v4248
    %v4317 = vunpack.c.l.b16 %v4249
    %v4318 = vunpack.c.h.b16 %v4249
    %v4319 = vunpack.c.l.b16 %v4250
    %v4320 = vunpack.c.h.b16 %v4250
    %v4321 = vunpack.c.l.b16 %v4251
    %v4322 = vunpack.c.h.b16 %v4251
    %v4323 = vunpack.c.l.b16 %v4252
    %v4324 = vunpack.c.h.b16 %v4252
    %v4325 = vunpack.c.l.b16 %v4253
    %v4326 = vunpack.c.h.b16 %v4253
    %v4327 = vunpack.c.l.b16 %v4254
    %v4328 = vunpack.c.h.b16 %v4254
    %v4329 = vunpack.c.l.b16 %v4255
    %v4330 = vunpack.c.h.b16 %v4255
    %v4331 = vunpack.c.l.b16 %v4256
    %v4332 = vunpack.c.h.b16 %v4256
    %v4333 = vunpack.c.l.b16 %v4257
    %v4334 = vunpack.c.h.b16 %v4257
    %v4335 = vunpack.c.l.b16 %v4258
    %v4336 = vunpack.c.h.b16 %v4258
    %v4337 = vunpack.c.l.b16 %v4259
    %v4338 = vunpack.c.h.b16 %v4259
    %v4339 = vunpack.c.l.b16 %v4260
    %v4340 = vunpack.c.h.b16 %v4260
    %v4341 = vunpack.c.l.b16 %v4261
    %v4342 = vunpack.c.h.b16 %v4261
    %v4343 = vpack.c.b16 %v4313, %v4311
    %v4344 = vpack.c.b16 %v4314, %v4312
    %v4345 = vpack.c.b16 %v4317, %v4315
    %v4346 = vpack.c.b16 %v4318, %v4316
    %v4347 = vpack.c.b16 %v4321, %v4319
    %v4348 = vpack.c.b16 %v4322, %v4320
    %v4349 = vpack.c.b16 %v4325, %v4323
    %v4350 = vpack.c.b16 %v4326, %v4324
    %v4351 = vpack.c.b16 %v4329, %v4327
    %v4352 = vpack.c.b16 %v4330, %v4328
    %v4353 = vpack.c.b16 %v4333, %v4331
    %v4354 = vpack.c.b16 %v4334, %v4332
    %v4355 = vpack.c.b16 %v4337, %v4335
    %v4356 = vpack.c.b16 %v4338, %v4336
    %v4357 = vpack.c.b16 %v4341, %v4339
    %v4358 = vpack.c.b16 %v4342, %v4340
    %4375 = vmatprep.subr.bf16.mxu0 %v4344
    %4376 = vmatpush1.bf16.msra.mxu0 %v4343
    %4377 = vmatprep.subr.bf16.mxu0 %v4346
    %4378 = vmatpush1.bf16.msra.mxu0 %v4345
    %4379 = vmatprep.subr.bf16.mxu0 %v4348
    %4380 = vmatpush1.bf16.msra.mxu0 %v4347
    %4381 = vmatprep.subr.bf16.mxu0 %v4350
    %4382 = vmatpush1.bf16.msra.mxu0 %v4349
    %4383 = vmatprep.subr.bf16.mxu0 %v4352
    %4384 = vmatpush1.bf16.msra.mxu0 %v4351
    %4385 = vmatprep.subr.bf16.mxu0 %v4354
    %4386 = vmatpush1.bf16.msra.mxu0 %v4353
    %4387 = vmatprep.subr.bf16.mxu0 %v4356
    %4388 = vmatpush1.bf16.msra.mxu0 %v4355
    %4389 = vmatprep.subr.bf16.mxu0 %v4358
    %4390 = vmatpush1.bf16.msra.mxu0 %v4357
    %4391 = vmatprep.subr.bf16.mxu0 0
    %4392 = vmatpush1.bf16.msra.mxu0 0
    %4393 = vmatprep.subr.bf16.mxu0 0
    %4394 = vmatpush1.bf16.msra.mxu0 0
    %4395 = vmatprep.subr.bf16.mxu0 0
    %4396 = vmatpush1.bf16.msra.mxu0 0
    %4397 = vmatprep.subr.bf16.mxu0 0
    %4398 = vmatpush1.bf16.msra.mxu0 0
    %4399 = vmatprep.subr.bf16.mxu0 0
    %4400 = vmatpush1.bf16.msra.mxu0 0
    %4401 = vmatprep.subr.bf16.mxu0 0
    %4402 = vmatpush1.bf16.msra.mxu0 0
    %4403 = vmatprep.subr.bf16.mxu0 0
    %4404 = vmatpush1.bf16.msra.mxu0 0
    %4405 = vmatprep.subr.bf16.mxu0 0
    %4406 = vmatpush1.bf16.msra.mxu0 0
    %4407 = vmatprep.mubr.bf16.mxu0 0
    %4408 = vmatmul.mubr.bf16.gmra.mrb[0].mxu0 %v4293
    %v4409 = vpop.f32.mrb[0].mxu0
    %v4410 = vadd.f32 0.0, %v4409
    %v4411 = vpop.f32.mrb[0].mxu0
    %v4412 = vadd.f32 0.0, %v4411
    %v4413 = vpop.f32.mrb[0].mxu0
    %v4414 = vpop.f32.mrb[0].mxu0
    %4415 = vdwg.mxu0
    %v4432 = vunpack.c.l.b16 %v4229
    %v4433 = vunpack.c.h.b16 %v4229
    %v4434 = vunpack.c.l.b16 %v4230
    %v4435 = vunpack.c.h.b16 %v4230
    %v4436 = vunpack.c.l.b16 %v4231
    %v4437 = vunpack.c.h.b16 %v4231
    %v4438 = vunpack.c.l.b16 %v4232
    %v4439 = vunpack.c.h.b16 %v4232
    %v4440 = vunpack.c.l.b16 %v4233
    %v4441 = vunpack.c.h.b16 %v4233
    %v4442 = vunpack.c.l.b16 %v4234
    %v4443 = vunpack.c.h.b16 %v4234
    %v4444 = vunpack.c.l.b16 %v4235
    %v4445 = vunpack.c.h.b16 %v4235
    %v4446 = vunpack.c.l.b16 %v4236
    %v4447 = vunpack.c.h.b16 %v4236
    %v4448 = vunpack.c.l.b16 %v4237
    %v4449 = vunpack.c.h.b16 %v4237
    %v4450 = vunpack.c.l.b16 %v4238
    %v4451 = vunpack.c.h.b16 %v4238
    %v4452 = vunpack.c.l.b16 %v4239
    %v4453 = vunpack.c.h.b16 %v4239
    %v4454 = vunpack.c.l.b16 %v4240
    %v4455 = vunpack.c.h.b16 %v4240
    %v4456 = vunpack.c.l.b16 %v4241
    %v4457 = vunpack.c.h.b16 %v4241
    %v4458 = vunpack.c.l.b16 %v4242
    %v4459 = vunpack.c.h.b16 %v4242
    %v4460 = vunpack.c.l.b16 %v4243
    %v4461 = vunpack.c.h.b16 %v4243
    %v4462 = vunpack.c.l.b16 %v4244
    %v4463 = vunpack.c.h.b16 %v4244
    %v4464 = vpack.c.b16 %v4434, %v4432
    %v4465 = vpack.c.b16 %v4435, %v4433
    %v4466 = vpack.c.b16 %v4438, %v4436
    %v4467 = vpack.c.b16 %v4439, %v4437
    %v4468 = vpack.c.b16 %v4442, %v4440
    %v4469 = vpack.c.b16 %v4443, %v4441
    %v4470 = vpack.c.b16 %v4446, %v4444
    %v4471 = vpack.c.b16 %v4447, %v4445
    %v4472 = vpack.c.b16 %v4450, %v4448
    %v4473 = vpack.c.b16 %v4451, %v4449
    %v4474 = vpack.c.b16 %v4454, %v4452
    %v4475 = vpack.c.b16 %v4455, %v4453
    %v4476 = vpack.c.b16 %v4458, %v4456
    %v4477 = vpack.c.b16 %v4459, %v4457
    %v4478 = vpack.c.b16 %v4462, %v4460
    %v4479 = vpack.c.b16 %v4463, %v4461
    %4496 = vmatprep.subr.bf16.mxu0 %v4465
    %4497 = vmatpush1.bf16.msra.mxu0 %v4464
    %4498 = vmatprep.subr.bf16.mxu0 %v4467
    %4499 = vmatpush1.bf16.msra.mxu0 %v4466
    %4500 = vmatprep.subr.bf16.mxu0 %v4469
    %4501 = vmatpush1.bf16.msra.mxu0 %v4468
    %4502 = vmatprep.subr.bf16.mxu0 %v4471
    %4503 = vmatpush1.bf16.msra.mxu0 %v4470
    %4504 = vmatprep.subr.bf16.mxu0 %v4473
    %4505 = vmatpush1.bf16.msra.mxu0 %v4472
    %4506 = vmatprep.subr.bf16.mxu0 %v4475
    %4507 = vmatpush1.bf16.msra.mxu0 %v4474
    %4508 = vmatprep.subr.bf16.mxu0 %v4477
    %4509 = vmatpush1.bf16.msra.mxu0 %v4476
    %4510 = vmatprep.subr.bf16.mxu0 %v4479
    %4511 = vmatpush1.bf16.msra.mxu0 %v4478
    %4512 = vmatprep.subr.bf16.mxu0 0
    %4513 = vmatpush1.bf16.msra.mxu0 0
    %4514 = vmatprep.subr.bf16.mxu0 0
    %4515 = vmatpush1.bf16.msra.mxu0 0
    %4516 = vmatprep.subr.bf16.mxu0 0
    %4517 = vmatpush1.bf16.msra.mxu0 0
    %4518 = vmatprep.subr.bf16.mxu0 0
    %4519 = vmatpush1.bf16.msra.mxu0 0
    %4520 = vmatprep.subr.bf16.mxu0 0
    %4521 = vmatpush1.bf16.msra.mxu0 0
    %4522 = vmatprep.subr.bf16.mxu0 0
    %4523 = vmatpush1.bf16.msra.mxu0 0
    %4524 = vmatprep.subr.bf16.mxu0 0
    %4525 = vmatpush1.bf16.msra.mxu0 0
    %4526 = vmatprep.subr.bf16.mxu0 0
    %4527 = vmatpush1.bf16.msra.mxu0 0
    %4528 = vmatprep.mubr.bf16.mxu0 0
    %4529 = vmatmul.mubr.bf16.gmra.mrb[0].mxu0 %v4245
    %v4530 = vpop.f32.mrb[0].mxu0
    %v4531 = vadd.f32 %v4410, %v4530
    %v4532 = vpop.f32.mrb[0].mxu0
    %v4533 = vadd.f32 %v4412, %v4532
    %v4534 = vpop.f32.mrb[0].mxu0
    %v4535 = vpop.f32.mrb[0].mxu0
    %4536 = vdwg.mxu0
    %v4537 = vrot.slane %v4223, 1
    %v4538 = vsel %vm4202, 1, 0
    %vm4539 = vcmp.eq.s32.totalorder %v4538, 1
    %v4540 = vsel %vm4539, %v4537, 0.0
    %v4541 = vld [vmem:[#allocation6 + $0x100] sm:$0xff]
    %v4542 = vld [vmem:[#allocation6 + $0x108] sm:$0xff]
    %v4543 = vld [vmem:[#allocation6 + $0x110] sm:$0xff]
    %v4544 = vld [vmem:[#allocation6 + $0x118] sm:$0xff]
    %v4545 = vld [vmem:[#allocation6 + $0x120] sm:$0xff]
    %v4546 = vld [vmem:[#allocation6 + $0x128] sm:$0xff]
    %v4547 = vld [vmem:[#allocation6 + $0x130] sm:$0xff]
    %v4548 = vld [vmem:[#allocation6 + $0x138] sm:$0xff]
    %v4549 = vld [vmem:[#allocation6 + $0x140] sm:$0xff]
    %v4550 = vld [vmem:[#allocation6 + $0x148] sm:$0xff]
    %v4551 = vld [vmem:[#allocation6 + $0x150] sm:$0xff]
    %v4552 = vld [vmem:[#allocation6 + $0x158] sm:$0xff]
    %v4553 = vld [vmem:[#allocation6 + $0x160] sm:$0xff]
    %v4554 = vld [vmem:[#allocation6 + $0x168] sm:$0xff]
    %v4555 = vld [vmem:[#allocation6 + $0x170] sm:$0xff]
    %v4556 = vld [vmem:[#allocation6 + $0x178] sm:$0xff]
    %v4557 = vpack.c.bf16 %v4540, %v4540
    %v4574 = vunpack.c.l.b16 %v4541
    %v4575 = vunpack.c.h.b16 %v4541
    %v4576 = vunpack.c.l.b16 %v4542
    %v4577 = vunpack.c.h.b16 %v4542
    %v4578 = vunpack.c.l.b16 %v4543
    %v4579 = vunpack.c.h.b16 %v4543
    %v4580 = vunpack.c.l.b16 %v4544
    %v4581 = vunpack.c.h.b16 %v4544
    %v4582 = vunpack.c.l.b16 %v4545
    %v4583 = vunpack.c.h.b16 %v4545
    %v4584 = vunpack.c.l.b16 %v4546
    %v4585 = vunpack.c.h.b16 %v4546
    %v4586 = vunpack.c.l.b16 %v4547
    %v4587 = vunpack.c.h.b16 %v4547
    %v4588 = vunpack.c.l.b16 %v4548
    %v4589 = vunpack.c.h.b16 %v4548
    %v4590 = vunpack.c.l.b16 %v4549
    %v4591 = vunpack.c.h.b16 %v4549
    %v4592 = vunpack.c.l.b16 %v4550
    %v4593 = vunpack.c.h.b16 %v4550
    %v4594 = vunpack.c.l.b16 %v4551
    %v4595 = vunpack.c.h.b16 %v4551
    %v4596 = vunpack.c.l.b16 %v4552
    %v4597 = vunpack.c.h.b16 %v4552
    %v4598 = vunpack.c.l.b16 %v4553
    %v4599 = vunpack.c.h.b16 %v4553
    %v4600 = vunpack.c.l.b16 %v4554
    %v4601 = vunpack.c.h.b16 %v4554
    %v4602 = vunpack.c.l.b16 %v4555
    %v4603 = vunpack.c.h.b16 %v4555
    %v4604 = vunpack.c.l.b16 %v4556
    %v4605 = vunpack.c.h.b16 %v4556
    %v4606 = vpack.c.b16 %v4576, %v4574
    %v4607 = vpack.c.b16 %v4577, %v4575
    %v4608 = vpack.c.b16 %v4580, %v4578
    %v4609 = vpack.c.b16 %v4581, %v4579
    %v4610 = vpack.c.b16 %v4584, %v4582
    %v4611 = vpack.c.b16 %v4585, %v4583
    %v4612 = vpack.c.b16 %v4588, %v4586
    %v4613 = vpack.c.b16 %v4589, %v4587
    %v4614 = vpack.c.b16 %v4592, %v4590
    %v4615 = vpack.c.b16 %v4593, %v4591
    %v4616 = vpack.c.b16 %v4596, %v4594
    %v4617 = vpack.c.b16 %v4597, %v4595
    %v4618 = vpack.c.b16 %v4600, %v4598
    %v4619 = vpack.c.b16 %v4601, %v4599
    %v4620 = vpack.c.b16 %v4604, %v4602
    %v4621 = vpack.c.b16 %v4605, %v4603
    %4638 = vmatprep.subr.bf16.mxu0 %v4607
    %4639 = vmatpush1.bf16.msra.mxu0 %v4606
    %4640 = vmatprep.subr.bf16.mxu0 %v4609
    %4641 = vmatpush1.bf16.msra.mxu0 %v4608
    %4642 = vmatprep.subr.bf16.mxu0 %v4611
    %4643 = vmatpush1.bf16.msra.mxu0 %v4610
    %4644 = vmatprep.subr.bf16.mxu0 %v4613
    %4645 = vmatpush1.bf16.msra.mxu0 %v4612
    %4646 = vmatprep.subr.bf16.mxu0 %v4615
    %4647 = vmatpush1.bf16.msra.mxu0 %v4614
    %4648 = vmatprep.subr.bf16.mxu0 %v4617
    %4649 = vmatpush1.bf16.msra.mxu0 %v4616
    %4650 = vmatprep.subr.bf16.mxu0 %v4619
    %4651 = vmatpush1.bf16.msra.mxu0 %v4618
    %4652 = vmatprep.subr.bf16.mxu0 %v4621
    %4653 = vmatpush1.bf16.msra.mxu0 %v4620
    %4654 = vmatprep.subr.bf16.mxu0 0
    %4655 = vmatpush1.bf16.msra.mxu0 0
    %4656 = vmatprep.subr.bf16.mxu0 0
    %4657 = vmatpush1.bf16.msra.mxu0 0
    %4658 = vmatprep.subr.bf16.mxu0 0
    %4659 = vmatpush1.bf16.msra.mxu0 0
    %4660 = vmatprep.subr.bf16.mxu0 0
    %4661 = vmatpush1.bf16.msra.mxu0 0
    %4662 = vmatprep.subr.bf16.mxu0 0
    %4663 = vmatpush1.bf16.msra.mxu0 0
    %4664 = vmatprep.subr.bf16.mxu0 0
    %4665 = vmatpush1.bf16.msra.mxu0 0
    %4666 = vmatprep.subr.bf16.mxu0 0
    %4667 = vmatpush1.bf16.msra.mxu0 0
    %4668 = vmatprep.subr.bf16.mxu0 0
    %4669 = vmatpush1.bf16.msra.mxu0 0
    %4670 = vmatprep.mubr.bf16.mxu0 0
    %4671 = vmatmul.mubr.bf16.gmra.mrb[0].mxu0 %v4557
    %v4672 = vpop.f32.mrb[0].mxu0
    %v4673 = vadd.f32 0.0, %v4672
    %v4674 = vpop.f32.mrb[0].mxu0
    %v4675 = vadd.f32 0.0, %v4674
    %v4676 = vpop.f32.mrb[0].mxu0
    %v4677 = vpop.f32.mrb[0].mxu0
    %4678 = vdwg.mxu0
    %v4679 = vadd.f32 %v4531, %v4673
    %v4680 = vadd.f32 %v4533, %v4675
    %v4682 = vlaneseq
    %v4683 = vshrl.u32 %v4682, 7
    %v4684 = vsub.s32 0, %v4683
    %v4685 = vrot.slane %v4204, %v4684
    %v4686 = vlaneseq
    %v4687 = vshrl.u32 %v4686, 7
    %v4688 = vsub.s32 1, %v4687
    %v4689 = vrot.slane %v4204, %v4688
    %v4692 = vadd.f32 %v4679, %v4685
    %v4693 = vadd.f32 %v4680, %v4689
    %vm4694 = vcmask 64512
    %v4695 = vsel %vm4694, 1.0, 0
    %4697 = vmatprep.subr.mxu0 0.0
    %4698 = vmatpush1.msra.mxu0 %v4693
    %4699 = vmatprep.subr.mxu0 0.0
    %4700 = vmatpush1.msra.mxu0 0.0
    %4701 = vmatprep.subr.mxu0 0.0
    %4702 = vmatpush1.msra.mxu0 0.0
    %4703 = vmatprep.subr.mxu0 0.0
    %4704 = vmatpush1.msra.mxu0 0.0
    %4705 = vmatprep.subr.mxu0 0.0
    %4706 = vmatpush1.msra.mxu0 0.0
    %4707 = vmatprep.subr.mxu0 0.0
    %4708 = vmatpush1.msra.mxu0 0.0
    %4709 = vmatprep.subr.mxu0 0.0
    %4710 = vmatpush1.msra.mxu0 0.0
    %4711 = vmatprep.subr.mxu0 0.0
    %4712 = vmatpush1.msra.mxu0 0.0
    %4713 = vmatprep.subr.mxu0 0.0
    %4714 = vmatpush1.msra.mxu0 0.0
    %4715 = vmatprep.subr.mxu0 0.0
    %4716 = vmatpush1.msra.mxu0 0.0
    %4717 = vmatprep.subr.mxu0 0.0
    %4718 = vmatpush1.msra.mxu0 0.0
    %4719 = vmatprep.subr.mxu0 0.0
    %4720 = vmatpush1.msra.mxu0 0.0
    %4721 = vmatprep.subr.mxu0 0.0
    %4722 = vmatpush1.msra.mxu0 0.0
    %4723 = vmatprep.subr.mxu0 0.0
    %4724 = vmatpush1.msra.mxu0 0.0
    %4725 = vmatprep.subr.mxu0 0.0
    %4726 = vmatpush1.msra.mxu0 0.0
    %4727 = vmatprep.subr.mxu0 0.0
    %4728 = vmatpush1.msra.mxu0 0.0
    %4729 = vmatprep.subr.mxu0 0.0
    %4730 = vmatpush1.msra.mxu0 0.0
    %4731 = vmatprep.subr.mxu0 0.0
    %4732 = vmatpush1.msra.mxu0 0.0
    %4733 = vmatprep.subr.mxu0 0.0
    %4734 = vmatpush1.msra.mxu0 0.0
    %4735 = vmatprep.subr.mxu0 0.0
    %4736 = vmatpush1.msra.mxu0 0.0
    %4737 = vmatprep.subr.mxu0 0.0
    %4738 = vmatpush1.msra.mxu0 0.0
    %4739 = vmatprep.subr.mxu0 0.0
    %4740 = vmatpush1.msra.mxu0 0.0
    %4741 = vmatprep.subr.mxu0 0.0
    %4742 = vmatpush1.msra.mxu0 0.0
    %4743 = vmatprep.subr.mxu0 0.0
    %4744 = vmatpush1.msra.mxu0 0.0
    %4745 = vmatprep.subr.mxu0 0.0
    %4746 = vmatpush1.msra.mxu0 0.0
    %4747 = vmatprep.subr.mxu0 0.0
    %4748 = vmatpush1.msra.mxu0 0.0
    %4749 = vmatprep.subr.mxu0 0.0
    %4750 = vmatpush1.msra.mxu0 0.0
    %4751 = vmatprep.subr.mxu0 0.0
    %4752 = vmatpush1.msra.mxu0 0.0
    %4753 = vmatprep.subr.mxu0 0.0
    %4754 = vmatpush1.msra.mxu0 0.0
    %4755 = vmatprep.subr.mxu0 0.0
    %4756 = vmatpush1.msra.mxu0 0.0
    %4757 = vmatprep.subr.mxu0 0.0
    %4758 = vmatpush1.msra.mxu0 0.0
    %4759 = vmatprep.subr.mxu0 0.0
    %4760 = vmatpush1.msra.mxu0 0.0
    %4761 = vmatprep.mubr.f32.mxu0 0.0
    %4762 = vmatmul.mubr.f32.gmra.mrb[0].mxu0 %v4695
    %v4763 = vpop.f32.mrb[0].mxu0
    %v4764 = vadd.f32 0.0, %v4763
    %v4765 = vpop.f32.mrb[0].mxu0
    %4766 = vdwg.mxu0
    %v4767 = vmul.f32 %v4693, %v4693
    %4768 = vmatprep.subr.mxu0 0.0
    %4769 = vmatpush1.msra.mxu0 %v4767
    %4770 = vmatprep.subr.mxu0 0.0
    %4771 = vmatpush1.msra.mxu0 0.0
    %4772 = vmatprep.subr.mxu0 0.0
    %4773 = vmatpush1.msra.mxu0 0.0
    %4774 = vmatprep.subr.mxu0 0.0
    %4775 = vmatpush1.msra.mxu0 0.0
    %4776 = vmatprep.subr.mxu0 0.0
    %4777 = vmatpush1.msra.mxu0 0.0
    %4778 = vmatprep.subr.mxu0 0.0
    %4779 = vmatpush1.msra.mxu0 0.0
    %4780 = vmatprep.subr.mxu0 0.0
    %4781 = vmatpush1.msra.mxu0 0.0
    %4782 = vmatprep.subr.mxu0 0.0
    %4783 = vmatpush1.msra.mxu0 0.0
    %4784 = vmatprep.subr.mxu0 0.0
    %4785 = vmatpush1.msra.mxu0 0.0
    %4786 = vmatprep.subr.mxu0 0.0
    %4787 = vmatpush1.msra.mxu0 0.0
    %4788 = vmatprep.subr.mxu0 0.0
    %4789 = vmatpush1.msra.mxu0 0.0
    %4790 = vmatprep.subr.mxu0 0.0
    %4791 = vmatpush1.msra.mxu0 0.0
    %4792 = vmatprep.subr.mxu0 0.0
    %4793 = vmatpush1.msra.mxu0 0.0
    %4794 = vmatprep.subr.mxu0 0.0
    %4795 = vmatpush1.msra.mxu0 0.0
    %4796 = vmatprep.subr.mxu0 0.0
    %4797 = vmatpush1.msra.mxu0 0.0
    %4798 = vmatprep.subr.mxu0 0.0
    %4799 = vmatpush1.msra.mxu0 0.0
    %4800 = vmatprep.subr.mxu0 0.0
    %4801 = vmatpush1.msra.mxu0 0.0
    %4802 = vmatprep.subr.mxu0 0.0
    %4803 = vmatpush1.msra.mxu0 0.0
    %4804 = vmatprep.subr.mxu0 0.0
    %4805 = vmatpush1.msra.mxu0 0.0
    %4806 = vmatprep.subr.mxu0 0.0
    %4807 = vmatpush1.msra.mxu0 0.0
    %4808 = vmatprep.subr.mxu0 0.0
    %4809 = vmatpush1.msra.mxu0 0.0
    %4810 = vmatprep.subr.mxu0 0.0
    %4811 = vmatpush1.msra.mxu0 0.0
    %4812 = vmatprep.subr.mxu0 0.0
    %4813 = vmatpush1.msra.mxu0 0.0
    %4814 = vmatprep.subr.mxu0 0.0
    %4815 = vmatpush1.msra.mxu0 0.0
    %4816 = vmatprep.subr.mxu0 0.0
    %4817 = vmatpush1.msra.mxu0 0.0
    %4818 = vmatprep.subr.mxu0 0.0
    %4819 = vmatpush1.msra.mxu0 0.0
    %4820 = vmatprep.subr.mxu0 0.0
    %4821 = vmatpush1.msra.mxu0 0.0
    %4822 = vmatprep.subr.mxu0 0.0
    %4823 = vmatpush1.msra.mxu0 0.0
    %4824 = vmatprep.subr.mxu0 0.0
    %4825 = vmatpush1.msra.mxu0 0.0
    %4826 = vmatprep.subr.mxu0 0.0
    %4827 = vmatpush1.msra.mxu0 0.0
    %4828 = vmatprep.subr.mxu0 0.0
    %4829 = vmatpush1.msra.mxu0 0.0
    %4830 = vmatprep.subr.mxu0 0.0
    %4831 = vmatpush1.msra.mxu0 0.0
    %4832 = vmatprep.mubr.f32.mxu0 0.0
    %4833 = vmatmul.mubr.f32.gmra.mrb[0].mxu0 %v4695
    %v4834 = vpop.f32.mrb[0].mxu0
    %v4835 = vadd.f32 0.0, %v4834
    %v4836 = vpop.f32.mrb[0].mxu0
    %4837 = vdwg.mxu0
    %v4838 = vmul.f32 %v4764, 0.125
    %v4839 = vmul.f32 %v4835, 0.125
    %v4840 = vmul.f32 %v4838, %v4838
    %v4841 = vsub.f32 %v4839, %v4840
    %v4842 = vlaneseq
    %v4843 = vshrl.u32 %v4842, 7
    %v4844 = vsub.s32 0, %v4843
    %v4845 = vrot.slane %v4838, %v4844
    %v4846 = vsub.f32 %v4693, %v4845
    %v4847 = vadd.f32 %v4841, 1e-05
    %v4848 = vrsqrt.pop %v4847
    %v4849 = vmul.f32 %v4848, %v4207
    %v4850 = vlaneseq
    %v4851 = vshrl.u32 %v4850, 7
    %v4852 = vsub.s32 0, %v4851
    %v4853 = vrot.slane %v4849, %v4852
    %v4854 = vmul.f32 %v4846, %v4853
    %v4855 = vadd.f32 %v4854, %v4208
    %4856 = vmatprep.subr.mxu0 0.0
    %4857 = vmatpush1.msra.mxu0 %v4692
    %4858 = vmatprep.subr.mxu0 0.0
    %4859 = vmatpush1.msra.mxu0 0.0
    %4860 = vmatprep.subr.mxu0 0.0
    %4861 = vmatpush1.msra.mxu0 0.0
    %4862 = vmatprep.subr.mxu0 0.0
    %4863 = vmatpush1.msra.mxu0 0.0
    %4864 = vmatprep.subr.mxu0 0.0
    %4865 = vmatpush1.msra.mxu0 0.0
    %4866 = vmatprep.subr.mxu0 0.0
    %4867 = vmatpush1.msra.mxu0 0.0
    %4868 = vmatprep.subr.mxu0 0.0
    %4869 = vmatpush1.msra.mxu0 0.0
    %4870 = vmatprep.subr.mxu0 0.0
    %4871 = vmatpush1.msra.mxu0 0.0
    %4872 = vmatprep.subr.mxu0 0.0
    %4873 = vmatpush1.msra.mxu0 0.0
    %4874 = vmatprep.subr.mxu0 0.0
    %4875 = vmatpush1.msra.mxu0 0.0
    %4876 = vmatprep.subr.mxu0 0.0
    %4877 = vmatpush1.msra.mxu0 0.0
    %4878 = vmatprep.subr.mxu0 0.0
    %4879 = vmatpush1.msra.mxu0 0.0
    %4880 = vmatprep.subr.mxu0 0.0
    %4881 = vmatpush1.msra.mxu0 0.0
    %4882 = vmatprep.subr.mxu0 0.0
    %4883 = vmatpush1.msra.mxu0 0.0
    %4884 = vmatprep.subr.mxu0 0.0
    %4885 = vmatpush1.msra.mxu0 0.0
    %4886 = vmatprep.subr.mxu0 0.0
    %4887 = vmatpush1.msra.mxu0 0.0
    %4888 = vmatprep.subr.mxu0 0.0
    %4889 = vmatpush1.msra.mxu0 0.0
    %4890 = vmatprep.subr.mxu0 0.0
    %4891 = vmatpush1.msra.mxu0 0.0
    %4892 = vmatprep.subr.mxu0 0.0
    %4893 = vmatpush1.msra.mxu0 0.0
    %4894 = vmatprep.subr.mxu0 0.0
    %4895 = vmatpush1.msra.mxu0 0.0
    %4896 = vmatprep.subr.mxu0 0.0
    %4897 = vmatpush1.msra.mxu0 0.0
    %4898 = vmatprep.subr.mxu0 0.0
    %4899 = vmatpush1.msra.mxu0 0.0
    %4900 = vmatprep.subr.mxu0 0.0
    %4901 = vmatpush1.msra.mxu0 0.0
    %4902 = vmatprep.subr.mxu0 0.0
    %4903 = vmatpush1.msra.mxu0 0.0
    %4904 = vmatprep.subr.mxu0 0.0
    %4905 = vmatpush1.msra.mxu0 0.0
    %4906 = vmatprep.subr.mxu0 0.0
    %4907 = vmatpush1.msra.mxu0 0.0
    %4908 = vmatprep.subr.mxu0 0.0
    %4909 = vmatpush1.msra.mxu0 0.0
    %4910 = vmatprep.subr.mxu0 0.0
    %4911 = vmatpush1.msra.mxu0 0.0
    %4912 = vmatprep.subr.mxu0 0.0
    %4913 = vmatpush1.msra.mxu0 0.0
    %4914 = vmatprep.subr.mxu0 0.0
    %4915 = vmatpush1.msra.mxu0 0.0
    %4916 = vmatprep.subr.mxu0 0.0
    %4917 = vmatpush1.msra.mxu0 0.0
    %4918 = vmatprep.subr.mxu0 0.0
    %4919 = vmatpush1.msra.mxu0 0.0
    %4920 = vmatprep.mubr.f32.mxu0 0.0
    %4921 = vmatmul.mubr.f32.gmra.mrb[0].mxu0 %v4695
    %v4922 = vpop.f32.mrb[0].mxu0
    %v4923 = vadd.f32 0.0, %v4922
    %v4924 = vpop.f32.mrb[0].mxu0
    %4925 = vdwg.mxu0
    %v4926 = vmul.f32 %v4692, %v4692
    %4927 = vmatprep.subr.mxu0 0.0
    %4928 = vmatpush1.msra.mxu0 %v4926
    %4929 = vmatprep.subr.mxu0 0.0
    %4930 = vmatpush1.msra.mxu0 0.0
    %4931 = vmatprep.subr.mxu0 0.0
    %4932 = vmatpush1.msra.mxu0 0.0
    %4933 = vmatprep.subr.mxu0 0.0
    %4934 = vmatpush1.msra.mxu0 0.0
    %4935 = vmatprep.subr.mxu0 0.0
    %4936 = vmatpush1.msra.mxu0 0.0
    %4937 = vmatprep.subr.mxu0 0.0
    %4938 = vmatpush1.msra.mxu0 0.0
    %4939 = vmatprep.subr.mxu0 0.0
    %4940 = vmatpush1.msra.mxu0 0.0
    %4941 = vmatprep.subr.mxu0 0.0
    %4942 = vmatpush1.msra.mxu0 0.0
    %4943 = vmatprep.subr.mxu0 0.0
    %4944 = vmatpush1.msra.mxu0 0.0
    %4945 = vmatprep.subr.mxu0 0.0
    %4946 = vmatpush1.msra.mxu0 0.0
    %4947 = vmatprep.subr.mxu0 0.0
    %4948 = vmatpush1.msra.mxu0 0.0
    %4949 = vmatprep.subr.mxu0 0.0
    %4950 = vmatpush1.msra.mxu0 0.0
    %4951 = vmatprep.subr.mxu0 0.0
    %4952 = vmatpush1.msra.mxu0 0.0
    %4953 = vmatprep.subr.mxu0 0.0
    %4954 = vmatpush1.msra.mxu0 0.0
    %4955 = vmatprep.subr.mxu0 0.0
    %4956 = vmatpush1.msra.mxu0 0.0
    %4957 = vmatprep.subr.mxu0 0.0
    %4958 = vmatpush1.msra.mxu0 0.0
    %4959 = vmatprep.subr.mxu0 0.0
    %4960 = vmatpush1.msra.mxu0 0.0
    %4961 = vmatprep.subr.mxu0 0.0
    %4962 = vmatpush1.msra.mxu0 0.0
    %4963 = vmatprep.subr.mxu0 0.0
    %4964 = vmatpush1.msra.mxu0 0.0
    %4965 = vmatprep.subr.mxu0 0.0
    %4966 = vmatpush1.msra.mxu0 0.0
    %4967 = vmatprep.subr.mxu0 0.0
    %4968 = vmatpush1.msra.mxu0 0.0
    %4969 = vmatprep.subr.mxu0 0.0
    %4970 = vmatpush1.msra.mxu0 0.0
    %4971 = vmatprep.subr.mxu0 0.0
    %4972 = vmatpush1.msra.mxu0 0.0
    %4973 = vmatprep.subr.mxu0 0.0
    %4974 = vmatpush1.msra.mxu0 0.0
    %4975 = vmatprep.subr.mxu0 0.0
    %4976 = vmatpush1.msra.mxu0 0.0
    %4977 = vmatprep.subr.mxu0 0.0
    %4978 = vmatpush1.msra.mxu0 0.0
    %4979 = vmatprep.subr.mxu0 0.0
    %4980 = vmatpush1.msra.mxu0 0.0
    %4981 = vmatprep.subr.mxu0 0.0
    %4982 = vmatpush1.msra.mxu0 0.0
    %4983 = vmatprep.subr.mxu0 0.0
    %4984 = vmatpush1.msra.mxu0 0.0
    %4985 = vmatprep.subr.mxu0 0.0
    %4986 = vmatpush1.msra.mxu0 0.0
    %4987 = vmatprep.subr.mxu0 0.0
    %4988 = vmatpush1.msra.mxu0 0.0
    %4989 = vmatprep.subr.mxu0 0.0
    %4990 = vmatpush1.msra.mxu0 0.0
    %4991 = vmatprep.mubr.f32.mxu0 0.0
    %4992 = vmatmul.mubr.f32.gmra.mrb[0].mxu0 %v4695
    %v4993 = vpop.f32.mrb[0].mxu0
    %v4994 = vadd.f32 0.0, %v4993
    %v4995 = vpop.f32.mrb[0].mxu0
    %4996 = vdwg.mxu0
    %v4997 = vmul.f32 %v4923, 0.125
    %v4998 = vmul.f32 %v4994, 0.125
    %v4999 = vmul.f32 %v4997, %v4997
    %v5000 = vsub.f32 %v4998, %v4999
    %v5001 = vlaneseq
    %v5002 = vshrl.u32 %v5001, 7
    %v5003 = vsub.s32 0, %v5002
    %v5004 = vrot.slane %v4997, %v5003
    %v5005 = vsub.f32 %v4692, %v5004
    %v5006 = vadd.f32 %v5000, 1e-05
    %v5007 = vrsqrt.pop %v5006
    %v5008 = vmul.f32 %v5007, %v4207
    %v5009 = vlaneseq
    %v5010 = vshrl.u32 %v5009, 7
    %v5011 = vsub.s32 0, %v5010
    %v5012 = vrot.slane %v5008, %v5011
    %v5013 = vmul.f32 %v5005, %v5012
    %v5014 = vadd.f32 %v5013, %v4208
    %v5015 = vmax.f32 %v5014, 0.0
    %v5016 = vrot.slane %v5015, 7
    %v5017 = vsel %vm4227, %v5016, 0.0
    %v5018 = vld [vmem:[#allocation6 + $0x180] sm:$0xf]
    %v5019 = vld [vmem:[#allocation6 + $0x188] sm:$0xf]
    %v5020 = vld [vmem:[#allocation6 + $0x190] sm:$0xf]
    %v5021 = vld [vmem:[#allocation6 + $0x198] sm:$0xf]
    %v5022 = vld [vmem:[#allocation6 + $0x1a0] sm:$0xf]
    %v5023 = vld [vmem:[#allocation6 + $0x1a8] sm:$0xf]
    %v5024 = vld [vmem:[#allocation6 + $0x1b0] sm:$0xf]
    %v5025 = vld [vmem:[#allocation6 + $0x1b8] sm:$0xf]
    %v5026 = vld [vmem:[#allocation6 + $0x1c0] sm:$0xf]
    %v5027 = vld [vmem:[#allocation6 + $0x1c8] sm:$0xf]
    %v5028 = vld [vmem:[#allocation6 + $0x1d0] sm:$0xf]
    %v5029 = vld [vmem:[#allocation6 + $0x1d8] sm:$0xf]
    %v5030 = vld [vmem:[#allocation6 + $0x1e0] sm:$0xf]
    %v5031 = vld [vmem:[#allocation6 + $0x1e8] sm:$0xf]
    %v5032 = vld [vmem:[#allocation6 + $0x1f0] sm:$0xf]
    %v5033 = vld [vmem:[#allocation6 + $0x1f8] sm:$0xf]
    %v5034 = vpack.c.bf16 %v5017, %v5017
    %v5035 = vld [vmem:[#allocation6 + $0x200] sm:$0xf]
    %v5036 = vld [vmem:[#allocation6 + $0x208] sm:$0xf]
    %v5037 = vld [vmem:[#allocation6 + $0x210] sm:$0xf]
    %v5038 = vld [vmem:[#allocation6 + $0x218] sm:$0xf]
    %v5039 = vld [vmem:[#allocation6 + $0x220] sm:$0xf]
    %v5040 = vld [vmem:[#allocation6 + $0x228] sm:$0xf]
    %v5041 = vld [vmem:[#allocation6 + $0x230] sm:$0xf]
    %v5042 = vld [vmem:[#allocation6 + $0x238] sm:$0xf]
    %v5043 = vld [vmem:[#allocation6 + $0x240] sm:$0xf]
    %v5044 = vld [vmem:[#allocation6 + $0x248] sm:$0xf]
    %v5045 = vld [vmem:[#allocation6 + $0x250] sm:$0xf]
    %v5046 = vld [vmem:[#allocation6 + $0x258] sm:$0xf]
    %v5047 = vld [vmem:[#allocation6 + $0x260] sm:$0xf]
    %v5048 = vld [vmem:[#allocation6 + $0x268] sm:$0xf]
    %v5049 = vld [vmem:[#allocation6 + $0x270] sm:$0xf]
    %v5050 = vld [vmem:[#allocation6 + $0x278] sm:$0xf]
    %v5051 = vpack.c.bf16 %v5015, %v5015
    %v5068 = vunpack.c.l.b16 %v5035
    %v5069 = vunpack.c.l.b16 %v5036
    %v5070 = vunpack.c.l.b16 %v5037
    %v5071 = vunpack.c.l.b16 %v5038
    %v5072 = vunpack.c.l.b16 %v5039
    %v5073 = vunpack.c.l.b16 %v5040
    %v5074 = vunpack.c.l.b16 %v5041
    %v5075 = vunpack.c.l.b16 %v5042
    %v5076 = vunpack.c.l.b16 %v5043
    %v5077 = vunpack.c.l.b16 %v5044
    %v5078 = vunpack.c.l.b16 %v5045
    %v5079 = vunpack.c.l.b16 %v5046
    %v5080 = vunpack.c.l.b16 %v5047
    %v5081 = vunpack.c.l.b16 %v5048
    %v5082 = vunpack.c.l.b16 %v5049
    %v5083 = vunpack.c.l.b16 %v5050
    %v5084 = vpack.c.b16 %v5069, %v5068
    %v5085 = vpack.c.b16 %v5071, %v5070
    %v5086 = vpack.c.b16 %v5073, %v5072
    %v5087 = vpack.c.b16 %v5075, %v5074
    %v5088 = vpack.c.b16 %v5077, %v5076
    %v5089 = vpack.c.b16 %v5079, %v5078
    %v5090 = vpack.c.b16 %v5081, %v5080
    %v5091 = vpack.c.b16 %v5083, %v5082
    %5100 = vmatprep.subr.bf16.mxu0 0
    %5101 = vmatpush1.bf16.msra.mxu0 %v5084
    %5102 = vmatprep.subr.bf16.mxu0 0
    %5103 = vmatpush1.bf16.msra.mxu0 %v5085
    %5104 = vmatprep.subr.bf16.mxu0 0
    %5105 = vmatpush1.bf16.msra.mxu0 %v5086
    %5106 = vmatprep.subr.bf16.mxu0 0
    %5107 = vmatpush1.bf16.msra.mxu0 %v5087
    %5108 = vmatprep.subr.bf16.mxu0 0
    %5109 = vmatpush1.bf16.msra.mxu0 %v5088
    %5110 = vmatprep.subr.bf16.mxu0 0
    %5111 = vmatpush1.bf16.msra.mxu0 %v5089
    %5112 = vmatprep.subr.bf16.mxu0 0
    %5113 = vmatpush1.bf16.msra.mxu0 %v5090
    %5114 = vmatprep.subr.bf16.mxu0 0
    %5115 = vmatpush1.bf16.msra.mxu0 %v5091
    %5116 = vmatprep.subr.bf16.mxu0 0
    %5117 = vmatpush1.bf16.msra.mxu0 0
    %5118 = vmatprep.subr.bf16.mxu0 0
    %5119 = vmatpush1.bf16.msra.mxu0 0
    %5120 = vmatprep.subr.bf16.mxu0 0
    %5121 = vmatpush1.bf16.msra.mxu0 0
    %5122 = vmatprep.subr.bf16.mxu0 0
    %5123 = vmatpush1.bf16.msra.mxu0 0
    %5124 = vmatprep.subr.bf16.mxu0 0
    %5125 = vmatpush1.bf16.msra.mxu0 0
    %5126 = vmatprep.subr.bf16.mxu0 0
    %5127 = vmatpush1.bf16.msra.mxu0 0
    %5128 = vmatprep.subr.bf16.mxu0 0
    %5129 = vmatpush1.bf16.msra.mxu0 0
    %5130 = vmatprep.subr.bf16.mxu0 0
    %5131 = vmatpush1.bf16.msra.mxu0 0
    %5132 = vmatprep.mubr.bf16.mxu0 0
    %5133 = vmatmul.mubr.bf16.gmra.mrb[0].mxu0 %v5051
    %v5134 = vpop.f32.mrb[0].mxu0
    %v5135 = vadd.f32 0.0, %v5134
    %v5136 = vpop.f32.mrb[0].mxu0
    %v5137 = vpop.f32.mrb[0].mxu0
    %v5138 = vpop.f32.mrb[0].mxu0
    %5139 = vdwg.mxu0
    %v5156 = vunpack.c.l.b16 %v5018
    %v5157 = vunpack.c.l.b16 %v5019
    %v5158 = vunpack.c.l.b16 %v5020
    %v5159 = vunpack.c.l.b16 %v5021
    %v5160 = vunpack.c.l.b16 %v5022
    %v5161 = vunpack.c.l.b16 %v5023
    %v5162 = vunpack.c.l.b16 %v5024
    %v5163 = vunpack.c.l.b16 %v5025
    %v5164 = vunpack.c.l.b16 %v5026
    %v5165 = vunpack.c.l.b16 %v5027
    %v5166 = vunpack.c.l.b16 %v5028
    %v5167 = vunpack.c.l.b16 %v5029
    %v5168 = vunpack.c.l.b16 %v5030
    %v5169 = vunpack.c.l.b16 %v5031
    %v5170 = vunpack.c.l.b16 %v5032
    %v5171 = vunpack.c.l.b16 %v5033
    %v5172 = vpack.c.b16 %v5157, %v5156
    %v5173 = vpack.c.b16 %v5159, %v5158
    %v5174 = vpack.c.b16 %v5161, %v5160
    %v5175 = vpack.c.b16 %v5163, %v5162
    %v5176 = vpack.c.b16 %v5165, %v5164
    %v5177 = vpack.c.b16 %v5167, %v5166
    %v5178 = vpack.c.b16 %v5169, %v5168
    %v5179 = vpack.c.b16 %v5171, %v5170
    %5188 = vmatprep.subr.bf16.mxu0 0
    %5189 = vmatpush1.bf16.msra.mxu0 %v5172
    %5190 = vmatprep.subr.bf16.mxu0 0
    %5191 = vmatpush1.bf16.msra.mxu0 %v5173
    %5192 = vmatprep.subr.bf16.mxu0 0
    %5193 = vmatpush1.bf16.msra.mxu0 %v5174
    %5194 = vmatprep.subr.bf16.mxu0 0
    %5195 = vmatpush1.bf16.msra.mxu0 %v5175
    %5196 = vmatprep.subr.bf16.mxu0 0
    %5197 = vmatpush1.bf16.msra.mxu0 %v5176
    %5198 = vmatprep.subr.bf16.mxu0 0
    %5199 = vmatpush1.bf16.msra.mxu0 %v5177
    %5200 = vmatprep.subr.bf16.mxu0 0
    %5201 = vmatpush1.bf16.msra.mxu0 %v5178
    %5202 = vmatprep.subr.bf16.mxu0 0
    %5203 = vmatpush1.bf16.msra.mxu0 %v5179
    %5204 = vmatprep.subr.bf16.mxu0 0
    %5205 = vmatpush1.bf16.msra.mxu0 0
    %5206 = vmatprep.subr.bf16.mxu0 0
    %5207 = vmatpush1.bf16.msra.mxu0 0
    %5208 = vmatprep.subr.bf16.mxu0 0
    %5209 = vmatpush1.bf16.msra.mxu0 0
    %5210 = vmatprep.subr.bf16.mxu0 0
    %5211 = vmatpush1.bf16.msra.mxu0 0
    %5212 = vmatprep.subr.bf16.mxu0 0
    %5213 = vmatpush1.bf16.msra.mxu0 0
    %5214 = vmatprep.subr.bf16.mxu0 0
    %5215 = vmatpush1.bf16.msra.mxu0 0
    %5216 = vmatprep.subr.bf16.mxu0 0
    %5217 = vmatpush1.bf16.msra.mxu0 0
    %5218 = vmatprep.subr.bf16.mxu0 0
    %5219 = vmatpush1.bf16.msra.mxu0 0
    %5220 = vmatprep.mubr.bf16.mxu0 0
    %5221 = vmatmul.mubr.bf16.gmra.mrb[0].mxu0 %v5034
    %v5222 = vpop.f32.mrb[0].mxu0
    %v5223 = vadd.f32 %v5135, %v5222
    %v5224 = vpop.f32.mrb[0].mxu0
    %v5225 = vpop.f32.mrb[0].mxu0
    %v5226 = vpop.f32.mrb[0].mxu0
    %5227 = vdwg.mxu0
    %v5228 = vrot.slane %v5015, 1
    %v5229 = vsel %vm4539, %v5228, 0.0
    %v5230 = vld [vmem:[#allocation6 + $0x280] sm:$0xf]
    %v5231 = vld [vmem:[#allocation6 + $0x288] sm:$0xf]
    %v5232 = vld [vmem:[#allocation6 + $0x290] sm:$0xf]
    %v5233 = vld [vmem:[#allocation6 + $0x298] sm:$0xf]
    %v5234 = vld [vmem:[#allocation6 + $0x2a0] sm:$0xf]
    %v5235 = vld [vmem:[#allocation6 + $0x2a8] sm:$0xf]
    %v5236 = vld [vmem:[#allocation6 + $0x2b0] sm:$0xf]
    %v5237 = vld [vmem:[#allocation6 + $0x2b8] sm:$0xf]
    %v5238 = vld [vmem:[#allocation6 + $0x2c0] sm:$0xf]
    %v5239 = vld [vmem:[#allocation6 + $0x2c8] sm:$0xf]
    %v5240 = vld [vmem:[#allocation6 + $0x2d0] sm:$0xf]
    %v5241 = vld [vmem:[#allocation6 + $0x2d8] sm:$0xf]
    %v5242 = vld [vmem:[#allocation6 + $0x2e0] sm:$0xf]
    %v5243 = vld [vmem:[#allocation6 + $0x2e8] sm:$0xf]
    %v5244 = vld [vmem:[#allocation6 + $0x2f0] sm:$0xf]
    %v5245 = vld [vmem:[#allocation6 + $0x2f8] sm:$0xf]
    %v5246 = vpack.c.bf16 %v5229, %v5229
    %v5263 = vunpack.c.l.b16 %v5230
    %v5264 = vunpack.c.l.b16 %v5231
    %v5265 = vunpack.c.l.b16 %v5232
    %v5266 = vunpack.c.l.b16 %v5233
    %v5267 = vunpack.c.l.b16 %v5234
    %v5268 = vunpack.c.l.b16 %v5235
    %v5269 = vunpack.c.l.b16 %v5236
    %v5270 = vunpack.c.l.b16 %v5237
    %v5271 = vunpack.c.l.b16 %v5238
    %v5272 = vunpack.c.l.b16 %v5239
    %v5273 = vunpack.c.l.b16 %v5240
    %v5274 = vunpack.c.l.b16 %v5241
    %v5275 = vunpack.c.l.b16 %v5242
    %v5276 = vunpack.c.l.b16 %v5243
    %v5277 = vunpack.c.l.b16 %v5244
    %v5278 = vunpack.c.l.b16 %v5245
    %v5279 = vpack.c.b16 %v5264, %v5263
    %v5280 = vpack.c.b16 %v5266, %v5265
    %v5281 = vpack.c.b16 %v5268, %v5267
    %v5282 = vpack.c.b16 %v5270, %v5269
    %v5283 = vpack.c.b16 %v5272, %v5271
    %v5284 = vpack.c.b16 %v5274, %v5273
    %v5285 = vpack.c.b16 %v5276, %v5275
    %v5286 = vpack.c.b16 %v5278, %v5277
    %5295 = vmatprep.subr.bf16.mxu0 0
    %5296 = vmatpush1.bf16.msra.mxu0 %v5279
    %5297 = vmatprep.subr.bf16.mxu0 0
    %5298 = vmatpush1.bf16.msra.mxu0 %v5280
    %5299 = vmatprep.subr.bf16.mxu0 0
    %5300 = vmatpush1.bf16.msra.mxu0 %v5281
    %5301 = vmatprep.subr.bf16.mxu0 0
    %5302 = vmatpush1.bf16.msra.mxu0 %v5282
    %5303 = vmatprep.subr.bf16.mxu0 0
    %5304 = vmatpush1.bf16.msra.mxu0 %v5283
    %5305 = vmatprep.subr.bf16.mxu0 0
    %5306 = vmatpush1.bf16.msra.mxu0 %v5284
    %5307 = vmatprep.subr.bf16.mxu0 0
    %5308 = vmatpush1.bf16.msra.mxu0 %v5285
    %5309 = vmatprep.subr.bf16.mxu0 0
    %5310 = vmatpush1.bf16.msra.mxu0 %v5286
    %5311 = vmatprep.subr.bf16.mxu0 0
    %5312 = vmatpush1.bf16.msra.mxu0 0
    %5313 = vmatprep.subr.bf16.mxu0 0
    %5314 = vmatpush1.bf16.msra.mxu0 0
    %5315 = vmatprep.subr.bf16.mxu0 0
    %5316 = vmatpush1.bf16.msra.mxu0 0
    %5317 = vmatprep.subr.bf16.mxu0 0
    %5318 = vmatpush1.bf16.msra.mxu0 0
    %5319 = vmatprep.subr.bf16.mxu0 0
    %5320 = vmatpush1.bf16.msra.mxu0 0
    %5321 = vmatprep.subr.bf16.mxu0 0
    %5322 = vmatpush1.bf16.msra.mxu0 0
    %5323 = vmatprep.subr.bf16.mxu0 0
    %5324 = vmatpush1.bf16.msra.mxu0 0
    %5325 = vmatprep.subr.bf16.mxu0 0
    %5326 = vmatpush1.bf16.msra.mxu0 0
    %5327 = vmatprep.mubr.bf16.mxu0 0
    %5328 = vmatmul.mubr.bf16.gmra.mrb[0].mxu0 %v5246
    %v5329 = vpop.f32.mrb[0].mxu0
    %v5330 = vadd.f32 0.0, %v5329
    %v5331 = vpop.f32.mrb[0].mxu0
    %v5332 = vpop.f32.mrb[0].mxu0
    %v5333 = vpop.f32.mrb[0].mxu0
    %5334 = vdwg.mxu0
    %v5335 = vadd.f32 %v5223, %v5330
    %v5336 = vadd.f32 %v5335, %v4205
    %5337 = vmatprep.subr.mxu0 0.0
    %5338 = vmatpush1.msra.mxu0 %v5336
    %5339 = vmatprep.subr.mxu0 0.0
    %5340 = vmatpush1.msra.mxu0 0.0
    %5341 = vmatprep.subr.mxu0 0.0
    %5342 = vmatpush1.msra.mxu0 0.0
    %5343 = vmatprep.subr.mxu0 0.0
    %5344 = vmatpush1.msra.mxu0 0.0
    %5345 = vmatprep.subr.mxu0 0.0
    %5346 = vmatpush1.msra.mxu0 0.0
    %5347 = vmatprep.subr.mxu0 0.0
    %5348 = vmatpush1.msra.mxu0 0.0
    %5349 = vmatprep.subr.mxu0 0.0
    %5350 = vmatpush1.msra.mxu0 0.0
    %5351 = vmatprep.subr.mxu0 0.0
    %5352 = vmatpush1.msra.mxu0 0.0
    %5353 = vmatprep.subr.mxu0 0.0
    %5354 = vmatpush1.msra.mxu0 0.0
    %5355 = vmatprep.subr.mxu0 0.0
    %5356 = vmatpush1.msra.mxu0 0.0
    %5357 = vmatprep.subr.mxu0 0.0
    %5358 = vmatpush1.msra.mxu0 0.0
    %5359 = vmatprep.subr.mxu0 0.0
    %5360 = vmatpush1.msra.mxu0 0.0
    %5361 = vmatprep.subr.mxu0 0.0
    %5362 = vmatpush1.msra.mxu0 0.0
    %5363 = vmatprep.subr.mxu0 0.0
    %5364 = vmatpush1.msra.mxu0 0.0
    %5365 = vmatprep.subr.mxu0 0.0
    %5366 = vmatpush1.msra.mxu0 0.0
    %5367 = vmatprep.subr.mxu0 0.0
    %5368 = vmatpush1.msra.mxu0 0.0
    %5369 = vmatprep.subr.mxu0 0.0
    %5370 = vmatpush1.msra.mxu0 0.0
    %5371 = vmatprep.subr.mxu0 0.0
    %5372 = vmatpush1.msra.mxu0 0.0
    %5373 = vmatprep.subr.mxu0 0.0
    %5374 = vmatpush1.msra.mxu0 0.0
    %5375 = vmatprep.subr.mxu0 0.0
    %5376 = vmatpush1.msra.mxu0 0.0
    %5377 = vmatprep.subr.mxu0 0.0
    %5378 = vmatpush1.msra.mxu0 0.0
    %5379 = vmatprep.subr.mxu0 0.0
    %5380 = vmatpush1.msra.mxu0 0.0
    %5381 = vmatprep.subr.mxu0 0.0
    %5382 = vmatpush1.msra.mxu0 0.0
    %5383 = vmatprep.subr.mxu0 0.0
    %5384 = vmatpush1.msra.mxu0 0.0
    %5385 = vmatprep.subr.mxu0 0.0
    %5386 = vmatpush1.msra.mxu0 0.0
    %5387 = vmatprep.subr.mxu0 0.0
    %5388 = vmatpush1.msra.mxu0 0.0
    %5389 = vmatprep.subr.mxu0 0.0
    %5390 = vmatpush1.msra.mxu0 0.0
    %5391 = vmatprep.subr.mxu0 0.0
    %5392 = vmatpush1.msra.mxu0 0.0
    %5393 = vmatprep.subr.mxu0 0.0
    %5394 = vmatpush1.msra.mxu0 0.0
    %5395 = vmatprep.subr.mxu0 0.0
    %5396 = vmatpush1.msra.mxu0 0.0
    %5397 = vmatprep.subr.mxu0 0.0
    %5398 = vmatpush1.msra.mxu0 0.0
    %5399 = vmatprep.subr.mxu0 0.0
    %5400 = vmatpush1.msra.mxu0 0.0
    %5401 = vmatprep.mubr.f32.mxu0 0.0
    %5402 = vmatmul.mubr.f32.gmra.mrb[0].mxu0 %v4695
    %v5403 = vpop.f32.mrb[0].mxu0
    %v5404 = vadd.f32 0.0, %v5403
    %v5405 = vpop.f32.mrb[0].mxu0
    %5406 = vdwg.mxu0
    %v5407 = vmul.f32 %v5336, %v5336
    %5408 = vmatprep.subr.mxu0 0.0
    %5409 = vmatpush1.msra.mxu0 %v5407
    %5410 = vmatprep.subr.mxu0 0.0
    %5411 = vmatpush1.msra.mxu0 0.0
    %5412 = vmatprep.subr.mxu0 0.0
    %5413 = vmatpush1.msra.mxu0 0.0
    %5414 = vmatprep.subr.mxu0 0.0
    %5415 = vmatpush1.msra.mxu0 0.0
    %5416 = vmatprep.subr.mxu0 0.0
    %5417 = vmatpush1.msra.mxu0 0.0
    %5418 = vmatprep.subr.mxu0 0.0
    %5419 = vmatpush1.msra.mxu0 0.0
    %5420 = vmatprep.subr.mxu0 0.0
    %5421 = vmatpush1.msra.mxu0 0.0
    %5422 = vmatprep.subr.mxu0 0.0
    %5423 = vmatpush1.msra.mxu0 0.0
    %5424 = vmatprep.subr.mxu0 0.0
    %5425 = vmatpush1.msra.mxu0 0.0
    %5426 = vmatprep.subr.mxu0 0.0
    %5427 = vmatpush1.msra.mxu0 0.0
    %5428 = vmatprep.subr.mxu0 0.0
    %5429 = vmatpush1.msra.mxu0 0.0
    %5430 = vmatprep.subr.mxu0 0.0
    %5431 = vmatpush1.msra.mxu0 0.0
    %5432 = vmatprep.subr.mxu0 0.0
    %5433 = vmatpush1.msra.mxu0 0.0
    %5434 = vmatprep.subr.mxu0 0.0
    %5435 = vmatpush1.msra.mxu0 0.0
    %5436 = vmatprep.subr.mxu0 0.0
    %5437 = vmatpush1.msra.mxu0 0.0
    %5438 = vmatprep.subr.mxu0 0.0
    %5439 = vmatpush1.msra.mxu0 0.0
    %5440 = vmatprep.subr.mxu0 0.0
    %5441 = vmatpush1.msra.mxu0 0.0
    %5442 = vmatprep.subr.mxu0 0.0
    %5443 = vmatpush1.msra.mxu0 0.0
    %5444 = vmatprep.subr.mxu0 0.0
    %5445 = vmatpush1.msra.mxu0 0.0
    %5446 = vmatprep.subr.mxu0 0.0
    %5447 = vmatpush1.msra.mxu0 0.0
    %5448 = vmatprep.subr.mxu0 0.0
    %5449 = vmatpush1.msra.mxu0 0.0
    %5450 = vmatprep.subr.mxu0 0.0
    %5451 = vmatpush1.msra.mxu0 0.0
    %5452 = vmatprep.subr.mxu0 0.0
    %5453 = vmatpush1.msra.mxu0 0.0
    %5454 = vmatprep.subr.mxu0 0.0
    %5455 = vmatpush1.msra.mxu0 0.0
    %5456 = vmatprep.subr.mxu0 0.0
    %5457 = vmatpush1.msra.mxu0 0.0
    %5458 = vmatprep.subr.mxu0 0.0
    %5459 = vmatpush1.msra.mxu0 0.0
    %5460 = vmatprep.subr.mxu0 0.0
    %5461 = vmatpush1.msra.mxu0 0.0
    %5462 = vmatprep.subr.mxu0 0.0
    %5463 = vmatpush1.msra.mxu0 0.0
    %5464 = vmatprep.subr.mxu0 0.0
    %5465 = vmatpush1.msra.mxu0 0.0
    %5466 = vmatprep.subr.mxu0 0.0
    %5467 = vmatpush1.msra.mxu0 0.0
    %5468 = vmatprep.subr.mxu0 0.0
    %5469 = vmatpush1.msra.mxu0 0.0
    %5470 = vmatprep.subr.mxu0 0.0
    %5471 = vmatpush1.msra.mxu0 0.0
    %5472 = vmatprep.mubr.f32.mxu0 0.0
    %5473 = vmatmul.mubr.f32.gmra.mrb[0].mxu0 %v4695
    %v5474 = vpop.f32.mrb[0].mxu0
    %v5475 = vadd.f32 0.0, %v5474
    %v5476 = vpop.f32.mrb[0].mxu0
    %5477 = vdwg.mxu0
    %v5478 = vmul.f32 %v5404, 0.125
    %v5479 = vmul.f32 %v5475, 0.125
    %v5480 = vmul.f32 %v5478, %v5478
    %v5481 = vsub.f32 %v5479, %v5480
    %v5482 = vlaneseq
    %v5483 = vshrl.u32 %v5482, 7
    %v5484 = vsub.s32 0, %v5483
    %v5485 = vrot.slane %v5478, %v5484
    %v5486 = vsub.f32 %v5336, %v5485
    %v5487 = vadd.f32 %v5481, 1e-05
    %v5488 = vrsqrt.pop %v5487
    %v5489 = vmul.f32 %v5488, %v4207
    %v5490 = vlaneseq
    %v5491 = vshrl.u32 %v5490, 7
    %v5492 = vsub.s32 0, %v5491
    %v5493 = vrot.slane %v5489, %v5492
    %v5494 = vmul.f32 %v5486, %v5493
    %v5495 = vadd.f32 %v5494, %v4208
    %v5496 = vmax.f32 %v5495, 0.0
    %v5497 = vrot.slane %v5496, 7
    %v5498 = vsel %vm4227, %v5497, 0.0
    %v5499 = vld [vmem:[#allocation6 + $0x300] sm:$0xf]
    %v5500 = vld [vmem:[#allocation6 + $0x308] sm:$0xf]
    %v5501 = vld [vmem:[#allocation6 + $0x310] sm:$0xf]
    %v5502 = vld [vmem:[#allocation6 + $0x318] sm:$0xf]
    %v5503 = vld [vmem:[#allocation6 + $0x320] sm:$0xf]
    %v5504 = vld [vmem:[#allocation6 + $0x328] sm:$0xf]
    %v5505 = vld [vmem:[#allocation6 + $0x330] sm:$0xf]
    %v5506 = vld [vmem:[#allocation6 + $0x338] sm:$0xf]
    %v5507 = vld [vmem:[#allocation6 + $0x340] sm:$0xf]
    %v5508 = vld [vmem:[#allocation6 + $0x348] sm:$0xf]
    %v5509 = vld [vmem:[#allocation6 + $0x350] sm:$0xf]
    %v5510 = vld [vmem:[#allocation6 + $0x358] sm:$0xf]
    %v5511 = vld [vmem:[#allocation6 + $0x360] sm:$0xf]
    %v5512 = vld [vmem:[#allocation6 + $0x368] sm:$0xf]
    %v5513 = vld [vmem:[#allocation6 + $0x370] sm:$0xf]
    %v5514 = vld [vmem:[#allocation6 + $0x378] sm:$0xf]
    %v5515 = vpack.c.bf16 %v5498, %v5498
    %v5516 = vld [vmem:[#allocation6 + $0x380] sm:$0xf]
    %v5517 = vld [vmem:[#allocation6 + $0x388] sm:$0xf]
    %v5518 = vld [vmem:[#allocation6 + $0x390] sm:$0xf]
    %v5519 = vld [vmem:[#allocation6 + $0x398] sm:$0xf]
    %v5520 = vld [vmem:[#allocation6 + $0x3a0] sm:$0xf]
    %v5521 = vld [vmem:[#allocation6 + $0x3a8] sm:$0xf]
    %v5522 = vld [vmem:[#allocation6 + $0x3b0] sm:$0xf]
    %v5523 = vld [vmem:[#allocation6 + $0x3b8] sm:$0xf]
    %v5524 = vld [vmem:[#allocation6 + $0x3c0] sm:$0xf]
    %v5525 = vld [vmem:[#allocation6 + $0x3c8] sm:$0xf]
    %v5526 = vld [vmem:[#allocation6 + $0x3d0] sm:$0xf]
    %v5527 = vld [vmem:[#allocation6 + $0x3d8] sm:$0xf]
    %v5528 = vld [vmem:[#allocation6 + $0x3e0] sm:$0xf]
    %v5529 = vld [vmem:[#allocation6 + $0x3e8] sm:$0xf]
    %v5530 = vld [vmem:[#allocation6 + $0x3f0] sm:$0xf]
    %v5531 = vld [vmem:[#allocation6 + $0x3f8] sm:$0xf]
    %v5532 = vpack.c.bf16 %v5496, %v5496
    %v5549 = vunpack.c.l.b16 %v5516
    %v5550 = vunpack.c.l.b16 %v5517
    %v5551 = vunpack.c.l.b16 %v5518
    %v5552 = vunpack.c.l.b16 %v5519
    %v5553 = vunpack.c.l.b16 %v5520
    %v5554 = vunpack.c.l.b16 %v5521
    %v5555 = vunpack.c.l.b16 %v5522
    %v5556 = vunpack.c.l.b16 %v5523
    %v5557 = vunpack.c.l.b16 %v5524
    %v5558 = vunpack.c.l.b16 %v5525
    %v5559 = vunpack.c.l.b16 %v5526
    %v5560 = vunpack.c.l.b16 %v5527
    %v5561 = vunpack.c.l.b16 %v5528
    %v5562 = vunpack.c.l.b16 %v5529
    %v5563 = vunpack.c.l.b16 %v5530
    %v5564 = vunpack.c.l.b16 %v5531
    %v5565 = vpack.c.b16 %v5550, %v5549
    %v5566 = vpack.c.b16 %v5552, %v5551
    %v5567 = vpack.c.b16 %v5554, %v5553
    %v5568 = vpack.c.b16 %v5556, %v5555
    %v5569 = vpack.c.b16 %v5558, %v5557
    %v5570 = vpack.c.b16 %v5560, %v5559
    %v5571 = vpack.c.b16 %v5562, %v5561
    %v5572 = vpack.c.b16 %v5564, %v5563
    %5581 = vmatprep.subr.bf16.mxu0 0
    %5582 = vmatpush1.bf16.msra.mxu0 %v5565
    %5583 = vmatprep.subr.bf16.mxu0 0
    %5584 = vmatpush1.bf16.msra.mxu0 %v5566
    %5585 = vmatprep.subr.bf16.mxu0 0
    %5586 = vmatpush1.bf16.msra.mxu0 %v5567
    %5587 = vmatprep.subr.bf16.mxu0 0
    %5588 = vmatpush1.bf16.msra.mxu0 %v5568
    %5589 = vmatprep.subr.bf16.mxu0 0
    %5590 = vmatpush1.bf16.msra.mxu0 %v5569
    %5591 = vmatprep.subr.bf16.mxu0 0
    %5592 = vmatpush1.bf16.msra.mxu0 %v5570
    %5593 = vmatprep.subr.bf16.mxu0 0
    %5594 = vmatpush1.bf16.msra.mxu0 %v5571
    %5595 = vmatprep.subr.bf16.mxu0 0
    %5596 = vmatpush1.bf16.msra.mxu0 %v5572
    %5597 = vmatprep.subr.bf16.mxu0 0
    %5598 = vmatpush1.bf16.msra.mxu0 0
    %5599 = vmatprep.subr.bf16.mxu0 0
    %5600 = vmatpush1.bf16.msra.mxu0 0
    %5601 = vmatprep.subr.bf16.mxu0 0
    %5602 = vmatpush1.bf16.msra.mxu0 0
    %5603 = vmatprep.subr.bf16.mxu0 0
    %5604 = vmatpush1.bf16.msra.mxu0 0
    %5605 = vmatprep.subr.bf16.mxu0 0
    %5606 = vmatpush1.bf16.msra.mxu0 0
    %5607 = vmatprep.subr.bf16.mxu0 0
    %5608 = vmatpush1.bf16.msra.mxu0 0
    %5609 = vmatprep.subr.bf16.mxu0 0
    %5610 = vmatpush1.bf16.msra.mxu0 0
    %5611 = vmatprep.subr.bf16.mxu0 0
    %5612 = vmatpush1.bf16.msra.mxu0 0
    %5613 = vmatprep.mubr.bf16.mxu0 0
    %5614 = vmatmul.mubr.bf16.gmra.mrb[0].mxu0 %v5532
    %v5615 = vpop.f32.mrb[0].mxu0
    %v5616 = vadd.f32 0.0, %v5615
    %v5617 = vpop.f32.mrb[0].mxu0
    %v5618 = vpop.f32.mrb[0].mxu0
    %v5619 = vpop.f32.mrb[0].mxu0
    %5620 = vdwg.mxu0
    %v5637 = vunpack.c.l.b16 %v5499
    %v5638 = vunpack.c.l.b16 %v5500
    %v5639 = vunpack.c.l.b16 %v5501
    %v5640 = vunpack.c.l.b16 %v5502
    %v5641 = vunpack.c.l.b16 %v5503
    %v5642 = vunpack.c.l.b16 %v5504
    %v5643 = vunpack.c.l.b16 %v5505
    %v5644 = vunpack.c.l.b16 %v5506
    %v5645 = vunpack.c.l.b16 %v5507
    %v5646 = vunpack.c.l.b16 %v5508
    %v5647 = vunpack.c.l.b16 %v5509
    %v5648 = vunpack.c.l.b16 %v5510
    %v5649 = vunpack.c.l.b16 %v5511
    %v5650 = vunpack.c.l.b16 %v5512
    %v5651 = vunpack.c.l.b16 %v5513
    %v5652 = vunpack.c.l.b16 %v5514
    %v5653 = vpack.c.b16 %v5638, %v5637
    %v5654 = vpack.c.b16 %v5640, %v5639
    %v5655 = vpack.c.b16 %v5642, %v5641
    %v5656 = vpack.c.b16 %v5644, %v5643
    %v5657 = vpack.c.b16 %v5646, %v5645
    %v5658 = vpack.c.b16 %v5648, %v5647
    %v5659 = vpack.c.b16 %v5650, %v5649
    %v5660 = vpack.c.b16 %v5652, %v5651
    %5669 = vmatprep.subr.bf16.mxu0 0
    %5670 = vmatpush1.bf16.msra.mxu0 %v5653
    %5671 = vmatprep.subr.bf16.mxu0 0
    %5672 = vmatpush1.bf16.msra.mxu0 %v5654
    %5673 = vmatprep.subr.bf16.mxu0 0
    %5674 = vmatpush1.bf16.msra.mxu0 %v5655
    %5675 = vmatprep.subr.bf16.mxu0 0
    %5676 = vmatpush1.bf16.msra.mxu0 %v5656
    %5677 = vmatprep.subr.bf16.mxu0 0
    %5678 = vmatpush1.bf16.msra.mxu0 %v5657
    %5679 = vmatprep.subr.bf16.mxu0 0
    %5680 = vmatpush1.bf16.msra.mxu0 %v5658
    %5681 = vmatprep.subr.bf16.mxu0 0
    %5682 = vmatpush1.bf16.msra.mxu0 %v5659
    %5683 = vmatprep.subr.bf16.mxu0 0
    %5684 = vmatpush1.bf16.msra.mxu0 %v5660
    %5685 = vmatprep.subr.bf16.mxu0 0
    %5686 = vmatpush1.bf16.msra.mxu0 0
    %5687 = vmatprep.subr.bf16.mxu0 0
    %5688 = vmatpush1.bf16.msra.mxu0 0
    %5689 = vmatprep.subr.bf16.mxu0 0
    %5690 = vmatpush1.bf16.msra.mxu0 0
    %5691 = vmatprep.subr.bf16.mxu0 0
    %5692 = vmatpush1.bf16.msra.mxu0 0
    %5693 = vmatprep.subr.bf16.mxu0 0
    %5694 = vmatpush1.bf16.msra.mxu0 0
    %5695 = vmatprep.subr.bf16.mxu0 0
    %5696 = vmatpush1.bf16.msra.mxu0 0
    %5697 = vmatprep.subr.bf16.mxu0 0
    %5698 = vmatpush1.bf16.msra.mxu0 0
    %5699 = vmatprep.subr.bf16.mxu0 0
    %5700 = vmatpush1.bf16.msra.mxu0 0
    %5701 = vmatprep.mubr.bf16.mxu0 0
    %5702 = vmatmul.mubr.bf16.gmra.mrb[0].mxu0 %v5515
    %v5703 = vpop.f32.mrb[0].mxu0
    %v5704 = vadd.f32 %v5616, %v5703
    %v5705 = vpop.f32.mrb[0].mxu0
    %v5706 = vpop.f32.mrb[0].mxu0
    %v5707 = vpop.f32.mrb[0].mxu0
    %5708 = vdwg.mxu0
    %v5709 = vrot.slane %v5496, 1
    %v5710 = vsel %vm4539, %v5709, 0.0
    %v5711 = vld [vmem:[#allocation6 + $0x400] sm:$0xf]
    %v5712 = vld [vmem:[#allocation6 + $0x408] sm:$0xf]
    %v5713 = vld [vmem:[#allocation6 + $0x410] sm:$0xf]
    %v5714 = vld [vmem:[#allocation6 + $0x418] sm:$0xf]
    %v5715 = vld [vmem:[#allocation6 + $0x420] sm:$0xf]
    %v5716 = vld [vmem:[#allocation6 + $0x428] sm:$0xf]
    %v5717 = vld [vmem:[#allocation6 + $0x430] sm:$0xf]
    %v5718 = vld [vmem:[#allocation6 + $0x438] sm:$0xf]
    %v5719 = vld [vmem:[#allocation6 + $0x440] sm:$0xf]
    %v5720 = vld [vmem:[#allocation6 + $0x448] sm:$0xf]
    %v5721 = vld [vmem:[#allocation6 + $0x450] sm:$0xf]
    %v5722 = vld [vmem:[#allocation6 + $0x458] sm:$0xf]
    %v5723 = vld [vmem:[#allocation6 + $0x460] sm:$0xf]
    %v5724 = vld [vmem:[#allocation6 + $0x468] sm:$0xf]
    %v5725 = vld [vmem:[#allocation6 + $0x470] sm:$0xf]
    %v5726 = vld [vmem:[#allocation6 + $0x478] sm:$0xf]
    %v5727 = vpack.c.bf16 %v5710, %v5710
    %v5744 = vunpack.c.l.b16 %v5711
    %v5745 = vunpack.c.l.b16 %v5712
    %v5746 = vunpack.c.l.b16 %v5713
    %v5747 = vunpack.c.l.b16 %v5714
    %v5748 = vunpack.c.l.b16 %v5715
    %v5749 = vunpack.c.l.b16 %v5716
    %v5750 = vunpack.c.l.b16 %v5717
    %v5751 = vunpack.c.l.b16 %v5718
    %v5752 = vunpack.c.l.b16 %v5719
    %v5753 = vunpack.c.l.b16 %v5720
    %v5754 = vunpack.c.l.b16 %v5721
    %v5755 = vunpack.c.l.b16 %v5722
    %v5756 = vunpack.c.l.b16 %v5723
    %v5757 = vunpack.c.l.b16 %v5724
    %v5758 = vunpack.c.l.b16 %v5725
    %v5759 = vunpack.c.l.b16 %v5726
    %v5760 = vpack.c.b16 %v5745, %v5744
    %v5761 = vpack.c.b16 %v5747, %v5746
    %v5762 = vpack.c.b16 %v5749, %v5748
    %v5763 = vpack.c.b16 %v5751, %v5750
    %v5764 = vpack.c.b16 %v5753, %v5752
    %v5765 = vpack.c.b16 %v5755, %v5754
    %v5766 = vpack.c.b16 %v5757, %v5756
    %v5767 = vpack.c.b16 %v5759, %v5758
    %5776 = vmatprep.subr.bf16.mxu0 0
    %5777 = vmatpush1.bf16.msra.mxu0 %v5760
    %5778 = vmatprep.subr.bf16.mxu0 0
    %5779 = vmatpush1.bf16.msra.mxu0 %v5761
    %5780 = vmatprep.subr.bf16.mxu0 0
    %5781 = vmatpush1.bf16.msra.mxu0 %v5762
    %5782 = vmatprep.subr.bf16.mxu0 0
    %5783 = vmatpush1.bf16.msra.mxu0 %v5763
    %5784 = vmatprep.subr.bf16.mxu0 0
    %5785 = vmatpush1.bf16.msra.mxu0 %v5764
    %5786 = vmatprep.subr.bf16.mxu0 0
    %5787 = vmatpush1.bf16.msra.mxu0 %v5765
    %5788 = vmatprep.subr.bf16.mxu0 0
    %5789 = vmatpush1.bf16.msra.mxu0 %v5766
    %5790 = vmatprep.subr.bf16.mxu0 0
    %5791 = vmatpush1.bf16.msra.mxu0 %v5767
    %5792 = vmatprep.subr.bf16.mxu0 0
    %5793 = vmatpush1.bf16.msra.mxu0 0
    %5794 = vmatprep.subr.bf16.mxu0 0
    %5795 = vmatpush1.bf16.msra.mxu0 0
    %5796 = vmatprep.subr.bf16.mxu0 0
    %5797 = vmatpush1.bf16.msra.mxu0 0
    %5798 = vmatprep.subr.bf16.mxu0 0
    %5799 = vmatpush1.bf16.msra.mxu0 0
    %5800 = vmatprep.subr.bf16.mxu0 0
    %5801 = vmatpush1.bf16.msra.mxu0 0
    %5802 = vmatprep.subr.bf16.mxu0 0
    %5803 = vmatpush1.bf16.msra.mxu0 0
    %5804 = vmatprep.subr.bf16.mxu0 0
    %5805 = vmatpush1.bf16.msra.mxu0 0
    %5806 = vmatprep.subr.bf16.mxu0 0
    %5807 = vmatpush1.bf16.msra.mxu0 0
    %5808 = vmatprep.mubr.bf16.mxu0 0
    %5809 = vmatmul.mubr.bf16.gmra.mrb[0].mxu0 %v5727
    %v5810 = vpop.f32.mrb[0].mxu0
    %v5811 = vadd.f32 0.0, %v5810
    %v5812 = vpop.f32.mrb[0].mxu0
    %v5813 = vpop.f32.mrb[0].mxu0
    %v5814 = vpop.f32.mrb[0].mxu0
    %5815 = vdwg.mxu0
    %v5816 = vadd.f32 %v5704, %v5811
    %v5817 = vadd.f32 %v5816, %v4206
    %5818 = vmatprep.subr.mxu0 0.0
    %5819 = vmatpush1.msra.mxu0 %v5817
    %5820 = vmatprep.subr.mxu0 0.0
    %5821 = vmatpush1.msra.mxu0 0.0
    %5822 = vmatprep.subr.mxu0 0.0
    %5823 = vmatpush1.msra.mxu0 0.0
    %5824 = vmatprep.subr.mxu0 0.0
    %5825 = vmatpush1.msra.mxu0 0.0
    %5826 = vmatprep.subr.mxu0 0.0
    %5827 = vmatpush1.msra.mxu0 0.0
    %5828 = vmatprep.subr.mxu0 0.0
    %5829 = vmatpush1.msra.mxu0 0.0
    %5830 = vmatprep.subr.mxu0 0.0
    %5831 = vmatpush1.msra.mxu0 0.0
    %5832 = vmatprep.subr.mxu0 0.0
    %5833 = vmatpush1.msra.mxu0 0.0
    %5834 = vmatprep.subr.mxu0 0.0
    %5835 = vmatpush1.msra.mxu0 0.0
    %5836 = vmatprep.subr.mxu0 0.0
    %5837 = vmatpush1.msra.mxu0 0.0
    %5838 = vmatprep.subr.mxu0 0.0
    %5839 = vmatpush1.msra.mxu0 0.0
    %5840 = vmatprep.subr.mxu0 0.0
    %5841 = vmatpush1.msra.mxu0 0.0
    %5842 = vmatprep.subr.mxu0 0.0
    %5843 = vmatpush1.msra.mxu0 0.0
    %5844 = vmatprep.subr.mxu0 0.0
    %5845 = vmatpush1.msra.mxu0 0.0
    %5846 = vmatprep.subr.mxu0 0.0
    %5847 = vmatpush1.msra.mxu0 0.0
    %5848 = vmatprep.subr.mxu0 0.0
    %5849 = vmatpush1.msra.mxu0 0.0
    %5850 = vmatprep.subr.mxu0 0.0
    %5851 = vmatpush1.msra.mxu0 0.0
    %5852 = vmatprep.subr.mxu0 0.0
    %5853 = vmatpush1.msra.mxu0 0.0
    %5854 = vmatprep.subr.mxu0 0.0
    %5855 = vmatpush1.msra.mxu0 0.0
    %5856 = vmatprep.subr.mxu0 0.0
    %5857 = vmatpush1.msra.mxu0 0.0
    %5858 = vmatprep.subr.mxu0 0.0
    %5859 = vmatpush1.msra.mxu0 0.0
    %5860 = vmatprep.subr.mxu0 0.0
    %5861 = vmatpush1.msra.mxu0 0.0
    %5862 = vmatprep.subr.mxu0 0.0
    %5863 = vmatpush1.msra.mxu0 0.0
    %5864 = vmatprep.subr.mxu0 0.0
    %5865 = vmatpush1.msra.mxu0 0.0
    %5866 = vmatprep.subr.mxu0 0.0
    %5867 = vmatpush1.msra.mxu0 0.0
    %5868 = vmatprep.subr.mxu0 0.0
    %5869 = vmatpush1.msra.mxu0 0.0
    %5870 = vmatprep.subr.mxu0 0.0
    %5871 = vmatpush1.msra.mxu0 0.0
    %5872 = vmatprep.subr.mxu0 0.0
    %5873 = vmatpush1.msra.mxu0 0.0
    %5874 = vmatprep.subr.mxu0 0.0
    %5875 = vmatpush1.msra.mxu0 0.0
    %5876 = vmatprep.subr.mxu0 0.0
    %5877 = vmatpush1.msra.mxu0 0.0
    %5878 = vmatprep.subr.mxu0 0.0
    %5879 = vmatpush1.msra.mxu0 0.0
    %5880 = vmatprep.subr.mxu0 0.0
    %5881 = vmatpush1.msra.mxu0 0.0
    %5882 = vmatprep.mubr.f32.mxu0 0.0
    %5883 = vmatmul.mubr.f32.gmra.mrb[0].mxu0 %v4695
    %v5884 = vpop.f32.mrb[0].mxu0
    %v5885 = vadd.f32 0.0, %v5884
    %v5886 = vpop.f32.mrb[0].mxu0
    %5887 = vdwg.mxu0
    %v5888 = vmul.f32 %v5817, %v5817
    %5889 = vmatprep.subr.mxu0 0.0
    %5890 = vmatpush1.msra.mxu0 %v5888
    %5891 = vmatprep.subr.mxu0 0.0
    %5892 = vmatpush1.msra.mxu0 0.0
    %5893 = vmatprep.subr.mxu0 0.0
    %5894 = vmatpush1.msra.mxu0 0.0
    %5895 = vmatprep.subr.mxu0 0.0
    %5896 = vmatpush1.msra.mxu0 0.0
    %5897 = vmatprep.subr.mxu0 0.0
    %5898 = vmatpush1.msra.mxu0 0.0
    %5899 = vmatprep.subr.mxu0 0.0
    %5900 = vmatpush1.msra.mxu0 0.0
    %5901 = vmatprep.subr.mxu0 0.0
    %5902 = vmatpush1.msra.mxu0 0.0
    %5903 = vmatprep.subr.mxu0 0.0
    %5904 = vmatpush1.msra.mxu0 0.0
    %5905 = vmatprep.subr.mxu0 0.0
    %5906 = vmatpush1.msra.mxu0 0.0
    %5907 = vmatprep.subr.mxu0 0.0
    %5908 = vmatpush1.msra.mxu0 0.0
    %5909 = vmatprep.subr.mxu0 0.0
    %5910 = vmatpush1.msra.mxu0 0.0
    %5911 = vmatprep.subr.mxu0 0.0
    %5912 = vmatpush1.msra.mxu0 0.0
    %5913 = vmatprep.subr.mxu0 0.0
    %5914 = vmatpush1.msra.mxu0 0.0
    %5915 = vmatprep.subr.mxu0 0.0
    %5916 = vmatpush1.msra.mxu0 0.0
    %5917 = vmatprep.subr.mxu0 0.0
    %5918 = vmatpush1.msra.mxu0 0.0
    %5919 = vmatprep.subr.mxu0 0.0
    %5920 = vmatpush1.msra.mxu0 0.0
    %5921 = vmatprep.subr.mxu0 0.0
    %5922 = vmatpush1.msra.mxu0 0.0
    %5923 = vmatprep.subr.mxu0 0.0
    %5924 = vmatpush1.msra.mxu0 0.0
    %5925 = vmatprep.subr.mxu0 0.0
    %5926 = vmatpush1.msra.mxu0 0.0
    %5927 = vmatprep.subr.mxu0 0.0
    %5928 = vmatpush1.msra.mxu0 0.0
    %5929 = vmatprep.subr.mxu0 0.0
    %5930 = vmatpush1.msra.mxu0 0.0
    %5931 = vmatprep.subr.mxu0 0.0
    %5932 = vmatpush1.msra.mxu0 0.0
    %5933 = vmatprep.subr.mxu0 0.0
    %5934 = vmatpush1.msra.mxu0 0.0
    %5935 = vmatprep.subr.mxu0 0.0
    %5936 = vmatpush1.msra.mxu0 0.0
    %5937 = vmatprep.subr.mxu0 0.0
    %5938 = vmatpush1.msra.mxu0 0.0
    %5939 = vmatprep.subr.mxu0 0.0
    %5940 = vmatpush1.msra.mxu0 0.0
    %5941 = vmatprep.subr.mxu0 0.0
    %5942 = vmatpush1.msra.mxu0 0.0
    %5943 = vmatprep.subr.mxu0 0.0
    %5944 = vmatpush1.msra.mxu0 0.0
    %5945 = vmatprep.subr.mxu0 0.0
    %5946 = vmatpush1.msra.mxu0 0.0
    %5947 = vmatprep.subr.mxu0 0.0
    %5948 = vmatpush1.msra.mxu0 0.0
    %5949 = vmatprep.subr.mxu0 0.0
    %5950 = vmatpush1.msra.mxu0 0.0
    %5951 = vmatprep.subr.mxu0 0.0
    %5952 = vmatpush1.msra.mxu0 0.0
    %5953 = vmatprep.mubr.f32.mxu0 0.0
    %5954 = vmatmul.mubr.f32.gmra.mrb[0].mxu0 %v4695
    %v5955 = vpop.f32.mrb[0].mxu0
    %v5956 = vadd.f32 0.0, %v5955
    %v5957 = vpop.f32.mrb[0].mxu0
    %5958 = vdwg.mxu0
    %v5959 = vmul.f32 %v5885, 0.125
    %v5960 = vmul.f32 %v5956, 0.125
    %v5961 = vmul.f32 %v5959, %v5959
    %v5962 = vsub.f32 %v5960, %v5961
    %v5963 = vlaneseq
    %v5964 = vshrl.u32 %v5963, 7
    %v5965 = vsub.s32 0, %v5964
    %v5966 = vrot.slane %v5959, %v5965
    %v5967 = vsub.f32 %v5817, %v5966
    %v5968 = vadd.f32 %v5962, 1e-05
    %v5969 = vrsqrt.pop %v5968
    %v5970 = vmul.f32 %v5969, %v4207
    %v5971 = vlaneseq
    %v5972 = vshrl.u32 %v5971, 7
    %v5973 = vsub.s32 0, %v5972
    %v5974 = vrot.slane %v5970, %v5973
    %v5975 = vmul.f32 %v5967, %v5974
    %v5976 = vadd.f32 %v5975, %v4208
    %v5977 = vadd.f32 %v5976, %v4855
    %v5978 = vmax.f32 %v5977, 0.0
    %v5980 = vcombine.high %v5978, %v5978
    %v5982 = vunpack.c.l.s4 1983009808
    %v5983 = vunpack.c.0.s8 %v5982
    %v5984 = vlaneseq
    %v5985 = vshrl.u32 %v5984, 7
    %v5986 = vsub.s32 %v5983, %v5985
    %v5987 = vrot.slane %v5978, %v5986
    %v5989 = vunpack.c.l.s4 1983009808
    %v5990 = vunpack.c.0.s8 %v5989
    %v5991 = vlaneseq
    %v5992 = vshrl.u32 %v5991, 7
    %v5993 = vsub.s32 %v5990, %v5992
    %v5994 = vrot.slane %v5980, %v5993
    %v5995 = vcombine.high %v5987, %v5987
    %v5996 = vcombine.high %v5994, %v5994
    %v6001 = vsel %vm2008, %v5987, 0.0
    %v6002 = vrot.slane %v6001, 4
    %v6003 = vadd.f32 %v6001, %v6002
    %v6004 = vrot.slane %v6003, 2
    %v6005 = vadd.f32 %v6003, %v6004
    %v6006 = vrot.slane %v6005, 1
    %v6007 = vadd.f32 %v6005, %v6006
    %v6008 = vsel %vm2008, %v5995, 0.0
    %v6009 = vrot.slane %v6008, 4
    %v6010 = vadd.f32 %v6008, %v6009
    %v6011 = vrot.slane %v6010, 2
    %v6012 = vadd.f32 %v6010, %v6011
    %v6013 = vrot.slane %v6012, 1
    %v6014 = vadd.f32 %v6012, %v6013
    %v6015 = vsel %vm2008, %v5994, 0.0
    %v6016 = vrot.slane %v6015, 4
    %v6017 = vadd.f32 %v6015, %v6016
    %v6018 = vrot.slane %v6017, 2
    %v6019 = vadd.f32 %v6017, %v6018
    %v6020 = vrot.slane %v6019, 1
    %v6021 = vadd.f32 %v6019, %v6020
    %v6022 = vsel %vm2008, %v5996, 0.0
    %v6023 = vrot.slane %v6022, 4
    %v6024 = vadd.f32 %v6022, %v6023
    %v6025 = vrot.slane %v6024, 2
    %v6026 = vadd.f32 %v6024, %v6025
    %v6027 = vrot.slane %v6026, 1
    %v6028 = vadd.f32 %v6026, %v6027
    %v6029 = vmul.f32 %v6007, %v2121
    %v6030 = vmul.f32 %v6014, %v2121
    %v6031 = vmul.f32 %v6021, %v2121
    %v6032 = vmul.f32 %v6028, %v2121
    %v6037 = vsel %vm2200, %v6030, %v6029
    %v6038 = vsel %vm2200, %v6032, %v6031
    %v6041 = vcombine.low %v6037, %v6038
    %v6043 = vunpack.c.l.s4 1934713408
    %v6044 = vunpack.c.0.s8 %v6043
    %v6045 = vlaneseq
    %v6046 = vshrl.u32 %v6045, 7
    %v6047 = vsub.s32 %v6044, %v6046
    %v6048 = vrot.slane %v6041, %v6047
    %v6049 = vcombine.high %v6048, 0.0
    %v6050 = vld [vmem:[#allocation7] sm:$0xf]
    %v6051 = vld [vmem:[#allocation7 + $0x4] sm:$0xf]
    %v6052 = vld [vmem:[#allocation7 + $0x8] sm:$0xf]
    %v6053 = vld [vmem:[#allocation7 + $0xc] sm:$0xf]
    %v6054 = vld [vmem:[#allocation7 + $0x10] sm:$0xf]
    %v6055 = vld [vmem:[#allocation7 + $0x14] sm:$0xf]
    %v6056 = vld [vmem:[#allocation7 + $0x18] sm:$0xf]
    %v6057 = vld [vmem:[#allocation7 + $0x1c] sm:$0xf]
    %v6058 = vld [vmem:[#allocation7 + $0x20] sm:$0xf]
    %v6059 = vld [vmem:[#allocation7 + $0x24] sm:$0xf]
    %v6060 = vld [vmem:[#allocation7 + $0x28] sm:$0xf]
    %v6061 = vld [vmem:[#allocation7 + $0x2c] sm:$0xf]
    %v6062 = vld [vmem:[#allocation7 + $0x30] sm:$0xf]
    %v6063 = vld [vmem:[#allocation7 + $0x34] sm:$0xf]
    %v6064 = vld [vmem:[#allocation7 + $0x38] sm:$0xf]
    %v6065 = vld [vmem:[#allocation7 + $0x3c] sm:$0xf]
    %v6066 = vld [vmem:[#allocation7 + $0x40] sm:$0xf]
    %v6067 = vld [vmem:[#allocation7 + $0x44] sm:$0xf]
    %v6068 = vld [vmem:[#allocation7 + $0x48] sm:$0xf]
    %v6069 = vld [vmem:[#allocation7 + $0x4c] sm:$0xf]
    %v6070 = vld [vmem:[#allocation7 + $0x50] sm:$0xf]
    %v6071 = vld [vmem:[#allocation7 + $0x54] sm:$0xf]
    %v6072 = vld [vmem:[#allocation7 + $0x58] sm:$0xf]
    %v6073 = vld [vmem:[#allocation7 + $0x5c] sm:$0xf]
    %v6074 = vld [vmem:[#allocation7 + $0x60] sm:$0xf]
    %v6075 = vld [vmem:[#allocation7 + $0x64] sm:$0xf]
    %v6076 = vld [vmem:[#allocation7 + $0x68] sm:$0xf]
    %v6077 = vld [vmem:[#allocation7 + $0x6c] sm:$0xf]
    %v6078 = vld [vmem:[#allocation7 + $0x70] sm:$0xf]
    %v6079 = vld [vmem:[#allocation7 + $0x74] sm:$0xf]
    %v6080 = vld [vmem:[#allocation7 + $0x78] sm:$0xf]
    %v6081 = vld [vmem:[#allocation7 + $0x7c] sm:$0xf]
    %v6082 = vld [vmem:[%s5 + $0x30] ss:$0 sm:$0xff]
    %v6083 = vpack.c.bf16 %v6048, %v6048
    %v6084 = vpack.c.bf16 %v6049, %v6049
    %v6117 = vunpack.c.l.b16 %v6050
    %v6118 = vunpack.c.l.b16 %v6051
    %v6119 = vunpack.c.l.b16 %v6052
    %v6120 = vunpack.c.l.b16 %v6053
    %v6121 = vunpack.c.l.b16 %v6054
    %v6122 = vunpack.c.l.b16 %v6055
    %v6123 = vunpack.c.l.b16 %v6056
    %v6124 = vunpack.c.l.b16 %v6057
    %v6125 = vunpack.c.l.b16 %v6058
    %v6126 = vunpack.c.l.b16 %v6059
    %v6127 = vunpack.c.l.b16 %v6060
    %v6128 = vunpack.c.l.b16 %v6061
    %v6129 = vunpack.c.l.b16 %v6062
    %v6130 = vunpack.c.l.b16 %v6063
    %v6131 = vunpack.c.l.b16 %v6064
    %v6132 = vunpack.c.l.b16 %v6065
    %v6133 = vunpack.c.l.b16 %v6066
    %v6134 = vunpack.c.l.b16 %v6067
    %v6135 = vunpack.c.l.b16 %v6068
    %v6136 = vunpack.c.l.b16 %v6069
    %v6137 = vunpack.c.l.b16 %v6070
    %v6138 = vunpack.c.l.b16 %v6071
    %v6139 = vunpack.c.l.b16 %v6072
    %v6140 = vunpack.c.l.b16 %v6073
    %v6141 = vunpack.c.l.b16 %v6074
    %v6142 = vunpack.c.l.b16 %v6075
    %v6143 = vunpack.c.l.b16 %v6076
    %v6144 = vunpack.c.l.b16 %v6077
    %v6145 = vunpack.c.l.b16 %v6078
    %v6146 = vunpack.c.l.b16 %v6079
    %v6147 = vunpack.c.l.b16 %v6080
    %v6148 = vunpack.c.l.b16 %v6081
    %v6149 = vpack.c.b16 %v6118, %v6117
    %v6150 = vpack.c.b16 %v6120, %v6119
    %v6151 = vpack.c.b16 %v6122, %v6121
    %v6152 = vpack.c.b16 %v6124, %v6123
    %v6153 = vpack.c.b16 %v6126, %v6125
    %v6154 = vpack.c.b16 %v6128, %v6127
    %v6155 = vpack.c.b16 %v6130, %v6129
    %v6156 = vpack.c.b16 %v6132, %v6131
    %v6157 = vpack.c.b16 %v6134, %v6133
    %v6158 = vpack.c.b16 %v6136, %v6135
    %v6159 = vpack.c.b16 %v6138, %v6137
    %v6160 = vpack.c.b16 %v6140, %v6139
    %v6161 = vpack.c.b16 %v6142, %v6141
    %v6162 = vpack.c.b16 %v6144, %v6143
    %v6163 = vpack.c.b16 %v6146, %v6145
    %v6164 = vpack.c.b16 %v6148, %v6147
    %6181 = vmatprep.subr.bf16.mxu0 0
    %6182 = vmatpush1.bf16.msra.mxu0 %v6149
    %6183 = vmatprep.subr.bf16.mxu0 0
    %6184 = vmatpush1.bf16.msra.mxu0 %v6150
    %6185 = vmatprep.subr.bf16.mxu0 0
    %6186 = vmatpush1.bf16.msra.mxu0 %v6151
    %6187 = vmatprep.subr.bf16.mxu0 0
    %6188 = vmatpush1.bf16.msra.mxu0 %v6152
    %6189 = vmatprep.subr.bf16.mxu0 0
    %6190 = vmatpush1.bf16.msra.mxu0 %v6153
    %6191 = vmatprep.subr.bf16.mxu0 0
    %6192 = vmatpush1.bf16.msra.mxu0 %v6154
    %6193 = vmatprep.subr.bf16.mxu0 0
    %6194 = vmatpush1.bf16.msra.mxu0 %v6155
    %6195 = vmatprep.subr.bf16.mxu0 0
    %6196 = vmatpush1.bf16.msra.mxu0 %v6156
    %6197 = vmatprep.subr.bf16.mxu0 0
    %6198 = vmatpush1.bf16.msra.mxu0 %v6157
    %6199 = vmatprep.subr.bf16.mxu0 0
    %6200 = vmatpush1.bf16.msra.mxu0 %v6158
    %6201 = vmatprep.subr.bf16.mxu0 0
    %6202 = vmatpush1.bf16.msra.mxu0 %v6159
    %6203 = vmatprep.subr.bf16.mxu0 0
    %6204 = vmatpush1.bf16.msra.mxu0 %v6160
    %6205 = vmatprep.subr.bf16.mxu0 0
    %6206 = vmatpush1.bf16.msra.mxu0 %v6161
    %6207 = vmatprep.subr.bf16.mxu0 0
    %6208 = vmatpush1.bf16.msra.mxu0 %v6162
    %6209 = vmatprep.subr.bf16.mxu0 0
    %6210 = vmatpush1.bf16.msra.mxu0 %v6163
    %6211 = vmatprep.subr.bf16.mxu0 0
    %6212 = vmatpush1.bf16.msra.mxu0 %v6164
    %6213 = vmatprep.mubr.bf16.mxu0 %v6084
    %6214 = vmatmul.mubr.bf16.gmra.mrb[0].mxu0 %v6083
    %v6215 = vpop.f32.mrb[0].mxu0
    %v6216 = vadd.f32 %v6082, %v6215
    %v6217 = vpop.f32.mrb[0].mxu0
    %v6218 = vpop.f32.mrb[0].mxu0
    %v6219 = vpop.f32.mrb[0].mxu0
    %6220 = vdwg.mxu0
    %v6221 = vmax.f32 %v6216, 0.0
    %v6222 = vld [vmem:[#allocation7 + $0x80] sm:$0xf]
    %v6223 = vld [vmem:[#allocation7 + $0x84] sm:$0xf]
    %v6224 = vld [vmem:[#allocation7 + $0x88] sm:$0xf]
    %v6225 = vld [vmem:[#allocation7 + $0x8c] sm:$0xf]
    %v6226 = vld [vmem:[#allocation7 + $0x90] sm:$0xf]
    %v6227 = vld [vmem:[#allocation7 + $0x94] sm:$0xf]
    %v6228 = vld [vmem:[#allocation7 + $0x98] sm:$0xf]
    %v6229 = vld [vmem:[#allocation7 + $0x9c] sm:$0xf]
    %v6230 = vld [vmem:[#allocation7 + $0xa0] sm:$0xf]
    %v6231 = vld [vmem:[#allocation7 + $0xa4] sm:$0xf]
    %v6232 = vld [vmem:[#allocation7 + $0xa8] sm:$0xf]
    %v6233 = vld [vmem:[#allocation7 + $0xac] sm:$0xf]
    %v6234 = vld [vmem:[#allocation7 + $0xb0] sm:$0xf]
    %v6235 = vld [vmem:[#allocation7 + $0xb4] sm:$0xf]
    %v6236 = vld [vmem:[#allocation7 + $0xb8] sm:$0xf]
    %v6237 = vld [vmem:[#allocation7 + $0xbc] sm:$0xf]
    %v6238 = vld [vmem:[%s5 + $0x31] ss:$0 sm:$0xff]
    %v6239 = vpack.c.bf16 %v6221, %v6221
    %v6256 = vunpack.c.l.b16 %v6222
    %v6257 = vunpack.c.l.b16 %v6223
    %v6258 = vunpack.c.l.b16 %v6224
    %v6259 = vunpack.c.l.b16 %v6225
    %v6260 = vunpack.c.l.b16 %v6226
    %v6261 = vunpack.c.l.b16 %v6227
    %v6262 = vunpack.c.l.b16 %v6228
    %v6263 = vunpack.c.l.b16 %v6229
    %v6264 = vunpack.c.l.b16 %v6230
    %v6265 = vunpack.c.l.b16 %v6231
    %v6266 = vunpack.c.l.b16 %v6232
    %v6267 = vunpack.c.l.b16 %v6233
    %v6268 = vunpack.c.l.b16 %v6234
    %v6269 = vunpack.c.l.b16 %v6235
    %v6270 = vunpack.c.l.b16 %v6236
    %v6271 = vunpack.c.l.b16 %v6237
    %v6272 = vpack.c.b16 %v6257, %v6256
    %v6273 = vpack.c.b16 %v6259, %v6258
    %v6274 = vpack.c.b16 %v6261, %v6260
    %v6275 = vpack.c.b16 %v6263, %v6262
    %v6276 = vpack.c.b16 %v6265, %v6264
    %v6277 = vpack.c.b16 %v6267, %v6266
    %v6278 = vpack.c.b16 %v6269, %v6268
    %v6279 = vpack.c.b16 %v6271, %v6270
    %6288 = vmatprep.subr.bf16.mxu0 0
    %6289 = vmatpush1.bf16.msra.mxu0 %v6272
    %6290 = vmatprep.subr.bf16.mxu0 0
    %6291 = vmatpush1.bf16.msra.mxu0 %v6273
    %6292 = vmatprep.subr.bf16.mxu0 0
    %6293 = vmatpush1.bf16.msra.mxu0 %v6274
    %6294 = vmatprep.subr.bf16.mxu0 0
    %6295 = vmatpush1.bf16.msra.mxu0 %v6275
    %6296 = vmatprep.subr.bf16.mxu0 0
    %6297 = vmatpush1.bf16.msra.mxu0 %v6276
    %6298 = vmatprep.subr.bf16.mxu0 0
    %6299 = vmatpush1.bf16.msra.mxu0 %v6277
    %6300 = vmatprep.subr.bf16.mxu0 0
    %6301 = vmatpush1.bf16.msra.mxu0 %v6278
    %6302 = vmatprep.subr.bf16.mxu0 0
    %6303 = vmatpush1.bf16.msra.mxu0 %v6279
    %6304 = vmatprep.subr.bf16.mxu0 0
    %6305 = vmatpush1.bf16.msra.mxu0 0
    %6306 = vmatprep.subr.bf16.mxu0 0
    %6307 = vmatpush1.bf16.msra.mxu0 0
    %6308 = vmatprep.subr.bf16.mxu0 0
    %6309 = vmatpush1.bf16.msra.mxu0 0
    %6310 = vmatprep.subr.bf16.mxu0 0
    %6311 = vmatpush1.bf16.msra.mxu0 0
    %6312 = vmatprep.subr.bf16.mxu0 0
    %6313 = vmatpush1.bf16.msra.mxu0 0
    %6314 = vmatprep.subr.bf16.mxu0 0
    %6315 = vmatpush1.bf16.msra.mxu0 0
    %6316 = vmatprep.subr.bf16.mxu0 0
    %6317 = vmatpush1.bf16.msra.mxu0 0
    %6318 = vmatprep.subr.bf16.mxu0 0
    %6319 = vmatpush1.bf16.msra.mxu0 0
    %6320 = vmatprep.mubr.bf16.mxu0 0
    %6321 = vmatmul.mubr.bf16.gmra.mrb[0].mxu0 %v6239
    %v6322 = vpop.f32.mrb[0].mxu0
    %v6323 = vadd.f32 %v6238, %v6322
    %v6324 = vpop.f32.mrb[0].mxu0
    %v6325 = vpop.f32.mrb[0].mxu0
    %v6326 = vpop.f32.mrb[0].mxu0
    %6327 = vdwg.mxu0
    %v6328 = vmax.f32 %v6323, 0.0
    %v6329 = vld [vmem:[#allocation7 + $0xc0] sm:$0xf]
    %v6330 = vld [vmem:[#allocation7 + $0xc4] sm:$0xf]
    %v6331 = vld [vmem:[#allocation7 + $0xc8] sm:$0xf]
    %v6332 = vld [vmem:[#allocation7 + $0xcc] sm:$0xf]
    %v6333 = vld [vmem:[#allocation7 + $0xd0] sm:$0xf]
    %v6334 = vld [vmem:[#allocation7 + $0xd4] sm:$0xf]
    %v6335 = vld [vmem:[#allocation7 + $0xd8] sm:$0xf]
    %v6336 = vld [vmem:[#allocation7 + $0xdc] sm:$0xf]
    %v6337 = vld [vmem:[#allocation7 + $0xe0] sm:$0xf]
    %v6338 = vld [vmem:[#allocation7 + $0xe4] sm:$0xf]
    %v6339 = vld [vmem:[#allocation7 + $0xe8] sm:$0xf]
    %v6340 = vld [vmem:[#allocation7 + $0xec] sm:$0xf]
    %v6341 = vld [vmem:[#allocation7 + $0xf0] sm:$0xf]
    %v6342 = vld [vmem:[#allocation7 + $0xf4] sm:$0xf]
    %v6343 = vld [vmem:[#allocation7 + $0xf8] sm:$0xf]
    %v6344 = vld [vmem:[#allocation7 + $0xfc] sm:$0xf]
    %v6345 = vld [vmem:[%s5 + $0x32] ss:$0 sm:$0xff]
    %v6346 = vpack.c.bf16 %v6328, %v6328
    %v6363 = vunpack.c.l.b16 %v6329
    %v6364 = vunpack.c.l.b16 %v6330
    %v6365 = vunpack.c.l.b16 %v6331
    %v6366 = vunpack.c.l.b16 %v6332
    %v6367 = vunpack.c.l.b16 %v6333
    %v6368 = vunpack.c.l.b16 %v6334
    %v6369 = vunpack.c.l.b16 %v6335
    %v6370 = vunpack.c.l.b16 %v6336
    %v6371 = vunpack.c.l.b16 %v6337
    %v6372 = vunpack.c.l.b16 %v6338
    %v6373 = vunpack.c.l.b16 %v6339
    %v6374 = vunpack.c.l.b16 %v6340
    %v6375 = vunpack.c.l.b16 %v6341
    %v6376 = vunpack.c.l.b16 %v6342
    %v6377 = vunpack.c.l.b16 %v6343
    %v6378 = vunpack.c.l.b16 %v6344
    %v6379 = vpack.c.b16 %v6364, %v6363
    %v6380 = vpack.c.b16 %v6366, %v6365
    %v6381 = vpack.c.b16 %v6368, %v6367
    %v6382 = vpack.c.b16 %v6370, %v6369
    %v6383 = vpack.c.b16 %v6372, %v6371
    %v6384 = vpack.c.b16 %v6374, %v6373
    %v6385 = vpack.c.b16 %v6376, %v6375
    %v6386 = vpack.c.b16 %v6378, %v6377
    %6395 = vmatprep.subr.bf16.mxu0 0
    %6396 = vmatpush1.bf16.msra.mxu0 %v6379
    %6397 = vmatprep.subr.bf16.mxu0 0
    %6398 = vmatpush1.bf16.msra.mxu0 %v6380
    %6399 = vmatprep.subr.bf16.mxu0 0
    %6400 = vmatpush1.bf16.msra.mxu0 %v6381
    %6401 = vmatprep.subr.bf16.mxu0 0
    %6402 = vmatpush1.bf16.msra.mxu0 %v6382
    %6403 = vmatprep.subr.bf16.mxu0 0
    %6404 = vmatpush1.bf16.msra.mxu0 %v6383
    %6405 = vmatprep.subr.bf16.mxu0 0
    %6406 = vmatpush1.bf16.msra.mxu0 %v6384
    %6407 = vmatprep.subr.bf16.mxu0 0
    %6408 = vmatpush1.bf16.msra.mxu0 %v6385
    %6409 = vmatprep.subr.bf16.mxu0 0
    %6410 = vmatpush1.bf16.msra.mxu0 %v6386
    %6411 = vmatprep.subr.bf16.mxu0 0
    %6412 = vmatpush1.bf16.msra.mxu0 0
    %6413 = vmatprep.subr.bf16.mxu0 0
    %6414 = vmatpush1.bf16.msra.mxu0 0
    %6415 = vmatprep.subr.bf16.mxu0 0
    %6416 = vmatpush1.bf16.msra.mxu0 0
    %6417 = vmatprep.subr.bf16.mxu0 0
    %6418 = vmatpush1.bf16.msra.mxu0 0
    %6419 = vmatprep.subr.bf16.mxu0 0
    %6420 = vmatpush1.bf16.msra.mxu0 0
    %6421 = vmatprep.subr.bf16.mxu0 0
    %6422 = vmatpush1.bf16.msra.mxu0 0
    %6423 = vmatprep.subr.bf16.mxu0 0
    %6424 = vmatpush1.bf16.msra.mxu0 0
    %6425 = vmatprep.subr.bf16.mxu0 0
    %6426 = vmatpush1.bf16.msra.mxu0 0
    %6427 = vmatprep.mubr.bf16.mxu0 0
    %6428 = vmatmul.mubr.bf16.gmra.mrb[0].mxu0 %v6346
    %v6429 = vpop.f32.mrb[0].mxu0
    %v6430 = vadd.f32 %v6345, %v6429
    %v6431 = vpop.f32.mrb[0].mxu0
    %v6432 = vpop.f32.mrb[0].mxu0
    %v6433 = vpop.f32.mrb[0].mxu0
    %6434 = vdwg.mxu0
    %v6435 = vsub.f32 0.0, %v6430
    %v6436 = vmul.f32 %v6435, 1.442695
    %v6437 = vpow.pop %v6436
    %v6438 = vadd.f32 %v6437, 1.0
    %v6439 = vrcp.pop %v6438
    %vm6440 = vcmask 1024
    %6441 = vst.msk [vmem:[%s6] sm:$0x3] %vm6440, %v6439
    // Predicated region
    $region42: #{tpu_custom_call.1} parent=1 // pred_check
      _
    $region43: #{tpu_custom_call.1} parent=1 // pred_check_branch
      %6443 = sbr.rel (0) target = $region45
    $region44: #{tpu_custom_call.1} parent=1 // pred_region
      _
    $region45: #{tpu_custom_call.1} parent=1 // pred_fallthru
      _
    // Predicated region
    $region46: #{tpu_custom_call.1} parent=1 // pred_check
      _
    $region47: #{tpu_custom_call.1} parent=1 // pred_check_branch
      %6445 = sbr.rel (0) target = $region49
    $region48: #{tpu_custom_call.1} parent=1 // pred_region
      _
    $region49: #{tpu_custom_call.1} parent=1 // pred_fallthru
      _
    %6446 = vsyncpa [#allocation3], 1
    %6447 = vsyncpa [#allocation5], 1
    %6448 = vsyncpa [#allocation8], 1

</llo_original>
